<compile_context>
chip_gen: v5e
topology: v5e:2x2
jax: 0.10.0
libtpu: 0.0.40
codegen_flags: <defaults>
</compile_context>

<pallas_src>
import functools

import jax
import jax.numpy as jnp
from jax import lax
from jax.experimental import pallas as pl
from jax.experimental.pallas import tpu as pltpu


def _round_up(x, m):
    return ((x + m - 1) // m) * m


def _device_kind():
    try:
        return jax.devices()[0].device_kind.lower()
    except Exception:  # pragma: no cover - defensive only
        return ""


_KIND = _device_kind()
# v5e has no bf16 VPU/EUP -> keep elementwise epilogues in f32 there; v6e/v7x
# execute bf16 on the VALU, halving epilogue width and vreg pressure.
_EPILOGUE_DTYPE = jnp.float32 if "v5" in _KIND else jnp.bfloat16
# v5e/v6e have 1 TensorCore -> a single head-conv grid step avoids ~0.35us/step
# pipeline overhead; other chips (v7x: 2 TCs) get a 2-way parallel M split.
_HEAD_M_BLOCKS = 1 if ("v5" in _KIND or "v6" in _KIND) else 2


def _leaky(v, slope):
    return jnp.where(v > 0, v, slope * v)


# ---------------------------------------------------------------------------
# Kernel 1: matmul + bias + LeakyReLU (head conv).  M-tiled, single K/N block.
# ---------------------------------------------------------------------------
def _mm_bias_leaky_kernel(x_ref, w_ref, b_ref, o_ref, *, slope, cdt):
    y = jnp.dot(x_ref[...], w_ref[...], preferred_element_type=jnp.float32)
    y = (y + b_ref[...]).astype(cdt)
    o_ref[...] = _leaky(y, slope).astype(o_ref.dtype)


# ---------------------------------------------------------------------------
# Kernel 2: conv-matmul + BatchNorm(batch statistics) + LeakyReLU(0.2)
# fused in a single whole-layer block (per DiscLayer).  No bias (BN cancels it).
# ---------------------------------------------------------------------------
def _conv_bn_leaky_kernel(x_ref, w_ref, o_ref, *, m_rows, eps, slope, cdt):
    y = jnp.dot(x_ref[...], w_ref[...], preferred_element_type=jnp.float32)
    # One-pass batch statistics over rows (= N*H*W), f32.
    inv_m = 1.0 / float(m_rows)
    mean = jnp.sum(y, axis=0, keepdims=True) * inv_m
    ex2 = jnp.sum(y * y, axis=0, keepdims=True) * inv_m
    var = jnp.maximum(ex2 - mean * mean, 0.0)          # clamp: bf16 products
    scale = lax.rsqrt(var + eps)                        # BN weight=1, bias=0
    yn = (y.astype(cdt) - mean.astype(cdt)) * scale.astype(cdt)
    o_ref[...] = _leaky(yn, slope).astype(o_ref.dtype)


# ---------------------------------------------------------------------------
# Kernel 3: fused FC head:  sigmoid(leaky02(x @ W1 + b1) @ W2 + b2)
# ---------------------------------------------------------------------------
def _fc_fused_kernel(x_ref, w1_ref, b1_ref, w2_ref, b2_ref, o_ref, *, cdt):
    h = jnp.dot(x_ref[...], w1_ref[...], preferred_element_type=jnp.float32)
    h = _leaky((h + b1_ref[...]).astype(cdt), 0.2)
    z = jnp.dot(h.astype(w2_ref.dtype), w2_ref[...],
                preferred_element_type=jnp.float32) + b2_ref[...]
    o_ref[...] = jax.nn.sigmoid(z)


# ---------------------------------------------------------------------------
# Patch extraction (3x3, pad=1) — one XLA op, columns ordered c*9 + kh*3 + kw.
# ---------------------------------------------------------------------------
def conv_patches(x_nhwc, stride):
    # TODO(synk): replace with an in-kernel pl.ds patch gather from an NHWC
    # VMEM block to remove the 9x patch-matrix HBM blow-up entirely.
    pat = lax.conv_general_dilated_patches(
        x_nhwc, (3, 3), (stride, stride), ((1, 1), (1, 1)),
        dimension_numbers=("NHWC", "HWIO", "NHWC"))
    B, Ho, Wo, K = pat.shape
    return pat.reshape(B * Ho * Wo, K), (B, Ho, Wo)


# ---------------------------------------------------------------------------
# One-time weight packing (hoisted out of the forward pass)
# ---------------------------------------------------------------------------
def _pack_conv_weight(w_torch, cin_store):
    """(Cout,Cin,3,3) -> bf16 (Kp,Np); row = c*9 + kh*3 + kw matching patches,
    with input channels zero-padded to the stored (lane-padded) count and
    output channels zero-padded to a lane multiple."""
    cout, cin = w_torch.shape[0], w_torch.shape[1]
    np_ = _round_up(cout, 128)
    w2 = jnp.transpose(w_torch, (1, 2, 3, 0))               # (Cin,KH,KW,Cout)
    w2 = jnp.pad(w2, ((0, cin_store - cin), (0, 0), (0, 0), (0, np_ - cout)))
    w2 = w2.reshape(9 * cin_store, np_)
    kp = _round_up(9 * cin_store, 128)
    if kp != 9 * cin_store:
        w2 = jnp.pad(w2, ((0, kp - 9 * cin_store), (0, 0)))
    return w2.astype(jnp.bfloat16)


def _pack_bias(b, np_):
    return jnp.pad(b, (0, np_ - b.shape[0])).reshape(1, np_).astype(jnp.float32)


def pack_params(params, spatial):
    assert spatial % 16 == 0
    in_ch = params["conv_w"].shape[1]

    head_w = _pack_conv_weight(params["conv_w"], cin_store=in_ch)
    head_b = _pack_bias(params["conv_b"], head_w.shape[1])

    layers = []
    cin_store = head_w.shape[1]                   # lane-padded channel count
    for w in params["layer_w"]:                   # biases are dead under BN
        lw = _pack_conv_weight(w, cin_store=cin_store)
        layers.append(lw)
        cin_store = lw.shape[1]

    # fc1: permute rows from torch NCHW-flatten order to our NHWC lane-padded
    # flatten order (h, w, c_padded), so the forward needs no transpose.
    c_f = params["layer_w"][-1].shape[0]
    cp_f = _round_up(c_f, 128)
    h_f = w_f = spatial // 16                     # four stride-2 layers
    n1 = params["fc1_w"].shape[1]
    w1 = params["fc1_w"].reshape(c_f, h_f, w_f, n1)
    w1 = jnp.transpose(w1, (1, 2, 0, 3))
    w1 = jnp.pad(w1, ((0, 0), (0, 0), (0, cp_f - c_f), (0, 0)))
    k1 = h_f * w_f * cp_f
    w1 = w1.reshape(k1, n1)
    k1p, n1p = _round_up(k1, 128), _round_up(n1, 128)
    w1p = jnp.pad(w1, ((0, k1p - k1), (0, n1p - n1))).astype(jnp.bfloat16)
    b1p = _pack_bias(params["fc1_b"], n1p)

    n2 = params["fc2_w"].shape[1]
    n2p = _round_up(n2, 128)
    w2p = jnp.pad(params["fc2_w"],
                  ((0, n1p - n1), (0, n2p - n2))).astype(jnp.bfloat16)
    b2p = _pack_bias(params["fc2_b"], n2p)

    return {"head": (head_w, head_b), "layers": tuple(layers),
            "fc": (w1p, b1p, w2p, b2p, n2)}


# ---------------------------------------------------------------------------
# Layer wrappers
# ---------------------------------------------------------------------------
def conv_head(x_nhwc, wp, bp):
    """Head conv (stride 1) + LeakyReLU(0.1); output in lane-padded layout."""
    pat, (B, Ho, Wo) = conv_patches(x_nhwc, stride=1)
    M, K = pat.shape
    Kp, Np = wp.shape
    if Kp != K:                      # only the 3-channel head needs K padding
        pat = jnp.pad(pat, ((0, 0), (0, Kp - K)))
    assert M % 8 == 0, "head rows must be sublane aligned"
    nm = _HEAD_M_BLOCKS if (M >= 1024 and M % (_HEAD_M_BLOCKS * 8) == 0) else 1
    tm = M // nm
    out = pl.pallas_call(
        functools.partial(_mm_bias_leaky_kernel, slope=0.1, cdt=_EPILOGUE_DTYPE),
        out_shape=jax.ShapeDtypeStruct((M, Np), jnp.bfloat16),
        grid_spec=pltpu.PrefetchScalarGridSpec(
            num_scalar_prefetch=0,
            grid=(nm,),
            in_specs=[pl.BlockSpec((tm, Kp), lambda i: (i, 0)),
                      pl.BlockSpec((Kp, Np), lambda i: (0, 0)),
                      pl.BlockSpec((1, Np), lambda i: (0, 0))],
            out_specs=pl.BlockSpec((tm, Np), lambda i: (i, 0))),
        compiler_params=pltpu.CompilerParams(
            dimension_semantics=("parallel",)),
    )(pat, wp, bp)
    return out.reshape(B, Ho, Wo, Np)


def conv_bn_leaky(x_nhwc, wp, stride, eps=1e-5):
    """DiscLayer: conv -> BatchNorm(batch stats) -> LeakyReLU(0.2), one call.

    Whole-layer single block (<~2 MB at these shapes, far under scoped VMEM on
    v5e/v6e/v7x).
    TODO(synk): M-tiled two-pass BN (partial sum/sumsq per block) for large
    activations and to split M across v7x's 2 TensorCores.
    """
    pat, (B, Ho, Wo) = conv_patches(x_nhwc, stride)
    M, K = pat.shape
    Kp, Np = wp.shape
    assert K == Kp, (K, Kp)
    assert M % 8 == 0, "BN rows must be sublane aligned (pad the batch)"
    out = pl.pallas_call(
        functools.partial(_conv_bn_leaky_kernel, m_rows=M, eps=eps, slope=0.2,
                          cdt=_EPILOGUE_DTYPE),
        out_shape=jax.ShapeDtypeStruct((M, Np), jnp.bfloat16),
        grid_spec=pltpu.PrefetchScalarGridSpec(
            num_scalar_prefetch=0,
            grid=(1,),
            in_specs=[pl.BlockSpec((M, Kp), lambda i: (0, 0)),
                      pl.BlockSpec((Kp, Np), lambda i: (0, 0))],
            out_specs=pl.BlockSpec((M, Np), lambda i: (0, 0))),
        compiler_params=pltpu.CompilerParams(
            dimension_semantics=("arbitrary",)),
    )(pat, wp)
    return out.reshape(B, Ho, Wo, Np)


def fc_head(flat, w1p, b1p, w2p, b2p, n_out):
    """fc1 + LeakyReLU(0.2) + fc2 + Sigmoid fused; hidden stays in VMEM."""
    M, K = flat.shape
    Mp = max(_round_up(M, 8), 8)
    K1p, N1 = w1p.shape
    _, N2p = w2p.shape
    xp = flat
    if Mp != M or K1p != K:
        xp = jnp.pad(flat, ((0, Mp - M), (0, K1p - K)))
    out = pl.pallas_call(
        functools.partial(_fc_fused_kernel, cdt=_EPILOGUE_DTYPE),
        out_shape=jax.ShapeDtypeStruct((Mp, N2p), jnp.float32),
        grid_spec=pltpu.PrefetchScalarGridSpec(
            num_scalar_prefetch=0,
            grid=(1,),
            in_specs=[pl.BlockSpec((Mp, K1p), lambda i: (0, 0)),
                      pl.BlockSpec((K1p, N1), lambda i: (0, 0)),
                      pl.BlockSpec((1, N1), lambda i: (0, 0)),
                      pl.BlockSpec((N1, N2p), lambda i: (0, 0)),
                      pl.BlockSpec((1, N2p), lambda i: (0, 0))],
            out_specs=pl.BlockSpec((Mp, N2p), lambda i: (0, 0))),
        compiler_params=pltpu.CompilerParams(
            dimension_semantics=("arbitrary",)),
    )(xp, w1p, b1p, w2p, b2p)
    return out[:M, :n_out]


# ---------------------------------------------------------------------------
# Discriminator
# ---------------------------------------------------------------------------
LAYER_STRIDES = (2, 1, 2, 1, 2, 1, 2)


def init_params(key, in_channels=3, hid=16, spatial=32, fc1_out=1024):
    chans = [(hid, hid), (hid, 2 * hid), (2 * hid, 2 * hid),
             (2 * hid, 4 * hid), (4 * hid, 4 * hid),
             (4 * hid, 8 * hid), (8 * hid, 8 * hid)]
    keys = jax.random.split(key, 2 + 2 * len(chans) + 4)
    ki = iter(keys)

    def conv_init(k, cout, cin):
        scale = 1.0 / jnp.sqrt(9.0 * cin)
        return scale * jax.random.normal(k, (cout, cin, 3, 3), jnp.float32)

    params = {
        "conv_w": conv_init(next(ki), hid, in_channels),
        "conv_b": 0.01 * jax.random.normal(next(ki), (hid,), jnp.float32),
        "layer_w": [],
        "layer_b": [],
    }
    for cin, cout in chans:
        params["layer_w"].append(conv_init(next(ki), cout, cin))
        params["layer_b"].append(
            0.01 * jax.random.normal(next(ki), (cout,), jnp.float32))

    flat = 8 * hid * (spatial // 16) ** 2
    params["fc1_w"] = (1.0 / jnp.sqrt(flat)) * jax.random.normal(
        next(ki), (flat, fc1_out), jnp.float32)
    params["fc1_b"] = 0.01 * jax.random.normal(next(ki), (fc1_out,), jnp.float32)
    params["fc2_w"] = (1.0 / jnp.sqrt(fc1_out)) * jax.random.normal(
        next(ki), (fc1_out, 1), jnp.float32)
    params["fc2_b"] = 0.01 * jax.random.normal(next(ki), (1,), jnp.float32)
    return params


def discriminator_forward(packed, x_nchw):
    x = jnp.transpose(x_nchw, (0, 2, 3, 1)).astype(jnp.bfloat16)   # -> NHWC

    # head conv + LeakyReLU(0.1); activations stay lane-padded from here on.
    x = conv_head(x, *packed["head"])

    # 7 DiscLayers: conv -> BatchNorm(batch stats) -> LeakyReLU(0.2), fused.
    for wp, stride in zip(packed["layers"], LAYER_STRIDES):
        x = conv_bn_leaky(x, wp, stride)

    # NHWC flatten: fc1 rows were permuted/padded at pack time, no transpose.
    flat = x.reshape(x.shape[0], -1)

    return fc_head(flat, *packed["fc"])                            # (B, 1)


# ---------------------------------------------------------------------------
# Pure-JAX reference: real lax convs (independent of the Pallas patch/packing
# path) with the same bf16-operand / f32-accumulate / epilogue-dtype policy.
# Matches the PyTorch module in training-mode BN (batch stats, gamma=1, beta=0).
# ---------------------------------------------------------------------------
def reference_forward(params, x_nchw, eps=1e-5, cdt=_EPILOGUE_DTYPE):
    bf = jnp.bfloat16

    def conv(xb, w, b, stride):
        wk = jnp.transpose(w, (2, 3, 1, 0)).astype(bf)             # HWIO
        y = lax.conv_general_dilated(
            xb, wk, (stride, stride), ((1, 1), (1, 1)),
            dimension_numbers=("NHWC", "HWIO", "NHWC"),
            preferred_element_type=jnp.float32)
        return y + b

    x = jnp.transpose(x_nchw, (0, 2, 3, 1)).astype(bf)
    y = conv(x, params["conv_w"], params["conv_b"], 1)
    x = _leaky(y.astype(cdt), 0.1).astype(bf)
    for lw, lb, stride in zip(params["layer_w"], params["layer_b"],
                              LAYER_STRIDES):
        y = conv(x, lw, lb, stride)
        mean = y.mean(axis=(0, 1, 2), keepdims=True)
        var = jnp.maximum((y * y).mean(axis=(0, 1, 2), keepdims=True)
                          - mean * mean, 0.0)
        scale = lax.rsqrt(var + eps)
        yn = (y.astype(cdt) - mean.astype(cdt)) * scale.astype(cdt)
        x = _leaky(yn, 0.2).astype(bf)
    flat = jnp.transpose(x, (0, 3, 1, 2)).reshape(x.shape[0], -1)   # torch order
    h = jnp.dot(flat, params["fc1_w"].astype(bf),
                preferred_element_type=jnp.float32) + params["fc1_b"]
    h = _leaky(h.astype(cdt), 0.2).astype(bf)
    z = jnp.dot(h, params["fc2_w"].astype(bf),
                preferred_element_type=jnp.float32) + params["fc2_b"]
    return jax.nn.sigmoid(z)


if __name__ == "__main__":
    key = jax.random.PRNGKey(0)
    k_param, k_input = jax.random.split(key)

    B, C_IN, HID, SPATIAL = 2, 3, 16, 32          # small test shapes
    params = init_params(k_param, in_channels=C_IN, hid=HID, spatial=SPATIAL)
    packed = pack_params(params, spatial=SPATIAL)  # one-time weight packing
    x = jax.random.normal(k_input, (B, C_IN, SPATIAL, SPATIAL), jnp.float32)

    fwd = jax.jit(functools.partial(discriminator_forward, packed))
    out = jax.block_until_ready(fwd(x))
    ref = jax.block_until_ready(reference_forward(params, x))

    assert out.shape == (B, 1), out.shape
    assert bool(jnp.all(jnp.isfinite(out)))
    assert bool(jnp.allclose(out, ref, atol=2.5e-2)), (out, ref)
    print("KERNEL_OK")
</pallas_src>

<mosaic_0001>
module attributes {stable_mosaic.version = 11 : i64} {
  func.func @_mm_bias_leaky_kernel(%arg0: i32, %arg1: memref<1024x128xbf16, #tpu.memory_space<vmem>>, %arg2: memref<128x128xbf16, #tpu.memory_space<vmem>>, %arg3: memref<1x128xf32, #tpu.memory_space<vmem>>, %arg4: memref<1024x128xbf16, #tpu.memory_space<vmem>>) attributes {dimension_semantics = [#tpu.dimension_semantics<parallel>], iteration_bounds = array<i64: 2>, scalar_prefetch = 0 : i64, scratch_operands = 0 : i64, tpu.core_type = #tpu.core_type<tc>, window_params = [{transform_indices = @transform_0, window_bounds = array<i64: 1024, 128>}, {pipeline_mode = #tpu.pipeline_mode<synchronous>, transform_indices = @transform_1, window_bounds = array<i64: 128, 128>}, {pipeline_mode = #tpu.pipeline_mode<synchronous>, transform_indices = @transform_2, window_bounds = array<i64: 1, 128>}, {transform_indices = @transform_3, window_bounds = array<i64: 1024, 128>}]} {
    %c0 = arith.constant 0 : index
    %c0_0 = arith.constant 0 : index
    %0 = vector.load %arg1[%c0, %c0_0] : memref<1024x128xbf16, #tpu.memory_space<vmem>>, vector<1024x128xbf16>
    %c0_1 = arith.constant 0 : index
    %c0_2 = arith.constant 0 : index
    %1 = vector.load %arg2[%c0_1, %c0_2] : memref<128x128xbf16, #tpu.memory_space<vmem>>, vector<128x128xbf16>
    %cst = arith.constant dense<0.000000e+00> : vector<1024x128xf32>
    %2 = tpu.matmul %0, %1, %cst {dimension_numbers = #tpu.dot_dimension_numbers<[1], [0], [0], [1], [0, 0, 1, 1], [], []>} : vector<1024x128xbf16>, vector<128x128xbf16>, vector<1024x128xf32> -> vector<1024x128xf32>
    %c0_3 = arith.constant 0 : index
    %c0_4 = arith.constant 0 : index
    %3 = vector.load %arg3[%c0_3, %c0_4] : memref<1x128xf32, #tpu.memory_space<vmem>>, vector<1x128xf32>
    %4 = vector.broadcast %3 : vector<1x128xf32> to vector<1024x128xf32>
    %5 = arith.addf %2, %4 : vector<1024x128xf32>
    %6 = arith.truncf %5 : vector<1024x128xf32> to vector<1024x128xbf16>
    %cst_5 = arith.constant 0.000000e+00 : bf16
    %7 = vector.broadcast %cst_5 : bf16 to vector<1024x128xbf16>
    %8 = arith.cmpf ogt, %6, %7 : vector<1024x128xbf16>
    %cst_6 = arith.constant 1.000980e-01 : bf16
    %9 = vector.broadcast %cst_6 : bf16 to vector<1024x128xbf16>
    %10 = arith.mulf %9, %6 : vector<1024x128xbf16>
    %11 = arith.select %8, %6, %10 : vector<1024x128xi1>, vector<1024x128xbf16>
    %c0_7 = arith.constant 0 : index
    %c0_8 = arith.constant 0 : index
    %12 = vector.load %arg4[%c0_7, %c0_8] : memref<1024x128xbf16, #tpu.memory_space<vmem>>, vector<1024x128xbf16>
    tpu.vector_store %arg4[%c0_7, %c0_8], %11 {strides = array<i32>} : memref<1024x128xbf16, #tpu.memory_space<vmem>>, vector<1024x128xbf16>,
    return
  }
  func.func @transform_0(%arg0: i32) -> (i32, i32) {
    %c0_i32 = arith.constant 0 : i32
    %c0_i32_0 = arith.constant 0 : i32
    return %arg0, %c0_i32 : i32, i32
  }
  func.func @transform_1(%arg0: i32) -> (i32, i32) {
    %c0_i32 = arith.constant 0 : i32
    %c0_i32_0 = arith.constant 0 : i32
    %c0_i32_1 = arith.constant 0 : i32
    return %c0_i32, %c0_i32_0 : i32, i32
  }
  func.func @transform_2(%arg0: i32) -> (i32, i32) {
    %c0_i32 = arith.constant 0 : i32
    %c0_i32_0 = arith.constant 0 : i32
    %c0_i32_1 = arith.constant 0 : i32
    return %c0_i32, %c0_i32_0 : i32, i32
  }
  func.func @transform_3(%arg0: i32) -> (i32, i32) {
    %c0_i32 = arith.constant 0 : i32
    %c0_i32_0 = arith.constant 0 : i32
    return %arg0, %c0_i32 : i32, i32
  }
}

module attributes {stable_mosaic.version = 11 : i64} {
  func.func @_conv_bn_leaky_kernel(%arg0: i32, %arg1: memref<512x1152xbf16, #tpu.memory_space<vmem>>, %arg2: memref<1152x128xbf16, #tpu.memory_space<vmem>>, %arg3: memref<512x128xbf16, #tpu.memory_space<vmem>>) attributes {dimension_semantics = [#tpu.dimension_semantics<arbitrary>], iteration_bounds = array<i64: 1>, scalar_prefetch = 0 : i64, scratch_operands = 0 : i64, tpu.core_type = #tpu.core_type<tc>, window_params = [{pipeline_mode = #tpu.pipeline_mode<synchronous>, transform_indices = @transform_0, window_bounds = array<i64: 512, 1152>}, {pipeline_mode = #tpu.pipeline_mode<synchronous>, transform_indices = @transform_1, window_bounds = array<i64: 1152, 128>}, {pipeline_mode = #tpu.pipeline_mode<synchronous>, transform_indices = @transform_2, window_bounds = array<i64: 512, 128>}]} {
    %c0 = arith.constant 0 : index
    %c0_0 = arith.constant 0 : index
    %0 = vector.load %arg1[%c0, %c0_0] : memref<512x1152xbf16, #tpu.memory_space<vmem>>, vector<512x1152xbf16>
    %c0_1 = arith.constant 0 : index
    %c0_2 = arith.constant 0 : index
    %1 = vector.load %arg2[%c0_1, %c0_2] : memref<1152x128xbf16, #tpu.memory_space<vmem>>, vector<1152x128xbf16>
    %cst = arith.constant dense<0.000000e+00> : vector<512x128xf32>
    %2 = tpu.matmul %0, %1, %cst {dimension_numbers = #tpu.dot_dimension_numbers<[1], [0], [0], [1], [0, 0, 1, 1], [], []>} : vector<512x1152xbf16>, vector<1152x128xbf16>, vector<512x128xf32> -> vector<512x128xf32>
    %cst_3 = arith.constant dense<0.000000e+00> : vector<128xf32>
    %3 = vector.multi_reduction <add>, %2, %cst_3 [0] : vector<512x128xf32> to vector<128xf32>
    %4 = vector.shape_cast %3 : vector<128xf32> to vector<1x128xf32>
    %cst_4 = arith.constant 0.001953125 : f32
    %5 = vector.broadcast %cst_4 : f32 to vector<1x128xf32>
    %6 = arith.mulf %4, %5 : vector<1x128xf32>
    %7 = arith.mulf %2, %2 : vector<512x128xf32>
    %cst_5 = arith.constant dense<0.000000e+00> : vector<128xf32>
    %8 = vector.multi_reduction <add>, %7, %cst_5 [0] : vector<512x128xf32> to vector<128xf32>
    %9 = vector.shape_cast %8 : vector<128xf32> to vector<1x128xf32>
    %cst_6 = arith.constant 0.001953125 : f32
    %10 = vector.broadcast %cst_6 : f32 to vector<1x128xf32>
    %11 = arith.mulf %9, %10 : vector<1x128xf32>
    %12 = arith.mulf %6, %6 : vector<1x128xf32>
    %13 = arith.subf %11, %12 : vector<1x128xf32>
    %cst_7 = arith.constant 0.000000e+00 : f32
    %14 = vector.broadcast %cst_7 : f32 to vector<1x128xf32>
    %15 = arith.maximumf %13, %14 : vector<1x128xf32>
    %cst_8 = arith.constant 9.99999974E-6 : f32
    %16 = vector.broadcast %cst_8 : f32 to vector<1x128xf32>
    %17 = arith.addf %15, %16 : vector<1x128xf32>
    %18 = math.rsqrt %17 : vector<1x128xf32>
    %19 = arith.truncf %2 : vector<512x128xf32> to vector<512x128xbf16>
    %20 = arith.truncf %6 : vector<1x128xf32> to vector<1x128xbf16>
    %21 = vector.broadcast %20 : vector<1x128xbf16> to vector<512x128xbf16>
    %22 = arith.subf %19, %21 : vector<512x128xbf16>
    %23 = arith.truncf %18 : vector<1x128xf32> to vector<1x128xbf16>
    %24 = vector.broadcast %23 : vector<1x128xbf16> to vector<512x128xbf16>
    %25 = arith.mulf %22, %24 : vector<512x128xbf16>
    %cst_9 = arith.constant 0.000000e+00 : bf16
    %26 = vector.broadcast %cst_9 : bf16 to vector<512x128xbf16>
    %27 = arith.cmpf ogt, %25, %26 : vector<512x128xbf16>
    %cst_10 = arith.constant 2.001950e-01 : bf16
    %28 = vector.broadcast %cst_10 : bf16 to vector<512x128xbf16>
    %29 = arith.mulf %28, %25 : vector<512x128xbf16>
    %30 = arith.select %27, %25, %29 : vector<512x128xi1>, vector<512x128xbf16>
    %c0_11 = arith.constant 0 : index
    %c0_12 = arith.constant 0 : index
    %31 = vector.load %arg3[%c0_11, %c0_12] : memref<512x128xbf16, #tpu.memory_space<vmem>>, vector<512x128xbf16>
    tpu.vector_store %arg3[%c0_11, %c0_12], %30 {strides = array<i32>} : memref<512x128xbf16, #tpu.memory_space<vmem>>, vector<512x128xbf16>,
    return
  }
  func.func @transform_0(%arg0: i32) -> (i32, i32) {
    %c0_i32 = arith.constant 0 : i32
    %c0_i32_0 = arith.constant 0 : i32
    %c0_i32_1 = arith.constant 0 : i32
    return %c0_i32, %c0_i32_0 : i32, i32
  }
  func.func @transform_1(%arg0: i32) -> (i32, i32) {
    %c0_i32 = arith.constant 0 : i32
    %c0_i32_0 = arith.constant 0 : i32
    %c0_i32_1 = arith.constant 0 : i32
    return %c0_i32, %c0_i32_0 : i32, i32
  }
  func.func @transform_2(%arg0: i32) -> (i32, i32) {
    %c0_i32 = arith.constant 0 : i32
    %c0_i32_0 = arith.constant 0 : i32
    %c0_i32_1 = arith.constant 0 : i32
    return %c0_i32, %c0_i32_0 : i32, i32
  }
}

module attributes {stable_mosaic.version = 11 : i64} {
  func.func @_conv_bn_leaky_kernel(%arg0: i32, %arg1: memref<128x1152xbf16, #tpu.memory_space<vmem>>, %arg2: memref<1152x128xbf16, #tpu.memory_space<vmem>>, %arg3: memref<128x128xbf16, #tpu.memory_space<vmem>>) attributes {dimension_semantics = [#tpu.dimension_semantics<arbitrary>], iteration_bounds = array<i64: 1>, scalar_prefetch = 0 : i64, scratch_operands = 0 : i64, tpu.core_type = #tpu.core_type<tc>, window_params = [{pipeline_mode = #tpu.pipeline_mode<synchronous>, transform_indices = @transform_0, window_bounds = array<i64: 128, 1152>}, {pipeline_mode = #tpu.pipeline_mode<synchronous>, transform_indices = @transform_1, window_bounds = array<i64: 1152, 128>}, {pipeline_mode = #tpu.pipeline_mode<synchronous>, transform_indices = @transform_2, window_bounds = array<i64: 128, 128>}]} {
    %c0 = arith.constant 0 : index
    %c0_0 = arith.constant 0 : index
    %0 = vector.load %arg1[%c0, %c0_0] : memref<128x1152xbf16, #tpu.memory_space<vmem>>, vector<128x1152xbf16>
    %c0_1 = arith.constant 0 : index
    %c0_2 = arith.constant 0 : index
    %1 = vector.load %arg2[%c0_1, %c0_2] : memref<1152x128xbf16, #tpu.memory_space<vmem>>, vector<1152x128xbf16>
    %cst = arith.constant dense<0.000000e+00> : vector<128x128xf32>
    %2 = tpu.matmul %0, %1, %cst {dimension_numbers = #tpu.dot_dimension_numbers<[1], [0], [0], [1], [0, 0, 1, 1], [], []>} : vector<128x1152xbf16>, vector<1152x128xbf16>, vector<128x128xf32> -> vector<128x128xf32>
    %cst_3 = arith.constant dense<0.000000e+00> : vector<128xf32>
    %3 = vector.multi_reduction <add>, %2, %cst_3 [0] : vector<128x128xf32> to vector<128xf32>
    %4 = vector.shape_cast %3 : vector<128xf32> to vector<1x128xf32>
    %cst_4 = arith.constant 7.812500e-03 : f32
    %5 = vector.broadcast %cst_4 : f32 to vector<1x128xf32>
    %6 = arith.mulf %4, %5 : vector<1x128xf32>
    %7 = arith.mulf %2, %2 : vector<128x128xf32>
    %cst_5 = arith.constant dense<0.000000e+00> : vector<128xf32>
    %8 = vector.multi_reduction <add>, %7, %cst_5 [0] : vector<128x128xf32> to vector<128xf32>
    %9 = vector.shape_cast %8 : vector<128xf32> to vector<1x128xf32>
    %cst_6 = arith.constant 7.812500e-03 : f32
    %10 = vector.broadcast %cst_6 : f32 to vector<1x128xf32>
    %11 = arith.mulf %9, %10 : vector<1x128xf32>
    %12 = arith.mulf %6, %6 : vector<1x128xf32>
    %13 = arith.subf %11, %12 : vector<1x128xf32>
    %cst_7 = arith.constant 0.000000e+00 : f32
    %14 = vector.broadcast %cst_7 : f32 to vector<1x128xf32>
    %15 = arith.maximumf %13, %14 : vector<1x128xf32>
    %cst_8 = arith.constant 9.99999974E-6 : f32
    %16 = vector.broadcast %cst_8 : f32 to vector<1x128xf32>
    %17 = arith.addf %15, %16 : vector<1x128xf32>
    %18 = math.rsqrt %17 : vector<1x128xf32>
    %19 = arith.truncf %2 : vector<128x128xf32> to vector<128x128xbf16>
    %20 = arith.truncf %6 : vector<1x128xf32> to vector<1x128xbf16>
    %21 = vector.broadcast %20 : vector<1x128xbf16> to vector<128x128xbf16>
    %22 = arith.subf %19, %21 : vector<128x128xbf16>
    %23 = arith.truncf %18 : vector<1x128xf32> to vector<1x128xbf16>
    %24 = vector.broadcast %23 : vector<1x128xbf16> to vector<128x128xbf16>
    %25 = arith.mulf %22, %24 : vector<128x128xbf16>
    %cst_9 = arith.constant 0.000000e+00 : bf16
    %26 = vector.broadcast %cst_9 : bf16 to vector<128x128xbf16>
    %27 = arith.cmpf ogt, %25, %26 : vector<128x128xbf16>
    %cst_10 = arith.constant 2.001950e-01 : bf16
    %28 = vector.broadcast %cst_10 : bf16 to vector<128x128xbf16>
    %29 = arith.mulf %28, %25 : vector<128x128xbf16>
    %30 = arith.select %27, %25, %29 : vector<128x128xi1>, vector<128x128xbf16>
    %c0_11 = arith.constant 0 : index
    %c0_12 = arith.constant 0 : index
    %31 = vector.load %arg3[%c0_11, %c0_12] : memref<128x128xbf16, #tpu.memory_space<vmem>>, vector<128x128xbf16>
    tpu.vector_store %arg3[%c0_11, %c0_12], %30 {strides = array<i32>} : memref<128x128xbf16, #tpu.memory_space<vmem>>, vector<128x128xbf16>,
    return
  }
  func.func @transform_0(%arg0: i32) -> (i32, i32) {
    %c0_i32 = arith.constant 0 : i32
    %c0_i32_0 = arith.constant 0 : i32
    %c0_i32_1 = arith.constant 0 : i32
    return %c0_i32, %c0_i32_0 : i32, i32
  }
  func.func @transform_1(%arg0: i32) -> (i32, i32) {
    %c0_i32 = arith.constant 0 : i32
    %c0_i32_0 = arith.constant 0 : i32
    %c0_i32_1 = arith.constant 0 : i32
    return %c0_i32, %c0_i32_0 : i32, i32
  }
  func.func @transform_2(%arg0: i32) -> (i32, i32) {
    %c0_i32 = arith.constant 0 : i32
    %c0_i32_0 = arith.constant 0 : i32
    %c0_i32_1 = arith.constant 0 : i32
    return %c0_i32, %c0_i32_0 : i32, i32
  }
}

module attributes {stable_mosaic.version = 11 : i64} {
  func.func @_conv_bn_leaky_kernel(%arg0: i32, %arg1: memref<32x1152xbf16, #tpu.memory_space<vmem>>, %arg2: memref<1152x128xbf16, #tpu.memory_space<vmem>>, %arg3: memref<32x128xbf16, #tpu.memory_space<vmem>>) attributes {dimension_semantics = [#tpu.dimension_semantics<arbitrary>], iteration_bounds = array<i64: 1>, scalar_prefetch = 0 : i64, scratch_operands = 0 : i64, tpu.core_type = #tpu.core_type<tc>, window_params = [{pipeline_mode = #tpu.pipeline_mode<synchronous>, transform_indices = @transform_0, window_bounds = array<i64: 32, 1152>}, {pipeline_mode = #tpu.pipeline_mode<synchronous>, transform_indices = @transform_1, window_bounds = array<i64: 1152, 128>}, {pipeline_mode = #tpu.pipeline_mode<synchronous>, transform_indices = @transform_2, window_bounds = array<i64: 32, 128>}]} {
    %c0 = arith.constant 0 : index
    %c0_0 = arith.constant 0 : index
    %0 = vector.load %arg1[%c0, %c0_0] : memref<32x1152xbf16, #tpu.memory_space<vmem>>, vector<32x1152xbf16>
    %c0_1 = arith.constant 0 : index
    %c0_2 = arith.constant 0 : index
    %1 = vector.load %arg2[%c0_1, %c0_2] : memref<1152x128xbf16, #tpu.memory_space<vmem>>, vector<1152x128xbf16>
    %cst = arith.constant dense<0.000000e+00> : vector<32x128xf32>
    %2 = tpu.matmul %0, %1, %cst {dimension_numbers = #tpu.dot_dimension_numbers<[1], [0], [0], [1], [0, 0, 1, 1], [], []>} : vector<32x1152xbf16>, vector<1152x128xbf16>, vector<32x128xf32> -> vector<32x128xf32>
    %cst_3 = arith.constant dense<0.000000e+00> : vector<128xf32>
    %3 = vector.multi_reduction <add>, %2, %cst_3 [0] : vector<32x128xf32> to vector<128xf32>
    %4 = vector.shape_cast %3 : vector<128xf32> to vector<1x128xf32>
    %cst_4 = arith.constant 3.125000e-02 : f32
    %5 = vector.broadcast %cst_4 : f32 to vector<1x128xf32>
    %6 = arith.mulf %4, %5 : vector<1x128xf32>
    %7 = arith.mulf %2, %2 : vector<32x128xf32>
    %cst_5 = arith.constant dense<0.000000e+00> : vector<128xf32>
    %8 = vector.multi_reduction <add>, %7, %cst_5 [0] : vector<32x128xf32> to vector<128xf32>
    %9 = vector.shape_cast %8 : vector<128xf32> to vector<1x128xf32>
    %cst_6 = arith.constant 3.125000e-02 : f32
    %10 = vector.broadcast %cst_6 : f32 to vector<1x128xf32>
    %11 = arith.mulf %9, %10 : vector<1x128xf32>
    %12 = arith.mulf %6, %6 : vector<1x128xf32>
    %13 = arith.subf %11, %12 : vector<1x128xf32>
    %cst_7 = arith.constant 0.000000e+00 : f32
    %14 = vector.broadcast %cst_7 : f32 to vector<1x128xf32>
    %15 = arith.maximumf %13, %14 : vector<1x128xf32>
    %cst_8 = arith.constant 9.99999974E-6 : f32
    %16 = vector.broadcast %cst_8 : f32 to vector<1x128xf32>
    %17 = arith.addf %15, %16 : vector<1x128xf32>
    %18 = math.rsqrt %17 : vector<1x128xf32>
    %19 = arith.truncf %2 : vector<32x128xf32> to vector<32x128xbf16>
    %20 = arith.truncf %6 : vector<1x128xf32> to vector<1x128xbf16>
    %21 = vector.broadcast %20 : vector<1x128xbf16> to vector<32x128xbf16>
    %22 = arith.subf %19, %21 : vector<32x128xbf16>
    %23 = arith.truncf %18 : vector<1x128xf32> to vector<1x128xbf16>
    %24 = vector.broadcast %23 : vector<1x128xbf16> to vector<32x128xbf16>
    %25 = arith.mulf %22, %24 : vector<32x128xbf16>
    %cst_9 = arith.constant 0.000000e+00 : bf16
    %26 = vector.broadcast %cst_9 : bf16 to vector<32x128xbf16>
    %27 = arith.cmpf ogt, %25, %26 : vector<32x128xbf16>
    %cst_10 = arith.constant 2.001950e-01 : bf16
    %28 = vector.broadcast %cst_10 : bf16 to vector<32x128xbf16>
    %29 = arith.mulf %28, %25 : vector<32x128xbf16>
    %30 = arith.select %27, %25, %29 : vector<32x128xi1>, vector<32x128xbf16>
    %c0_11 = arith.constant 0 : index
    %c0_12 = arith.constant 0 : index
    %31 = vector.load %arg3[%c0_11, %c0_12] : memref<32x128xbf16, #tpu.memory_space<vmem>>, vector<32x128xbf16>
    tpu.vector_store %arg3[%c0_11, %c0_12], %30 {strides = array<i32>} : memref<32x128xbf16, #tpu.memory_space<vmem>>, vector<32x128xbf16>,
    return
  }
  func.func @transform_0(%arg0: i32) -> (i32, i32) {
    %c0_i32 = arith.constant 0 : i32
    %c0_i32_0 = arith.constant 0 : i32
    %c0_i32_1 = arith.constant 0 : i32
    return %c0_i32, %c0_i32_0 : i32, i32
  }
  func.func @transform_1(%arg0: i32) -> (i32, i32) {
    %c0_i32 = arith.constant 0 : i32
    %c0_i32_0 = arith.constant 0 : i32
    %c0_i32_1 = arith.constant 0 : i32
    return %c0_i32, %c0_i32_0 : i32, i32
  }
  func.func @transform_2(%arg0: i32) -> (i32, i32) {
    %c0_i32 = arith.constant 0 : i32
    %c0_i32_0 = arith.constant 0 : i32
    %c0_i32_1 = arith.constant 0 : i32
    return %c0_i32, %c0_i32_0 : i32, i32
  }
}

module attributes {stable_mosaic.version = 11 : i64} {
  func.func @_conv_bn_leaky_kernel(%arg0: i32, %arg1: memref<8x1152xbf16, #tpu.memory_space<vmem>>, %arg2: memref<1152x128xbf16, #tpu.memory_space<vmem>>, %arg3: memref<8x128xbf16, #tpu.memory_space<vmem>>) attributes {dimension_semantics = [#tpu.dimension_semantics<arbitrary>], iteration_bounds = array<i64: 1>, scalar_prefetch = 0 : i64, scratch_operands = 0 : i64, tpu.core_type = #tpu.core_type<tc>, window_params = [{pipeline_mode = #tpu.pipeline_mode<synchronous>, transform_indices = @transform_0, window_bounds = array<i64: 8, 1152>}, {pipeline_mode = #tpu.pipeline_mode<synchronous>, transform_indices = @transform_1, window_bounds = array<i64: 1152, 128>}, {pipeline_mode = #tpu.pipeline_mode<synchronous>, transform_indices = @transform_2, window_bounds = array<i64: 8, 128>}]} {
    %c0 = arith.constant 0 : index
    %c0_0 = arith.constant 0 : index
    %0 = vector.load %arg1[%c0, %c0_0] : memref<8x1152xbf16, #tpu.memory_space<vmem>>, vector<8x1152xbf16>
    %c0_1 = arith.constant 0 : index
    %c0_2 = arith.constant 0 : index
    %1 = vector.load %arg2[%c0_1, %c0_2] : memref<1152x128xbf16, #tpu.memory_space<vmem>>, vector<1152x128xbf16>
    %cst = arith.constant dense<0.000000e+00> : vector<8x128xf32>
    %2 = tpu.matmul %0, %1, %cst {dimension_numbers = #tpu.dot_dimension_numbers<[1], [0], [0], [1], [0, 0, 1, 1], [], []>} : vector<8x1152xbf16>, vector<1152x128xbf16>, vector<8x128xf32> -> vector<8x128xf32>
    %cst_3 = arith.constant dense<0.000000e+00> : vector<128xf32>
    %3 = vector.multi_reduction <add>, %2, %cst_3 [0] : vector<8x128xf32> to vector<128xf32>
    %4 = vector.shape_cast %3 : vector<128xf32> to vector<1x128xf32>
    %cst_4 = arith.constant 1.250000e-01 : f32
    %5 = vector.broadcast %cst_4 : f32 to vector<1x128xf32>
    %6 = arith.mulf %4, %5 : vector<1x128xf32>
    %7 = arith.mulf %2, %2 : vector<8x128xf32>
    %cst_5 = arith.constant dense<0.000000e+00> : vector<128xf32>
    %8 = vector.multi_reduction <add>, %7, %cst_5 [0] : vector<8x128xf32> to vector<128xf32>
    %9 = vector.shape_cast %8 : vector<128xf32> to vector<1x128xf32>
    %cst_6 = arith.constant 1.250000e-01 : f32
    %10 = vector.broadcast %cst_6 : f32 to vector<1x128xf32>
    %11 = arith.mulf %9, %10 : vector<1x128xf32>
    %12 = arith.mulf %6, %6 : vector<1x128xf32>
    %13 = arith.subf %11, %12 : vector<1x128xf32>
    %cst_7 = arith.constant 0.000000e+00 : f32
    %14 = vector.broadcast %cst_7 : f32 to vector<1x128xf32>
    %15 = arith.maximumf %13, %14 : vector<1x128xf32>
    %cst_8 = arith.constant 9.99999974E-6 : f32
    %16 = vector.broadcast %cst_8 : f32 to vector<1x128xf32>
    %17 = arith.addf %15, %16 : vector<1x128xf32>
    %18 = math.rsqrt %17 : vector<1x128xf32>
    %19 = arith.truncf %2 : vector<8x128xf32> to vector<8x128xbf16>
    %20 = arith.truncf %6 : vector<1x128xf32> to vector<1x128xbf16>
    %21 = vector.broadcast %20 : vector<1x128xbf16> to vector<8x128xbf16>
    %22 = arith.subf %19, %21 : vector<8x128xbf16>
    %23 = arith.truncf %18 : vector<1x128xf32> to vector<1x128xbf16>
    %24 = vector.broadcast %23 : vector<1x128xbf16> to vector<8x128xbf16>
    %25 = arith.mulf %22, %24 : vector<8x128xbf16>
    %cst_9 = arith.constant 0.000000e+00 : bf16
    %26 = vector.broadcast %cst_9 : bf16 to vector<8x128xbf16>
    %27 = arith.cmpf ogt, %25, %26 : vector<8x128xbf16>
    %cst_10 = arith.constant 2.001950e-01 : bf16
    %28 = vector.broadcast %cst_10 : bf16 to vector<8x128xbf16>
    %29 = arith.mulf %28, %25 : vector<8x128xbf16>
    %30 = arith.select %27, %25, %29 : vector<8x128xi1>, vector<8x128xbf16>
    %c0_11 = arith.constant 0 : index
    %c0_12 = arith.constant 0 : index
    %31 = vector.load %arg3[%c0_11, %c0_12] : memref<8x128xbf16, #tpu.memory_space<vmem>>, vector<8x128xbf16>
    tpu.vector_store %arg3[%c0_11, %c0_12], %30 {strides = array<i32>} : memref<8x128xbf16, #tpu.memory_space<vmem>>, vector<8x128xbf16>,
    return
  }
  func.func @transform_0(%arg0: i32) -> (i32, i32) {
    %c0_i32 = arith.constant 0 : i32
    %c0_i32_0 = arith.constant 0 : i32
    %c0_i32_1 = arith.constant 0 : i32
    return %c0_i32, %c0_i32_0 : i32, i32
  }
  func.func @transform_1(%arg0: i32) -> (i32, i32) {
    %c0_i32 = arith.constant 0 : i32
    %c0_i32_0 = arith.constant 0 : i32
    %c0_i32_1 = arith.constant 0 : i32
    return %c0_i32, %c0_i32_0 : i32, i32
  }
  func.func @transform_2(%arg0: i32) -> (i32, i32) {
    %c0_i32 = arith.constant 0 : i32
    %c0_i32_0 = arith.constant 0 : i32
    %c0_i32_1 = arith.constant 0 : i32
    return %c0_i32, %c0_i32_0 : i32, i32
  }
}

module attributes {stable_mosaic.version = 11 : i64} {
  func.func @_fc_fused_kernel(%arg0: i32, %arg1: memref<8x512xbf16, #tpu.memory_space<vmem>>, %arg2: memref<512x1024xbf16, #tpu.memory_space<vmem>>, %arg3: memref<1x1024xf32, #tpu.memory_space<vmem>>, %arg4: memref<1024x128xbf16, #tpu.memory_space<vmem>>, %arg5: memref<1x128xf32, #tpu.memory_space<vmem>>, %arg6: memref<8x128xf32, #tpu.memory_space<vmem>>) attributes {dimension_semantics = [#tpu.dimension_semantics<arbitrary>], iteration_bounds = array<i64: 1>, scalar_prefetch = 0 : i64, scratch_operands = 0 : i64, tpu.core_type = #tpu.core_type<tc>, window_params = [{pipeline_mode = #tpu.pipeline_mode<synchronous>, transform_indices = @transform_0, window_bounds = array<i64: 8, 512>}, {pipeline_mode = #tpu.pipeline_mode<synchronous>, transform_indices = @transform_1, window_bounds = array<i64: 512, 1024>}, {pipeline_mode = #tpu.pipeline_mode<synchronous>, transform_indices = @transform_2, window_bounds = array<i64: 1, 1024>}, {pipeline_mode = #tpu.pipeline_mode<synchronous>, transform_indices = @transform_3, window_bounds = array<i64: 1024, 128>}, {pipeline_mode = #tpu.pipeline_mode<synchronous>, transform_indices = @transform_4, window_bounds = array<i64: 1, 128>}, {pipeline_mode = #tpu.pipeline_mode<synchronous>, transform_indices = @transform_5, window_bounds = array<i64: 8, 128>}]} {
    %c0 = arith.constant 0 : index
    %c0_0 = arith.constant 0 : index
    %0 = vector.load %arg1[%c0, %c0_0] : memref<8x512xbf16, #tpu.memory_space<vmem>>, vector<8x512xbf16>
    %c0_1 = arith.constant 0 : index
    %c0_2 = arith.constant 0 : index
    %1 = vector.load %arg2[%c0_1, %c0_2] : memref<512x1024xbf16, #tpu.memory_space<vmem>>, vector<512x1024xbf16>
    %cst = arith.constant dense<0.000000e+00> : vector<8x1024xf32>
    %2 = tpu.matmul %0, %1, %cst {dimension_numbers = #tpu.dot_dimension_numbers<[1], [0], [0], [1], [0, 0, 1, 1], [], []>} : vector<8x512xbf16>, vector<512x1024xbf16>, vector<8x1024xf32> -> vector<8x1024xf32>
    %c0_3 = arith.constant 0 : index
    %c0_4 = arith.constant 0 : index
    %3 = vector.load %arg3[%c0_3, %c0_4] : memref<1x1024xf32, #tpu.memory_space<vmem>>, vector<1x1024xf32>
    %4 = vector.broadcast %3 : vector<1x1024xf32> to vector<8x1024xf32>
    %5 = arith.addf %2, %4 : vector<8x1024xf32>
    %6 = arith.truncf %5 : vector<8x1024xf32> to vector<8x1024xbf16>
    %cst_5 = arith.constant 0.000000e+00 : bf16
    %7 = vector.broadcast %cst_5 : bf16 to vector<8x1024xbf16>
    %8 = arith.cmpf ogt, %6, %7 : vector<8x1024xbf16>
    %cst_6 = arith.constant 2.001950e-01 : bf16
    %9 = vector.broadcast %cst_6 : bf16 to vector<8x1024xbf16>
    %10 = arith.mulf %9, %6 : vector<8x1024xbf16>
    %11 = arith.select %8, %6, %10 : vector<8x1024xi1>, vector<8x1024xbf16>
    %c0_7 = arith.constant 0 : index
    %c0_8 = arith.constant 0 : index
    %12 = vector.load %arg4[%c0_7, %c0_8] : memref<1024x128xbf16, #tpu.memory_space<vmem>>, vector<1024x128xbf16>
    %cst_9 = arith.constant dense<0.000000e+00> : vector<8x128xf32>
    %13 = tpu.matmul %11, %12, %cst_9 {dimension_numbers = #tpu.dot_dimension_numbers<[1], [0], [0], [1], [0, 0, 1, 1], [], []>} : vector<8x1024xbf16>, vector<1024x128xbf16>, vector<8x128xf32> -> vector<8x128xf32>
    %c0_10 = arith.constant 0 : index
    %c0_11 = arith.constant 0 : index
    %14 = vector.load %arg5[%c0_10, %c0_11] : memref<1x128xf32, #tpu.memory_space<vmem>>, vector<1x128xf32>
    %15 = vector.broadcast %14 : vector<1x128xf32> to vector<8x128xf32>
    %16 = arith.addf %13, %15 : vector<8x128xf32>
    %17 = arith.negf %16 : vector<8x128xf32>
    %18 = math.exp %17 : vector<8x128xf32>
    %cst_12 = arith.constant 1.000000e+00 : f32
    %19 = vector.broadcast %cst_12 : f32 to vector<8x128xf32>
    %20 = arith.addf %19, %18 : vector<8x128xf32>
    %21 = arith.divf %19, %20 : vector<8x128xf32>
    %c0_13 = arith.constant 0 : index
    %c0_14 = arith.constant 0 : index
    %22 = vector.load %arg6[%c0_13, %c0_14] : memref<8x128xf32, #tpu.memory_space<vmem>>, vector<8x128xf32>
    tpu.vector_store %arg6[%c0_13, %c0_14], %21 {strides = array<i32>} : memref<8x128xf32, #tpu.memory_space<vmem>>, vector<8x128xf32>,
    return
  }
  func.func @transform_0(%arg0: i32) -> (i32, i32) {
    %c0_i32 = arith.constant 0 : i32
    %c0_i32_0 = arith.constant 0 : i32
    %c0_i32_1 = arith.constant 0 : i32
    return %c0_i32, %c0_i32_0 : i32, i32
  }
  func.func @transform_1(%arg0: i32) -> (i32, i32) {
    %c0_i32 = arith.constant 0 : i32
    %c0_i32_0 = arith.constant 0 : i32
    %c0_i32_1 = arith.constant 0 : i32
    return %c0_i32, %c0_i32_0 : i32, i32
  }
  func.func @transform_2(%arg0: i32) -> (i32, i32) {
    %c0_i32 = arith.constant 0 : i32
    %c0_i32_0 = arith.constant 0 : i32
    %c0_i32_1 = arith.constant 0 : i32
    return %c0_i32, %c0_i32_0 : i32, i32
  }
  func.func @transform_3(%arg0: i32) -> (i32, i32) {
    %c0_i32 = arith.constant 0 : i32
    %c0_i32_0 = arith.constant 0 : i32
    %c0_i32_1 = arith.constant 0 : i32
    return %c0_i32, %c0_i32_0 : i32, i32
  }
  func.func @transform_4(%arg0: i32) -> (i32, i32) {
    %c0_i32 = arith.constant 0 : i32
    %c0_i32_0 = arith.constant 0 : i32
    %c0_i32_1 = arith.constant 0 : i32
    return %c0_i32, %c0_i32_0 : i32, i32
  }
  func.func @transform_5(%arg0: i32) -> (i32, i32) {
    %c0_i32 = arith.constant 0 : i32
    %c0_i32_0 = arith.constant 0 : i32
    %c0_i32_1 = arith.constant 0 : i32
    return %c0_i32, %c0_i32_0 : i32, i32
  }
}

</mosaic_0001>

<llo_original>
// kernel: discriminator_forward.9
$region0: #{discriminator_forward.9}
  #allocation0 [shape = 'u32[]', space=smem, size = 0x4, offset = 0x4, fixed_abs, tag = 'smem constant byte address 0x4 - core index']
  #allocation1 [shape = 'u32[72,128]{1,0:T(1,128)}', space=vmem, size = 0x9000, scoped, tag = 'internal scratch']
  %s0 = inlined_call_operand.vmem [shape: bf16[2048,128], index: 0, kind: input, shape index: {}]
  %s1 = inlined_call_operand.vmem [shape: bf16[128,128], index: 1, kind: input, shape index: {}]
  %s2 = inlined_call_operand.vmem [shape: f32[1,128], index: 2, kind: input, shape index: {}]
  %s3 = inlined_call_operand.vmem [shape: bf16[2048,128], index: 3, kind: output, shape index: {}]
  %s4 = sld [smem:[#allocation0]]
  $region45: #{discriminator_forward.9} parent=0
    _
  %s6 = ssub.s32 1, %s4
  %s7 = scalar_select 0, %s6, %s4
  loop: start=0, step=1, limit=4
  $region2: #{discriminator_forward.9} parent=0 // loop_pre_header
    _
  $region3: #{discriminator_forward.9} parent=0 // loop_header
    %s9 = sphi 0, %s13
    %p10 = scmp.ge.s32.totalorder %s9, 4
    %s19 = sphi 0, %s21
    %s22 = sphi 0, %s19
    %s23 = sphi 0, %s22
    %s39 = sphi 0, %s23
    %s43 = sphi 0, %s43
    %s45 = sphi 0, %s43
    %s46 = sphi 0, %s45
    %s60 = sphi 0, %s46
    %s64 = sphi 0, %s64
    %s66 = sphi 0, %s64
    %s67 = sphi 0, %s66
    %s81 = sphi 0, %s67
    %s87 = sphi 0, %s89
    %s90 = sphi 0, %s87
    %s91 = sphi 0, %s90
    %s107 = sphi 0, %s91
  $region4: #{discriminator_forward.9} parent=0 // loop_header_branch
    %12 = sbr.rel (%p10) target = $region8
  $region5: #{discriminator_forward.9} parent=0 // loop_body
    %s14 = ssub.s32 %s9, 1
    %s15 = ssub.s32 %s9, 2
    %s16 = sadd.s32 %s9, 1
    %s17 = ssub.s32 %s9, %s16
    %p18 = scmp.eq.s32.totalorder %s17, 0
    %s20 = sadd.s32 %s19, 1
    %s21 = scalar_select %p18, %s19, %s20
    %p24 = pneg %p18
    %p25 = scmp.eq.s32.totalorder %s9, 1
    %p26 = por %p24, %p25
    %p27 = scmp.ne.s32.totalorder %s19, %s22
    %p28 = scmp.eq.s32.totalorder %s9, 0
    %p29 = por %p27, %p28
    %p30 = scmp.ne.s32.totalorder %s19, %s22
    %p31 = scmp.eq.s32.totalorder %s14, 1
    %p32 = por %p30, %p31
    %p33 = scmp.ne.s32.totalorder %s22, %s23
    %p34 = scmp.eq.s32.totalorder %s14, 0
    %p35 = por %p33, %p34
    %p36 = scmp.ne.s32.totalorder %s22, %s23
    %p37 = scmp.eq.s32.totalorder %s15, 1
    %p38 = por %p36, %p37
    %p40 = scmp.ne.s32.totalorder %s23, %s39
    %p41 = scmp.eq.s32.totalorder %s15, 0
    %p42 = por %p40, %p41
    %s44 = sadd.s32 %s43, 1
    %p47 = scmp.eq.s32.totalorder %s9, 1
    %p48 = scmp.ne.s32.totalorder %s43, %s45
    %p49 = scmp.eq.s32.totalorder %s9, 0
    %p50 = por %p48, %p49
    %p51 = scmp.ne.s32.totalorder %s43, %s45
    %p52 = scmp.eq.s32.totalorder %s14, 1
    %p53 = por %p51, %p52
    %p54 = scmp.ne.s32.totalorder %s45, %s46
    %p55 = scmp.eq.s32.totalorder %s14, 0
    %p56 = por %p54, %p55
    %p57 = scmp.ne.s32.totalorder %s45, %s46
    %p58 = scmp.eq.s32.totalorder %s15, 1
    %p59 = por %p57, %p58
    %p61 = scmp.ne.s32.totalorder %s46, %s60
    %p62 = scmp.eq.s32.totalorder %s15, 0
    %p63 = por %p61, %p62
    %s65 = sadd.s32 %s64, 1
    %p68 = scmp.eq.s32.totalorder %s9, 1
    %p69 = scmp.ne.s32.totalorder %s64, %s66
    %p70 = scmp.eq.s32.totalorder %s9, 0
    %p71 = por %p69, %p70
    %p72 = scmp.ne.s32.totalorder %s64, %s66
    %p73 = scmp.eq.s32.totalorder %s14, 1
    %p74 = por %p72, %p73
    %p75 = scmp.ne.s32.totalorder %s66, %s67
    %p76 = scmp.eq.s32.totalorder %s14, 0
    %p77 = por %p75, %p76
    %p78 = scmp.ne.s32.totalorder %s66, %s67
    %p79 = scmp.eq.s32.totalorder %s15, 1
    %p80 = por %p78, %p79
    %p82 = scmp.ne.s32.totalorder %s67, %s81
    %p83 = scmp.eq.s32.totalorder %s15, 0
    %p84 = por %p82, %p83
    %s85 = ssub.s32 %s9, %s16
    %p86 = scmp.eq.s32.totalorder %s85, 0
    %s88 = sadd.s32 %s87, 1
    %s89 = scalar_select %p86, %s87, %s88
    %p92 = pneg %p86
    %p93 = scmp.eq.s32.totalorder %s9, 1
    %p94 = por %p92, %p93
    %p95 = scmp.ne.s32.totalorder %s87, %s90
    %p96 = scmp.eq.s32.totalorder %s9, 0
    %p97 = por %p95, %p96
    %p98 = scmp.ne.s32.totalorder %s87, %s90
    %p99 = scmp.eq.s32.totalorder %s14, 1
    %p100 = por %p98, %p99
    %p101 = scmp.ne.s32.totalorder %s90, %s91
    %p102 = scmp.eq.s32.totalorder %s14, 0
    %p103 = por %p101, %p102
    %p104 = scmp.ne.s32.totalorder %s90, %s91
    %p105 = scmp.eq.s32.totalorder %s15, 1
    %p106 = por %p104, %p105
    %p108 = scmp.ne.s32.totalorder %s91, %s107
    %p109 = scmp.eq.s32.totalorder %s15, 0
    %p110 = por %p108, %p109
    %p111 = scmp.le.s32.totalorder 1, %s9
    %p112 = scmp.lt.s32.totalorder %s9, 3
    %p113 = pnand %p111, %p112
    %p114 = pneg %p113
    // Predicated region
    $region9: #{discriminator_forward.9} parent=5 // pred_check
      _
    $region10: #{discriminator_forward.9} parent=5 // pred_check_branch
      %116 = sbr.rel (%p113) target = $region12
    $region11: #{discriminator_forward.9} parent=5 // pred_region
      %s117 = ssub.s32 %s9, 1
      // Predicated region
      $region13: #{discriminator_forward.9} parent=11 // pred_check
        %p118 = pneg %p56
      $region14: #{discriminator_forward.9} parent=11 // pred_check_branch
        %120 = sbr.rel (%p118) target = $region16
      $region15: #{discriminator_forward.9} parent=11 // pred_region
        _
      $region16: #{discriminator_forward.9} parent=11 // pred_fallthru
        _
      // Predicated region
      $region17: #{discriminator_forward.9} parent=11 // pred_check
        %p121 = pneg %p77
      $region18: #{discriminator_forward.9} parent=11 // pred_check_branch
        %123 = sbr.rel (%p121) target = $region20
      $region19: #{discriminator_forward.9} parent=11 // pred_region
        _
      $region20: #{discriminator_forward.9} parent=11 // pred_fallthru
        _
    $region12: #{discriminator_forward.9} parent=5 // pred_fallthru
      _
    %p124 = scmp.lt.s32.totalorder %s9, 2
    // Predicated region
    $region21: #{discriminator_forward.9} parent=5 // pred_check
      %p125 = pneg %p124
    $region22: #{discriminator_forward.9} parent=5 // pred_check_branch
      %127 = sbr.rel (%p125) target = $region24
    $region23: #{discriminator_forward.9} parent=5 // pred_region
      // Predicated region
      $region25: #{discriminator_forward.9} parent=23 // pred_check
        %p128 = pneg %p29
      $region26: #{discriminator_forward.9} parent=23 // pred_check_branch
        %130 = sbr.rel (%p128) target = $region28
      $region27: #{discriminator_forward.9} parent=23 // pred_region
        %s131 = smul.u32 128, %s9
        %p132 = scmp.lt.s32.totalorder %s131, 255
        %s133 = scalar_select %p132, %s131, 255
        %s134 = smul.addr %s133, 4
        %s135 = scalar_lea.vmem %s0, %s134
        %s136 = smul.u32 128, %s9
      $region28: #{discriminator_forward.9} parent=23 // pred_fallthru
        _
    $region24: #{discriminator_forward.9} parent=5 // pred_fallthru
      _
    %p137 = scmp.le.s32.totalorder 1, %s9
    %p138 = scmp.lt.s32.totalorder %s9, 3
    %p139 = pnand %p137, %p138
    %p140 = pneg %p139
    // Predicated region
    $region29: #{discriminator_forward.9} parent=5 // pred_check
      _
    $region30: #{discriminator_forward.9} parent=5 // pred_check_branch
      %142 = sbr.rel (%p139) target = $region32
    $region31: #{discriminator_forward.9} parent=5 // pred_region
      %s143 = ssub.s32 %s9, 1
      %s144 = smul.u32 128, %s14
      %p145 = scmp.lt.s32.totalorder %s144, 255
      %s146 = scalar_select %p145, %s144, 255
      %s147 = smul.addr %s146, 4
      %s148 = scalar_lea.vmem %s0, %s147
      %p149 = pneg %p35
      %p150 = pneg %p32
      %p151 = pneg %p56
      %p152 = pneg %p53
      %p153 = pneg %p77
      %p154 = pneg %p74
      %p155 = pneg %p103
      %p156 = pneg %p100
      %s157 = smul.u32 128, %s14
      %p158 = scmp.lt.s32.totalorder %s157, 255
      %s159 = scalar_select %p158, %s157, 255
      %s160 = smul.addr %s159, 4
      %s161 = scalar_lea.vmem %s3, %s160
      %s162 = smul.u32 128, %s14
      %p163 = scmp.lt.s32.totalorder %s162, 255
      %s164 = scalar_select %p163, %s162, 255
      %s165 = smul.addr %s164, 4
      %s166 = scalar_lea.vmem %s0, %s165
      %s167 = smul.u32 128, %s14
      %s168 = smul.u32 128, %s14
      %p169 = scmp.lt.s32.totalorder %s168, 255
      %s170 = scalar_select %p169, %s168, 255
      %s171 = smul.addr %s170, 4
      %s172 = scalar_lea.vmem %s3, %s171
      %s173 = smul.u32 128, %s14
      %v174 = vld [vmem:[%s166] sm:$0xf]
      %v175 = vld [vmem:[%s166 + $0x4] sm:$0xf]
      %v176 = vld [vmem:[%s166 + $0x8] sm:$0xf]
      %v177 = vld [vmem:[%s166 + $0xc] sm:$0xf]
      %v178 = vld [vmem:[%s166 + $0x10] sm:$0xf]
      %v179 = vld [vmem:[%s166 + $0x14] sm:$0xf]
      %v180 = vld [vmem:[%s166 + $0x18] sm:$0xf]
      %v181 = vld [vmem:[%s166 + $0x1c] sm:$0xf]
      %v182 = vld [vmem:[%s166 + $0x20] sm:$0xf]
      %v183 = vld [vmem:[%s166 + $0x24] sm:$0xf]
      %v184 = vld [vmem:[%s166 + $0x28] sm:$0xf]
      %v185 = vld [vmem:[%s166 + $0x2c] sm:$0xf]
      %v186 = vld [vmem:[%s166 + $0x30] sm:$0xf]
      %v187 = vld [vmem:[%s166 + $0x34] sm:$0xf]
      %v188 = vld [vmem:[%s166 + $0x38] sm:$0xf]
      %v189 = vld [vmem:[%s166 + $0x3c] sm:$0xf]
      %v190 = vld [vmem:[%s166 + $0x40] sm:$0xf]
      %v191 = vld [vmem:[%s166 + $0x44] sm:$0xf]
      %v192 = vld [vmem:[%s166 + $0x48] sm:$0xf]
      %v193 = vld [vmem:[%s166 + $0x4c] sm:$0xf]
      %v194 = vld [vmem:[%s166 + $0x50] sm:$0xf]
      %v195 = vld [vmem:[%s166 + $0x54] sm:$0xf]
      %v196 = vld [vmem:[%s166 + $0x58] sm:$0xf]
      %v197 = vld [vmem:[%s166 + $0x5c] sm:$0xf]
      %v198 = vld [vmem:[%s166 + $0x60] sm:$0xf]
      %v199 = vld [vmem:[%s166 + $0x64] sm:$0xf]
      %v200 = vld [vmem:[%s166 + $0x68] sm:$0xf]
      %v201 = vld [vmem:[%s166 + $0x6c] sm:$0xf]
      %v202 = vld [vmem:[%s166 + $0x70] sm:$0xf]
      %v203 = vld [vmem:[%s166 + $0x74] sm:$0xf]
      %v204 = vld [vmem:[%s166 + $0x78] sm:$0xf]
      %v205 = vld [vmem:[%s166 + $0x7c] sm:$0xf]
      %v206 = vld [vmem:[%s166 + $0x80] sm:$0xf]
      %v207 = vld [vmem:[%s166 + $0x84] sm:$0xf]
      %v208 = vld [vmem:[%s166 + $0x88] sm:$0xf]
      %v209 = vld [vmem:[%s166 + $0x8c] sm:$0xf]
      %v210 = vld [vmem:[%s166 + $0x90] sm:$0xf]
      %v211 = vld [vmem:[%s166 + $0x94] sm:$0xf]
      %v212 = vld [vmem:[%s166 + $0x98] sm:$0xf]
      %v213 = vld [vmem:[%s166 + $0x9c] sm:$0xf]
      %v214 = vld [vmem:[%s166 + $0xa0] sm:$0xf]
      %v215 = vld [vmem:[%s166 + $0xa4] sm:$0xf]
      %v216 = vld [vmem:[%s166 + $0xa8] sm:$0xf]
      %v217 = vld [vmem:[%s166 + $0xac] sm:$0xf]
      %v218 = vld [vmem:[%s166 + $0xb0] sm:$0xf]
      %v219 = vld [vmem:[%s166 + $0xb4] sm:$0xf]
      %v220 = vld [vmem:[%s166 + $0xb8] sm:$0xf]
      %v221 = vld [vmem:[%s166 + $0xbc] sm:$0xf]
      %v222 = vld [vmem:[%s166 + $0xc0] sm:$0xf]
      %v223 = vld [vmem:[%s166 + $0xc4] sm:$0xf]
      %v224 = vld [vmem:[%s166 + $0xc8] sm:$0xf]
      %v225 = vld [vmem:[%s166 + $0xcc] sm:$0xf]
      %v226 = vld [vmem:[%s166 + $0xd0] sm:$0xf]
      %v227 = vld [vmem:[%s166 + $0xd4] sm:$0xf]
      %v228 = vld [vmem:[%s166 + $0xd8] sm:$0xf]
      %v229 = vld [vmem:[%s166 + $0xdc] sm:$0xf]
      %v230 = vld [vmem:[%s166 + $0xe0] sm:$0xf]
      %v231 = vld [vmem:[%s166 + $0xe4] sm:$0xf]
      %v232 = vld [vmem:[%s166 + $0xe8] sm:$0xf]
      %v233 = vld [vmem:[%s166 + $0xec] sm:$0xf]
      %v234 = vld [vmem:[%s166 + $0xf0] sm:$0xf]
      %v235 = vld [vmem:[%s166 + $0xf4] sm:$0xf]
      %v236 = vld [vmem:[%s166 + $0xf8] sm:$0xf]
      %v237 = vld [vmem:[%s166 + $0xfc] sm:$0xf]
      %v238 = vld [vmem:[%s166 + $0x100] sm:$0xf]
      %v239 = vld [vmem:[%s166 + $0x104] sm:$0xf]
      %v240 = vld [vmem:[%s166 + $0x108] sm:$0xf]
      %v241 = vld [vmem:[%s166 + $0x10c] sm:$0xf]
      %v242 = vld [vmem:[%s166 + $0x110] sm:$0xf]
      %v243 = vld [vmem:[%s166 + $0x114] sm:$0xf]
      %v244 = vld [vmem:[%s166 + $0x118] sm:$0xf]
      %v245 = vld [vmem:[%s166 + $0x11c] sm:$0xf]
      %v246 = vld [vmem:[%s166 + $0x120] sm:$0xf]
      %v247 = vld [vmem:[%s166 + $0x124] sm:$0xf]
      %v248 = vld [vmem:[%s166 + $0x128] sm:$0xf]
      %v249 = vld [vmem:[%s166 + $0x12c] sm:$0xf]
      %v250 = vld [vmem:[%s166 + $0x130] sm:$0xf]
      %v251 = vld [vmem:[%s166 + $0x134] sm:$0xf]
      %v252 = vld [vmem:[%s166 + $0x138] sm:$0xf]
      %v253 = vld [vmem:[%s166 + $0x13c] sm:$0xf]
      %v254 = vld [vmem:[%s166 + $0x140] sm:$0xf]
      %v255 = vld [vmem:[%s166 + $0x144] sm:$0xf]
      %v256 = vld [vmem:[%s166 + $0x148] sm:$0xf]
      %v257 = vld [vmem:[%s166 + $0x14c] sm:$0xf]
      %v258 = vld [vmem:[%s166 + $0x150] sm:$0xf]
      %v259 = vld [vmem:[%s166 + $0x154] sm:$0xf]
      %v260 = vld [vmem:[%s166 + $0x158] sm:$0xf]
      %v261 = vld [vmem:[%s166 + $0x15c] sm:$0xf]
      %v262 = vld [vmem:[%s166 + $0x160] sm:$0xf]
      %v263 = vld [vmem:[%s166 + $0x164] sm:$0xf]
      %v264 = vld [vmem:[%s166 + $0x168] sm:$0xf]
      %v265 = vld [vmem:[%s166 + $0x16c] sm:$0xf]
      %v266 = vld [vmem:[%s166 + $0x170] sm:$0xf]
      %v267 = vld [vmem:[%s166 + $0x174] sm:$0xf]
      %v268 = vld [vmem:[%s166 + $0x178] sm:$0xf]
      %v269 = vld [vmem:[%s166 + $0x17c] sm:$0xf]
      %v270 = vld [vmem:[%s166 + $0x180] sm:$0xf]
      %v271 = vld [vmem:[%s166 + $0x184] sm:$0xf]
      %v272 = vld [vmem:[%s166 + $0x188] sm:$0xf]
      %v273 = vld [vmem:[%s166 + $0x18c] sm:$0xf]
      %v274 = vld [vmem:[%s166 + $0x190] sm:$0xf]
      %v275 = vld [vmem:[%s166 + $0x194] sm:$0xf]
      %v276 = vld [vmem:[%s166 + $0x198] sm:$0xf]
      %v277 = vld [vmem:[%s166 + $0x19c] sm:$0xf]
      %v278 = vld [vmem:[%s166 + $0x1a0] sm:$0xf]
      %v279 = vld [vmem:[%s166 + $0x1a4] sm:$0xf]
      %v280 = vld [vmem:[%s166 + $0x1a8] sm:$0xf]
      %v281 = vld [vmem:[%s166 + $0x1ac] sm:$0xf]
      %v282 = vld [vmem:[%s166 + $0x1b0] sm:$0xf]
      %v283 = vld [vmem:[%s166 + $0x1b4] sm:$0xf]
      %v284 = vld [vmem:[%s166 + $0x1b8] sm:$0xf]
      %v285 = vld [vmem:[%s166 + $0x1bc] sm:$0xf]
      %v286 = vld [vmem:[%s166 + $0x1c0] sm:$0xf]
      %v287 = vld [vmem:[%s166 + $0x1c4] sm:$0xf]
      %v288 = vld [vmem:[%s166 + $0x1c8] sm:$0xf]
      %v289 = vld [vmem:[%s166 + $0x1cc] sm:$0xf]
      %v290 = vld [vmem:[%s166 + $0x1d0] sm:$0xf]
      %v291 = vld [vmem:[%s166 + $0x1d4] sm:$0xf]
      %v292 = vld [vmem:[%s166 + $0x1d8] sm:$0xf]
      %v293 = vld [vmem:[%s166 + $0x1dc] sm:$0xf]
      %v294 = vld [vmem:[%s166 + $0x1e0] sm:$0xf]
      %v295 = vld [vmem:[%s166 + $0x1e4] sm:$0xf]
      %v296 = vld [vmem:[%s166 + $0x1e8] sm:$0xf]
      %v297 = vld [vmem:[%s166 + $0x1ec] sm:$0xf]
      %v298 = vld [vmem:[%s166 + $0x1f0] sm:$0xf]
      %v299 = vld [vmem:[%s166 + $0x1f4] sm:$0xf]
      %v300 = vld [vmem:[%s166 + $0x1f8] sm:$0xf]
      %v301 = vld [vmem:[%s166 + $0x1fc] sm:$0xf]
      %v302 = vld [vmem:[%s1] sm:$0xf]
      %v303 = vld [vmem:[%s1 + $0x4] sm:$0xf]
      %v304 = vld [vmem:[%s1 + $0x8] sm:$0xf]
      %v305 = vld [vmem:[%s1 + $0xc] sm:$0xf]
      %v306 = vld [vmem:[%s1 + $0x10] sm:$0xf]
      %v307 = vld [vmem:[%s1 + $0x14] sm:$0xf]
      %v308 = vld [vmem:[%s1 + $0x18] sm:$0xf]
      %v309 = vld [vmem:[%s1 + $0x1c] sm:$0xf]
      %v310 = vld [vmem:[%s1 + $0x20] sm:$0xf]
      %v311 = vld [vmem:[%s1 + $0x24] sm:$0xf]
      %v312 = vld [vmem:[%s1 + $0x28] sm:$0xf]
      %v313 = vld [vmem:[%s1 + $0x2c] sm:$0xf]
      %v314 = vld [vmem:[%s1 + $0x30] sm:$0xf]
      %v315 = vld [vmem:[%s1 + $0x34] sm:$0xf]
      %v316 = vld [vmem:[%s1 + $0x38] sm:$0xf]
      %v317 = vld [vmem:[%s1 + $0x3c] sm:$0xf]
      %v318 = vld [vmem:[%s2] sm:$0x1]
      %v320 = vperm.slane %v318, 0
      %v450 = vunpack.c.l.b16 %v174
      %v451 = vunpack.c.l.b16 %v175
      %v452 = vunpack.c.l.b16 %v176
      %v453 = vunpack.c.l.b16 %v177
      %v454 = vunpack.c.l.b16 %v178
      %v455 = vunpack.c.l.b16 %v179
      %v456 = vunpack.c.l.b16 %v180
      %v457 = vunpack.c.l.b16 %v181
      %v458 = vunpack.c.l.b16 %v182
      %v459 = vunpack.c.l.b16 %v183
      %v460 = vunpack.c.l.b16 %v184
      %v461 = vunpack.c.l.b16 %v185
      %v462 = vunpack.c.l.b16 %v186
      %v463 = vunpack.c.l.b16 %v187
      %v464 = vunpack.c.l.b16 %v188
      %v465 = vunpack.c.l.b16 %v189
      %v466 = vunpack.c.l.b16 %v190
      %v467 = vunpack.c.l.b16 %v191
      %v468 = vunpack.c.l.b16 %v192
      %v469 = vunpack.c.l.b16 %v193
      %v470 = vunpack.c.l.b16 %v194
      %v471 = vunpack.c.l.b16 %v195
      %v472 = vunpack.c.l.b16 %v196
      %v473 = vunpack.c.l.b16 %v197
      %v474 = vunpack.c.l.b16 %v198
      %v475 = vunpack.c.l.b16 %v199
      %v476 = vunpack.c.l.b16 %v200
      %v477 = vunpack.c.l.b16 %v201
      %v478 = vunpack.c.l.b16 %v202
      %v479 = vunpack.c.l.b16 %v203
      %v480 = vunpack.c.l.b16 %v204
      %v481 = vunpack.c.l.b16 %v205
      %v482 = vunpack.c.l.b16 %v206
      %v483 = vunpack.c.l.b16 %v207
      %v484 = vunpack.c.l.b16 %v208
      %v485 = vunpack.c.l.b16 %v209
      %v486 = vunpack.c.l.b16 %v210
      %v487 = vunpack.c.l.b16 %v211
      %v488 = vunpack.c.l.b16 %v212
      %v489 = vunpack.c.l.b16 %v213
      %v490 = vunpack.c.l.b16 %v214
      %v491 = vunpack.c.l.b16 %v215
      %v492 = vunpack.c.l.b16 %v216
      %v493 = vunpack.c.l.b16 %v217
      %v494 = vunpack.c.l.b16 %v218
      %v495 = vunpack.c.l.b16 %v219
      %v496 = vunpack.c.l.b16 %v220
      %v497 = vunpack.c.l.b16 %v221
      %v498 = vunpack.c.l.b16 %v222
      %v499 = vunpack.c.l.b16 %v223
      %v500 = vunpack.c.l.b16 %v224
      %v501 = vunpack.c.l.b16 %v225
      %v502 = vunpack.c.l.b16 %v226
      %v503 = vunpack.c.l.b16 %v227
      %v504 = vunpack.c.l.b16 %v228
      %v505 = vunpack.c.l.b16 %v229
      %v506 = vunpack.c.l.b16 %v230
      %v507 = vunpack.c.l.b16 %v231
      %v508 = vunpack.c.l.b16 %v232
      %v509 = vunpack.c.l.b16 %v233
      %v510 = vunpack.c.l.b16 %v234
      %v511 = vunpack.c.l.b16 %v235
      %v512 = vunpack.c.l.b16 %v236
      %v513 = vunpack.c.l.b16 %v237
      %v514 = vunpack.c.l.b16 %v238
      %v515 = vunpack.c.l.b16 %v239
      %v516 = vunpack.c.l.b16 %v240
      %v517 = vunpack.c.l.b16 %v241
      %v518 = vunpack.c.l.b16 %v242
      %v519 = vunpack.c.l.b16 %v243
      %v520 = vunpack.c.l.b16 %v244
      %v521 = vunpack.c.l.b16 %v245
      %v522 = vunpack.c.l.b16 %v246
      %v523 = vunpack.c.l.b16 %v247
      %v524 = vunpack.c.l.b16 %v248
      %v525 = vunpack.c.l.b16 %v249
      %v526 = vunpack.c.l.b16 %v250
      %v527 = vunpack.c.l.b16 %v251
      %v528 = vunpack.c.l.b16 %v252
      %v529 = vunpack.c.l.b16 %v253
      %v530 = vunpack.c.l.b16 %v254
      %v531 = vunpack.c.l.b16 %v255
      %v532 = vunpack.c.l.b16 %v256
      %v533 = vunpack.c.l.b16 %v257
      %v534 = vunpack.c.l.b16 %v258
      %v535 = vunpack.c.l.b16 %v259
      %v536 = vunpack.c.l.b16 %v260
      %v537 = vunpack.c.l.b16 %v261
      %v538 = vunpack.c.l.b16 %v262
      %v539 = vunpack.c.l.b16 %v263
      %v540 = vunpack.c.l.b16 %v264
      %v541 = vunpack.c.l.b16 %v265
      %v542 = vunpack.c.l.b16 %v266
      %v543 = vunpack.c.l.b16 %v267
      %v544 = vunpack.c.l.b16 %v268
      %v545 = vunpack.c.l.b16 %v269
      %v546 = vunpack.c.l.b16 %v270
      %v547 = vunpack.c.l.b16 %v271
      %v548 = vunpack.c.l.b16 %v272
      %v549 = vunpack.c.l.b16 %v273
      %v550 = vunpack.c.l.b16 %v274
      %v551 = vunpack.c.l.b16 %v275
      %v552 = vunpack.c.l.b16 %v276
      %v553 = vunpack.c.l.b16 %v277
      %v554 = vunpack.c.l.b16 %v278
      %v555 = vunpack.c.l.b16 %v279
      %v556 = vunpack.c.l.b16 %v280
      %v557 = vunpack.c.l.b16 %v281
      %v558 = vunpack.c.l.b16 %v282
      %v559 = vunpack.c.l.b16 %v283
      %v560 = vunpack.c.l.b16 %v284
      %v561 = vunpack.c.l.b16 %v285
      %v562 = vunpack.c.l.b16 %v286
      %v563 = vunpack.c.l.b16 %v287
      %v564 = vunpack.c.l.b16 %v288
      %v565 = vunpack.c.l.b16 %v289
      %v566 = vunpack.c.l.b16 %v290
      %v567 = vunpack.c.l.b16 %v291
      %v568 = vunpack.c.l.b16 %v292
      %v569 = vunpack.c.l.b16 %v293
      %v570 = vunpack.c.l.b16 %v294
      %v571 = vunpack.c.l.b16 %v295
      %v572 = vunpack.c.l.b16 %v296
      %v573 = vunpack.c.l.b16 %v297
      %v574 = vunpack.c.l.b16 %v298
      %v575 = vunpack.c.l.b16 %v299
      %v576 = vunpack.c.l.b16 %v300
      %v577 = vunpack.c.l.b16 %v301
      %v578 = vpack.c.b16 %v451, %v450
      %v579 = vpack.c.b16 %v453, %v452
      %v580 = vpack.c.b16 %v455, %v454
      %v581 = vpack.c.b16 %v457, %v456
      %v582 = vpack.c.b16 %v459, %v458
      %v583 = vpack.c.b16 %v461, %v460
      %v584 = vpack.c.b16 %v463, %v462
      %v585 = vpack.c.b16 %v465, %v464
      %v586 = vpack.c.b16 %v467, %v466
      %v587 = vpack.c.b16 %v469, %v468
      %v588 = vpack.c.b16 %v471, %v470
      %v589 = vpack.c.b16 %v473, %v472
      %v590 = vpack.c.b16 %v475, %v474
      %v591 = vpack.c.b16 %v477, %v476
      %v592 = vpack.c.b16 %v479, %v478
      %v593 = vpack.c.b16 %v481, %v480
      %v594 = vpack.c.b16 %v483, %v482
      %v595 = vpack.c.b16 %v485, %v484
      %v596 = vpack.c.b16 %v487, %v486
      %v597 = vpack.c.b16 %v489, %v488
      %v598 = vpack.c.b16 %v491, %v490
      %v599 = vpack.c.b16 %v493, %v492
      %v600 = vpack.c.b16 %v495, %v494
      %v601 = vpack.c.b16 %v497, %v496
      %v602 = vpack.c.b16 %v499, %v498
      %v603 = vpack.c.b16 %v501, %v500
      %v604 = vpack.c.b16 %v503, %v502
      %v605 = vpack.c.b16 %v505, %v504
      %v606 = vpack.c.b16 %v507, %v506
      %v607 = vpack.c.b16 %v509, %v508
      %v608 = vpack.c.b16 %v511, %v510
      %v609 = vpack.c.b16 %v513, %v512
      %v610 = vpack.c.b16 %v515, %v514
      %v611 = vpack.c.b16 %v517, %v516
      %v612 = vpack.c.b16 %v519, %v518
      %v613 = vpack.c.b16 %v521, %v520
      %v614 = vpack.c.b16 %v523, %v522
      %v615 = vpack.c.b16 %v525, %v524
      %v616 = vpack.c.b16 %v527, %v526
      %v617 = vpack.c.b16 %v529, %v528
      %v618 = vpack.c.b16 %v531, %v530
      %v619 = vpack.c.b16 %v533, %v532
      %v620 = vpack.c.b16 %v535, %v534
      %v621 = vpack.c.b16 %v537, %v536
      %v622 = vpack.c.b16 %v539, %v538
      %v623 = vpack.c.b16 %v541, %v540
      %v624 = vpack.c.b16 %v543, %v542
      %v625 = vpack.c.b16 %v545, %v544
      %v626 = vpack.c.b16 %v547, %v546
      %v627 = vpack.c.b16 %v549, %v548
      %v628 = vpack.c.b16 %v551, %v550
      %v629 = vpack.c.b16 %v553, %v552
      %v630 = vpack.c.b16 %v555, %v554
      %v631 = vpack.c.b16 %v557, %v556
      %v632 = vpack.c.b16 %v559, %v558
      %v633 = vpack.c.b16 %v561, %v560
      %v634 = vpack.c.b16 %v563, %v562
      %v635 = vpack.c.b16 %v565, %v564
      %v636 = vpack.c.b16 %v567, %v566
      %v637 = vpack.c.b16 %v569, %v568
      %v638 = vpack.c.b16 %v571, %v570
      %v639 = vpack.c.b16 %v573, %v572
      %v640 = vpack.c.b16 %v575, %v574
      %v641 = vpack.c.b16 %v577, %v576
      %v722 = vunpack.c.l.b16 %v302
      %v723 = vunpack.c.l.b16 %v303
      %v724 = vunpack.c.l.b16 %v304
      %v725 = vunpack.c.l.b16 %v305
      %v726 = vunpack.c.l.b16 %v306
      %v727 = vunpack.c.l.b16 %v307
      %v728 = vunpack.c.l.b16 %v308
      %v729 = vunpack.c.l.b16 %v309
      %v730 = vunpack.c.l.b16 %v310
      %v731 = vunpack.c.l.b16 %v311
      %v732 = vunpack.c.l.b16 %v312
      %v733 = vunpack.c.l.b16 %v313
      %v734 = vunpack.c.l.b16 %v314
      %v735 = vunpack.c.l.b16 %v315
      %v736 = vunpack.c.l.b16 %v316
      %v737 = vunpack.c.l.b16 %v317
      %v738 = vpack.c.b16 %v723, %v722
      %v739 = vpack.c.b16 %v725, %v724
      %v740 = vpack.c.b16 %v727, %v726
      %v741 = vpack.c.b16 %v729, %v728
      %v742 = vpack.c.b16 %v731, %v730
      %v743 = vpack.c.b16 %v733, %v732
      %v744 = vpack.c.b16 %v735, %v734
      %v745 = vpack.c.b16 %v737, %v736
      %754 = vmatpush.bf16.msra.mxu0 %v745
      %755 = vmatpush.bf16.msra.mxu0 %v744
      %756 = vmatpush.bf16.msra.mxu0 %v743
      %757 = vmatpush.bf16.msra.mxu0 %v742
      %758 = vmatpush.bf16.msra.mxu0 %v741
      %759 = vmatpush.bf16.msra.mxu0 %v740
      %760 = vmatpush.bf16.msra.mxu0 %v739
      %761 = vmatpush.bf16.msra.mxu0 %v738
      %762 = vmatmul.bf16.gmra.mxu0 %v578
      %v763 = vpop.f32.mrf.mxu0
      %v764 = vadd.f32 %v320, %v763
      %v765 = vpop.f32.mrf.mxu0
      %v766 = vadd.f32 %v320, %v765
      %767 = vmatmul.bf16.gmra.mxu0 %v579
      %v768 = vpop.f32.mrf.mxu0
      %v769 = vadd.f32 %v320, %v768
      %v770 = vpop.f32.mrf.mxu0
      %v771 = vadd.f32 %v320, %v770
      %772 = vmatmul.bf16.gmra.mxu0 %v580
      %v773 = vpop.f32.mrf.mxu0
      %v774 = vadd.f32 %v320, %v773
      %v775 = vpop.f32.mrf.mxu0
      %v776 = vadd.f32 %v320, %v775
      %777 = vmatmul.bf16.gmra.mxu0 %v581
      %v778 = vpop.f32.mrf.mxu0
      %v779 = vadd.f32 %v320, %v778
      %v780 = vpop.f32.mrf.mxu0
      %v781 = vadd.f32 %v320, %v780
      %782 = vmatmul.bf16.gmra.mxu0 %v582
      %v783 = vpop.f32.mrf.mxu0
      %v784 = vadd.f32 %v320, %v783
      %v785 = vpop.f32.mrf.mxu0
      %v786 = vadd.f32 %v320, %v785
      %787 = vmatmul.bf16.gmra.mxu0 %v583
      %v788 = vpop.f32.mrf.mxu0
      %v789 = vadd.f32 %v320, %v788
      %v790 = vpop.f32.mrf.mxu0
      %v791 = vadd.f32 %v320, %v790
      %792 = vmatmul.bf16.gmra.mxu0 %v584
      %v793 = vpop.f32.mrf.mxu0
      %v794 = vadd.f32 %v320, %v793
      %v795 = vpop.f32.mrf.mxu0
      %v796 = vadd.f32 %v320, %v795
      %797 = vmatmul.bf16.gmra.mxu0 %v585
      %v798 = vpop.f32.mrf.mxu0
      %v799 = vadd.f32 %v320, %v798
      %v800 = vpop.f32.mrf.mxu0
      %v801 = vadd.f32 %v320, %v800
      %802 = vmatmul.bf16.gmra.mxu0 %v586
      %v803 = vpop.f32.mrf.mxu0
      %v804 = vadd.f32 %v320, %v803
      %v805 = vpop.f32.mrf.mxu0
      %v806 = vadd.f32 %v320, %v805
      %807 = vmatmul.bf16.gmra.mxu0 %v587
      %v808 = vpop.f32.mrf.mxu0
      %v809 = vadd.f32 %v320, %v808
      %v810 = vpop.f32.mrf.mxu0
      %v811 = vadd.f32 %v320, %v810
      %812 = vmatmul.bf16.gmra.mxu0 %v588
      %v813 = vpop.f32.mrf.mxu0
      %v814 = vadd.f32 %v320, %v813
      %v815 = vpop.f32.mrf.mxu0
      %v816 = vadd.f32 %v320, %v815
      %817 = vmatmul.bf16.gmra.mxu0 %v589
      %v818 = vpop.f32.mrf.mxu0
      %v819 = vadd.f32 %v320, %v818
      %v820 = vpop.f32.mrf.mxu0
      %v821 = vadd.f32 %v320, %v820
      %822 = vmatmul.bf16.gmra.mxu0 %v590
      %v823 = vpop.f32.mrf.mxu0
      %v824 = vadd.f32 %v320, %v823
      %v825 = vpop.f32.mrf.mxu0
      %v826 = vadd.f32 %v320, %v825
      %827 = vmatmul.bf16.gmra.mxu0 %v591
      %v828 = vpop.f32.mrf.mxu0
      %v829 = vadd.f32 %v320, %v828
      %v830 = vpop.f32.mrf.mxu0
      %v831 = vadd.f32 %v320, %v830
      %832 = vmatmul.bf16.gmra.mxu0 %v592
      %v833 = vpop.f32.mrf.mxu0
      %v834 = vadd.f32 %v320, %v833
      %v835 = vpop.f32.mrf.mxu0
      %v836 = vadd.f32 %v320, %v835
      %837 = vmatmul.bf16.gmra.mxu0 %v593
      %v838 = vpop.f32.mrf.mxu0
      %v839 = vadd.f32 %v320, %v838
      %v840 = vpop.f32.mrf.mxu0
      %v841 = vadd.f32 %v320, %v840
      %842 = vmatmul.bf16.gmra.mxu0 %v594
      %v843 = vpop.f32.mrf.mxu0
      %v844 = vadd.f32 %v320, %v843
      %v845 = vpop.f32.mrf.mxu0
      %v846 = vadd.f32 %v320, %v845
      %847 = vmatmul.bf16.gmra.mxu0 %v595
      %v848 = vpop.f32.mrf.mxu0
      %v849 = vadd.f32 %v320, %v848
      %v850 = vpop.f32.mrf.mxu0
      %v851 = vadd.f32 %v320, %v850
      %852 = vmatmul.bf16.gmra.mxu0 %v596
      %v853 = vpop.f32.mrf.mxu0
      %v854 = vadd.f32 %v320, %v853
      %v855 = vpop.f32.mrf.mxu0
      %v856 = vadd.f32 %v320, %v855
      %857 = vmatmul.bf16.gmra.mxu0 %v597
      %v858 = vpop.f32.mrf.mxu0
      %v859 = vadd.f32 %v320, %v858
      %v860 = vpop.f32.mrf.mxu0
      %v861 = vadd.f32 %v320, %v860
      %862 = vmatmul.bf16.gmra.mxu0 %v598
      %v863 = vpop.f32.mrf.mxu0
      %v864 = vadd.f32 %v320, %v863
      %v865 = vpop.f32.mrf.mxu0
      %v866 = vadd.f32 %v320, %v865
      %867 = vmatmul.bf16.gmra.mxu0 %v599
      %v868 = vpop.f32.mrf.mxu0
      %v869 = vadd.f32 %v320, %v868
      %v870 = vpop.f32.mrf.mxu0
      %v871 = vadd.f32 %v320, %v870
      %872 = vmatmul.bf16.gmra.mxu0 %v600
      %v873 = vpop.f32.mrf.mxu0
      %v874 = vadd.f32 %v320, %v873
      %v875 = vpop.f32.mrf.mxu0
      %v876 = vadd.f32 %v320, %v875
      %877 = vmatmul.bf16.gmra.mxu0 %v601
      %v878 = vpop.f32.mrf.mxu0
      %v879 = vadd.f32 %v320, %v878
      %v880 = vpop.f32.mrf.mxu0
      %v881 = vadd.f32 %v320, %v880
      %882 = vmatmul.bf16.gmra.mxu0 %v602
      %v883 = vpop.f32.mrf.mxu0
      %v884 = vadd.f32 %v320, %v883
      %v885 = vpop.f32.mrf.mxu0
      %v886 = vadd.f32 %v320, %v885
      %887 = vmatmul.bf16.gmra.mxu0 %v603
      %v888 = vpop.f32.mrf.mxu0
      %v889 = vadd.f32 %v320, %v888
      %v890 = vpop.f32.mrf.mxu0
      %v891 = vadd.f32 %v320, %v890
      %892 = vmatmul.bf16.gmra.mxu0 %v604
      %v893 = vpop.f32.mrf.mxu0
      %v894 = vadd.f32 %v320, %v893
      %v895 = vpop.f32.mrf.mxu0
      %v896 = vadd.f32 %v320, %v895
      %897 = vmatmul.bf16.gmra.mxu0 %v605
      %v898 = vpop.f32.mrf.mxu0
      %v899 = vadd.f32 %v320, %v898
      %v900 = vpop.f32.mrf.mxu0
      %v901 = vadd.f32 %v320, %v900
      %902 = vmatmul.bf16.gmra.mxu0 %v606
      %v903 = vpop.f32.mrf.mxu0
      %v904 = vadd.f32 %v320, %v903
      %v905 = vpop.f32.mrf.mxu0
      %v906 = vadd.f32 %v320, %v905
      %907 = vmatmul.bf16.gmra.mxu0 %v607
      %v908 = vpop.f32.mrf.mxu0
      %v909 = vadd.f32 %v320, %v908
      %v910 = vpop.f32.mrf.mxu0
      %v911 = vadd.f32 %v320, %v910
      %912 = vmatmul.bf16.gmra.mxu0 %v608
      %v913 = vpop.f32.mrf.mxu0
      %v914 = vadd.f32 %v320, %v913
      %v915 = vpop.f32.mrf.mxu0
      %v916 = vadd.f32 %v320, %v915
      %917 = vmatmul.bf16.gmra.mxu0 %v609
      %v918 = vpop.f32.mrf.mxu0
      %v919 = vadd.f32 %v320, %v918
      %v920 = vpop.f32.mrf.mxu0
      %v921 = vadd.f32 %v320, %v920
      %922 = vmatmul.bf16.gmra.mxu0 %v610
      %v923 = vpop.f32.mrf.mxu0
      %v924 = vadd.f32 %v320, %v923
      %v925 = vpop.f32.mrf.mxu0
      %v926 = vadd.f32 %v320, %v925
      %927 = vmatmul.bf16.gmra.mxu0 %v611
      %v928 = vpop.f32.mrf.mxu0
      %v929 = vadd.f32 %v320, %v928
      %v930 = vpop.f32.mrf.mxu0
      %v931 = vadd.f32 %v320, %v930
      %932 = vmatmul.bf16.gmra.mxu0 %v612
      %v933 = vpop.f32.mrf.mxu0
      %v934 = vadd.f32 %v320, %v933
      %v935 = vpop.f32.mrf.mxu0
      %v936 = vadd.f32 %v320, %v935
      %937 = vmatmul.bf16.gmra.mxu0 %v613
      %v938 = vpop.f32.mrf.mxu0
      %v939 = vadd.f32 %v320, %v938
      %v940 = vpop.f32.mrf.mxu0
      %v941 = vadd.f32 %v320, %v940
      %942 = vmatmul.bf16.gmra.mxu0 %v614
      %v943 = vpop.f32.mrf.mxu0
      %v944 = vadd.f32 %v320, %v943
      %v945 = vpop.f32.mrf.mxu0
      %v946 = vadd.f32 %v320, %v945
      %947 = vmatmul.bf16.gmra.mxu0 %v615
      %v948 = vpop.f32.mrf.mxu0
      %v949 = vadd.f32 %v320, %v948
      %v950 = vpop.f32.mrf.mxu0
      %v951 = vadd.f32 %v320, %v950
      %952 = vmatmul.bf16.gmra.mxu0 %v616
      %v953 = vpop.f32.mrf.mxu0
      %v954 = vadd.f32 %v320, %v953
      %v955 = vpop.f32.mrf.mxu0
      %v956 = vadd.f32 %v320, %v955
      %957 = vmatmul.bf16.gmra.mxu0 %v617
      %v958 = vpop.f32.mrf.mxu0
      %v959 = vadd.f32 %v320, %v958
      %v960 = vpop.f32.mrf.mxu0
      %v961 = vadd.f32 %v320, %v960
      %962 = vmatmul.bf16.gmra.mxu0 %v618
      %v963 = vpop.f32.mrf.mxu0
      %v964 = vadd.f32 %v320, %v963
      %v965 = vpop.f32.mrf.mxu0
      %v966 = vadd.f32 %v320, %v965
      %967 = vmatmul.bf16.gmra.mxu0 %v619
      %v968 = vpop.f32.mrf.mxu0
      %v969 = vadd.f32 %v320, %v968
      %v970 = vpop.f32.mrf.mxu0
      %v971 = vadd.f32 %v320, %v970
      %972 = vmatmul.bf16.gmra.mxu0 %v620
      %v973 = vpop.f32.mrf.mxu0
      %v974 = vadd.f32 %v320, %v973
      %v975 = vpop.f32.mrf.mxu0
      %v976 = vadd.f32 %v320, %v975
      %977 = vmatmul.bf16.gmra.mxu0 %v621
      %v978 = vpop.f32.mrf.mxu0
      %v979 = vadd.f32 %v320, %v978
      %v980 = vpop.f32.mrf.mxu0
      %v981 = vadd.f32 %v320, %v980
      %982 = vmatmul.bf16.gmra.mxu0 %v622
      %v983 = vpop.f32.mrf.mxu0
      %v984 = vadd.f32 %v320, %v983
      %v985 = vpop.f32.mrf.mxu0
      %v986 = vadd.f32 %v320, %v985
      %987 = vmatmul.bf16.gmra.mxu0 %v623
      %v988 = vpop.f32.mrf.mxu0
      %v989 = vadd.f32 %v320, %v988
      %v990 = vpop.f32.mrf.mxu0
      %v991 = vadd.f32 %v320, %v990
      %992 = vmatmul.bf16.gmra.mxu0 %v624
      %v993 = vpop.f32.mrf.mxu0
      %v994 = vadd.f32 %v320, %v993
      %v995 = vpop.f32.mrf.mxu0
      %v996 = vadd.f32 %v320, %v995
      %997 = vmatmul.bf16.gmra.mxu0 %v625
      %v998 = vpop.f32.mrf.mxu0
      %v999 = vadd.f32 %v320, %v998
      %v1000 = vpop.f32.mrf.mxu0
      %v1001 = vadd.f32 %v320, %v1000
      %1002 = vmatmul.bf16.gmra.mxu0 %v626
      %v1003 = vpop.f32.mrf.mxu0
      %v1004 = vadd.f32 %v320, %v1003
      %v1005 = vpop.f32.mrf.mxu0
      %v1006 = vadd.f32 %v320, %v1005
      %1007 = vmatmul.bf16.gmra.mxu0 %v627
      %v1008 = vpop.f32.mrf.mxu0
      %v1009 = vadd.f32 %v320, %v1008
      %v1010 = vpop.f32.mrf.mxu0
      %v1011 = vadd.f32 %v320, %v1010
      %1012 = vmatmul.bf16.gmra.mxu0 %v628
      %v1013 = vpop.f32.mrf.mxu0
      %v1014 = vadd.f32 %v320, %v1013
      %v1015 = vpop.f32.mrf.mxu0
      %v1016 = vadd.f32 %v320, %v1015
      %1017 = vmatmul.bf16.gmra.mxu0 %v629
      %v1018 = vpop.f32.mrf.mxu0
      %v1019 = vadd.f32 %v320, %v1018
      %v1020 = vpop.f32.mrf.mxu0
      %v1021 = vadd.f32 %v320, %v1020
      %1022 = vmatmul.bf16.gmra.mxu0 %v630
      %v1023 = vpop.f32.mrf.mxu0
      %v1024 = vadd.f32 %v320, %v1023
      %v1025 = vpop.f32.mrf.mxu0
      %v1026 = vadd.f32 %v320, %v1025
      %1027 = vmatmul.bf16.gmra.mxu0 %v631
      %v1028 = vpop.f32.mrf.mxu0
      %v1029 = vadd.f32 %v320, %v1028
      %v1030 = vpop.f32.mrf.mxu0
      %v1031 = vadd.f32 %v320, %v1030
      %1032 = vmatmul.bf16.gmra.mxu0 %v632
      %v1033 = vpop.f32.mrf.mxu0
      %v1034 = vadd.f32 %v320, %v1033
      %v1035 = vpop.f32.mrf.mxu0
      %v1036 = vadd.f32 %v320, %v1035
      %1037 = vmatmul.bf16.gmra.mxu0 %v633
      %v1038 = vpop.f32.mrf.mxu0
      %v1039 = vadd.f32 %v320, %v1038
      %v1040 = vpop.f32.mrf.mxu0
      %v1041 = vadd.f32 %v320, %v1040
      %1042 = vmatmul.bf16.gmra.mxu0 %v634
      %v1043 = vpop.f32.mrf.mxu0
      %v1044 = vadd.f32 %v320, %v1043
      %v1045 = vpop.f32.mrf.mxu0
      %v1046 = vadd.f32 %v320, %v1045
      %1047 = vmatmul.bf16.gmra.mxu0 %v635
      %v1048 = vpop.f32.mrf.mxu0
      %v1049 = vadd.f32 %v320, %v1048
      %v1050 = vpop.f32.mrf.mxu0
      %v1051 = vadd.f32 %v320, %v1050
      %1052 = vmatmul.bf16.gmra.mxu0 %v636
      %v1053 = vpop.f32.mrf.mxu0
      %v1054 = vadd.f32 %v320, %v1053
      %v1055 = vpop.f32.mrf.mxu0
      %v1056 = vadd.f32 %v320, %v1055
      %1057 = vmatmul.bf16.gmra.mxu0 %v637
      %v1058 = vpop.f32.mrf.mxu0
      %v1059 = vadd.f32 %v320, %v1058
      %v1060 = vpop.f32.mrf.mxu0
      %v1061 = vadd.f32 %v320, %v1060
      %1062 = vmatmul.bf16.gmra.mxu0 %v638
      %v1063 = vpop.f32.mrf.mxu0
      %v1064 = vadd.f32 %v320, %v1063
      %v1065 = vpop.f32.mrf.mxu0
      %v1066 = vadd.f32 %v320, %v1065
      %1067 = vmatmul.bf16.gmra.mxu0 %v639
      %v1068 = vpop.f32.mrf.mxu0
      %v1069 = vadd.f32 %v320, %v1068
      %v1070 = vpop.f32.mrf.mxu0
      %v1071 = vadd.f32 %v320, %v1070
      %1072 = vmatmul.bf16.gmra.mxu0 %v640
      %v1073 = vpop.f32.mrf.mxu0
      %v1074 = vadd.f32 %v320, %v1073
      %v1075 = vpop.f32.mrf.mxu0
      %v1076 = vadd.f32 %v320, %v1075
      %1077 = vmatmul.bf16.gmra.mxu0 %v641
      %v1078 = vpop.f32.mrf.mxu0
      %v1079 = vadd.f32 %v320, %v1078
      %v1080 = vpop.f32.mrf.mxu0
      %v1081 = vadd.f32 %v320, %v1080
      %1082 = vdwg.mxu0
      %v1083 = vpack.c.bf16 %v764, %v764
      %v1084 = vpack.c.bf16 %v766, %v766
      %v1085 = vpack.c.bf16 %v769, %v769
      %v1086 = vpack.c.bf16 %v771, %v771
      %v1087 = vpack.c.bf16 %v774, %v774
      %v1088 = vpack.c.bf16 %v776, %v776
      %v1089 = vpack.c.bf16 %v779, %v779
      %v1090 = vpack.c.bf16 %v781, %v781
      %v1091 = vpack.c.bf16 %v784, %v784
      %v1092 = vpack.c.bf16 %v786, %v786
      %v1093 = vpack.c.bf16 %v789, %v789
      %v1094 = vpack.c.bf16 %v791, %v791
      %v1095 = vpack.c.bf16 %v794, %v794
      %v1096 = vpack.c.bf16 %v796, %v796
      %v1097 = vpack.c.bf16 %v799, %v799
      %v1098 = vpack.c.bf16 %v801, %v801
      %v1099 = vpack.c.bf16 %v804, %v804
      %v1100 = vpack.c.bf16 %v806, %v806
      %v1101 = vpack.c.bf16 %v809, %v809
      %v1102 = vpack.c.bf16 %v811, %v811
      %v1103 = vpack.c.bf16 %v814, %v814
      %v1104 = vpack.c.bf16 %v816, %v816
      %v1105 = vpack.c.bf16 %v819, %v819
      %v1106 = vpack.c.bf16 %v821, %v821
      %v1107 = vpack.c.bf16 %v824, %v824
      %v1108 = vpack.c.bf16 %v826, %v826
      %v1109 = vpack.c.bf16 %v829, %v829
      %v1110 = vpack.c.bf16 %v831, %v831
      %v1111 = vpack.c.bf16 %v834, %v834
      %v1112 = vpack.c.bf16 %v836, %v836
      %v1113 = vpack.c.bf16 %v839, %v839
      %v1114 = vpack.c.bf16 %v841, %v841
      %v1115 = vpack.c.bf16 %v844, %v844
      %v1116 = vpack.c.bf16 %v846, %v846
      %v1117 = vpack.c.bf16 %v849, %v849
      %v1118 = vpack.c.bf16 %v851, %v851
      %v1119 = vpack.c.bf16 %v854, %v854
      %v1120 = vpack.c.bf16 %v856, %v856
      %v1121 = vpack.c.bf16 %v859, %v859
      %v1122 = vpack.c.bf16 %v861, %v861
      %v1123 = vpack.c.bf16 %v864, %v864
      %v1124 = vpack.c.bf16 %v866, %v866
      %v1125 = vpack.c.bf16 %v869, %v869
      %v1126 = vpack.c.bf16 %v871, %v871
      %v1127 = vpack.c.bf16 %v874, %v874
      %v1128 = vpack.c.bf16 %v876, %v876
      %v1129 = vpack.c.bf16 %v879, %v879
      %v1130 = vpack.c.bf16 %v881, %v881
      %v1131 = vpack.c.bf16 %v884, %v884
      %v1132 = vpack.c.bf16 %v886, %v886
      %v1133 = vpack.c.bf16 %v889, %v889
      %v1134 = vpack.c.bf16 %v891, %v891
      %v1135 = vpack.c.bf16 %v894, %v894
      %v1136 = vpack.c.bf16 %v896, %v896
      %v1137 = vpack.c.bf16 %v899, %v899
      %v1138 = vpack.c.bf16 %v901, %v901
      %v1139 = vpack.c.bf16 %v904, %v904
      %v1140 = vpack.c.bf16 %v906, %v906
      %v1141 = vpack.c.bf16 %v909, %v909
      %v1142 = vpack.c.bf16 %v911, %v911
      %v1143 = vpack.c.bf16 %v914, %v914
      %v1144 = vpack.c.bf16 %v916, %v916
      %v1145 = vpack.c.bf16 %v919, %v919
      %v1146 = vpack.c.bf16 %v921, %v921
      %v1147 = vpack.c.bf16 %v924, %v924
      %v1148 = vpack.c.bf16 %v926, %v926
      %v1149 = vpack.c.bf16 %v929, %v929
      %v1150 = vpack.c.bf16 %v931, %v931
      %v1151 = vpack.c.bf16 %v934, %v934
      %v1152 = vpack.c.bf16 %v936, %v936
      %v1153 = vpack.c.bf16 %v939, %v939
      %v1154 = vpack.c.bf16 %v941, %v941
      %v1155 = vpack.c.bf16 %v944, %v944
      %v1156 = vpack.c.bf16 %v946, %v946
      %v1157 = vpack.c.bf16 %v949, %v949
      %v1158 = vpack.c.bf16 %v951, %v951
      %v1159 = vpack.c.bf16 %v954, %v954
      %v1160 = vpack.c.bf16 %v956, %v956
      %v1161 = vpack.c.bf16 %v959, %v959
      %v1162 = vpack.c.bf16 %v961, %v961
      %v1163 = vpack.c.bf16 %v964, %v964
      %v1164 = vpack.c.bf16 %v966, %v966
      %v1165 = vpack.c.bf16 %v969, %v969
      %v1166 = vpack.c.bf16 %v971, %v971
      %v1167 = vpack.c.bf16 %v974, %v974
      %v1168 = vpack.c.bf16 %v976, %v976
      %v1169 = vpack.c.bf16 %v979, %v979
      %v1170 = vpack.c.bf16 %v981, %v981
      %v1171 = vpack.c.bf16 %v984, %v984
      %v1172 = vpack.c.bf16 %v986, %v986
      %v1173 = vpack.c.bf16 %v989, %v989
      %v1174 = vpack.c.bf16 %v991, %v991
      %v1175 = vpack.c.bf16 %v994, %v994
      %v1176 = vpack.c.bf16 %v996, %v996
      %v1177 = vpack.c.bf16 %v999, %v999
      %v1178 = vpack.c.bf16 %v1001, %v1001
      %v1179 = vpack.c.bf16 %v1004, %v1004
      %v1180 = vpack.c.bf16 %v1006, %v1006
      %v1181 = vpack.c.bf16 %v1009, %v1009
      %v1182 = vpack.c.bf16 %v1011, %v1011
      %v1183 = vpack.c.bf16 %v1014, %v1014
      %v1184 = vpack.c.bf16 %v1016, %v1016
      %v1185 = vpack.c.bf16 %v1019, %v1019
      %v1186 = vpack.c.bf16 %v1021, %v1021
      %v1187 = vpack.c.bf16 %v1024, %v1024
      %v1188 = vpack.c.bf16 %v1026, %v1026
      %v1189 = vpack.c.bf16 %v1029, %v1029
      %v1190 = vpack.c.bf16 %v1031, %v1031
      %v1191 = vpack.c.bf16 %v1034, %v1034
      %v1192 = vpack.c.bf16 %v1036, %v1036
      %v1193 = vpack.c.bf16 %v1039, %v1039
      %v1194 = vpack.c.bf16 %v1041, %v1041
      %v1195 = vpack.c.bf16 %v1044, %v1044
      %v1196 = vpack.c.bf16 %v1046, %v1046
      %v1197 = vpack.c.bf16 %v1049, %v1049
      %v1198 = vpack.c.bf16 %v1051, %v1051
      %v1199 = vpack.c.bf16 %v1054, %v1054
      %v1200 = vpack.c.bf16 %v1056, %v1056
      %v1201 = vpack.c.bf16 %v1059, %v1059
      %v1202 = vpack.c.bf16 %v1061, %v1061
      %v1203 = vpack.c.bf16 %v1064, %v1064
      %v1204 = vpack.c.bf16 %v1066, %v1066
      %v1205 = vpack.c.bf16 %v1069, %v1069
      %v1206 = vpack.c.bf16 %v1071, %v1071
      %v1207 = vpack.c.bf16 %v1074, %v1074
      %v1208 = vpack.c.bf16 %v1076, %v1076
      %v1209 = vpack.c.bf16 %v1079, %v1079
      %v1210 = vpack.c.bf16 %v1081, %v1081
      %v1211 = vunpack.c.l.bf16 %v1083
      %v1212 = vunpack.c.l.bf16 %v1084
      %v1213 = vunpack.c.l.bf16 %v1085
      %v1214 = vunpack.c.l.bf16 %v1086
      %v1215 = vunpack.c.l.bf16 %v1087
      %v1216 = vunpack.c.l.bf16 %v1088
      %v1217 = vunpack.c.l.bf16 %v1089
      %v1218 = vunpack.c.l.bf16 %v1090
      %v1219 = vunpack.c.l.bf16 %v1091
      %v1220 = vunpack.c.l.bf16 %v1092
      %v1221 = vunpack.c.l.bf16 %v1093
      %v1222 = vunpack.c.l.bf16 %v1094
      %v1223 = vunpack.c.l.bf16 %v1095
      %v1224 = vunpack.c.l.bf16 %v1096
      %v1225 = vunpack.c.l.bf16 %v1097
      %v1226 = vunpack.c.l.bf16 %v1098
      %v1227 = vunpack.c.l.bf16 %v1099
      %v1228 = vunpack.c.l.bf16 %v1100
      %v1229 = vunpack.c.l.bf16 %v1101
      %v1230 = vunpack.c.l.bf16 %v1102
      %v1231 = vunpack.c.l.bf16 %v1103
      %v1232 = vunpack.c.l.bf16 %v1104
      %v1233 = vunpack.c.l.bf16 %v1105
      %v1234 = vunpack.c.l.bf16 %v1106
      %v1235 = vunpack.c.l.bf16 %v1107
      %v1236 = vunpack.c.l.bf16 %v1108
      %v1237 = vunpack.c.l.bf16 %v1109
      %v1238 = vunpack.c.l.bf16 %v1110
      %v1239 = vunpack.c.l.bf16 %v1111
      %v1240 = vunpack.c.l.bf16 %v1112
      %v1241 = vunpack.c.l.bf16 %v1113
      %v1242 = vunpack.c.l.bf16 %v1114
      %v1243 = vunpack.c.l.bf16 %v1115
      %v1244 = vunpack.c.l.bf16 %v1116
      %v1245 = vunpack.c.l.bf16 %v1117
      %v1246 = vunpack.c.l.bf16 %v1118
      %v1247 = vunpack.c.l.bf16 %v1119
      %v1248 = vunpack.c.l.bf16 %v1120
      %v1249 = vunpack.c.l.bf16 %v1121
      %v1250 = vunpack.c.l.bf16 %v1122
      %v1251 = vunpack.c.l.bf16 %v1123
      %v1252 = vunpack.c.l.bf16 %v1124
      %v1253 = vunpack.c.l.bf16 %v1125
      %v1254 = vunpack.c.l.bf16 %v1126
      %v1255 = vunpack.c.l.bf16 %v1127
      %v1256 = vunpack.c.l.bf16 %v1128
      %v1257 = vunpack.c.l.bf16 %v1129
      %v1258 = vunpack.c.l.bf16 %v1130
      %v1259 = vunpack.c.l.bf16 %v1131
      %v1260 = vunpack.c.l.bf16 %v1132
      %v1261 = vunpack.c.l.bf16 %v1133
      %v1262 = vunpack.c.l.bf16 %v1134
      %v1263 = vunpack.c.l.bf16 %v1135
      %v1264 = vunpack.c.l.bf16 %v1136
      %v1265 = vunpack.c.l.bf16 %v1137
      %v1266 = vunpack.c.l.bf16 %v1138
      %v1267 = vunpack.c.l.bf16 %v1139
      %v1268 = vunpack.c.l.bf16 %v1140
      %v1269 = vunpack.c.l.bf16 %v1141
      %v1270 = vunpack.c.l.bf16 %v1142
      %v1271 = vunpack.c.l.bf16 %v1143
      %v1272 = vunpack.c.l.bf16 %v1144
      %v1273 = vunpack.c.l.bf16 %v1145
      %v1274 = vunpack.c.l.bf16 %v1146
      %v1275 = vunpack.c.l.bf16 %v1147
      %v1276 = vunpack.c.l.bf16 %v1148
      %v1277 = vunpack.c.l.bf16 %v1149
      %v1278 = vunpack.c.l.bf16 %v1150
      %v1279 = vunpack.c.l.bf16 %v1151
      %v1280 = vunpack.c.l.bf16 %v1152
      %v1281 = vunpack.c.l.bf16 %v1153
      %v1282 = vunpack.c.l.bf16 %v1154
      %v1283 = vunpack.c.l.bf16 %v1155
      %v1284 = vunpack.c.l.bf16 %v1156
      %v1285 = vunpack.c.l.bf16 %v1157
      %v1286 = vunpack.c.l.bf16 %v1158
      %v1287 = vunpack.c.l.bf16 %v1159
      %v1288 = vunpack.c.l.bf16 %v1160
      %v1289 = vunpack.c.l.bf16 %v1161
      %v1290 = vunpack.c.l.bf16 %v1162
      %v1291 = vunpack.c.l.bf16 %v1163
      %v1292 = vunpack.c.l.bf16 %v1164
      %v1293 = vunpack.c.l.bf16 %v1165
      %v1294 = vunpack.c.l.bf16 %v1166
      %v1295 = vunpack.c.l.bf16 %v1167
      %v1296 = vunpack.c.l.bf16 %v1168
      %v1297 = vunpack.c.l.bf16 %v1169
      %v1298 = vunpack.c.l.bf16 %v1170
      %v1299 = vunpack.c.l.bf16 %v1171
      %v1300 = vunpack.c.l.bf16 %v1172
      %v1301 = vunpack.c.l.bf16 %v1173
      %v1302 = vunpack.c.l.bf16 %v1174
      %v1303 = vunpack.c.l.bf16 %v1175
      %v1304 = vunpack.c.l.bf16 %v1176
      %v1305 = vunpack.c.l.bf16 %v1177
      %v1306 = vunpack.c.l.bf16 %v1178
      %v1307 = vunpack.c.l.bf16 %v1179
      %v1308 = vunpack.c.l.bf16 %v1180
      %v1309 = vunpack.c.l.bf16 %v1181
      %v1310 = vunpack.c.l.bf16 %v1182
      %v1311 = vunpack.c.l.bf16 %v1183
      %v1312 = vunpack.c.l.bf16 %v1184
      %v1313 = vunpack.c.l.bf16 %v1185
      %v1314 = vunpack.c.l.bf16 %v1186
      %v1315 = vunpack.c.l.bf16 %v1187
      %v1316 = vunpack.c.l.bf16 %v1188
      %v1317 = vunpack.c.l.bf16 %v1189
      %v1318 = vunpack.c.l.bf16 %v1190
      %v1319 = vunpack.c.l.bf16 %v1191
      %v1320 = vunpack.c.l.bf16 %v1192
      %v1321 = vunpack.c.l.bf16 %v1193
      %v1322 = vunpack.c.l.bf16 %v1194
      %v1323 = vunpack.c.l.bf16 %v1195
      %v1324 = vunpack.c.l.bf16 %v1196
      %v1325 = vunpack.c.l.bf16 %v1197
      %v1326 = vunpack.c.l.bf16 %v1198
      %v1327 = vunpack.c.l.bf16 %v1199
      %v1328 = vunpack.c.l.bf16 %v1200
      %v1329 = vunpack.c.l.bf16 %v1201
      %v1330 = vunpack.c.l.bf16 %v1202
      %v1331 = vunpack.c.l.bf16 %v1203
      %v1332 = vunpack.c.l.bf16 %v1204
      %v1333 = vunpack.c.l.bf16 %v1205
      %v1334 = vunpack.c.l.bf16 %v1206
      %v1335 = vunpack.c.l.bf16 %v1207
      %v1336 = vunpack.c.l.bf16 %v1208
      %v1337 = vunpack.c.l.bf16 %v1209
      %v1338 = vunpack.c.l.bf16 %v1210
      %vm1339 = vcmp.gt.f32.partialorder %v1211, 0.0
      %vm1340 = vcmp.gt.f32.partialorder %v1212, 0.0
      %vm1341 = vcmp.gt.f32.partialorder %v1213, 0.0
      %vm1342 = vcmp.gt.f32.partialorder %v1214, 0.0
      %vm1343 = vcmp.gt.f32.partialorder %v1215, 0.0
      %vm1344 = vcmp.gt.f32.partialorder %v1216, 0.0
      %vm1345 = vcmp.gt.f32.partialorder %v1217, 0.0
      %vm1346 = vcmp.gt.f32.partialorder %v1218, 0.0
      %vm1347 = vcmp.gt.f32.partialorder %v1219, 0.0
      %vm1348 = vcmp.gt.f32.partialorder %v1220, 0.0
      %vm1349 = vcmp.gt.f32.partialorder %v1221, 0.0
      %vm1350 = vcmp.gt.f32.partialorder %v1222, 0.0
      %vm1351 = vcmp.gt.f32.partialorder %v1223, 0.0
      %vm1352 = vcmp.gt.f32.partialorder %v1224, 0.0
      %vm1353 = vcmp.gt.f32.partialorder %v1225, 0.0
      %vm1354 = vcmp.gt.f32.partialorder %v1226, 0.0
      %vm1355 = vcmp.gt.f32.partialorder %v1227, 0.0
      %vm1356 = vcmp.gt.f32.partialorder %v1228, 0.0
      %vm1357 = vcmp.gt.f32.partialorder %v1229, 0.0
      %vm1358 = vcmp.gt.f32.partialorder %v1230, 0.0
      %vm1359 = vcmp.gt.f32.partialorder %v1231, 0.0
      %vm1360 = vcmp.gt.f32.partialorder %v1232, 0.0
      %vm1361 = vcmp.gt.f32.partialorder %v1233, 0.0
      %vm1362 = vcmp.gt.f32.partialorder %v1234, 0.0
      %vm1363 = vcmp.gt.f32.partialorder %v1235, 0.0
      %vm1364 = vcmp.gt.f32.partialorder %v1236, 0.0
      %vm1365 = vcmp.gt.f32.partialorder %v1237, 0.0
      %vm1366 = vcmp.gt.f32.partialorder %v1238, 0.0
      %vm1367 = vcmp.gt.f32.partialorder %v1239, 0.0
      %vm1368 = vcmp.gt.f32.partialorder %v1240, 0.0
      %vm1369 = vcmp.gt.f32.partialorder %v1241, 0.0
      %vm1370 = vcmp.gt.f32.partialorder %v1242, 0.0
      %vm1371 = vcmp.gt.f32.partialorder %v1243, 0.0
      %vm1372 = vcmp.gt.f32.partialorder %v1244, 0.0
      %vm1373 = vcmp.gt.f32.partialorder %v1245, 0.0
      %vm1374 = vcmp.gt.f32.partialorder %v1246, 0.0
      %vm1375 = vcmp.gt.f32.partialorder %v1247, 0.0
      %vm1376 = vcmp.gt.f32.partialorder %v1248, 0.0
      %vm1377 = vcmp.gt.f32.partialorder %v1249, 0.0
      %vm1378 = vcmp.gt.f32.partialorder %v1250, 0.0
      %vm1379 = vcmp.gt.f32.partialorder %v1251, 0.0
      %vm1380 = vcmp.gt.f32.partialorder %v1252, 0.0
      %vm1381 = vcmp.gt.f32.partialorder %v1253, 0.0
      %vm1382 = vcmp.gt.f32.partialorder %v1254, 0.0
      %vm1383 = vcmp.gt.f32.partialorder %v1255, 0.0
      %vm1384 = vcmp.gt.f32.partialorder %v1256, 0.0
      %vm1385 = vcmp.gt.f32.partialorder %v1257, 0.0
      %vm1386 = vcmp.gt.f32.partialorder %v1258, 0.0
      %vm1387 = vcmp.gt.f32.partialorder %v1259, 0.0
      %vm1388 = vcmp.gt.f32.partialorder %v1260, 0.0
      %vm1389 = vcmp.gt.f32.partialorder %v1261, 0.0
      %vm1390 = vcmp.gt.f32.partialorder %v1262, 0.0
      %vm1391 = vcmp.gt.f32.partialorder %v1263, 0.0
      %vm1392 = vcmp.gt.f32.partialorder %v1264, 0.0
      %vm1393 = vcmp.gt.f32.partialorder %v1265, 0.0
      %vm1394 = vcmp.gt.f32.partialorder %v1266, 0.0
      %vm1395 = vcmp.gt.f32.partialorder %v1267, 0.0
      %vm1396 = vcmp.gt.f32.partialorder %v1268, 0.0
      %vm1397 = vcmp.gt.f32.partialorder %v1269, 0.0
      %vm1398 = vcmp.gt.f32.partialorder %v1270, 0.0
      %vm1399 = vcmp.gt.f32.partialorder %v1271, 0.0
      %vm1400 = vcmp.gt.f32.partialorder %v1272, 0.0
      %vm1401 = vcmp.gt.f32.partialorder %v1273, 0.0
      %vm1402 = vcmp.gt.f32.partialorder %v1274, 0.0
      %vm1403 = vcmp.gt.f32.partialorder %v1275, 0.0
      %vm1404 = vcmp.gt.f32.partialorder %v1276, 0.0
      %vm1405 = vcmp.gt.f32.partialorder %v1277, 0.0
      %vm1406 = vcmp.gt.f32.partialorder %v1278, 0.0
      %vm1407 = vcmp.gt.f32.partialorder %v1279, 0.0
      %vm1408 = vcmp.gt.f32.partialorder %v1280, 0.0
      %vm1409 = vcmp.gt.f32.partialorder %v1281, 0.0
      %vm1410 = vcmp.gt.f32.partialorder %v1282, 0.0
      %vm1411 = vcmp.gt.f32.partialorder %v1283, 0.0
      %vm1412 = vcmp.gt.f32.partialorder %v1284, 0.0
      %vm1413 = vcmp.gt.f32.partialorder %v1285, 0.0
      %vm1414 = vcmp.gt.f32.partialorder %v1286, 0.0
      %vm1415 = vcmp.gt.f32.partialorder %v1287, 0.0
      %vm1416 = vcmp.gt.f32.partialorder %v1288, 0.0
      %vm1417 = vcmp.gt.f32.partialorder %v1289, 0.0
      %vm1418 = vcmp.gt.f32.partialorder %v1290, 0.0
      %vm1419 = vcmp.gt.f32.partialorder %v1291, 0.0
      %vm1420 = vcmp.gt.f32.partialorder %v1292, 0.0
      %vm1421 = vcmp.gt.f32.partialorder %v1293, 0.0
      %vm1422 = vcmp.gt.f32.partialorder %v1294, 0.0
      %vm1423 = vcmp.gt.f32.partialorder %v1295, 0.0
      %vm1424 = vcmp.gt.f32.partialorder %v1296, 0.0
      %vm1425 = vcmp.gt.f32.partialorder %v1297, 0.0
      %vm1426 = vcmp.gt.f32.partialorder %v1298, 0.0
      %vm1427 = vcmp.gt.f32.partialorder %v1299, 0.0
      %vm1428 = vcmp.gt.f32.partialorder %v1300, 0.0
      %vm1429 = vcmp.gt.f32.partialorder %v1301, 0.0
      %vm1430 = vcmp.gt.f32.partialorder %v1302, 0.0
      %vm1431 = vcmp.gt.f32.partialorder %v1303, 0.0
      %vm1432 = vcmp.gt.f32.partialorder %v1304, 0.0
      %vm1433 = vcmp.gt.f32.partialorder %v1305, 0.0
      %vm1434 = vcmp.gt.f32.partialorder %v1306, 0.0
      %vm1435 = vcmp.gt.f32.partialorder %v1307, 0.0
      %vm1436 = vcmp.gt.f32.partialorder %v1308, 0.0
      %vm1437 = vcmp.gt.f32.partialorder %v1309, 0.0
      %vm1438 = vcmp.gt.f32.partialorder %v1310, 0.0
      %vm1439 = vcmp.gt.f32.partialorder %v1311, 0.0
      %vm1440 = vcmp.gt.f32.partialorder %v1312, 0.0
      %vm1441 = vcmp.gt.f32.partialorder %v1313, 0.0
      %vm1442 = vcmp.gt.f32.partialorder %v1314, 0.0
      %vm1443 = vcmp.gt.f32.partialorder %v1315, 0.0
      %vm1444 = vcmp.gt.f32.partialorder %v1316, 0.0
      %vm1445 = vcmp.gt.f32.partialorder %v1317, 0.0
      %vm1446 = vcmp.gt.f32.partialorder %v1318, 0.0
      %vm1447 = vcmp.gt.f32.partialorder %v1319, 0.0
      %vm1448 = vcmp.gt.f32.partialorder %v1320, 0.0
      %vm1449 = vcmp.gt.f32.partialorder %v1321, 0.0
      %vm1450 = vcmp.gt.f32.partialorder %v1322, 0.0
      %vm1451 = vcmp.gt.f32.partialorder %v1323, 0.0
      %vm1452 = vcmp.gt.f32.partialorder %v1324, 0.0
      %vm1453 = vcmp.gt.f32.partialorder %v1325, 0.0
      %vm1454 = vcmp.gt.f32.partialorder %v1326, 0.0
      %vm1455 = vcmp.gt.f32.partialorder %v1327, 0.0
      %vm1456 = vcmp.gt.f32.partialorder %v1328, 0.0
      %vm1457 = vcmp.gt.f32.partialorder %v1329, 0.0
      %vm1458 = vcmp.gt.f32.partialorder %v1330, 0.0
      %vm1459 = vcmp.gt.f32.partialorder %v1331, 0.0
      %vm1460 = vcmp.gt.f32.partialorder %v1332, 0.0
      %vm1461 = vcmp.gt.f32.partialorder %v1333, 0.0
      %vm1462 = vcmp.gt.f32.partialorder %v1334, 0.0
      %vm1463 = vcmp.gt.f32.partialorder %v1335, 0.0
      %vm1464 = vcmp.gt.f32.partialorder %v1336, 0.0
      %vm1465 = vcmp.gt.f32.partialorder %v1337, 0.0
      %vm1466 = vcmp.gt.f32.partialorder %v1338, 0.0
      %v1467 = vmul.f32 %v1211, 0.100097656
      %v1468 = vmul.f32 %v1212, 0.100097656
      %v1469 = vmul.f32 %v1213, 0.100097656
      %v1470 = vmul.f32 %v1214, 0.100097656
      %v1471 = vmul.f32 %v1215, 0.100097656
      %v1472 = vmul.f32 %v1216, 0.100097656
      %v1473 = vmul.f32 %v1217, 0.100097656
      %v1474 = vmul.f32 %v1218, 0.100097656
      %v1475 = vmul.f32 %v1219, 0.100097656
      %v1476 = vmul.f32 %v1220, 0.100097656
      %v1477 = vmul.f32 %v1221, 0.100097656
      %v1478 = vmul.f32 %v1222, 0.100097656
      %v1479 = vmul.f32 %v1223, 0.100097656
      %v1480 = vmul.f32 %v1224, 0.100097656
      %v1481 = vmul.f32 %v1225, 0.100097656
      %v1482 = vmul.f32 %v1226, 0.100097656
      %v1483 = vmul.f32 %v1227, 0.100097656
      %v1484 = vmul.f32 %v1228, 0.100097656
      %v1485 = vmul.f32 %v1229, 0.100097656
      %v1486 = vmul.f32 %v1230, 0.100097656
      %v1487 = vmul.f32 %v1231, 0.100097656
      %v1488 = vmul.f32 %v1232, 0.100097656
      %v1489 = vmul.f32 %v1233, 0.100097656
      %v1490 = vmul.f32 %v1234, 0.100097656
      %v1491 = vmul.f32 %v1235, 0.100097656
      %v1492 = vmul.f32 %v1236, 0.100097656
      %v1493 = vmul.f32 %v1237, 0.100097656
      %v1494 = vmul.f32 %v1238, 0.100097656
      %v1495 = vmul.f32 %v1239, 0.100097656
      %v1496 = vmul.f32 %v1240, 0.100097656
      %v1497 = vmul.f32 %v1241, 0.100097656
      %v1498 = vmul.f32 %v1242, 0.100097656
      %v1499 = vmul.f32 %v1243, 0.100097656
      %v1500 = vmul.f32 %v1244, 0.100097656
      %v1501 = vmul.f32 %v1245, 0.100097656
      %v1502 = vmul.f32 %v1246, 0.100097656
      %v1503 = vmul.f32 %v1247, 0.100097656
      %v1504 = vmul.f32 %v1248, 0.100097656
      %v1505 = vmul.f32 %v1249, 0.100097656
      %v1506 = vmul.f32 %v1250, 0.100097656
      %v1507 = vmul.f32 %v1251, 0.100097656
      %v1508 = vmul.f32 %v1252, 0.100097656
      %v1509 = vmul.f32 %v1253, 0.100097656
      %v1510 = vmul.f32 %v1254, 0.100097656
      %v1511 = vmul.f32 %v1255, 0.100097656
      %v1512 = vmul.f32 %v1256, 0.100097656
      %v1513 = vmul.f32 %v1257, 0.100097656
      %v1514 = vmul.f32 %v1258, 0.100097656
      %v1515 = vmul.f32 %v1259, 0.100097656
      %v1516 = vmul.f32 %v1260, 0.100097656
      %v1517 = vmul.f32 %v1261, 0.100097656
      %v1518 = vmul.f32 %v1262, 0.100097656
      %v1519 = vmul.f32 %v1263, 0.100097656
      %v1520 = vmul.f32 %v1264, 0.100097656
      %v1521 = vmul.f32 %v1265, 0.100097656
      %v1522 = vmul.f32 %v1266, 0.100097656
      %v1523 = vmul.f32 %v1267, 0.100097656
      %v1524 = vmul.f32 %v1268, 0.100097656
      %v1525 = vmul.f32 %v1269, 0.100097656
      %v1526 = vmul.f32 %v1270, 0.100097656
      %v1527 = vmul.f32 %v1271, 0.100097656
      %v1528 = vmul.f32 %v1272, 0.100097656
      %v1529 = vmul.f32 %v1273, 0.100097656
      %v1530 = vmul.f32 %v1274, 0.100097656
      %v1531 = vmul.f32 %v1275, 0.100097656
      %v1532 = vmul.f32 %v1276, 0.100097656
      %v1533 = vmul.f32 %v1277, 0.100097656
      %v1534 = vmul.f32 %v1278, 0.100097656
      %v1535 = vmul.f32 %v1279, 0.100097656
      %v1536 = vmul.f32 %v1280, 0.100097656
      %v1537 = vmul.f32 %v1281, 0.100097656
      %v1538 = vmul.f32 %v1282, 0.100097656
      %v1539 = vmul.f32 %v1283, 0.100097656
      %v1540 = vmul.f32 %v1284, 0.100097656
      %v1541 = vmul.f32 %v1285, 0.100097656
      %v1542 = vmul.f32 %v1286, 0.100097656
      %v1543 = vmul.f32 %v1287, 0.100097656
      %v1544 = vmul.f32 %v1288, 0.100097656
      %v1545 = vmul.f32 %v1289, 0.100097656
      %v1546 = vmul.f32 %v1290, 0.100097656
      %v1547 = vmul.f32 %v1291, 0.100097656
      %v1548 = vmul.f32 %v1292, 0.100097656
      %v1549 = vmul.f32 %v1293, 0.100097656
      %v1550 = vmul.f32 %v1294, 0.100097656
      %v1551 = vmul.f32 %v1295, 0.100097656
      %v1552 = vmul.f32 %v1296, 0.100097656
      %v1553 = vmul.f32 %v1297, 0.100097656
      %v1554 = vmul.f32 %v1298, 0.100097656
      %v1555 = vmul.f32 %v1299, 0.100097656
      %v1556 = vmul.f32 %v1300, 0.100097656
      %v1557 = vmul.f32 %v1301, 0.100097656
      %v1558 = vmul.f32 %v1302, 0.100097656
      %v1559 = vmul.f32 %v1303, 0.100097656
      %v1560 = vmul.f32 %v1304, 0.100097656
      %v1561 = vmul.f32 %v1305, 0.100097656
      %v1562 = vmul.f32 %v1306, 0.100097656
      %v1563 = vmul.f32 %v1307, 0.100097656
      %v1564 = vmul.f32 %v1308, 0.100097656
      %v1565 = vmul.f32 %v1309, 0.100097656
      %v1566 = vmul.f32 %v1310, 0.100097656
      %v1567 = vmul.f32 %v1311, 0.100097656
      %v1568 = vmul.f32 %v1312, 0.100097656
      %v1569 = vmul.f32 %v1313, 0.100097656
      %v1570 = vmul.f32 %v1314, 0.100097656
      %v1571 = vmul.f32 %v1315, 0.100097656
      %v1572 = vmul.f32 %v1316, 0.100097656
      %v1573 = vmul.f32 %v1317, 0.100097656
      %v1574 = vmul.f32 %v1318, 0.100097656
      %v1575 = vmul.f32 %v1319, 0.100097656
      %v1576 = vmul.f32 %v1320, 0.100097656
      %v1577 = vmul.f32 %v1321, 0.100097656
      %v1578 = vmul.f32 %v1322, 0.100097656
      %v1579 = vmul.f32 %v1323, 0.100097656
      %v1580 = vmul.f32 %v1324, 0.100097656
      %v1581 = vmul.f32 %v1325, 0.100097656
      %v1582 = vmul.f32 %v1326, 0.100097656
      %v1583 = vmul.f32 %v1327, 0.100097656
      %v1584 = vmul.f32 %v1328, 0.100097656
      %v1585 = vmul.f32 %v1329, 0.100097656
      %v1586 = vmul.f32 %v1330, 0.100097656
      %v1587 = vmul.f32 %v1331, 0.100097656
      %v1588 = vmul.f32 %v1332, 0.100097656
      %v1589 = vmul.f32 %v1333, 0.100097656
      %v1590 = vmul.f32 %v1334, 0.100097656
      %v1591 = vmul.f32 %v1335, 0.100097656
      %v1592 = vmul.f32 %v1336, 0.100097656
      %v1593 = vmul.f32 %v1337, 0.100097656
      %v1594 = vmul.f32 %v1338, 0.100097656
      %v1595 = vpack.c.bf16 %v1467, %v1467
      %v1596 = vpack.c.bf16 %v1468, %v1468
      %v1597 = vpack.c.bf16 %v1469, %v1469
      %v1598 = vpack.c.bf16 %v1470, %v1470
      %v1599 = vpack.c.bf16 %v1471, %v1471
      %v1600 = vpack.c.bf16 %v1472, %v1472
      %v1601 = vpack.c.bf16 %v1473, %v1473
      %v1602 = vpack.c.bf16 %v1474, %v1474
      %v1603 = vpack.c.bf16 %v1475, %v1475
      %v1604 = vpack.c.bf16 %v1476, %v1476
      %v1605 = vpack.c.bf16 %v1477, %v1477
      %v1606 = vpack.c.bf16 %v1478, %v1478
      %v1607 = vpack.c.bf16 %v1479, %v1479
      %v1608 = vpack.c.bf16 %v1480, %v1480
      %v1609 = vpack.c.bf16 %v1481, %v1481
      %v1610 = vpack.c.bf16 %v1482, %v1482
      %v1611 = vpack.c.bf16 %v1483, %v1483
      %v1612 = vpack.c.bf16 %v1484, %v1484
      %v1613 = vpack.c.bf16 %v1485, %v1485
      %v1614 = vpack.c.bf16 %v1486, %v1486
      %v1615 = vpack.c.bf16 %v1487, %v1487
      %v1616 = vpack.c.bf16 %v1488, %v1488
      %v1617 = vpack.c.bf16 %v1489, %v1489
      %v1618 = vpack.c.bf16 %v1490, %v1490
      %v1619 = vpack.c.bf16 %v1491, %v1491
      %v1620 = vpack.c.bf16 %v1492, %v1492
      %v1621 = vpack.c.bf16 %v1493, %v1493
      %v1622 = vpack.c.bf16 %v1494, %v1494
      %v1623 = vpack.c.bf16 %v1495, %v1495
      %v1624 = vpack.c.bf16 %v1496, %v1496
      %v1625 = vpack.c.bf16 %v1497, %v1497
      %v1626 = vpack.c.bf16 %v1498, %v1498
      %v1627 = vpack.c.bf16 %v1499, %v1499
      %v1628 = vpack.c.bf16 %v1500, %v1500
      %v1629 = vpack.c.bf16 %v1501, %v1501
      %v1630 = vpack.c.bf16 %v1502, %v1502
      %v1631 = vpack.c.bf16 %v1503, %v1503
      %v1632 = vpack.c.bf16 %v1504, %v1504
      %v1633 = vpack.c.bf16 %v1505, %v1505
      %v1634 = vpack.c.bf16 %v1506, %v1506
      %v1635 = vpack.c.bf16 %v1507, %v1507
      %v1636 = vpack.c.bf16 %v1508, %v1508
      %v1637 = vpack.c.bf16 %v1509, %v1509
      %v1638 = vpack.c.bf16 %v1510, %v1510
      %v1639 = vpack.c.bf16 %v1511, %v1511
      %v1640 = vpack.c.bf16 %v1512, %v1512
      %v1641 = vpack.c.bf16 %v1513, %v1513
      %v1642 = vpack.c.bf16 %v1514, %v1514
      %v1643 = vpack.c.bf16 %v1515, %v1515
      %v1644 = vpack.c.bf16 %v1516, %v1516
      %v1645 = vpack.c.bf16 %v1517, %v1517
      %v1646 = vpack.c.bf16 %v1518, %v1518
      %v1647 = vpack.c.bf16 %v1519, %v1519
      %v1648 = vpack.c.bf16 %v1520, %v1520
      %v1649 = vpack.c.bf16 %v1521, %v1521
      %v1650 = vpack.c.bf16 %v1522, %v1522
      %v1651 = vpack.c.bf16 %v1523, %v1523
      %v1652 = vpack.c.bf16 %v1524, %v1524
      %v1653 = vpack.c.bf16 %v1525, %v1525
      %v1654 = vpack.c.bf16 %v1526, %v1526
      %v1655 = vpack.c.bf16 %v1527, %v1527
      %v1656 = vpack.c.bf16 %v1528, %v1528
      %v1657 = vpack.c.bf16 %v1529, %v1529
      %v1658 = vpack.c.bf16 %v1530, %v1530
      %v1659 = vpack.c.bf16 %v1531, %v1531
      %v1660 = vpack.c.bf16 %v1532, %v1532
      %v1661 = vpack.c.bf16 %v1533, %v1533
      %v1662 = vpack.c.bf16 %v1534, %v1534
      %v1663 = vpack.c.bf16 %v1535, %v1535
      %v1664 = vpack.c.bf16 %v1536, %v1536
      %v1665 = vpack.c.bf16 %v1537, %v1537
      %v1666 = vpack.c.bf16 %v1538, %v1538
      %v1667 = vpack.c.bf16 %v1539, %v1539
      %v1668 = vpack.c.bf16 %v1540, %v1540
      %v1669 = vpack.c.bf16 %v1541, %v1541
      %v1670 = vpack.c.bf16 %v1542, %v1542
      %v1671 = vpack.c.bf16 %v1543, %v1543
      %v1672 = vpack.c.bf16 %v1544, %v1544
      %v1673 = vpack.c.bf16 %v1545, %v1545
      %v1674 = vpack.c.bf16 %v1546, %v1546
      %v1675 = vpack.c.bf16 %v1547, %v1547
      %v1676 = vpack.c.bf16 %v1548, %v1548
      %v1677 = vpack.c.bf16 %v1549, %v1549
      %v1678 = vpack.c.bf16 %v1550, %v1550
      %v1679 = vpack.c.bf16 %v1551, %v1551
      %v1680 = vpack.c.bf16 %v1552, %v1552
      %v1681 = vpack.c.bf16 %v1553, %v1553
      %v1682 = vpack.c.bf16 %v1554, %v1554
      %v1683 = vpack.c.bf16 %v1555, %v1555
      %v1684 = vpack.c.bf16 %v1556, %v1556
      %v1685 = vpack.c.bf16 %v1557, %v1557
      %v1686 = vpack.c.bf16 %v1558, %v1558
      %v1687 = vpack.c.bf16 %v1559, %v1559
      %v1688 = vpack.c.bf16 %v1560, %v1560
      %v1689 = vpack.c.bf16 %v1561, %v1561
      %v1690 = vpack.c.bf16 %v1562, %v1562
      %v1691 = vpack.c.bf16 %v1563, %v1563
      %v1692 = vpack.c.bf16 %v1564, %v1564
      %v1693 = vpack.c.bf16 %v1565, %v1565
      %v1694 = vpack.c.bf16 %v1566, %v1566
      %v1695 = vpack.c.bf16 %v1567, %v1567
      %v1696 = vpack.c.bf16 %v1568, %v1568
      %v1697 = vpack.c.bf16 %v1569, %v1569
      %v1698 = vpack.c.bf16 %v1570, %v1570
      %v1699 = vpack.c.bf16 %v1571, %v1571
      %v1700 = vpack.c.bf16 %v1572, %v1572
      %v1701 = vpack.c.bf16 %v1573, %v1573
      %v1702 = vpack.c.bf16 %v1574, %v1574
      %v1703 = vpack.c.bf16 %v1575, %v1575
      %v1704 = vpack.c.bf16 %v1576, %v1576
      %v1705 = vpack.c.bf16 %v1577, %v1577
      %v1706 = vpack.c.bf16 %v1578, %v1578
      %v1707 = vpack.c.bf16 %v1579, %v1579
      %v1708 = vpack.c.bf16 %v1580, %v1580
      %v1709 = vpack.c.bf16 %v1581, %v1581
      %v1710 = vpack.c.bf16 %v1582, %v1582
      %v1711 = vpack.c.bf16 %v1583, %v1583
      %v1712 = vpack.c.bf16 %v1584, %v1584
      %v1713 = vpack.c.bf16 %v1585, %v1585
      %v1714 = vpack.c.bf16 %v1586, %v1586
      %v1715 = vpack.c.bf16 %v1587, %v1587
      %v1716 = vpack.c.bf16 %v1588, %v1588
      %v1717 = vpack.c.bf16 %v1589, %v1589
      %v1718 = vpack.c.bf16 %v1590, %v1590
      %v1719 = vpack.c.bf16 %v1591, %v1591
      %v1720 = vpack.c.bf16 %v1592, %v1592
      %v1721 = vpack.c.bf16 %v1593, %v1593
      %v1722 = vpack.c.bf16 %v1594, %v1594
      %vm1723 = vmpackc.low %vm1339, %vm1339
      %vm1724 = vmpackc.low %vm1340, %vm1340
      %vm1725 = vmpackc.low %vm1341, %vm1341
      %vm1726 = vmpackc.low %vm1342, %vm1342
      %vm1727 = vmpackc.low %vm1343, %vm1343
      %vm1728 = vmpackc.low %vm1344, %vm1344
      %vm1729 = vmpackc.low %vm1345, %vm1345
      %vm1730 = vmpackc.low %vm1346, %vm1346
      %vm1731 = vmpackc.low %vm1347, %vm1347
      %vm1732 = vmpackc.low %vm1348, %vm1348
      %vm1733 = vmpackc.low %vm1349, %vm1349
      %vm1734 = vmpackc.low %vm1350, %vm1350
      %vm1735 = vmpackc.low %vm1351, %vm1351
      %vm1736 = vmpackc.low %vm1352, %vm1352
      %vm1737 = vmpackc.low %vm1353, %vm1353
      %vm1738 = vmpackc.low %vm1354, %vm1354
      %vm1739 = vmpackc.low %vm1355, %vm1355
      %vm1740 = vmpackc.low %vm1356, %vm1356
      %vm1741 = vmpackc.low %vm1357, %vm1357
      %vm1742 = vmpackc.low %vm1358, %vm1358
      %vm1743 = vmpackc.low %vm1359, %vm1359
      %vm1744 = vmpackc.low %vm1360, %vm1360
      %vm1745 = vmpackc.low %vm1361, %vm1361
      %vm1746 = vmpackc.low %vm1362, %vm1362
      %vm1747 = vmpackc.low %vm1363, %vm1363
      %vm1748 = vmpackc.low %vm1364, %vm1364
      %vm1749 = vmpackc.low %vm1365, %vm1365
      %vm1750 = vmpackc.low %vm1366, %vm1366
      %vm1751 = vmpackc.low %vm1367, %vm1367
      %vm1752 = vmpackc.low %vm1368, %vm1368
      %vm1753 = vmpackc.low %vm1369, %vm1369
      %vm1754 = vmpackc.low %vm1370, %vm1370
      %vm1755 = vmpackc.low %vm1371, %vm1371
      %vm1756 = vmpackc.low %vm1372, %vm1372
      %vm1757 = vmpackc.low %vm1373, %vm1373
      %vm1758 = vmpackc.low %vm1374, %vm1374
      %vm1759 = vmpackc.low %vm1375, %vm1375
      %vm1760 = vmpackc.low %vm1376, %vm1376
      %vm1761 = vmpackc.low %vm1377, %vm1377
      %vm1762 = vmpackc.low %vm1378, %vm1378
      %vm1763 = vmpackc.low %vm1379, %vm1379
      %vm1764 = vmpackc.low %vm1380, %vm1380
      %vm1765 = vmpackc.low %vm1381, %vm1381
      %vm1766 = vmpackc.low %vm1382, %vm1382
      %vm1767 = vmpackc.low %vm1383, %vm1383
      %vm1768 = vmpackc.low %vm1384, %vm1384
      %vm1769 = vmpackc.low %vm1385, %vm1385
      %vm1770 = vmpackc.low %vm1386, %vm1386
      %vm1771 = vmpackc.low %vm1387, %vm1387
      %vm1772 = vmpackc.low %vm1388, %vm1388
      %vm1773 = vmpackc.low %vm1389, %vm1389
      %vm1774 = vmpackc.low %vm1390, %vm1390
      %vm1775 = vmpackc.low %vm1391, %vm1391
      %vm1776 = vmpackc.low %vm1392, %vm1392
      %vm1777 = vmpackc.low %vm1393, %vm1393
      %vm1778 = vmpackc.low %vm1394, %vm1394
      %vm1779 = vmpackc.low %vm1395, %vm1395
      %vm1780 = vmpackc.low %vm1396, %vm1396
      %vm1781 = vmpackc.low %vm1397, %vm1397
      %vm1782 = vmpackc.low %vm1398, %vm1398
      %vm1783 = vmpackc.low %vm1399, %vm1399
      %vm1784 = vmpackc.low %vm1400, %vm1400
      %vm1785 = vmpackc.low %vm1401, %vm1401
      %vm1786 = vmpackc.low %vm1402, %vm1402
      %vm1787 = vmpackc.low %vm1403, %vm1403
      %vm1788 = vmpackc.low %vm1404, %vm1404
      %vm1789 = vmpackc.low %vm1405, %vm1405
      %vm1790 = vmpackc.low %vm1406, %vm1406
      %vm1791 = vmpackc.low %vm1407, %vm1407
      %vm1792 = vmpackc.low %vm1408, %vm1408
      %vm1793 = vmpackc.low %vm1409, %vm1409
      %vm1794 = vmpackc.low %vm1410, %vm1410
      %vm1795 = vmpackc.low %vm1411, %vm1411
      %vm1796 = vmpackc.low %vm1412, %vm1412
      %vm1797 = vmpackc.low %vm1413, %vm1413
      %vm1798 = vmpackc.low %vm1414, %vm1414
      %vm1799 = vmpackc.low %vm1415, %vm1415
      %vm1800 = vmpackc.low %vm1416, %vm1416
      %vm1801 = vmpackc.low %vm1417, %vm1417
      %vm1802 = vmpackc.low %vm1418, %vm1418
      %vm1803 = vmpackc.low %vm1419, %vm1419
      %vm1804 = vmpackc.low %vm1420, %vm1420
      %vm1805 = vmpackc.low %vm1421, %vm1421
      %vm1806 = vmpackc.low %vm1422, %vm1422
      %vm1807 = vmpackc.low %vm1423, %vm1423
      %vm1808 = vmpackc.low %vm1424, %vm1424
      %vm1809 = vmpackc.low %vm1425, %vm1425
      %vm1810 = vmpackc.low %vm1426, %vm1426
      %vm1811 = vmpackc.low %vm1427, %vm1427
      %vm1812 = vmpackc.low %vm1428, %vm1428
      %vm1813 = vmpackc.low %vm1429, %vm1429
      %vm1814 = vmpackc.low %vm1430, %vm1430
      %vm1815 = vmpackc.low %vm1431, %vm1431
      %vm1816 = vmpackc.low %vm1432, %vm1432
      %vm1817 = vmpackc.low %vm1433, %vm1433
      %vm1818 = vmpackc.low %vm1434, %vm1434
      %vm1819 = vmpackc.low %vm1435, %vm1435
      %vm1820 = vmpackc.low %vm1436, %vm1436
      %vm1821 = vmpackc.low %vm1437, %vm1437
      %vm1822 = vmpackc.low %vm1438, %vm1438
      %vm1823 = vmpackc.low %vm1439, %vm1439
      %vm1824 = vmpackc.low %vm1440, %vm1440
      %vm1825 = vmpackc.low %vm1441, %vm1441
      %vm1826 = vmpackc.low %vm1442, %vm1442
      %vm1827 = vmpackc.low %vm1443, %vm1443
      %vm1828 = vmpackc.low %vm1444, %vm1444
      %vm1829 = vmpackc.low %vm1445, %vm1445
      %vm1830 = vmpackc.low %vm1446, %vm1446
      %vm1831 = vmpackc.low %vm1447, %vm1447
      %vm1832 = vmpackc.low %vm1448, %vm1448
      %vm1833 = vmpackc.low %vm1449, %vm1449
      %vm1834 = vmpackc.low %vm1450, %vm1450
      %vm1835 = vmpackc.low %vm1451, %vm1451
      %vm1836 = vmpackc.low %vm1452, %vm1452
      %vm1837 = vmpackc.low %vm1453, %vm1453
      %vm1838 = vmpackc.low %vm1454, %vm1454
      %vm1839 = vmpackc.low %vm1455, %vm1455
      %vm1840 = vmpackc.low %vm1456, %vm1456
      %vm1841 = vmpackc.low %vm1457, %vm1457
      %vm1842 = vmpackc.low %vm1458, %vm1458
      %vm1843 = vmpackc.low %vm1459, %vm1459
      %vm1844 = vmpackc.low %vm1460, %vm1460
      %vm1845 = vmpackc.low %vm1461, %vm1461
      %vm1846 = vmpackc.low %vm1462, %vm1462
      %vm1847 = vmpackc.low %vm1463, %vm1463
      %vm1848 = vmpackc.low %vm1464, %vm1464
      %vm1849 = vmpackc.low %vm1465, %vm1465
      %vm1850 = vmpackc.low %vm1466, %vm1466
      %v1851 = vsel %vm1723, %v1083, %v1595
      %v1852 = vsel %vm1724, %v1084, %v1596
      %v1853 = vsel %vm1725, %v1085, %v1597
      %v1854 = vsel %vm1726, %v1086, %v1598
      %v1855 = vsel %vm1727, %v1087, %v1599
      %v1856 = vsel %vm1728, %v1088, %v1600
      %v1857 = vsel %vm1729, %v1089, %v1601
      %v1858 = vsel %vm1730, %v1090, %v1602
      %v1859 = vsel %vm1731, %v1091, %v1603
      %v1860 = vsel %vm1732, %v1092, %v1604
      %v1861 = vsel %vm1733, %v1093, %v1605
      %v1862 = vsel %vm1734, %v1094, %v1606
      %v1863 = vsel %vm1735, %v1095, %v1607
      %v1864 = vsel %vm1736, %v1096, %v1608
      %v1865 = vsel %vm1737, %v1097, %v1609
      %v1866 = vsel %vm1738, %v1098, %v1610
      %v1867 = vsel %vm1739, %v1099, %v1611
      %v1868 = vsel %vm1740, %v1100, %v1612
      %v1869 = vsel %vm1741, %v1101, %v1613
      %v1870 = vsel %vm1742, %v1102, %v1614
      %v1871 = vsel %vm1743, %v1103, %v1615
      %v1872 = vsel %vm1744, %v1104, %v1616
      %v1873 = vsel %vm1745, %v1105, %v1617
      %v1874 = vsel %vm1746, %v1106, %v1618
      %v1875 = vsel %vm1747, %v1107, %v1619
      %v1876 = vsel %vm1748, %v1108, %v1620
      %v1877 = vsel %vm1749, %v1109, %v1621
      %v1878 = vsel %vm1750, %v1110, %v1622
      %v1879 = vsel %vm1751, %v1111, %v1623
      %v1880 = vsel %vm1752, %v1112, %v1624
      %v1881 = vsel %vm1753, %v1113, %v1625
      %v1882 = vsel %vm1754, %v1114, %v1626
      %v1883 = vsel %vm1755, %v1115, %v1627
      %v1884 = vsel %vm1756, %v1116, %v1628
      %v1885 = vsel %vm1757, %v1117, %v1629
      %v1886 = vsel %vm1758, %v1118, %v1630
      %v1887 = vsel %vm1759, %v1119, %v1631
      %v1888 = vsel %vm1760, %v1120, %v1632
      %v1889 = vsel %vm1761, %v1121, %v1633
      %v1890 = vsel %vm1762, %v1122, %v1634
      %v1891 = vsel %vm1763, %v1123, %v1635
      %v1892 = vsel %vm1764, %v1124, %v1636
      %v1893 = vsel %vm1765, %v1125, %v1637
      %v1894 = vsel %vm1766, %v1126, %v1638
      %v1895 = vsel %vm1767, %v1127, %v1639
      %v1896 = vsel %vm1768, %v1128, %v1640
      %v1897 = vsel %vm1769, %v1129, %v1641
      %v1898 = vsel %vm1770, %v1130, %v1642
      %v1899 = vsel %vm1771, %v1131, %v1643
      %v1900 = vsel %vm1772, %v1132, %v1644
      %v1901 = vsel %vm1773, %v1133, %v1645
      %v1902 = vsel %vm1774, %v1134, %v1646
      %v1903 = vsel %vm1775, %v1135, %v1647
      %v1904 = vsel %vm1776, %v1136, %v1648
      %v1905 = vsel %vm1777, %v1137, %v1649
      %v1906 = vsel %vm1778, %v1138, %v1650
      %v1907 = vsel %vm1779, %v1139, %v1651
      %v1908 = vsel %vm1780, %v1140, %v1652
      %v1909 = vsel %vm1781, %v1141, %v1653
      %v1910 = vsel %vm1782, %v1142, %v1654
      %v1911 = vsel %vm1783, %v1143, %v1655
      %v1912 = vsel %vm1784, %v1144, %v1656
      %v1913 = vsel %vm1785, %v1145, %v1657
      %v1914 = vsel %vm1786, %v1146, %v1658
      %v1915 = vsel %vm1787, %v1147, %v1659
      %v1916 = vsel %vm1788, %v1148, %v1660
      %v1917 = vsel %vm1789, %v1149, %v1661
      %v1918 = vsel %vm1790, %v1150, %v1662
      %v1919 = vsel %vm1791, %v1151, %v1663
      %v1920 = vsel %vm1792, %v1152, %v1664
      %v1921 = vsel %vm1793, %v1153, %v1665
      %v1922 = vsel %vm1794, %v1154, %v1666
      %v1923 = vsel %vm1795, %v1155, %v1667
      %v1924 = vsel %vm1796, %v1156, %v1668
      %v1925 = vsel %vm1797, %v1157, %v1669
      %v1926 = vsel %vm1798, %v1158, %v1670
      %v1927 = vsel %vm1799, %v1159, %v1671
      %v1928 = vsel %vm1800, %v1160, %v1672
      %v1929 = vsel %vm1801, %v1161, %v1673
      %v1930 = vsel %vm1802, %v1162, %v1674
      %v1931 = vsel %vm1803, %v1163, %v1675
      %v1932 = vsel %vm1804, %v1164, %v1676
      %v1933 = vsel %vm1805, %v1165, %v1677
      %v1934 = vsel %vm1806, %v1166, %v1678
      %v1935 = vsel %vm1807, %v1167, %v1679
      %v1936 = vsel %vm1808, %v1168, %v1680
      %v1937 = vsel %vm1809, %v1169, %v1681
      %v1938 = vsel %vm1810, %v1170, %v1682
      %v1939 = vsel %vm1811, %v1171, %v1683
      %v1940 = vsel %vm1812, %v1172, %v1684
      %v1941 = vsel %vm1813, %v1173, %v1685
      %v1942 = vsel %vm1814, %v1174, %v1686
      %v1943 = vsel %vm1815, %v1175, %v1687
      %v1944 = vsel %vm1816, %v1176, %v1688
      %v1945 = vsel %vm1817, %v1177, %v1689
      %v1946 = vsel %vm1818, %v1178, %v1690
      %v1947 = vsel %vm1819, %v1179, %v1691
      %v1948 = vsel %vm1820, %v1180, %v1692
      %v1949 = vsel %vm1821, %v1181, %v1693
      %v1950 = vsel %vm1822, %v1182, %v1694
      %v1951 = vsel %vm1823, %v1183, %v1695
      %v1952 = vsel %vm1824, %v1184, %v1696
      %v1953 = vsel %vm1825, %v1185, %v1697
      %v1954 = vsel %vm1826, %v1186, %v1698
      %v1955 = vsel %vm1827, %v1187, %v1699
      %v1956 = vsel %vm1828, %v1188, %v1700
      %v1957 = vsel %vm1829, %v1189, %v1701
      %v1958 = vsel %vm1830, %v1190, %v1702
      %v1959 = vsel %vm1831, %v1191, %v1703
      %v1960 = vsel %vm1832, %v1192, %v1704
      %v1961 = vsel %vm1833, %v1193, %v1705
      %v1962 = vsel %vm1834, %v1194, %v1706
      %v1963 = vsel %vm1835, %v1195, %v1707
      %v1964 = vsel %vm1836, %v1196, %v1708
      %v1965 = vsel %vm1837, %v1197, %v1709
      %v1966 = vsel %vm1838, %v1198, %v1710
      %v1967 = vsel %vm1839, %v1199, %v1711
      %v1968 = vsel %vm1840, %v1200, %v1712
      %v1969 = vsel %vm1841, %v1201, %v1713
      %v1970 = vsel %vm1842, %v1202, %v1714
      %v1971 = vsel %vm1843, %v1203, %v1715
      %v1972 = vsel %vm1844, %v1204, %v1716
      %v1973 = vsel %vm1845, %v1205, %v1717
      %v1974 = vsel %vm1846, %v1206, %v1718
      %v1975 = vsel %vm1847, %v1207, %v1719
      %v1976 = vsel %vm1848, %v1208, %v1720
      %v1977 = vsel %vm1849, %v1209, %v1721
      %v1978 = vsel %vm1850, %v1210, %v1722
      %1979 = vst [vmem:[%s172] sm:$0xf] %v1851
      %1980 = vst [vmem:[%s172 + $0x4] sm:$0xf] %v1852
      %1981 = vst [vmem:[%s172 + $0x8] sm:$0xf] %v1853
      %1982 = vst [vmem:[%s172 + $0xc] sm:$0xf] %v1854
      %1983 = vst [vmem:[%s172 + $0x10] sm:$0xf] %v1855
      %1984 = vst [vmem:[%s172 + $0x14] sm:$0xf] %v1856
      %1985 = vst [vmem:[%s172 + $0x18] sm:$0xf] %v1857
      %1986 = vst [vmem:[%s172 + $0x1c] sm:$0xf] %v1858
      %1987 = vst [vmem:[%s172 + $0x20] sm:$0xf] %v1859
      %1988 = vst [vmem:[%s172 + $0x24] sm:$0xf] %v1860
      %1989 = vst [vmem:[%s172 + $0x28] sm:$0xf] %v1861
      %1990 = vst [vmem:[%s172 + $0x2c] sm:$0xf] %v1862
      %1991 = vst [vmem:[%s172 + $0x30] sm:$0xf] %v1863
      %1992 = vst [vmem:[%s172 + $0x34] sm:$0xf] %v1864
      %1993 = vst [vmem:[%s172 + $0x38] sm:$0xf] %v1865
      %1994 = vst [vmem:[%s172 + $0x3c] sm:$0xf] %v1866
      %1995 = vst [vmem:[%s172 + $0x40] sm:$0xf] %v1867
      %1996 = vst [vmem:[%s172 + $0x44] sm:$0xf] %v1868
      %1997 = vst [vmem:[%s172 + $0x48] sm:$0xf] %v1869
      %1998 = vst [vmem:[%s172 + $0x4c] sm:$0xf] %v1870
      %1999 = vst [vmem:[%s172 + $0x50] sm:$0xf] %v1871
      %2000 = vst [vmem:[%s172 + $0x54] sm:$0xf] %v1872
      %2001 = vst [vmem:[%s172 + $0x58] sm:$0xf] %v1873
      %2002 = vst [vmem:[%s172 + $0x5c] sm:$0xf] %v1874
      %2003 = vst [vmem:[%s172 + $0x60] sm:$0xf] %v1875
      %2004 = vst [vmem:[%s172 + $0x64] sm:$0xf] %v1876
      %2005 = vst [vmem:[%s172 + $0x68] sm:$0xf] %v1877
      %2006 = vst [vmem:[%s172 + $0x6c] sm:$0xf] %v1878
      %2007 = vst [vmem:[%s172 + $0x70] sm:$0xf] %v1879
      %2008 = vst [vmem:[%s172 + $0x74] sm:$0xf] %v1880
      %2009 = vst [vmem:[%s172 + $0x78] sm:$0xf] %v1881
      %2010 = vst [vmem:[%s172 + $0x7c] sm:$0xf] %v1882
      %2011 = vst [vmem:[%s172 + $0x80] sm:$0xf] %v1883
      %2012 = vst [vmem:[%s172 + $0x84] sm:$0xf] %v1884
      %2013 = vst [vmem:[%s172 + $0x88] sm:$0xf] %v1885
      %2014 = vst [vmem:[%s172 + $0x8c] sm:$0xf] %v1886
      %2015 = vst [vmem:[%s172 + $0x90] sm:$0xf] %v1887
      %2016 = vst [vmem:[%s172 + $0x94] sm:$0xf] %v1888
      %2017 = vst [vmem:[%s172 + $0x98] sm:$0xf] %v1889
      %2018 = vst [vmem:[%s172 + $0x9c] sm:$0xf] %v1890
      %2019 = vst [vmem:[%s172 + $0xa0] sm:$0xf] %v1891
      %2020 = vst [vmem:[%s172 + $0xa4] sm:$0xf] %v1892
      %2021 = vst [vmem:[%s172 + $0xa8] sm:$0xf] %v1893
      %2022 = vst [vmem:[%s172 + $0xac] sm:$0xf] %v1894
      %2023 = vst [vmem:[%s172 + $0xb0] sm:$0xf] %v1895
      %2024 = vst [vmem:[%s172 + $0xb4] sm:$0xf] %v1896
      %2025 = vst [vmem:[%s172 + $0xb8] sm:$0xf] %v1897
      %2026 = vst [vmem:[%s172 + $0xbc] sm:$0xf] %v1898
      %2027 = vst [vmem:[%s172 + $0xc0] sm:$0xf] %v1899
      %2028 = vst [vmem:[%s172 + $0xc4] sm:$0xf] %v1900
      %2029 = vst [vmem:[%s172 + $0xc8] sm:$0xf] %v1901
      %2030 = vst [vmem:[%s172 + $0xcc] sm:$0xf] %v1902
      %2031 = vst [vmem:[%s172 + $0xd0] sm:$0xf] %v1903
      %2032 = vst [vmem:[%s172 + $0xd4] sm:$0xf] %v1904
      %2033 = vst [vmem:[%s172 + $0xd8] sm:$0xf] %v1905
      %2034 = vst [vmem:[%s172 + $0xdc] sm:$0xf] %v1906
      %2035 = vst [vmem:[%s172 + $0xe0] sm:$0xf] %v1907
      %2036 = vst [vmem:[%s172 + $0xe4] sm:$0xf] %v1908
      %2037 = vst [vmem:[%s172 + $0xe8] sm:$0xf] %v1909
      %2038 = vst [vmem:[%s172 + $0xec] sm:$0xf] %v1910
      %2039 = vst [vmem:[%s172 + $0xf0] sm:$0xf] %v1911
      %2040 = vst [vmem:[%s172 + $0xf4] sm:$0xf] %v1912
      %2041 = vst [vmem:[%s172 + $0xf8] sm:$0xf] %v1913
      %2042 = vst [vmem:[%s172 + $0xfc] sm:$0xf] %v1914
      %2043 = vst [vmem:[%s172 + $0x100] sm:$0xf] %v1915
      %2044 = vst [vmem:[%s172 + $0x104] sm:$0xf] %v1916
      %2045 = vst [vmem:[%s172 + $0x108] sm:$0xf] %v1917
      %2046 = vst [vmem:[%s172 + $0x10c] sm:$0xf] %v1918
      %2047 = vst [vmem:[%s172 + $0x110] sm:$0xf] %v1919
      %2048 = vst [vmem:[%s172 + $0x114] sm:$0xf] %v1920
      %2049 = vst [vmem:[%s172 + $0x118] sm:$0xf] %v1921
      %2050 = vst [vmem:[%s172 + $0x11c] sm:$0xf] %v1922
      %2051 = vst [vmem:[%s172 + $0x120] sm:$0xf] %v1923
      %2052 = vst [vmem:[%s172 + $0x124] sm:$0xf] %v1924
      %2053 = vst [vmem:[%s172 + $0x128] sm:$0xf] %v1925
      %2054 = vst [vmem:[%s172 + $0x12c] sm:$0xf] %v1926
      %2055 = vst [vmem:[%s172 + $0x130] sm:$0xf] %v1927
      %2056 = vst [vmem:[%s172 + $0x134] sm:$0xf] %v1928
      %2057 = vst [vmem:[%s172 + $0x138] sm:$0xf] %v1929
      %2058 = vst [vmem:[%s172 + $0x13c] sm:$0xf] %v1930
      %2059 = vst [vmem:[%s172 + $0x140] sm:$0xf] %v1931
      %2060 = vst [vmem:[%s172 + $0x144] sm:$0xf] %v1932
      %2061 = vst [vmem:[%s172 + $0x148] sm:$0xf] %v1933
      %2062 = vst [vmem:[%s172 + $0x14c] sm:$0xf] %v1934
      %2063 = vst [vmem:[%s172 + $0x150] sm:$0xf] %v1935
      %2064 = vst [vmem:[%s172 + $0x154] sm:$0xf] %v1936
      %2065 = vst [vmem:[%s172 + $0x158] sm:$0xf] %v1937
      %2066 = vst [vmem:[%s172 + $0x15c] sm:$0xf] %v1938
      %2067 = vst [vmem:[%s172 + $0x160] sm:$0xf] %v1939
      %2068 = vst [vmem:[%s172 + $0x164] sm:$0xf] %v1940
      %2069 = vst [vmem:[%s172 + $0x168] sm:$0xf] %v1941
      %2070 = vst [vmem:[%s172 + $0x16c] sm:$0xf] %v1942
      %2071 = vst [vmem:[%s172 + $0x170] sm:$0xf] %v1943
      %2072 = vst [vmem:[%s172 + $0x174] sm:$0xf] %v1944
      %2073 = vst [vmem:[%s172 + $0x178] sm:$0xf] %v1945
      %2074 = vst [vmem:[%s172 + $0x17c] sm:$0xf] %v1946
      %2075 = vst [vmem:[%s172 + $0x180] sm:$0xf] %v1947
      %2076 = vst [vmem:[%s172 + $0x184] sm:$0xf] %v1948
      %2077 = vst [vmem:[%s172 + $0x188] sm:$0xf] %v1949
      %2078 = vst [vmem:[%s172 + $0x18c] sm:$0xf] %v1950
      %2079 = vst [vmem:[%s172 + $0x190] sm:$0xf] %v1951
      %2080 = vst [vmem:[%s172 + $0x194] sm:$0xf] %v1952
      %2081 = vst [vmem:[%s172 + $0x198] sm:$0xf] %v1953
      %2082 = vst [vmem:[%s172 + $0x19c] sm:$0xf] %v1954
      %2083 = vst [vmem:[%s172 + $0x1a0] sm:$0xf] %v1955
      %2084 = vst [vmem:[%s172 + $0x1a4] sm:$0xf] %v1956
      %2085 = vst [vmem:[%s172 + $0x1a8] sm:$0xf] %v1957
      %2086 = vst [vmem:[%s172 + $0x1ac] sm:$0xf] %v1958
      %2087 = vst [vmem:[%s172 + $0x1b0] sm:$0xf] %v1959
      %2088 = vst [vmem:[%s172 + $0x1b4] sm:$0xf] %v1960
      %2089 = vst [vmem:[%s172 + $0x1b8] sm:$0xf] %v1961
      %2090 = vst [vmem:[%s172 + $0x1bc] sm:$0xf] %v1962
      %2091 = vst [vmem:[%s172 + $0x1c0] sm:$0xf] %v1963
      %2092 = vst [vmem:[%s172 + $0x1c4] sm:$0xf] %v1964
      %2093 = vst [vmem:[%s172 + $0x1c8] sm:$0xf] %v1965
      %2094 = vst [vmem:[%s172 + $0x1cc] sm:$0xf] %v1966
      %2095 = vst [vmem:[%s172 + $0x1d0] sm:$0xf] %v1967
      %2096 = vst [vmem:[%s172 + $0x1d4] sm:$0xf] %v1968
      %2097 = vst [vmem:[%s172 + $0x1d8] sm:$0xf] %v1969
      %2098 = vst [vmem:[%s172 + $0x1dc] sm:$0xf] %v1970
      %2099 = vst [vmem:[%s172 + $0x1e0] sm:$0xf] %v1971
      %2100 = vst [vmem:[%s172 + $0x1e4] sm:$0xf] %v1972
      %2101 = vst [vmem:[%s172 + $0x1e8] sm:$0xf] %v1973
      %2102 = vst [vmem:[%s172 + $0x1ec] sm:$0xf] %v1974
      %2103 = vst [vmem:[%s172 + $0x1f0] sm:$0xf] %v1975
      %2104 = vst [vmem:[%s172 + $0x1f4] sm:$0xf] %v1976
      %2105 = vst [vmem:[%s172 + $0x1f8] sm:$0xf] %v1977
      %2106 = vst [vmem:[%s172 + $0x1fc] sm:$0xf] %v1978
      %s2107 = smul.u32 128, %s14
      %p2108 = scmp.lt.s32.totalorder %s2107, 255
      %s2109 = scalar_select %p2108, %s2107, 255
      %s2110 = smul.addr %s2109, 4
      %s2111 = scalar_lea.vmem %s3, %s2110
      // Predicated region
      $region33: #{discriminator_forward.9} parent=31 // pred_check
        %p2112 = pneg %p100
      $region34: #{discriminator_forward.9} parent=31 // pred_check_branch
        %2114 = sbr.rel (%p2112) target = $region36
      $region35: #{discriminator_forward.9} parent=31 // pred_region
        %s2115 = smul.u32 128, %s14
      $region36: #{discriminator_forward.9} parent=31 // pred_fallthru
        _
    $region32: #{discriminator_forward.9} parent=5 // pred_fallthru
      _
    %p2116 = scmp.le.s32.totalorder 2, %s9
    // Predicated region
    $region37: #{discriminator_forward.9} parent=5 // pred_check
      %p2117 = pneg %p2116
    $region38: #{discriminator_forward.9} parent=5 // pred_check_branch
      %2119 = sbr.rel (%p2117) target = $region40
    $region39: #{discriminator_forward.9} parent=5 // pred_region
      %s2120 = ssub.s32 %s9, 2
      // Predicated region
      $region41: #{discriminator_forward.9} parent=39 // pred_check
        %p2121 = pneg %p106
      $region42: #{discriminator_forward.9} parent=39 // pred_check_branch
        %2123 = sbr.rel (%p2121) target = $region44
      $region43: #{discriminator_forward.9} parent=39 // pred_region
        %s2124 = smul.u32 128, %s15
        %p2125 = scmp.lt.s32.totalorder %s2124, 255
        %s2126 = scalar_select %p2125, %s2124, 255
        %s2127 = smul.addr %s2126, 4
        %s2128 = scalar_lea.vmem %s3, %s2127
      $region44: #{discriminator_forward.9} parent=39 // pred_fallthru
        _
    $region40: #{discriminator_forward.9} parent=5 // pred_fallthru
      _
  $region6: #{discriminator_forward.9} parent=0 // loop_footer
    %s13 = sadd.s32 1, %s9
  $region7: #{discriminator_forward.9} parent=0 // loop_footer_branch
    %8 = sbr.rel target = $region3
  $region8: #{discriminator_forward.9} parent=0 // loop_exit
    _

// kernel: discriminator_forward.10
$region0: #{discriminator_forward.10}
  #allocation0 [shape = 'u32[]', space=smem, size = 0x4, offset = 0x4, fixed_abs, tag = 'smem constant byte address 0x4 - core index']
  #allocation1 [shape = 'u32[72,128]{1,0:T(1,128)}', space=vmem, size = 0x9000, scoped, tag = 'internal scratch']
  %s0 = inlined_call_operand.vmem [shape: bf16[512,1152], index: 0, kind: input, shape index: {}]
  %s1 = inlined_call_operand.vmem [shape: bf16[1152,128], index: 1, kind: input, shape index: {}]
  %s2 = inlined_call_operand.vmem [shape: bf16[512,128], index: 2, kind: output, shape index: {}]
  %s3 = sld [smem:[#allocation0]]
  $region18: #{discriminator_forward.10} parent=0
    _
  %s5 = ssub.s32 1, %s3
  %s6 = scalar_select 0, %s5, %s3
  // Predicated region
  $region2: #{discriminator_forward.10} parent=0 // pred_check
    _
  $region3: #{discriminator_forward.10} parent=0 // pred_check_branch
    %8 = sbr.rel (0) target = $region5
  $region4: #{discriminator_forward.10} parent=0 // pred_region
    _
  $region5: #{discriminator_forward.10} parent=0 // pred_fallthru
    _
  // Predicated region
  $region6: #{discriminator_forward.10} parent=0 // pred_check
    _
  $region7: #{discriminator_forward.10} parent=0 // pred_check_branch
    %10 = sbr.rel (0) target = $region9
  $region8: #{discriminator_forward.10} parent=0 // pred_region
    _
  $region9: #{discriminator_forward.10} parent=0 // pred_fallthru
    _
  %v11 = vld [vmem:[%s0] sm:$0xff]
  %v12 = vld [vmem:[%s0 + $0x8] sm:$0xff]
  %v13 = vld [vmem:[%s0 + $0x10] sm:$0xff]
  %v14 = vld [vmem:[%s0 + $0x18] sm:$0xff]
  %v15 = vld [vmem:[%s0 + $0x20] sm:$0xf]
  %v16 = vld [vmem:[%s0 + $0x24] sm:$0xff]
  %v17 = vld [vmem:[%s0 + $0x2c] sm:$0xff]
  %v18 = vld [vmem:[%s0 + $0x34] sm:$0xff]
  %v19 = vld [vmem:[%s0 + $0x3c] sm:$0xff]
  %v20 = vld [vmem:[%s0 + $0x44] sm:$0xf]
  %v21 = vld [vmem:[%s0 + $0x48] sm:$0xff]
  %v22 = vld [vmem:[%s0 + $0x50] sm:$0xff]
  %v23 = vld [vmem:[%s0 + $0x58] sm:$0xff]
  %v24 = vld [vmem:[%s0 + $0x60] sm:$0xff]
  %v25 = vld [vmem:[%s0 + $0x68] sm:$0xf]
  %v26 = vld [vmem:[%s0 + $0x6c] sm:$0xff]
  %v27 = vld [vmem:[%s0 + $0x74] sm:$0xff]
  %v28 = vld [vmem:[%s0 + $0x7c] sm:$0xff]
  %v29 = vld [vmem:[%s0 + $0x84] sm:$0xff]
  %v30 = vld [vmem:[%s0 + $0x8c] sm:$0xf]
  %v31 = vld [vmem:[%s0 + $0x90] sm:$0xff]
  %v32 = vld [vmem:[%s0 + $0x98] sm:$0xff]
  %v33 = vld [vmem:[%s0 + $0xa0] sm:$0xff]
  %v34 = vld [vmem:[%s0 + $0xa8] sm:$0xff]
  %v35 = vld [vmem:[%s0 + $0xb0] sm:$0xf]
  %v36 = vld [vmem:[%s0 + $0xb4] sm:$0xff]
  %v37 = vld [vmem:[%s0 + $0xbc] sm:$0xff]
  %v38 = vld [vmem:[%s0 + $0xc4] sm:$0xff]
  %v39 = vld [vmem:[%s0 + $0xcc] sm:$0xff]
  %v40 = vld [vmem:[%s0 + $0xd4] sm:$0xf]
  %v41 = vld [vmem:[%s0 + $0xd8] sm:$0xff]
  %v42 = vld [vmem:[%s0 + $0xe0] sm:$0xff]
  %v43 = vld [vmem:[%s0 + $0xe8] sm:$0xff]
  %v44 = vld [vmem:[%s0 + $0xf0] sm:$0xff]
  %v45 = vld [vmem:[%s0 + $0xf8] sm:$0xf]
  %v46 = vld [vmem:[%s0 + $0xfc] sm:$0xff]
  %v47 = vld [vmem:[%s0 + $0x104] sm:$0xff]
  %v48 = vld [vmem:[%s0 + $0x10c] sm:$0xff]
  %v49 = vld [vmem:[%s0 + $0x114] sm:$0xff]
  %v50 = vld [vmem:[%s0 + $0x11c] sm:$0xf]
  %v51 = vld [vmem:[%s0 + $0x120] sm:$0xff]
  %v52 = vld [vmem:[%s0 + $0x128] sm:$0xff]
  %v53 = vld [vmem:[%s0 + $0x130] sm:$0xff]
  %v54 = vld [vmem:[%s0 + $0x138] sm:$0xff]
  %v55 = vld [vmem:[%s0 + $0x140] sm:$0xf]
  %v56 = vld [vmem:[%s0 + $0x144] sm:$0xff]
  %v57 = vld [vmem:[%s0 + $0x14c] sm:$0xff]
  %v58 = vld [vmem:[%s0 + $0x154] sm:$0xff]
  %v59 = vld [vmem:[%s0 + $0x15c] sm:$0xff]
  %v60 = vld [vmem:[%s0 + $0x164] sm:$0xf]
  %v61 = vld [vmem:[%s0 + $0x168] sm:$0xff]
  %v62 = vld [vmem:[%s0 + $0x170] sm:$0xff]
  %v63 = vld [vmem:[%s0 + $0x178] sm:$0xff]
  %v64 = vld [vmem:[%s0 + $0x180] sm:$0xff]
  %v65 = vld [vmem:[%s0 + $0x188] sm:$0xf]
  %v66 = vld [vmem:[%s0 + $0x18c] sm:$0xff]
  %v67 = vld [vmem:[%s0 + $0x194] sm:$0xff]
  %v68 = vld [vmem:[%s0 + $0x19c] sm:$0xff]
  %v69 = vld [vmem:[%s0 + $0x1a4] sm:$0xff]
  %v70 = vld [vmem:[%s0 + $0x1ac] sm:$0xf]
  %v71 = vld [vmem:[%s0 + $0x1b0] sm:$0xff]
  %v72 = vld [vmem:[%s0 + $0x1b8] sm:$0xff]
  %v73 = vld [vmem:[%s0 + $0x1c0] sm:$0xff]
  %v74 = vld [vmem:[%s0 + $0x1c8] sm:$0xff]
  %v75 = vld [vmem:[%s0 + $0x1d0] sm:$0xf]
  %v76 = vld [vmem:[%s0 + $0x1d4] sm:$0xff]
  %v77 = vld [vmem:[%s0 + $0x1dc] sm:$0xff]
  %v78 = vld [vmem:[%s0 + $0x1e4] sm:$0xff]
  %v79 = vld [vmem:[%s0 + $0x1ec] sm:$0xff]
  %v80 = vld [vmem:[%s0 + $0x1f4] sm:$0xf]
  %v81 = vld [vmem:[%s0 + $0x1f8] sm:$0xff]
  %v82 = vld [vmem:[%s0 + $0x200] sm:$0xff]
  %v83 = vld [vmem:[%s0 + $0x208] sm:$0xff]
  %v84 = vld [vmem:[%s0 + $0x210] sm:$0xff]
  %v85 = vld [vmem:[%s0 + $0x218] sm:$0xf]
  %v86 = vld [vmem:[%s0 + $0x21c] sm:$0xff]
  %v87 = vld [vmem:[%s0 + $0x224] sm:$0xff]
  %v88 = vld [vmem:[%s0 + $0x22c] sm:$0xff]
  %v89 = vld [vmem:[%s0 + $0x234] sm:$0xff]
  %v90 = vld [vmem:[%s0 + $0x23c] sm:$0xf]
  %v91 = vld [vmem:[%s0 + $0x240] sm:$0xff]
  %v92 = vld [vmem:[%s0 + $0x248] sm:$0xff]
  %v93 = vld [vmem:[%s0 + $0x250] sm:$0xff]
  %v94 = vld [vmem:[%s0 + $0x258] sm:$0xff]
  %v95 = vld [vmem:[%s0 + $0x260] sm:$0xf]
  %v96 = vld [vmem:[%s0 + $0x264] sm:$0xff]
  %v97 = vld [vmem:[%s0 + $0x26c] sm:$0xff]
  %v98 = vld [vmem:[%s0 + $0x274] sm:$0xff]
  %v99 = vld [vmem:[%s0 + $0x27c] sm:$0xff]
  %v100 = vld [vmem:[%s0 + $0x284] sm:$0xf]
  %v101 = vld [vmem:[%s0 + $0x288] sm:$0xff]
  %v102 = vld [vmem:[%s0 + $0x290] sm:$0xff]
  %v103 = vld [vmem:[%s0 + $0x298] sm:$0xff]
  %v104 = vld [vmem:[%s0 + $0x2a0] sm:$0xff]
  %v105 = vld [vmem:[%s0 + $0x2a8] sm:$0xf]
  %v106 = vld [vmem:[%s0 + $0x2ac] sm:$0xff]
  %v107 = vld [vmem:[%s0 + $0x2b4] sm:$0xff]
  %v108 = vld [vmem:[%s0 + $0x2bc] sm:$0xff]
  %v109 = vld [vmem:[%s0 + $0x2c4] sm:$0xff]
  %v110 = vld [vmem:[%s0 + $0x2cc] sm:$0xf]
  %v111 = vld [vmem:[%s0 + $0x2d0] sm:$0xff]
  %v112 = vld [vmem:[%s0 + $0x2d8] sm:$0xff]
  %v113 = vld [vmem:[%s0 + $0x2e0] sm:$0xff]
  %v114 = vld [vmem:[%s0 + $0x2e8] sm:$0xff]
  %v115 = vld [vmem:[%s0 + $0x2f0] sm:$0xf]
  %v116 = vld [vmem:[%s0 + $0x2f4] sm:$0xff]
  %v117 = vld [vmem:[%s0 + $0x2fc] sm:$0xff]
  %v118 = vld [vmem:[%s0 + $0x304] sm:$0xff]
  %v119 = vld [vmem:[%s0 + $0x30c] sm:$0xff]
  %v120 = vld [vmem:[%s0 + $0x314] sm:$0xf]
  %v121 = vld [vmem:[%s0 + $0x318] sm:$0xff]
  %v122 = vld [vmem:[%s0 + $0x320] sm:$0xff]
  %v123 = vld [vmem:[%s0 + $0x328] sm:$0xff]
  %v124 = vld [vmem:[%s0 + $0x330] sm:$0xff]
  %v125 = vld [vmem:[%s0 + $0x338] sm:$0xf]
  %v126 = vld [vmem:[%s0 + $0x33c] sm:$0xff]
  %v127 = vld [vmem:[%s0 + $0x344] sm:$0xff]
  %v128 = vld [vmem:[%s0 + $0x34c] sm:$0xff]
  %v129 = vld [vmem:[%s0 + $0x354] sm:$0xff]
  %v130 = vld [vmem:[%s0 + $0x35c] sm:$0xf]
  %v131 = vld [vmem:[%s0 + $0x360] sm:$0xff]
  %v132 = vld [vmem:[%s0 + $0x368] sm:$0xff]
  %v133 = vld [vmem:[%s0 + $0x370] sm:$0xff]
  %v134 = vld [vmem:[%s0 + $0x378] sm:$0xff]
  %v135 = vld [vmem:[%s0 + $0x380] sm:$0xf]
  %v136 = vld [vmem:[%s0 + $0x384] sm:$0xff]
  %v137 = vld [vmem:[%s0 + $0x38c] sm:$0xff]
  %v138 = vld [vmem:[%s0 + $0x394] sm:$0xff]
  %v139 = vld [vmem:[%s0 + $0x39c] sm:$0xff]
  %v140 = vld [vmem:[%s0 + $0x3a4] sm:$0xf]
  %v141 = vld [vmem:[%s0 + $0x3a8] sm:$0xff]
  %v142 = vld [vmem:[%s0 + $0x3b0] sm:$0xff]
  %v143 = vld [vmem:[%s0 + $0x3b8] sm:$0xff]
  %v144 = vld [vmem:[%s0 + $0x3c0] sm:$0xff]
  %v145 = vld [vmem:[%s0 + $0x3c8] sm:$0xf]
  %v146 = vld [vmem:[%s0 + $0x3cc] sm:$0xff]
  %v147 = vld [vmem:[%s0 + $0x3d4] sm:$0xff]
  %v148 = vld [vmem:[%s0 + $0x3dc] sm:$0xff]
  %v149 = vld [vmem:[%s0 + $0x3e4] sm:$0xff]
  %v150 = vld [vmem:[%s0 + $0x3ec] sm:$0xf]
  %v151 = vld [vmem:[%s0 + $0x3f0] sm:$0xff]
  %v152 = vld [vmem:[%s0 + $0x3f8] sm:$0xff]
  %v153 = vld [vmem:[%s0 + $0x400] sm:$0xff]
  %v154 = vld [vmem:[%s0 + $0x408] sm:$0xff]
  %v155 = vld [vmem:[%s0 + $0x410] sm:$0xf]
  %v156 = vld [vmem:[%s0 + $0x414] sm:$0xff]
  %v157 = vld [vmem:[%s0 + $0x41c] sm:$0xff]
  %v158 = vld [vmem:[%s0 + $0x424] sm:$0xff]
  %v159 = vld [vmem:[%s0 + $0x42c] sm:$0xff]
  %v160 = vld [vmem:[%s0 + $0x434] sm:$0xf]
  %v161 = vld [vmem:[%s0 + $0x438] sm:$0xff]
  %v162 = vld [vmem:[%s0 + $0x440] sm:$0xff]
  %v163 = vld [vmem:[%s0 + $0x448] sm:$0xff]
  %v164 = vld [vmem:[%s0 + $0x450] sm:$0xff]
  %v165 = vld [vmem:[%s0 + $0x458] sm:$0xf]
  %v166 = vld [vmem:[%s0 + $0x45c] sm:$0xff]
  %v167 = vld [vmem:[%s0 + $0x464] sm:$0xff]
  %v168 = vld [vmem:[%s0 + $0x46c] sm:$0xff]
  %v169 = vld [vmem:[%s0 + $0x474] sm:$0xff]
  %v170 = vld [vmem:[%s0 + $0x47c] sm:$0xf]
  %v171 = vld [vmem:[%s0 + $0x480] sm:$0xff]
  %v172 = vld [vmem:[%s0 + $0x488] sm:$0xff]
  %v173 = vld [vmem:[%s0 + $0x490] sm:$0xff]
  %v174 = vld [vmem:[%s0 + $0x498] sm:$0xff]
  %v175 = vld [vmem:[%s0 + $0x4a0] sm:$0xf]
  %v176 = vld [vmem:[%s0 + $0x4a4] sm:$0xff]
  %v177 = vld [vmem:[%s0 + $0x4ac] sm:$0xff]
  %v178 = vld [vmem:[%s0 + $0x4b4] sm:$0xff]
  %v179 = vld [vmem:[%s0 + $0x4bc] sm:$0xff]
  %v180 = vld [vmem:[%s0 + $0x4c4] sm:$0xf]
  %v181 = vld [vmem:[%s0 + $0x4c8] sm:$0xff]
  %v182 = vld [vmem:[%s0 + $0x4d0] sm:$0xff]
  %v183 = vld [vmem:[%s0 + $0x4d8] sm:$0xff]
  %v184 = vld [vmem:[%s0 + $0x4e0] sm:$0xff]
  %v185 = vld [vmem:[%s0 + $0x4e8] sm:$0xf]
  %v186 = vld [vmem:[%s0 + $0x4ec] sm:$0xff]
  %v187 = vld [vmem:[%s0 + $0x4f4] sm:$0xff]
  %v188 = vld [vmem:[%s0 + $0x4fc] sm:$0xff]
  %v189 = vld [vmem:[%s0 + $0x504] sm:$0xff]
  %v190 = vld [vmem:[%s0 + $0x50c] sm:$0xf]
  %v191 = vld [vmem:[%s0 + $0x510] sm:$0xff]
  %v192 = vld [vmem:[%s0 + $0x518] sm:$0xff]
  %v193 = vld [vmem:[%s0 + $0x520] sm:$0xff]
  %v194 = vld [vmem:[%s0 + $0x528] sm:$0xff]
  %v195 = vld [vmem:[%s0 + $0x530] sm:$0xf]
  %v196 = vld [vmem:[%s0 + $0x534] sm:$0xff]
  %v197 = vld [vmem:[%s0 + $0x53c] sm:$0xff]
  %v198 = vld [vmem:[%s0 + $0x544] sm:$0xff]
  %v199 = vld [vmem:[%s0 + $0x54c] sm:$0xff]
  %v200 = vld [vmem:[%s0 + $0x554] sm:$0xf]
  %v201 = vld [vmem:[%s0 + $0x558] sm:$0xff]
  %v202 = vld [vmem:[%s0 + $0x560] sm:$0xff]
  %v203 = vld [vmem:[%s0 + $0x568] sm:$0xff]
  %v204 = vld [vmem:[%s0 + $0x570] sm:$0xff]
  %v205 = vld [vmem:[%s0 + $0x578] sm:$0xf]
  %v206 = vld [vmem:[%s0 + $0x57c] sm:$0xff]
  %v207 = vld [vmem:[%s0 + $0x584] sm:$0xff]
  %v208 = vld [vmem:[%s0 + $0x58c] sm:$0xff]
  %v209 = vld [vmem:[%s0 + $0x594] sm:$0xff]
  %v210 = vld [vmem:[%s0 + $0x59c] sm:$0xf]
  %v211 = vld [vmem:[%s0 + $0x5a0] sm:$0xff]
  %v212 = vld [vmem:[%s0 + $0x5a8] sm:$0xff]
  %v213 = vld [vmem:[%s0 + $0x5b0] sm:$0xff]
  %v214 = vld [vmem:[%s0 + $0x5b8] sm:$0xff]
  %v215 = vld [vmem:[%s0 + $0x5c0] sm:$0xf]
  %v216 = vld [vmem:[%s0 + $0x5c4] sm:$0xff]
  %v217 = vld [vmem:[%s0 + $0x5cc] sm:$0xff]
  %v218 = vld [vmem:[%s0 + $0x5d4] sm:$0xff]
  %v219 = vld [vmem:[%s0 + $0x5dc] sm:$0xff]
  %v220 = vld [vmem:[%s0 + $0x5e4] sm:$0xf]
  %v221 = vld [vmem:[%s0 + $0x5e8] sm:$0xff]
  %v222 = vld [vmem:[%s0 + $0x5f0] sm:$0xff]
  %v223 = vld [vmem:[%s0 + $0x5f8] sm:$0xff]
  %v224 = vld [vmem:[%s0 + $0x600] sm:$0xff]
  %v225 = vld [vmem:[%s0 + $0x608] sm:$0xf]
  %v226 = vld [vmem:[%s0 + $0x60c] sm:$0xff]
  %v227 = vld [vmem:[%s0 + $0x614] sm:$0xff]
  %v228 = vld [vmem:[%s0 + $0x61c] sm:$0xff]
  %v229 = vld [vmem:[%s0 + $0x624] sm:$0xff]
  %v230 = vld [vmem:[%s0 + $0x62c] sm:$0xf]
  %v231 = vld [vmem:[%s0 + $0x630] sm:$0xff]
  %v232 = vld [vmem:[%s0 + $0x638] sm:$0xff]
  %v233 = vld [vmem:[%s0 + $0x640] sm:$0xff]
  %v234 = vld [vmem:[%s0 + $0x648] sm:$0xff]
  %v235 = vld [vmem:[%s0 + $0x650] sm:$0xf]
  %v236 = vld [vmem:[%s0 + $0x654] sm:$0xff]
  %v237 = vld [vmem:[%s0 + $0x65c] sm:$0xff]
  %v238 = vld [vmem:[%s0 + $0x664] sm:$0xff]
  %v239 = vld [vmem:[%s0 + $0x66c] sm:$0xff]
  %v240 = vld [vmem:[%s0 + $0x674] sm:$0xf]
  %v241 = vld [vmem:[%s0 + $0x678] sm:$0xff]
  %v242 = vld [vmem:[%s0 + $0x680] sm:$0xff]
  %v243 = vld [vmem:[%s0 + $0x688] sm:$0xff]
  %v244 = vld [vmem:[%s0 + $0x690] sm:$0xff]
  %v245 = vld [vmem:[%s0 + $0x698] sm:$0xf]
  %v246 = vld [vmem:[%s0 + $0x69c] sm:$0xff]
  %v247 = vld [vmem:[%s0 + $0x6a4] sm:$0xff]
  %v248 = vld [vmem:[%s0 + $0x6ac] sm:$0xff]
  %v249 = vld [vmem:[%s0 + $0x6b4] sm:$0xff]
  %v250 = vld [vmem:[%s0 + $0x6bc] sm:$0xf]
  %v251 = vld [vmem:[%s0 + $0x6c0] sm:$0xff]
  %v252 = vld [vmem:[%s0 + $0x6c8] sm:$0xff]
  %v253 = vld [vmem:[%s0 + $0x6d0] sm:$0xff]
  %v254 = vld [vmem:[%s0 + $0x6d8] sm:$0xff]
  %v255 = vld [vmem:[%s0 + $0x6e0] sm:$0xf]
  %v256 = vld [vmem:[%s0 + $0x6e4] sm:$0xff]
  %v257 = vld [vmem:[%s0 + $0x6ec] sm:$0xff]
  %v258 = vld [vmem:[%s0 + $0x6f4] sm:$0xff]
  %v259 = vld [vmem:[%s0 + $0x6fc] sm:$0xff]
  %v260 = vld [vmem:[%s0 + $0x704] sm:$0xf]
  %v261 = vld [vmem:[%s0 + $0x708] sm:$0xff]
  %v262 = vld [vmem:[%s0 + $0x710] sm:$0xff]
  %v263 = vld [vmem:[%s0 + $0x718] sm:$0xff]
  %v264 = vld [vmem:[%s0 + $0x720] sm:$0xff]
  %v265 = vld [vmem:[%s0 + $0x728] sm:$0xf]
  %v266 = vld [vmem:[%s0 + $0x72c] sm:$0xff]
  %v267 = vld [vmem:[%s0 + $0x734] sm:$0xff]
  %v268 = vld [vmem:[%s0 + $0x73c] sm:$0xff]
  %v269 = vld [vmem:[%s0 + $0x744] sm:$0xff]
  %v270 = vld [vmem:[%s0 + $0x74c] sm:$0xf]
  %v271 = vld [vmem:[%s0 + $0x750] sm:$0xff]
  %v272 = vld [vmem:[%s0 + $0x758] sm:$0xff]
  %v273 = vld [vmem:[%s0 + $0x760] sm:$0xff]
  %v274 = vld [vmem:[%s0 + $0x768] sm:$0xff]
  %v275 = vld [vmem:[%s0 + $0x770] sm:$0xf]
  %v276 = vld [vmem:[%s0 + $0x774] sm:$0xff]
  %v277 = vld [vmem:[%s0 + $0x77c] sm:$0xff]
  %v278 = vld [vmem:[%s0 + $0x784] sm:$0xff]
  %v279 = vld [vmem:[%s0 + $0x78c] sm:$0xff]
  %v280 = vld [vmem:[%s0 + $0x794] sm:$0xf]
  %v281 = vld [vmem:[%s0 + $0x798] sm:$0xff]
  %v282 = vld [vmem:[%s0 + $0x7a0] sm:$0xff]
  %v283 = vld [vmem:[%s0 + $0x7a8] sm:$0xff]
  %v284 = vld [vmem:[%s0 + $0x7b0] sm:$0xff]
  %v285 = vld [vmem:[%s0 + $0x7b8] sm:$0xf]
  %v286 = vld [vmem:[%s0 + $0x7bc] sm:$0xff]
  %v287 = vld [vmem:[%s0 + $0x7c4] sm:$0xff]
  %v288 = vld [vmem:[%s0 + $0x7cc] sm:$0xff]
  %v289 = vld [vmem:[%s0 + $0x7d4] sm:$0xff]
  %v290 = vld [vmem:[%s0 + $0x7dc] sm:$0xf]
  %v291 = vld [vmem:[%s0 + $0x7e0] sm:$0xff]
  %v292 = vld [vmem:[%s0 + $0x7e8] sm:$0xff]
  %v293 = vld [vmem:[%s0 + $0x7f0] sm:$0xff]
  %v294 = vld [vmem:[%s0 + $0x7f8] sm:$0xff]
  %v295 = vld [vmem:[%s0 + $0x800] sm:$0xf]
  %v296 = vld [vmem:[%s0 + $0x804] sm:$0xff]
  %v297 = vld [vmem:[%s0 + $0x80c] sm:$0xff]
  %v298 = vld [vmem:[%s0 + $0x814] sm:$0xff]
  %v299 = vld [vmem:[%s0 + $0x81c] sm:$0xff]
  %v300 = vld [vmem:[%s0 + $0x824] sm:$0xf]
  %v301 = vld [vmem:[%s0 + $0x828] sm:$0xff]
  %v302 = vld [vmem:[%s0 + $0x830] sm:$0xff]
  %v303 = vld [vmem:[%s0 + $0x838] sm:$0xff]
  %v304 = vld [vmem:[%s0 + $0x840] sm:$0xff]
  %v305 = vld [vmem:[%s0 + $0x848] sm:$0xf]
  %v306 = vld [vmem:[%s0 + $0x84c] sm:$0xff]
  %v307 = vld [vmem:[%s0 + $0x854] sm:$0xff]
  %v308 = vld [vmem:[%s0 + $0x85c] sm:$0xff]
  %v309 = vld [vmem:[%s0 + $0x864] sm:$0xff]
  %v310 = vld [vmem:[%s0 + $0x86c] sm:$0xf]
  %v311 = vld [vmem:[%s0 + $0x870] sm:$0xff]
  %v312 = vld [vmem:[%s0 + $0x878] sm:$0xff]
  %v313 = vld [vmem:[%s0 + $0x880] sm:$0xff]
  %v314 = vld [vmem:[%s0 + $0x888] sm:$0xff]
  %v315 = vld [vmem:[%s0 + $0x890] sm:$0xf]
  %v316 = vld [vmem:[%s0 + $0x894] sm:$0xff]
  %v317 = vld [vmem:[%s0 + $0x89c] sm:$0xff]
  %v318 = vld [vmem:[%s0 + $0x8a4] sm:$0xff]
  %v319 = vld [vmem:[%s0 + $0x8ac] sm:$0xff]
  %v320 = vld [vmem:[%s0 + $0x8b4] sm:$0xf]
  %v321 = vld [vmem:[%s0 + $0x8b8] sm:$0xff]
  %v322 = vld [vmem:[%s0 + $0x8c0] sm:$0xff]
  %v323 = vld [vmem:[%s0 + $0x8c8] sm:$0xff]
  %v324 = vld [vmem:[%s0 + $0x8d0] sm:$0xff]
  %v325 = vld [vmem:[%s0 + $0x8d8] sm:$0xf]
  %v326 = vld [vmem:[%s0 + $0x8dc] sm:$0xff]
  %v327 = vld [vmem:[%s0 + $0x8e4] sm:$0xff]
  %v328 = vld [vmem:[%s0 + $0x8ec] sm:$0xff]
  %v329 = vld [vmem:[%s0 + $0x8f4] sm:$0xff]
  %v330 = vld [vmem:[%s0 + $0x8fc] sm:$0xf]
  %v331 = vld [vmem:[%s1] sm:$0xf]
  %v332 = vld [vmem:[%s1 + $0x4] sm:$0xf]
  %v333 = vld [vmem:[%s1 + $0x8] sm:$0xf]
  %v334 = vld [vmem:[%s1 + $0xc] sm:$0xf]
  %v335 = vld [vmem:[%s1 + $0x10] sm:$0xf]
  %v336 = vld [vmem:[%s1 + $0x14] sm:$0xf]
  %v337 = vld [vmem:[%s1 + $0x18] sm:$0xf]
  %v338 = vld [vmem:[%s1 + $0x1c] sm:$0xf]
  %v339 = vld [vmem:[%s1 + $0x20] sm:$0xf]
  %v340 = vld [vmem:[%s1 + $0x24] sm:$0xf]
  %v341 = vld [vmem:[%s1 + $0x28] sm:$0xf]
  %v342 = vld [vmem:[%s1 + $0x2c] sm:$0xf]
  %v343 = vld [vmem:[%s1 + $0x30] sm:$0xf]
  %v344 = vld [vmem:[%s1 + $0x34] sm:$0xf]
  %v345 = vld [vmem:[%s1 + $0x38] sm:$0xf]
  %v346 = vld [vmem:[%s1 + $0x3c] sm:$0xf]
  %v347 = vld [vmem:[%s1 + $0x40] sm:$0xf]
  %v348 = vld [vmem:[%s1 + $0x44] sm:$0xf]
  %v349 = vld [vmem:[%s1 + $0x48] sm:$0xf]
  %v350 = vld [vmem:[%s1 + $0x4c] sm:$0xf]
  %v351 = vld [vmem:[%s1 + $0x50] sm:$0xf]
  %v352 = vld [vmem:[%s1 + $0x54] sm:$0xf]
  %v353 = vld [vmem:[%s1 + $0x58] sm:$0xf]
  %v354 = vld [vmem:[%s1 + $0x5c] sm:$0xf]
  %v355 = vld [vmem:[%s1 + $0x60] sm:$0xf]
  %v356 = vld [vmem:[%s1 + $0x64] sm:$0xf]
  %v357 = vld [vmem:[%s1 + $0x68] sm:$0xf]
  %v358 = vld [vmem:[%s1 + $0x6c] sm:$0xf]
  %v359 = vld [vmem:[%s1 + $0x70] sm:$0xf]
  %v360 = vld [vmem:[%s1 + $0x74] sm:$0xf]
  %v361 = vld [vmem:[%s1 + $0x78] sm:$0xf]
  %v362 = vld [vmem:[%s1 + $0x7c] sm:$0xf]
  %v363 = vld [vmem:[%s1 + $0x80] sm:$0xf]
  %v364 = vld [vmem:[%s1 + $0x84] sm:$0xf]
  %v365 = vld [vmem:[%s1 + $0x88] sm:$0xf]
  %v366 = vld [vmem:[%s1 + $0x8c] sm:$0xf]
  %v367 = vld [vmem:[%s1 + $0x90] sm:$0xf]
  %v368 = vld [vmem:[%s1 + $0x94] sm:$0xf]
  %v369 = vld [vmem:[%s1 + $0x98] sm:$0xf]
  %v370 = vld [vmem:[%s1 + $0x9c] sm:$0xf]
  %v371 = vld [vmem:[%s1 + $0xa0] sm:$0xf]
  %v372 = vld [vmem:[%s1 + $0xa4] sm:$0xf]
  %v373 = vld [vmem:[%s1 + $0xa8] sm:$0xf]
  %v374 = vld [vmem:[%s1 + $0xac] sm:$0xf]
  %v375 = vld [vmem:[%s1 + $0xb0] sm:$0xf]
  %v376 = vld [vmem:[%s1 + $0xb4] sm:$0xf]
  %v377 = vld [vmem:[%s1 + $0xb8] sm:$0xf]
  %v378 = vld [vmem:[%s1 + $0xbc] sm:$0xf]
  %v379 = vld [vmem:[%s1 + $0xc0] sm:$0xf]
  %v380 = vld [vmem:[%s1 + $0xc4] sm:$0xf]
  %v381 = vld [vmem:[%s1 + $0xc8] sm:$0xf]
  %v382 = vld [vmem:[%s1 + $0xcc] sm:$0xf]
  %v383 = vld [vmem:[%s1 + $0xd0] sm:$0xf]
  %v384 = vld [vmem:[%s1 + $0xd4] sm:$0xf]
  %v385 = vld [vmem:[%s1 + $0xd8] sm:$0xf]
  %v386 = vld [vmem:[%s1 + $0xdc] sm:$0xf]
  %v387 = vld [vmem:[%s1 + $0xe0] sm:$0xf]
  %v388 = vld [vmem:[%s1 + $0xe4] sm:$0xf]
  %v389 = vld [vmem:[%s1 + $0xe8] sm:$0xf]
  %v390 = vld [vmem:[%s1 + $0xec] sm:$0xf]
  %v391 = vld [vmem:[%s1 + $0xf0] sm:$0xf]
  %v392 = vld [vmem:[%s1 + $0xf4] sm:$0xf]
  %v393 = vld [vmem:[%s1 + $0xf8] sm:$0xf]
  %v394 = vld [vmem:[%s1 + $0xfc] sm:$0xf]
  %v395 = vld [vmem:[%s1 + $0x100] sm:$0xf]
  %v396 = vld [vmem:[%s1 + $0x104] sm:$0xf]
  %v397 = vld [vmem:[%s1 + $0x108] sm:$0xf]
  %v398 = vld [vmem:[%s1 + $0x10c] sm:$0xf]
  %v399 = vld [vmem:[%s1 + $0x110] sm:$0xf]
  %v400 = vld [vmem:[%s1 + $0x114] sm:$0xf]
  %v401 = vld [vmem:[%s1 + $0x118] sm:$0xf]
  %v402 = vld [vmem:[%s1 + $0x11c] sm:$0xf]
  %v403 = vld [vmem:[%s1 + $0x120] sm:$0xf]
  %v404 = vld [vmem:[%s1 + $0x124] sm:$0xf]
  %v405 = vld [vmem:[%s1 + $0x128] sm:$0xf]
  %v406 = vld [vmem:[%s1 + $0x12c] sm:$0xf]
  %v407 = vld [vmem:[%s1 + $0x130] sm:$0xf]
  %v408 = vld [vmem:[%s1 + $0x134] sm:$0xf]
  %v409 = vld [vmem:[%s1 + $0x138] sm:$0xf]
  %v410 = vld [vmem:[%s1 + $0x13c] sm:$0xf]
  %v411 = vld [vmem:[%s1 + $0x140] sm:$0xf]
  %v412 = vld [vmem:[%s1 + $0x144] sm:$0xf]
  %v413 = vld [vmem:[%s1 + $0x148] sm:$0xf]
  %v414 = vld [vmem:[%s1 + $0x14c] sm:$0xf]
  %v415 = vld [vmem:[%s1 + $0x150] sm:$0xf]
  %v416 = vld [vmem:[%s1 + $0x154] sm:$0xf]
  %v417 = vld [vmem:[%s1 + $0x158] sm:$0xf]
  %v418 = vld [vmem:[%s1 + $0x15c] sm:$0xf]
  %v419 = vld [vmem:[%s1 + $0x160] sm:$0xf]
  %v420 = vld [vmem:[%s1 + $0x164] sm:$0xf]
  %v421 = vld [vmem:[%s1 + $0x168] sm:$0xf]
  %v422 = vld [vmem:[%s1 + $0x16c] sm:$0xf]
  %v423 = vld [vmem:[%s1 + $0x170] sm:$0xf]
  %v424 = vld [vmem:[%s1 + $0x174] sm:$0xf]
  %v425 = vld [vmem:[%s1 + $0x178] sm:$0xf]
  %v426 = vld [vmem:[%s1 + $0x17c] sm:$0xf]
  %v427 = vld [vmem:[%s1 + $0x180] sm:$0xf]
  %v428 = vld [vmem:[%s1 + $0x184] sm:$0xf]
  %v429 = vld [vmem:[%s1 + $0x188] sm:$0xf]
  %v430 = vld [vmem:[%s1 + $0x18c] sm:$0xf]
  %v431 = vld [vmem:[%s1 + $0x190] sm:$0xf]
  %v432 = vld [vmem:[%s1 + $0x194] sm:$0xf]
  %v433 = vld [vmem:[%s1 + $0x198] sm:$0xf]
  %v434 = vld [vmem:[%s1 + $0x19c] sm:$0xf]
  %v435 = vld [vmem:[%s1 + $0x1a0] sm:$0xf]
  %v436 = vld [vmem:[%s1 + $0x1a4] sm:$0xf]
  %v437 = vld [vmem:[%s1 + $0x1a8] sm:$0xf]
  %v438 = vld [vmem:[%s1 + $0x1ac] sm:$0xf]
  %v439 = vld [vmem:[%s1 + $0x1b0] sm:$0xf]
  %v440 = vld [vmem:[%s1 + $0x1b4] sm:$0xf]
  %v441 = vld [vmem:[%s1 + $0x1b8] sm:$0xf]
  %v442 = vld [vmem:[%s1 + $0x1bc] sm:$0xf]
  %v443 = vld [vmem:[%s1 + $0x1c0] sm:$0xf]
  %v444 = vld [vmem:[%s1 + $0x1c4] sm:$0xf]
  %v445 = vld [vmem:[%s1 + $0x1c8] sm:$0xf]
  %v446 = vld [vmem:[%s1 + $0x1cc] sm:$0xf]
  %v447 = vld [vmem:[%s1 + $0x1d0] sm:$0xf]
  %v448 = vld [vmem:[%s1 + $0x1d4] sm:$0xf]
  %v449 = vld [vmem:[%s1 + $0x1d8] sm:$0xf]
  %v450 = vld [vmem:[%s1 + $0x1dc] sm:$0xf]
  %v451 = vld [vmem:[%s1 + $0x1e0] sm:$0xf]
  %v452 = vld [vmem:[%s1 + $0x1e4] sm:$0xf]
  %v453 = vld [vmem:[%s1 + $0x1e8] sm:$0xf]
  %v454 = vld [vmem:[%s1 + $0x1ec] sm:$0xf]
  %v455 = vld [vmem:[%s1 + $0x1f0] sm:$0xf]
  %v456 = vld [vmem:[%s1 + $0x1f4] sm:$0xf]
  %v457 = vld [vmem:[%s1 + $0x1f8] sm:$0xf]
  %v458 = vld [vmem:[%s1 + $0x1fc] sm:$0xf]
  %v459 = vld [vmem:[%s1 + $0x200] sm:$0xf]
  %v460 = vld [vmem:[%s1 + $0x204] sm:$0xf]
  %v461 = vld [vmem:[%s1 + $0x208] sm:$0xf]
  %v462 = vld [vmem:[%s1 + $0x20c] sm:$0xf]
  %v463 = vld [vmem:[%s1 + $0x210] sm:$0xf]
  %v464 = vld [vmem:[%s1 + $0x214] sm:$0xf]
  %v465 = vld [vmem:[%s1 + $0x218] sm:$0xf]
  %v466 = vld [vmem:[%s1 + $0x21c] sm:$0xf]
  %v467 = vld [vmem:[%s1 + $0x220] sm:$0xf]
  %v468 = vld [vmem:[%s1 + $0x224] sm:$0xf]
  %v469 = vld [vmem:[%s1 + $0x228] sm:$0xf]
  %v470 = vld [vmem:[%s1 + $0x22c] sm:$0xf]
  %v471 = vld [vmem:[%s1 + $0x230] sm:$0xf]
  %v472 = vld [vmem:[%s1 + $0x234] sm:$0xf]
  %v473 = vld [vmem:[%s1 + $0x238] sm:$0xf]
  %v474 = vld [vmem:[%s1 + $0x23c] sm:$0xf]
  %v795 = vunpack.c.l.b16 %v11
  %v796 = vunpack.c.h.b16 %v11
  %v797 = vunpack.c.l.b16 %v12
  %v798 = vunpack.c.h.b16 %v12
  %v799 = vunpack.c.l.b16 %v13
  %v800 = vunpack.c.h.b16 %v13
  %v801 = vunpack.c.l.b16 %v14
  %v802 = vunpack.c.h.b16 %v14
  %v803 = vunpack.c.l.b16 %v15
  %v804 = vunpack.c.l.b16 %v16
  %v805 = vunpack.c.h.b16 %v16
  %v806 = vunpack.c.l.b16 %v17
  %v807 = vunpack.c.h.b16 %v17
  %v808 = vunpack.c.l.b16 %v18
  %v809 = vunpack.c.h.b16 %v18
  %v810 = vunpack.c.l.b16 %v19
  %v811 = vunpack.c.h.b16 %v19
  %v812 = vunpack.c.l.b16 %v20
  %v813 = vunpack.c.l.b16 %v21
  %v814 = vunpack.c.h.b16 %v21
  %v815 = vunpack.c.l.b16 %v22
  %v816 = vunpack.c.h.b16 %v22
  %v817 = vunpack.c.l.b16 %v23
  %v818 = vunpack.c.h.b16 %v23
  %v819 = vunpack.c.l.b16 %v24
  %v820 = vunpack.c.h.b16 %v24
  %v821 = vunpack.c.l.b16 %v25
  %v822 = vunpack.c.l.b16 %v26
  %v823 = vunpack.c.h.b16 %v26
  %v824 = vunpack.c.l.b16 %v27
  %v825 = vunpack.c.h.b16 %v27
  %v826 = vunpack.c.l.b16 %v28
  %v827 = vunpack.c.h.b16 %v28
  %v828 = vunpack.c.l.b16 %v29
  %v829 = vunpack.c.h.b16 %v29
  %v830 = vunpack.c.l.b16 %v30
  %v831 = vunpack.c.l.b16 %v31
  %v832 = vunpack.c.h.b16 %v31
  %v833 = vunpack.c.l.b16 %v32
  %v834 = vunpack.c.h.b16 %v32
  %v835 = vunpack.c.l.b16 %v33
  %v836 = vunpack.c.h.b16 %v33
  %v837 = vunpack.c.l.b16 %v34
  %v838 = vunpack.c.h.b16 %v34
  %v839 = vunpack.c.l.b16 %v35
  %v840 = vunpack.c.l.b16 %v36
  %v841 = vunpack.c.h.b16 %v36
  %v842 = vunpack.c.l.b16 %v37
  %v843 = vunpack.c.h.b16 %v37
  %v844 = vunpack.c.l.b16 %v38
  %v845 = vunpack.c.h.b16 %v38
  %v846 = vunpack.c.l.b16 %v39
  %v847 = vunpack.c.h.b16 %v39
  %v848 = vunpack.c.l.b16 %v40
  %v849 = vunpack.c.l.b16 %v41
  %v850 = vunpack.c.h.b16 %v41
  %v851 = vunpack.c.l.b16 %v42
  %v852 = vunpack.c.h.b16 %v42
  %v853 = vunpack.c.l.b16 %v43
  %v854 = vunpack.c.h.b16 %v43
  %v855 = vunpack.c.l.b16 %v44
  %v856 = vunpack.c.h.b16 %v44
  %v857 = vunpack.c.l.b16 %v45
  %v858 = vunpack.c.l.b16 %v46
  %v859 = vunpack.c.h.b16 %v46
  %v860 = vunpack.c.l.b16 %v47
  %v861 = vunpack.c.h.b16 %v47
  %v862 = vunpack.c.l.b16 %v48
  %v863 = vunpack.c.h.b16 %v48
  %v864 = vunpack.c.l.b16 %v49
  %v865 = vunpack.c.h.b16 %v49
  %v866 = vunpack.c.l.b16 %v50
  %v867 = vunpack.c.l.b16 %v51
  %v868 = vunpack.c.h.b16 %v51
  %v869 = vunpack.c.l.b16 %v52
  %v870 = vunpack.c.h.b16 %v52
  %v871 = vunpack.c.l.b16 %v53
  %v872 = vunpack.c.h.b16 %v53
  %v873 = vunpack.c.l.b16 %v54
  %v874 = vunpack.c.h.b16 %v54
  %v875 = vunpack.c.l.b16 %v55
  %v876 = vunpack.c.l.b16 %v56
  %v877 = vunpack.c.h.b16 %v56
  %v878 = vunpack.c.l.b16 %v57
  %v879 = vunpack.c.h.b16 %v57
  %v880 = vunpack.c.l.b16 %v58
  %v881 = vunpack.c.h.b16 %v58
  %v882 = vunpack.c.l.b16 %v59
  %v883 = vunpack.c.h.b16 %v59
  %v884 = vunpack.c.l.b16 %v60
  %v885 = vunpack.c.l.b16 %v61
  %v886 = vunpack.c.h.b16 %v61
  %v887 = vunpack.c.l.b16 %v62
  %v888 = vunpack.c.h.b16 %v62
  %v889 = vunpack.c.l.b16 %v63
  %v890 = vunpack.c.h.b16 %v63
  %v891 = vunpack.c.l.b16 %v64
  %v892 = vunpack.c.h.b16 %v64
  %v893 = vunpack.c.l.b16 %v65
  %v894 = vunpack.c.l.b16 %v66
  %v895 = vunpack.c.h.b16 %v66
  %v896 = vunpack.c.l.b16 %v67
  %v897 = vunpack.c.h.b16 %v67
  %v898 = vunpack.c.l.b16 %v68
  %v899 = vunpack.c.h.b16 %v68
  %v900 = vunpack.c.l.b16 %v69
  %v901 = vunpack.c.h.b16 %v69
  %v902 = vunpack.c.l.b16 %v70
  %v903 = vunpack.c.l.b16 %v71
  %v904 = vunpack.c.h.b16 %v71
  %v905 = vunpack.c.l.b16 %v72
  %v906 = vunpack.c.h.b16 %v72
  %v907 = vunpack.c.l.b16 %v73
  %v908 = vunpack.c.h.b16 %v73
  %v909 = vunpack.c.l.b16 %v74
  %v910 = vunpack.c.h.b16 %v74
  %v911 = vunpack.c.l.b16 %v75
  %v912 = vunpack.c.l.b16 %v76
  %v913 = vunpack.c.h.b16 %v76
  %v914 = vunpack.c.l.b16 %v77
  %v915 = vunpack.c.h.b16 %v77
  %v916 = vunpack.c.l.b16 %v78
  %v917 = vunpack.c.h.b16 %v78
  %v918 = vunpack.c.l.b16 %v79
  %v919 = vunpack.c.h.b16 %v79
  %v920 = vunpack.c.l.b16 %v80
  %v921 = vunpack.c.l.b16 %v81
  %v922 = vunpack.c.h.b16 %v81
  %v923 = vunpack.c.l.b16 %v82
  %v924 = vunpack.c.h.b16 %v82
  %v925 = vunpack.c.l.b16 %v83
  %v926 = vunpack.c.h.b16 %v83
  %v927 = vunpack.c.l.b16 %v84
  %v928 = vunpack.c.h.b16 %v84
  %v929 = vunpack.c.l.b16 %v85
  %v930 = vunpack.c.l.b16 %v86
  %v931 = vunpack.c.h.b16 %v86
  %v932 = vunpack.c.l.b16 %v87
  %v933 = vunpack.c.h.b16 %v87
  %v934 = vunpack.c.l.b16 %v88
  %v935 = vunpack.c.h.b16 %v88
  %v936 = vunpack.c.l.b16 %v89
  %v937 = vunpack.c.h.b16 %v89
  %v938 = vunpack.c.l.b16 %v90
  %v939 = vunpack.c.l.b16 %v91
  %v940 = vunpack.c.h.b16 %v91
  %v941 = vunpack.c.l.b16 %v92
  %v942 = vunpack.c.h.b16 %v92
  %v943 = vunpack.c.l.b16 %v93
  %v944 = vunpack.c.h.b16 %v93
  %v945 = vunpack.c.l.b16 %v94
  %v946 = vunpack.c.h.b16 %v94
  %v947 = vunpack.c.l.b16 %v95
  %v948 = vunpack.c.l.b16 %v96
  %v949 = vunpack.c.h.b16 %v96
  %v950 = vunpack.c.l.b16 %v97
  %v951 = vunpack.c.h.b16 %v97
  %v952 = vunpack.c.l.b16 %v98
  %v953 = vunpack.c.h.b16 %v98
  %v954 = vunpack.c.l.b16 %v99
  %v955 = vunpack.c.h.b16 %v99
  %v956 = vunpack.c.l.b16 %v100
  %v957 = vunpack.c.l.b16 %v101
  %v958 = vunpack.c.h.b16 %v101
  %v959 = vunpack.c.l.b16 %v102
  %v960 = vunpack.c.h.b16 %v102
  %v961 = vunpack.c.l.b16 %v103
  %v962 = vunpack.c.h.b16 %v103
  %v963 = vunpack.c.l.b16 %v104
  %v964 = vunpack.c.h.b16 %v104
  %v965 = vunpack.c.l.b16 %v105
  %v966 = vunpack.c.l.b16 %v106
  %v967 = vunpack.c.h.b16 %v106
  %v968 = vunpack.c.l.b16 %v107
  %v969 = vunpack.c.h.b16 %v107
  %v970 = vunpack.c.l.b16 %v108
  %v971 = vunpack.c.h.b16 %v108
  %v972 = vunpack.c.l.b16 %v109
  %v973 = vunpack.c.h.b16 %v109
  %v974 = vunpack.c.l.b16 %v110
  %v975 = vunpack.c.l.b16 %v111
  %v976 = vunpack.c.h.b16 %v111
  %v977 = vunpack.c.l.b16 %v112
  %v978 = vunpack.c.h.b16 %v112
  %v979 = vunpack.c.l.b16 %v113
  %v980 = vunpack.c.h.b16 %v113
  %v981 = vunpack.c.l.b16 %v114
  %v982 = vunpack.c.h.b16 %v114
  %v983 = vunpack.c.l.b16 %v115
  %v984 = vunpack.c.l.b16 %v116
  %v985 = vunpack.c.h.b16 %v116
  %v986 = vunpack.c.l.b16 %v117
  %v987 = vunpack.c.h.b16 %v117
  %v988 = vunpack.c.l.b16 %v118
  %v989 = vunpack.c.h.b16 %v118
  %v990 = vunpack.c.l.b16 %v119
  %v991 = vunpack.c.h.b16 %v119
  %v992 = vunpack.c.l.b16 %v120
  %v993 = vunpack.c.l.b16 %v121
  %v994 = vunpack.c.h.b16 %v121
  %v995 = vunpack.c.l.b16 %v122
  %v996 = vunpack.c.h.b16 %v122
  %v997 = vunpack.c.l.b16 %v123
  %v998 = vunpack.c.h.b16 %v123
  %v999 = vunpack.c.l.b16 %v124
  %v1000 = vunpack.c.h.b16 %v124
  %v1001 = vunpack.c.l.b16 %v125
  %v1002 = vunpack.c.l.b16 %v126
  %v1003 = vunpack.c.h.b16 %v126
  %v1004 = vunpack.c.l.b16 %v127
  %v1005 = vunpack.c.h.b16 %v127
  %v1006 = vunpack.c.l.b16 %v128
  %v1007 = vunpack.c.h.b16 %v128
  %v1008 = vunpack.c.l.b16 %v129
  %v1009 = vunpack.c.h.b16 %v129
  %v1010 = vunpack.c.l.b16 %v130
  %v1011 = vunpack.c.l.b16 %v131
  %v1012 = vunpack.c.h.b16 %v131
  %v1013 = vunpack.c.l.b16 %v132
  %v1014 = vunpack.c.h.b16 %v132
  %v1015 = vunpack.c.l.b16 %v133
  %v1016 = vunpack.c.h.b16 %v133
  %v1017 = vunpack.c.l.b16 %v134
  %v1018 = vunpack.c.h.b16 %v134
  %v1019 = vunpack.c.l.b16 %v135
  %v1020 = vunpack.c.l.b16 %v136
  %v1021 = vunpack.c.h.b16 %v136
  %v1022 = vunpack.c.l.b16 %v137
  %v1023 = vunpack.c.h.b16 %v137
  %v1024 = vunpack.c.l.b16 %v138
  %v1025 = vunpack.c.h.b16 %v138
  %v1026 = vunpack.c.l.b16 %v139
  %v1027 = vunpack.c.h.b16 %v139
  %v1028 = vunpack.c.l.b16 %v140
  %v1029 = vunpack.c.l.b16 %v141
  %v1030 = vunpack.c.h.b16 %v141
  %v1031 = vunpack.c.l.b16 %v142
  %v1032 = vunpack.c.h.b16 %v142
  %v1033 = vunpack.c.l.b16 %v143
  %v1034 = vunpack.c.h.b16 %v143
  %v1035 = vunpack.c.l.b16 %v144
  %v1036 = vunpack.c.h.b16 %v144
  %v1037 = vunpack.c.l.b16 %v145
  %v1038 = vunpack.c.l.b16 %v146
  %v1039 = vunpack.c.h.b16 %v146
  %v1040 = vunpack.c.l.b16 %v147
  %v1041 = vunpack.c.h.b16 %v147
  %v1042 = vunpack.c.l.b16 %v148
  %v1043 = vunpack.c.h.b16 %v148
  %v1044 = vunpack.c.l.b16 %v149
  %v1045 = vunpack.c.h.b16 %v149
  %v1046 = vunpack.c.l.b16 %v150
  %v1047 = vunpack.c.l.b16 %v151
  %v1048 = vunpack.c.h.b16 %v151
  %v1049 = vunpack.c.l.b16 %v152
  %v1050 = vunpack.c.h.b16 %v152
  %v1051 = vunpack.c.l.b16 %v153
  %v1052 = vunpack.c.h.b16 %v153
  %v1053 = vunpack.c.l.b16 %v154
  %v1054 = vunpack.c.h.b16 %v154
  %v1055 = vunpack.c.l.b16 %v155
  %v1056 = vunpack.c.l.b16 %v156
  %v1057 = vunpack.c.h.b16 %v156
  %v1058 = vunpack.c.l.b16 %v157
  %v1059 = vunpack.c.h.b16 %v157
  %v1060 = vunpack.c.l.b16 %v158
  %v1061 = vunpack.c.h.b16 %v158
  %v1062 = vunpack.c.l.b16 %v159
  %v1063 = vunpack.c.h.b16 %v159
  %v1064 = vunpack.c.l.b16 %v160
  %v1065 = vunpack.c.l.b16 %v161
  %v1066 = vunpack.c.h.b16 %v161
  %v1067 = vunpack.c.l.b16 %v162
  %v1068 = vunpack.c.h.b16 %v162
  %v1069 = vunpack.c.l.b16 %v163
  %v1070 = vunpack.c.h.b16 %v163
  %v1071 = vunpack.c.l.b16 %v164
  %v1072 = vunpack.c.h.b16 %v164
  %v1073 = vunpack.c.l.b16 %v165
  %v1074 = vunpack.c.l.b16 %v166
  %v1075 = vunpack.c.h.b16 %v166
  %v1076 = vunpack.c.l.b16 %v167
  %v1077 = vunpack.c.h.b16 %v167
  %v1078 = vunpack.c.l.b16 %v168
  %v1079 = vunpack.c.h.b16 %v168
  %v1080 = vunpack.c.l.b16 %v169
  %v1081 = vunpack.c.h.b16 %v169
  %v1082 = vunpack.c.l.b16 %v170
  %v1083 = vunpack.c.l.b16 %v171
  %v1084 = vunpack.c.h.b16 %v171
  %v1085 = vunpack.c.l.b16 %v172
  %v1086 = vunpack.c.h.b16 %v172
  %v1087 = vunpack.c.l.b16 %v173
  %v1088 = vunpack.c.h.b16 %v173
  %v1089 = vunpack.c.l.b16 %v174
  %v1090 = vunpack.c.h.b16 %v174
  %v1091 = vunpack.c.l.b16 %v175
  %v1092 = vunpack.c.l.b16 %v176
  %v1093 = vunpack.c.h.b16 %v176
  %v1094 = vunpack.c.l.b16 %v177
  %v1095 = vunpack.c.h.b16 %v177
  %v1096 = vunpack.c.l.b16 %v178
  %v1097 = vunpack.c.h.b16 %v178
  %v1098 = vunpack.c.l.b16 %v179
  %v1099 = vunpack.c.h.b16 %v179
  %v1100 = vunpack.c.l.b16 %v180
  %v1101 = vunpack.c.l.b16 %v181
  %v1102 = vunpack.c.h.b16 %v181
  %v1103 = vunpack.c.l.b16 %v182
  %v1104 = vunpack.c.h.b16 %v182
  %v1105 = vunpack.c.l.b16 %v183
  %v1106 = vunpack.c.h.b16 %v183
  %v1107 = vunpack.c.l.b16 %v184
  %v1108 = vunpack.c.h.b16 %v184
  %v1109 = vunpack.c.l.b16 %v185
  %v1110 = vunpack.c.l.b16 %v186
  %v1111 = vunpack.c.h.b16 %v186
  %v1112 = vunpack.c.l.b16 %v187
  %v1113 = vunpack.c.h.b16 %v187
  %v1114 = vunpack.c.l.b16 %v188
  %v1115 = vunpack.c.h.b16 %v188
  %v1116 = vunpack.c.l.b16 %v189
  %v1117 = vunpack.c.h.b16 %v189
  %v1118 = vunpack.c.l.b16 %v190
  %v1119 = vunpack.c.l.b16 %v191
  %v1120 = vunpack.c.h.b16 %v191
  %v1121 = vunpack.c.l.b16 %v192
  %v1122 = vunpack.c.h.b16 %v192
  %v1123 = vunpack.c.l.b16 %v193
  %v1124 = vunpack.c.h.b16 %v193
  %v1125 = vunpack.c.l.b16 %v194
  %v1126 = vunpack.c.h.b16 %v194
  %v1127 = vunpack.c.l.b16 %v195
  %v1128 = vunpack.c.l.b16 %v196
  %v1129 = vunpack.c.h.b16 %v196
  %v1130 = vunpack.c.l.b16 %v197
  %v1131 = vunpack.c.h.b16 %v197
  %v1132 = vunpack.c.l.b16 %v198
  %v1133 = vunpack.c.h.b16 %v198
  %v1134 = vunpack.c.l.b16 %v199
  %v1135 = vunpack.c.h.b16 %v199
  %v1136 = vunpack.c.l.b16 %v200
  %v1137 = vunpack.c.l.b16 %v201
  %v1138 = vunpack.c.h.b16 %v201
  %v1139 = vunpack.c.l.b16 %v202
  %v1140 = vunpack.c.h.b16 %v202
  %v1141 = vunpack.c.l.b16 %v203
  %v1142 = vunpack.c.h.b16 %v203
  %v1143 = vunpack.c.l.b16 %v204
  %v1144 = vunpack.c.h.b16 %v204
  %v1145 = vunpack.c.l.b16 %v205
  %v1146 = vunpack.c.l.b16 %v206
  %v1147 = vunpack.c.h.b16 %v206
  %v1148 = vunpack.c.l.b16 %v207
  %v1149 = vunpack.c.h.b16 %v207
  %v1150 = vunpack.c.l.b16 %v208
  %v1151 = vunpack.c.h.b16 %v208
  %v1152 = vunpack.c.l.b16 %v209
  %v1153 = vunpack.c.h.b16 %v209
  %v1154 = vunpack.c.l.b16 %v210
  %v1155 = vunpack.c.l.b16 %v211
  %v1156 = vunpack.c.h.b16 %v211
  %v1157 = vunpack.c.l.b16 %v212
  %v1158 = vunpack.c.h.b16 %v212
  %v1159 = vunpack.c.l.b16 %v213
  %v1160 = vunpack.c.h.b16 %v213
  %v1161 = vunpack.c.l.b16 %v214
  %v1162 = vunpack.c.h.b16 %v214
  %v1163 = vunpack.c.l.b16 %v215
  %v1164 = vunpack.c.l.b16 %v216
  %v1165 = vunpack.c.h.b16 %v216
  %v1166 = vunpack.c.l.b16 %v217
  %v1167 = vunpack.c.h.b16 %v217
  %v1168 = vunpack.c.l.b16 %v218
  %v1169 = vunpack.c.h.b16 %v218
  %v1170 = vunpack.c.l.b16 %v219
  %v1171 = vunpack.c.h.b16 %v219
  %v1172 = vunpack.c.l.b16 %v220
  %v1173 = vunpack.c.l.b16 %v221
  %v1174 = vunpack.c.h.b16 %v221
  %v1175 = vunpack.c.l.b16 %v222
  %v1176 = vunpack.c.h.b16 %v222
  %v1177 = vunpack.c.l.b16 %v223
  %v1178 = vunpack.c.h.b16 %v223
  %v1179 = vunpack.c.l.b16 %v224
  %v1180 = vunpack.c.h.b16 %v224
  %v1181 = vunpack.c.l.b16 %v225
  %v1182 = vunpack.c.l.b16 %v226
  %v1183 = vunpack.c.h.b16 %v226
  %v1184 = vunpack.c.l.b16 %v227
  %v1185 = vunpack.c.h.b16 %v227
  %v1186 = vunpack.c.l.b16 %v228
  %v1187 = vunpack.c.h.b16 %v228
  %v1188 = vunpack.c.l.b16 %v229
  %v1189 = vunpack.c.h.b16 %v229
  %v1190 = vunpack.c.l.b16 %v230
  %v1191 = vunpack.c.l.b16 %v231
  %v1192 = vunpack.c.h.b16 %v231
  %v1193 = vunpack.c.l.b16 %v232
  %v1194 = vunpack.c.h.b16 %v232
  %v1195 = vunpack.c.l.b16 %v233
  %v1196 = vunpack.c.h.b16 %v233
  %v1197 = vunpack.c.l.b16 %v234
  %v1198 = vunpack.c.h.b16 %v234
  %v1199 = vunpack.c.l.b16 %v235
  %v1200 = vunpack.c.l.b16 %v236
  %v1201 = vunpack.c.h.b16 %v236
  %v1202 = vunpack.c.l.b16 %v237
  %v1203 = vunpack.c.h.b16 %v237
  %v1204 = vunpack.c.l.b16 %v238
  %v1205 = vunpack.c.h.b16 %v238
  %v1206 = vunpack.c.l.b16 %v239
  %v1207 = vunpack.c.h.b16 %v239
  %v1208 = vunpack.c.l.b16 %v240
  %v1209 = vunpack.c.l.b16 %v241
  %v1210 = vunpack.c.h.b16 %v241
  %v1211 = vunpack.c.l.b16 %v242
  %v1212 = vunpack.c.h.b16 %v242
  %v1213 = vunpack.c.l.b16 %v243
  %v1214 = vunpack.c.h.b16 %v243
  %v1215 = vunpack.c.l.b16 %v244
  %v1216 = vunpack.c.h.b16 %v244
  %v1217 = vunpack.c.l.b16 %v245
  %v1218 = vunpack.c.l.b16 %v246
  %v1219 = vunpack.c.h.b16 %v246
  %v1220 = vunpack.c.l.b16 %v247
  %v1221 = vunpack.c.h.b16 %v247
  %v1222 = vunpack.c.l.b16 %v248
  %v1223 = vunpack.c.h.b16 %v248
  %v1224 = vunpack.c.l.b16 %v249
  %v1225 = vunpack.c.h.b16 %v249
  %v1226 = vunpack.c.l.b16 %v250
  %v1227 = vunpack.c.l.b16 %v251
  %v1228 = vunpack.c.h.b16 %v251
  %v1229 = vunpack.c.l.b16 %v252
  %v1230 = vunpack.c.h.b16 %v252
  %v1231 = vunpack.c.l.b16 %v253
  %v1232 = vunpack.c.h.b16 %v253
  %v1233 = vunpack.c.l.b16 %v254
  %v1234 = vunpack.c.h.b16 %v254
  %v1235 = vunpack.c.l.b16 %v255
  %v1236 = vunpack.c.l.b16 %v256
  %v1237 = vunpack.c.h.b16 %v256
  %v1238 = vunpack.c.l.b16 %v257
  %v1239 = vunpack.c.h.b16 %v257
  %v1240 = vunpack.c.l.b16 %v258
  %v1241 = vunpack.c.h.b16 %v258
  %v1242 = vunpack.c.l.b16 %v259
  %v1243 = vunpack.c.h.b16 %v259
  %v1244 = vunpack.c.l.b16 %v260
  %v1245 = vunpack.c.l.b16 %v261
  %v1246 = vunpack.c.h.b16 %v261
  %v1247 = vunpack.c.l.b16 %v262
  %v1248 = vunpack.c.h.b16 %v262
  %v1249 = vunpack.c.l.b16 %v263
  %v1250 = vunpack.c.h.b16 %v263
  %v1251 = vunpack.c.l.b16 %v264
  %v1252 = vunpack.c.h.b16 %v264
  %v1253 = vunpack.c.l.b16 %v265
  %v1254 = vunpack.c.l.b16 %v266
  %v1255 = vunpack.c.h.b16 %v266
  %v1256 = vunpack.c.l.b16 %v267
  %v1257 = vunpack.c.h.b16 %v267
  %v1258 = vunpack.c.l.b16 %v268
  %v1259 = vunpack.c.h.b16 %v268
  %v1260 = vunpack.c.l.b16 %v269
  %v1261 = vunpack.c.h.b16 %v269
  %v1262 = vunpack.c.l.b16 %v270
  %v1263 = vunpack.c.l.b16 %v271
  %v1264 = vunpack.c.h.b16 %v271
  %v1265 = vunpack.c.l.b16 %v272
  %v1266 = vunpack.c.h.b16 %v272
  %v1267 = vunpack.c.l.b16 %v273
  %v1268 = vunpack.c.h.b16 %v273
  %v1269 = vunpack.c.l.b16 %v274
  %v1270 = vunpack.c.h.b16 %v274
  %v1271 = vunpack.c.l.b16 %v275
  %v1272 = vunpack.c.l.b16 %v276
  %v1273 = vunpack.c.h.b16 %v276
  %v1274 = vunpack.c.l.b16 %v277
  %v1275 = vunpack.c.h.b16 %v277
  %v1276 = vunpack.c.l.b16 %v278
  %v1277 = vunpack.c.h.b16 %v278
  %v1278 = vunpack.c.l.b16 %v279
  %v1279 = vunpack.c.h.b16 %v279
  %v1280 = vunpack.c.l.b16 %v280
  %v1281 = vunpack.c.l.b16 %v281
  %v1282 = vunpack.c.h.b16 %v281
  %v1283 = vunpack.c.l.b16 %v282
  %v1284 = vunpack.c.h.b16 %v282
  %v1285 = vunpack.c.l.b16 %v283
  %v1286 = vunpack.c.h.b16 %v283
  %v1287 = vunpack.c.l.b16 %v284
  %v1288 = vunpack.c.h.b16 %v284
  %v1289 = vunpack.c.l.b16 %v285
  %v1290 = vunpack.c.l.b16 %v286
  %v1291 = vunpack.c.h.b16 %v286
  %v1292 = vunpack.c.l.b16 %v287
  %v1293 = vunpack.c.h.b16 %v287
  %v1294 = vunpack.c.l.b16 %v288
  %v1295 = vunpack.c.h.b16 %v288
  %v1296 = vunpack.c.l.b16 %v289
  %v1297 = vunpack.c.h.b16 %v289
  %v1298 = vunpack.c.l.b16 %v290
  %v1299 = vunpack.c.l.b16 %v291
  %v1300 = vunpack.c.h.b16 %v291
  %v1301 = vunpack.c.l.b16 %v292
  %v1302 = vunpack.c.h.b16 %v292
  %v1303 = vunpack.c.l.b16 %v293
  %v1304 = vunpack.c.h.b16 %v293
  %v1305 = vunpack.c.l.b16 %v294
  %v1306 = vunpack.c.h.b16 %v294
  %v1307 = vunpack.c.l.b16 %v295
  %v1308 = vunpack.c.l.b16 %v296
  %v1309 = vunpack.c.h.b16 %v296
  %v1310 = vunpack.c.l.b16 %v297
  %v1311 = vunpack.c.h.b16 %v297
  %v1312 = vunpack.c.l.b16 %v298
  %v1313 = vunpack.c.h.b16 %v298
  %v1314 = vunpack.c.l.b16 %v299
  %v1315 = vunpack.c.h.b16 %v299
  %v1316 = vunpack.c.l.b16 %v300
  %v1317 = vunpack.c.l.b16 %v301
  %v1318 = vunpack.c.h.b16 %v301
  %v1319 = vunpack.c.l.b16 %v302
  %v1320 = vunpack.c.h.b16 %v302
  %v1321 = vunpack.c.l.b16 %v303
  %v1322 = vunpack.c.h.b16 %v303
  %v1323 = vunpack.c.l.b16 %v304
  %v1324 = vunpack.c.h.b16 %v304
  %v1325 = vunpack.c.l.b16 %v305
  %v1326 = vunpack.c.l.b16 %v306
  %v1327 = vunpack.c.h.b16 %v306
  %v1328 = vunpack.c.l.b16 %v307
  %v1329 = vunpack.c.h.b16 %v307
  %v1330 = vunpack.c.l.b16 %v308
  %v1331 = vunpack.c.h.b16 %v308
  %v1332 = vunpack.c.l.b16 %v309
  %v1333 = vunpack.c.h.b16 %v309
  %v1334 = vunpack.c.l.b16 %v310
  %v1335 = vunpack.c.l.b16 %v311
  %v1336 = vunpack.c.h.b16 %v311
  %v1337 = vunpack.c.l.b16 %v312
  %v1338 = vunpack.c.h.b16 %v312
  %v1339 = vunpack.c.l.b16 %v313
  %v1340 = vunpack.c.h.b16 %v313
  %v1341 = vunpack.c.l.b16 %v314
  %v1342 = vunpack.c.h.b16 %v314
  %v1343 = vunpack.c.l.b16 %v315
  %v1344 = vunpack.c.l.b16 %v316
  %v1345 = vunpack.c.h.b16 %v316
  %v1346 = vunpack.c.l.b16 %v317
  %v1347 = vunpack.c.h.b16 %v317
  %v1348 = vunpack.c.l.b16 %v318
  %v1349 = vunpack.c.h.b16 %v318
  %v1350 = vunpack.c.l.b16 %v319
  %v1351 = vunpack.c.h.b16 %v319
  %v1352 = vunpack.c.l.b16 %v320
  %v1353 = vunpack.c.l.b16 %v321
  %v1354 = vunpack.c.h.b16 %v321
  %v1355 = vunpack.c.l.b16 %v322
  %v1356 = vunpack.c.h.b16 %v322
  %v1357 = vunpack.c.l.b16 %v323
  %v1358 = vunpack.c.h.b16 %v323
  %v1359 = vunpack.c.l.b16 %v324
  %v1360 = vunpack.c.h.b16 %v324
  %v1361 = vunpack.c.l.b16 %v325
  %v1362 = vunpack.c.l.b16 %v326
  %v1363 = vunpack.c.h.b16 %v326
  %v1364 = vunpack.c.l.b16 %v327
  %v1365 = vunpack.c.h.b16 %v327
  %v1366 = vunpack.c.l.b16 %v328
  %v1367 = vunpack.c.h.b16 %v328
  %v1368 = vunpack.c.l.b16 %v329
  %v1369 = vunpack.c.h.b16 %v329
  %v1370 = vunpack.c.l.b16 %v330
  %v1371 = vpack.c.b16 %v804, %v795
  %v1372 = vpack.c.b16 %v805, %v796
  %v1373 = vpack.c.b16 %v806, %v797
  %v1374 = vpack.c.b16 %v807, %v798
  %v1375 = vpack.c.b16 %v808, %v799
  %v1376 = vpack.c.b16 %v809, %v800
  %v1377 = vpack.c.b16 %v810, %v801
  %v1378 = vpack.c.b16 %v811, %v802
  %v1379 = vpack.c.b16 %v812, %v803
  %v1380 = vpack.c.b16 %v822, %v813
  %v1381 = vpack.c.b16 %v823, %v814
  %v1382 = vpack.c.b16 %v824, %v815
  %v1383 = vpack.c.b16 %v825, %v816
  %v1384 = vpack.c.b16 %v826, %v817
  %v1385 = vpack.c.b16 %v827, %v818
  %v1386 = vpack.c.b16 %v828, %v819
  %v1387 = vpack.c.b16 %v829, %v820
  %v1388 = vpack.c.b16 %v830, %v821
  %v1389 = vpack.c.b16 %v840, %v831
  %v1390 = vpack.c.b16 %v841, %v832
  %v1391 = vpack.c.b16 %v842, %v833
  %v1392 = vpack.c.b16 %v843, %v834
  %v1393 = vpack.c.b16 %v844, %v835
  %v1394 = vpack.c.b16 %v845, %v836
  %v1395 = vpack.c.b16 %v846, %v837
  %v1396 = vpack.c.b16 %v847, %v838
  %v1397 = vpack.c.b16 %v848, %v839
  %v1398 = vpack.c.b16 %v858, %v849
  %v1399 = vpack.c.b16 %v859, %v850
  %v1400 = vpack.c.b16 %v860, %v851
  %v1401 = vpack.c.b16 %v861, %v852
  %v1402 = vpack.c.b16 %v862, %v853
  %v1403 = vpack.c.b16 %v863, %v854
  %v1404 = vpack.c.b16 %v864, %v855
  %v1405 = vpack.c.b16 %v865, %v856
  %v1406 = vpack.c.b16 %v866, %v857
  %v1407 = vpack.c.b16 %v876, %v867
  %v1408 = vpack.c.b16 %v877, %v868
  %v1409 = vpack.c.b16 %v878, %v869
  %v1410 = vpack.c.b16 %v879, %v870
  %v1411 = vpack.c.b16 %v880, %v871
  %v1412 = vpack.c.b16 %v881, %v872
  %v1413 = vpack.c.b16 %v882, %v873
  %v1414 = vpack.c.b16 %v883, %v874
  %v1415 = vpack.c.b16 %v884, %v875
  %v1416 = vpack.c.b16 %v894, %v885
  %v1417 = vpack.c.b16 %v895, %v886
  %v1418 = vpack.c.b16 %v896, %v887
  %v1419 = vpack.c.b16 %v897, %v888
  %v1420 = vpack.c.b16 %v898, %v889
  %v1421 = vpack.c.b16 %v899, %v890
  %v1422 = vpack.c.b16 %v900, %v891
  %v1423 = vpack.c.b16 %v901, %v892
  %v1424 = vpack.c.b16 %v902, %v893
  %v1425 = vpack.c.b16 %v912, %v903
  %v1426 = vpack.c.b16 %v913, %v904
  %v1427 = vpack.c.b16 %v914, %v905
  %v1428 = vpack.c.b16 %v915, %v906
  %v1429 = vpack.c.b16 %v916, %v907
  %v1430 = vpack.c.b16 %v917, %v908
  %v1431 = vpack.c.b16 %v918, %v909
  %v1432 = vpack.c.b16 %v919, %v910
  %v1433 = vpack.c.b16 %v920, %v911
  %v1434 = vpack.c.b16 %v930, %v921
  %v1435 = vpack.c.b16 %v931, %v922
  %v1436 = vpack.c.b16 %v932, %v923
  %v1437 = vpack.c.b16 %v933, %v924
  %v1438 = vpack.c.b16 %v934, %v925
  %v1439 = vpack.c.b16 %v935, %v926
  %v1440 = vpack.c.b16 %v936, %v927
  %v1441 = vpack.c.b16 %v937, %v928
  %v1442 = vpack.c.b16 %v938, %v929
  %v1443 = vpack.c.b16 %v948, %v939
  %v1444 = vpack.c.b16 %v949, %v940
  %v1445 = vpack.c.b16 %v950, %v941
  %v1446 = vpack.c.b16 %v951, %v942
  %v1447 = vpack.c.b16 %v952, %v943
  %v1448 = vpack.c.b16 %v953, %v944
  %v1449 = vpack.c.b16 %v954, %v945
  %v1450 = vpack.c.b16 %v955, %v946
  %v1451 = vpack.c.b16 %v956, %v947
  %v1452 = vpack.c.b16 %v966, %v957
  %v1453 = vpack.c.b16 %v967, %v958
  %v1454 = vpack.c.b16 %v968, %v959
  %v1455 = vpack.c.b16 %v969, %v960
  %v1456 = vpack.c.b16 %v970, %v961
  %v1457 = vpack.c.b16 %v971, %v962
  %v1458 = vpack.c.b16 %v972, %v963
  %v1459 = vpack.c.b16 %v973, %v964
  %v1460 = vpack.c.b16 %v974, %v965
  %v1461 = vpack.c.b16 %v984, %v975
  %v1462 = vpack.c.b16 %v985, %v976
  %v1463 = vpack.c.b16 %v986, %v977
  %v1464 = vpack.c.b16 %v987, %v978
  %v1465 = vpack.c.b16 %v988, %v979
  %v1466 = vpack.c.b16 %v989, %v980
  %v1467 = vpack.c.b16 %v990, %v981
  %v1468 = vpack.c.b16 %v991, %v982
  %v1469 = vpack.c.b16 %v992, %v983
  %v1470 = vpack.c.b16 %v1002, %v993
  %v1471 = vpack.c.b16 %v1003, %v994
  %v1472 = vpack.c.b16 %v1004, %v995
  %v1473 = vpack.c.b16 %v1005, %v996
  %v1474 = vpack.c.b16 %v1006, %v997
  %v1475 = vpack.c.b16 %v1007, %v998
  %v1476 = vpack.c.b16 %v1008, %v999
  %v1477 = vpack.c.b16 %v1009, %v1000
  %v1478 = vpack.c.b16 %v1010, %v1001
  %v1479 = vpack.c.b16 %v1020, %v1011
  %v1480 = vpack.c.b16 %v1021, %v1012
  %v1481 = vpack.c.b16 %v1022, %v1013
  %v1482 = vpack.c.b16 %v1023, %v1014
  %v1483 = vpack.c.b16 %v1024, %v1015
  %v1484 = vpack.c.b16 %v1025, %v1016
  %v1485 = vpack.c.b16 %v1026, %v1017
  %v1486 = vpack.c.b16 %v1027, %v1018
  %v1487 = vpack.c.b16 %v1028, %v1019
  %v1488 = vpack.c.b16 %v1038, %v1029
  %v1489 = vpack.c.b16 %v1039, %v1030
  %v1490 = vpack.c.b16 %v1040, %v1031
  %v1491 = vpack.c.b16 %v1041, %v1032
  %v1492 = vpack.c.b16 %v1042, %v1033
  %v1493 = vpack.c.b16 %v1043, %v1034
  %v1494 = vpack.c.b16 %v1044, %v1035
  %v1495 = vpack.c.b16 %v1045, %v1036
  %v1496 = vpack.c.b16 %v1046, %v1037
  %v1497 = vpack.c.b16 %v1056, %v1047
  %v1498 = vpack.c.b16 %v1057, %v1048
  %v1499 = vpack.c.b16 %v1058, %v1049
  %v1500 = vpack.c.b16 %v1059, %v1050
  %v1501 = vpack.c.b16 %v1060, %v1051
  %v1502 = vpack.c.b16 %v1061, %v1052
  %v1503 = vpack.c.b16 %v1062, %v1053
  %v1504 = vpack.c.b16 %v1063, %v1054
  %v1505 = vpack.c.b16 %v1064, %v1055
  %v1506 = vpack.c.b16 %v1074, %v1065
  %v1507 = vpack.c.b16 %v1075, %v1066
  %v1508 = vpack.c.b16 %v1076, %v1067
  %v1509 = vpack.c.b16 %v1077, %v1068
  %v1510 = vpack.c.b16 %v1078, %v1069
  %v1511 = vpack.c.b16 %v1079, %v1070
  %v1512 = vpack.c.b16 %v1080, %v1071
  %v1513 = vpack.c.b16 %v1081, %v1072
  %v1514 = vpack.c.b16 %v1082, %v1073
  %v1515 = vpack.c.b16 %v1092, %v1083
  %v1516 = vpack.c.b16 %v1093, %v1084
  %v1517 = vpack.c.b16 %v1094, %v1085
  %v1518 = vpack.c.b16 %v1095, %v1086
  %v1519 = vpack.c.b16 %v1096, %v1087
  %v1520 = vpack.c.b16 %v1097, %v1088
  %v1521 = vpack.c.b16 %v1098, %v1089
  %v1522 = vpack.c.b16 %v1099, %v1090
  %v1523 = vpack.c.b16 %v1100, %v1091
  %v1524 = vpack.c.b16 %v1110, %v1101
  %v1525 = vpack.c.b16 %v1111, %v1102
  %v1526 = vpack.c.b16 %v1112, %v1103
  %v1527 = vpack.c.b16 %v1113, %v1104
  %v1528 = vpack.c.b16 %v1114, %v1105
  %v1529 = vpack.c.b16 %v1115, %v1106
  %v1530 = vpack.c.b16 %v1116, %v1107
  %v1531 = vpack.c.b16 %v1117, %v1108
  %v1532 = vpack.c.b16 %v1118, %v1109
  %v1533 = vpack.c.b16 %v1128, %v1119
  %v1534 = vpack.c.b16 %v1129, %v1120
  %v1535 = vpack.c.b16 %v1130, %v1121
  %v1536 = vpack.c.b16 %v1131, %v1122
  %v1537 = vpack.c.b16 %v1132, %v1123
  %v1538 = vpack.c.b16 %v1133, %v1124
  %v1539 = vpack.c.b16 %v1134, %v1125
  %v1540 = vpack.c.b16 %v1135, %v1126
  %v1541 = vpack.c.b16 %v1136, %v1127
  %v1542 = vpack.c.b16 %v1146, %v1137
  %v1543 = vpack.c.b16 %v1147, %v1138
  %v1544 = vpack.c.b16 %v1148, %v1139
  %v1545 = vpack.c.b16 %v1149, %v1140
  %v1546 = vpack.c.b16 %v1150, %v1141
  %v1547 = vpack.c.b16 %v1151, %v1142
  %v1548 = vpack.c.b16 %v1152, %v1143
  %v1549 = vpack.c.b16 %v1153, %v1144
  %v1550 = vpack.c.b16 %v1154, %v1145
  %v1551 = vpack.c.b16 %v1164, %v1155
  %v1552 = vpack.c.b16 %v1165, %v1156
  %v1553 = vpack.c.b16 %v1166, %v1157
  %v1554 = vpack.c.b16 %v1167, %v1158
  %v1555 = vpack.c.b16 %v1168, %v1159
  %v1556 = vpack.c.b16 %v1169, %v1160
  %v1557 = vpack.c.b16 %v1170, %v1161
  %v1558 = vpack.c.b16 %v1171, %v1162
  %v1559 = vpack.c.b16 %v1172, %v1163
  %v1560 = vpack.c.b16 %v1182, %v1173
  %v1561 = vpack.c.b16 %v1183, %v1174
  %v1562 = vpack.c.b16 %v1184, %v1175
  %v1563 = vpack.c.b16 %v1185, %v1176
  %v1564 = vpack.c.b16 %v1186, %v1177
  %v1565 = vpack.c.b16 %v1187, %v1178
  %v1566 = vpack.c.b16 %v1188, %v1179
  %v1567 = vpack.c.b16 %v1189, %v1180
  %v1568 = vpack.c.b16 %v1190, %v1181
  %v1569 = vpack.c.b16 %v1200, %v1191
  %v1570 = vpack.c.b16 %v1201, %v1192
  %v1571 = vpack.c.b16 %v1202, %v1193
  %v1572 = vpack.c.b16 %v1203, %v1194
  %v1573 = vpack.c.b16 %v1204, %v1195
  %v1574 = vpack.c.b16 %v1205, %v1196
  %v1575 = vpack.c.b16 %v1206, %v1197
  %v1576 = vpack.c.b16 %v1207, %v1198
  %v1577 = vpack.c.b16 %v1208, %v1199
  %v1578 = vpack.c.b16 %v1218, %v1209
  %v1579 = vpack.c.b16 %v1219, %v1210
  %v1580 = vpack.c.b16 %v1220, %v1211
  %v1581 = vpack.c.b16 %v1221, %v1212
  %v1582 = vpack.c.b16 %v1222, %v1213
  %v1583 = vpack.c.b16 %v1223, %v1214
  %v1584 = vpack.c.b16 %v1224, %v1215
  %v1585 = vpack.c.b16 %v1225, %v1216
  %v1586 = vpack.c.b16 %v1226, %v1217
  %v1587 = vpack.c.b16 %v1236, %v1227
  %v1588 = vpack.c.b16 %v1237, %v1228
  %v1589 = vpack.c.b16 %v1238, %v1229
  %v1590 = vpack.c.b16 %v1239, %v1230
  %v1591 = vpack.c.b16 %v1240, %v1231
  %v1592 = vpack.c.b16 %v1241, %v1232
  %v1593 = vpack.c.b16 %v1242, %v1233
  %v1594 = vpack.c.b16 %v1243, %v1234
  %v1595 = vpack.c.b16 %v1244, %v1235
  %v1596 = vpack.c.b16 %v1254, %v1245
  %v1597 = vpack.c.b16 %v1255, %v1246
  %v1598 = vpack.c.b16 %v1256, %v1247
  %v1599 = vpack.c.b16 %v1257, %v1248
  %v1600 = vpack.c.b16 %v1258, %v1249
  %v1601 = vpack.c.b16 %v1259, %v1250
  %v1602 = vpack.c.b16 %v1260, %v1251
  %v1603 = vpack.c.b16 %v1261, %v1252
  %v1604 = vpack.c.b16 %v1262, %v1253
  %v1605 = vpack.c.b16 %v1272, %v1263
  %v1606 = vpack.c.b16 %v1273, %v1264
  %v1607 = vpack.c.b16 %v1274, %v1265
  %v1608 = vpack.c.b16 %v1275, %v1266
  %v1609 = vpack.c.b16 %v1276, %v1267
  %v1610 = vpack.c.b16 %v1277, %v1268
  %v1611 = vpack.c.b16 %v1278, %v1269
  %v1612 = vpack.c.b16 %v1279, %v1270
  %v1613 = vpack.c.b16 %v1280, %v1271
  %v1614 = vpack.c.b16 %v1290, %v1281
  %v1615 = vpack.c.b16 %v1291, %v1282
  %v1616 = vpack.c.b16 %v1292, %v1283
  %v1617 = vpack.c.b16 %v1293, %v1284
  %v1618 = vpack.c.b16 %v1294, %v1285
  %v1619 = vpack.c.b16 %v1295, %v1286
  %v1620 = vpack.c.b16 %v1296, %v1287
  %v1621 = vpack.c.b16 %v1297, %v1288
  %v1622 = vpack.c.b16 %v1298, %v1289
  %v1623 = vpack.c.b16 %v1308, %v1299
  %v1624 = vpack.c.b16 %v1309, %v1300
  %v1625 = vpack.c.b16 %v1310, %v1301
  %v1626 = vpack.c.b16 %v1311, %v1302
  %v1627 = vpack.c.b16 %v1312, %v1303
  %v1628 = vpack.c.b16 %v1313, %v1304
  %v1629 = vpack.c.b16 %v1314, %v1305
  %v1630 = vpack.c.b16 %v1315, %v1306
  %v1631 = vpack.c.b16 %v1316, %v1307
  %v1632 = vpack.c.b16 %v1326, %v1317
  %v1633 = vpack.c.b16 %v1327, %v1318
  %v1634 = vpack.c.b16 %v1328, %v1319
  %v1635 = vpack.c.b16 %v1329, %v1320
  %v1636 = vpack.c.b16 %v1330, %v1321
  %v1637 = vpack.c.b16 %v1331, %v1322
  %v1638 = vpack.c.b16 %v1332, %v1323
  %v1639 = vpack.c.b16 %v1333, %v1324
  %v1640 = vpack.c.b16 %v1334, %v1325
  %v1641 = vpack.c.b16 %v1344, %v1335
  %v1642 = vpack.c.b16 %v1345, %v1336
  %v1643 = vpack.c.b16 %v1346, %v1337
  %v1644 = vpack.c.b16 %v1347, %v1338
  %v1645 = vpack.c.b16 %v1348, %v1339
  %v1646 = vpack.c.b16 %v1349, %v1340
  %v1647 = vpack.c.b16 %v1350, %v1341
  %v1648 = vpack.c.b16 %v1351, %v1342
  %v1649 = vpack.c.b16 %v1352, %v1343
  %v1650 = vpack.c.b16 %v1362, %v1353
  %v1651 = vpack.c.b16 %v1363, %v1354
  %v1652 = vpack.c.b16 %v1364, %v1355
  %v1653 = vpack.c.b16 %v1365, %v1356
  %v1654 = vpack.c.b16 %v1366, %v1357
  %v1655 = vpack.c.b16 %v1367, %v1358
  %v1656 = vpack.c.b16 %v1368, %v1359
  %v1657 = vpack.c.b16 %v1369, %v1360
  %v1658 = vpack.c.b16 %v1370, %v1361
  %v2091 = vunpack.c.l.b16 %v331
  %v2092 = vunpack.c.l.b16 %v332
  %v2093 = vunpack.c.l.b16 %v333
  %v2094 = vunpack.c.l.b16 %v334
  %v2095 = vunpack.c.l.b16 %v335
  %v2096 = vunpack.c.l.b16 %v336
  %v2097 = vunpack.c.l.b16 %v337
  %v2098 = vunpack.c.l.b16 %v338
  %v2099 = vunpack.c.l.b16 %v339
  %v2100 = vunpack.c.l.b16 %v340
  %v2101 = vunpack.c.l.b16 %v341
  %v2102 = vunpack.c.l.b16 %v342
  %v2103 = vunpack.c.l.b16 %v343
  %v2104 = vunpack.c.l.b16 %v344
  %v2105 = vunpack.c.l.b16 %v345
  %v2106 = vunpack.c.l.b16 %v346
  %v2107 = vunpack.c.l.b16 %v347
  %v2108 = vunpack.c.l.b16 %v348
  %v2109 = vunpack.c.l.b16 %v349
  %v2110 = vunpack.c.l.b16 %v350
  %v2111 = vunpack.c.l.b16 %v351
  %v2112 = vunpack.c.l.b16 %v352
  %v2113 = vunpack.c.l.b16 %v353
  %v2114 = vunpack.c.l.b16 %v354
  %v2115 = vunpack.c.l.b16 %v355
  %v2116 = vunpack.c.l.b16 %v356
  %v2117 = vunpack.c.l.b16 %v357
  %v2118 = vunpack.c.l.b16 %v358
  %v2119 = vunpack.c.l.b16 %v359
  %v2120 = vunpack.c.l.b16 %v360
  %v2121 = vunpack.c.l.b16 %v361
  %v2122 = vunpack.c.l.b16 %v362
  %v2123 = vunpack.c.l.b16 %v363
  %v2124 = vunpack.c.l.b16 %v364
  %v2125 = vunpack.c.l.b16 %v365
  %v2126 = vunpack.c.l.b16 %v366
  %v2127 = vunpack.c.l.b16 %v367
  %v2128 = vunpack.c.l.b16 %v368
  %v2129 = vunpack.c.l.b16 %v369
  %v2130 = vunpack.c.l.b16 %v370
  %v2131 = vunpack.c.l.b16 %v371
  %v2132 = vunpack.c.l.b16 %v372
  %v2133 = vunpack.c.l.b16 %v373
  %v2134 = vunpack.c.l.b16 %v374
  %v2135 = vunpack.c.l.b16 %v375
  %v2136 = vunpack.c.l.b16 %v376
  %v2137 = vunpack.c.l.b16 %v377
  %v2138 = vunpack.c.l.b16 %v378
  %v2139 = vunpack.c.l.b16 %v379
  %v2140 = vunpack.c.l.b16 %v380
  %v2141 = vunpack.c.l.b16 %v381
  %v2142 = vunpack.c.l.b16 %v382
  %v2143 = vunpack.c.l.b16 %v383
  %v2144 = vunpack.c.l.b16 %v384
  %v2145 = vunpack.c.l.b16 %v385
  %v2146 = vunpack.c.l.b16 %v386
  %v2147 = vunpack.c.l.b16 %v387
  %v2148 = vunpack.c.l.b16 %v388
  %v2149 = vunpack.c.l.b16 %v389
  %v2150 = vunpack.c.l.b16 %v390
  %v2151 = vunpack.c.l.b16 %v391
  %v2152 = vunpack.c.l.b16 %v392
  %v2153 = vunpack.c.l.b16 %v393
  %v2154 = vunpack.c.l.b16 %v394
  %v2155 = vunpack.c.l.b16 %v395
  %v2156 = vunpack.c.l.b16 %v396
  %v2157 = vunpack.c.l.b16 %v397
  %v2158 = vunpack.c.l.b16 %v398
  %v2159 = vunpack.c.l.b16 %v399
  %v2160 = vunpack.c.l.b16 %v400
  %v2161 = vunpack.c.l.b16 %v401
  %v2162 = vunpack.c.l.b16 %v402
  %v2163 = vunpack.c.l.b16 %v403
  %v2164 = vunpack.c.l.b16 %v404
  %v2165 = vunpack.c.l.b16 %v405
  %v2166 = vunpack.c.l.b16 %v406
  %v2167 = vunpack.c.l.b16 %v407
  %v2168 = vunpack.c.l.b16 %v408
  %v2169 = vunpack.c.l.b16 %v409
  %v2170 = vunpack.c.l.b16 %v410
  %v2171 = vunpack.c.l.b16 %v411
  %v2172 = vunpack.c.l.b16 %v412
  %v2173 = vunpack.c.l.b16 %v413
  %v2174 = vunpack.c.l.b16 %v414
  %v2175 = vunpack.c.l.b16 %v415
  %v2176 = vunpack.c.l.b16 %v416
  %v2177 = vunpack.c.l.b16 %v417
  %v2178 = vunpack.c.l.b16 %v418
  %v2179 = vunpack.c.l.b16 %v419
  %v2180 = vunpack.c.l.b16 %v420
  %v2181 = vunpack.c.l.b16 %v421
  %v2182 = vunpack.c.l.b16 %v422
  %v2183 = vunpack.c.l.b16 %v423
  %v2184 = vunpack.c.l.b16 %v424
  %v2185 = vunpack.c.l.b16 %v425
  %v2186 = vunpack.c.l.b16 %v426
  %v2187 = vunpack.c.l.b16 %v427
  %v2188 = vunpack.c.l.b16 %v428
  %v2189 = vunpack.c.l.b16 %v429
  %v2190 = vunpack.c.l.b16 %v430
  %v2191 = vunpack.c.l.b16 %v431
  %v2192 = vunpack.c.l.b16 %v432
  %v2193 = vunpack.c.l.b16 %v433
  %v2194 = vunpack.c.l.b16 %v434
  %v2195 = vunpack.c.l.b16 %v435
  %v2196 = vunpack.c.l.b16 %v436
  %v2197 = vunpack.c.l.b16 %v437
  %v2198 = vunpack.c.l.b16 %v438
  %v2199 = vunpack.c.l.b16 %v439
  %v2200 = vunpack.c.l.b16 %v440
  %v2201 = vunpack.c.l.b16 %v441
  %v2202 = vunpack.c.l.b16 %v442
  %v2203 = vunpack.c.l.b16 %v443
  %v2204 = vunpack.c.l.b16 %v444
  %v2205 = vunpack.c.l.b16 %v445
  %v2206 = vunpack.c.l.b16 %v446
  %v2207 = vunpack.c.l.b16 %v447
  %v2208 = vunpack.c.l.b16 %v448
  %v2209 = vunpack.c.l.b16 %v449
  %v2210 = vunpack.c.l.b16 %v450
  %v2211 = vunpack.c.l.b16 %v451
  %v2212 = vunpack.c.l.b16 %v452
  %v2213 = vunpack.c.l.b16 %v453
  %v2214 = vunpack.c.l.b16 %v454
  %v2215 = vunpack.c.l.b16 %v455
  %v2216 = vunpack.c.l.b16 %v456
  %v2217 = vunpack.c.l.b16 %v457
  %v2218 = vunpack.c.l.b16 %v458
  %v2219 = vunpack.c.l.b16 %v459
  %v2220 = vunpack.c.l.b16 %v460
  %v2221 = vunpack.c.l.b16 %v461
  %v2222 = vunpack.c.l.b16 %v462
  %v2223 = vunpack.c.l.b16 %v463
  %v2224 = vunpack.c.l.b16 %v464
  %v2225 = vunpack.c.l.b16 %v465
  %v2226 = vunpack.c.l.b16 %v466
  %v2227 = vunpack.c.l.b16 %v467
  %v2228 = vunpack.c.l.b16 %v468
  %v2229 = vunpack.c.l.b16 %v469
  %v2230 = vunpack.c.l.b16 %v470
  %v2231 = vunpack.c.l.b16 %v471
  %v2232 = vunpack.c.l.b16 %v472
  %v2233 = vunpack.c.l.b16 %v473
  %v2234 = vunpack.c.l.b16 %v474
  %v2235 = vpack.c.b16 %v2092, %v2091
  %v2236 = vpack.c.b16 %v2094, %v2093
  %v2237 = vpack.c.b16 %v2096, %v2095
  %v2238 = vpack.c.b16 %v2098, %v2097
  %v2239 = vpack.c.b16 %v2100, %v2099
  %v2240 = vpack.c.b16 %v2102, %v2101
  %v2241 = vpack.c.b16 %v2104, %v2103
  %v2242 = vpack.c.b16 %v2106, %v2105
  %v2243 = vpack.c.b16 %v2108, %v2107
  %v2244 = vpack.c.b16 %v2110, %v2109
  %v2245 = vpack.c.b16 %v2112, %v2111
  %v2246 = vpack.c.b16 %v2114, %v2113
  %v2247 = vpack.c.b16 %v2116, %v2115
  %v2248 = vpack.c.b16 %v2118, %v2117
  %v2249 = vpack.c.b16 %v2120, %v2119
  %v2250 = vpack.c.b16 %v2122, %v2121
  %v2251 = vpack.c.b16 %v2124, %v2123
  %v2252 = vpack.c.b16 %v2126, %v2125
  %v2253 = vpack.c.b16 %v2128, %v2127
  %v2254 = vpack.c.b16 %v2130, %v2129
  %v2255 = vpack.c.b16 %v2132, %v2131
  %v2256 = vpack.c.b16 %v2134, %v2133
  %v2257 = vpack.c.b16 %v2136, %v2135
  %v2258 = vpack.c.b16 %v2138, %v2137
  %v2259 = vpack.c.b16 %v2140, %v2139
  %v2260 = vpack.c.b16 %v2142, %v2141
  %v2261 = vpack.c.b16 %v2144, %v2143
  %v2262 = vpack.c.b16 %v2146, %v2145
  %v2263 = vpack.c.b16 %v2148, %v2147
  %v2264 = vpack.c.b16 %v2150, %v2149
  %v2265 = vpack.c.b16 %v2152, %v2151
  %v2266 = vpack.c.b16 %v2154, %v2153
  %v2267 = vpack.c.b16 %v2156, %v2155
  %v2268 = vpack.c.b16 %v2158, %v2157
  %v2269 = vpack.c.b16 %v2160, %v2159
  %v2270 = vpack.c.b16 %v2162, %v2161
  %v2271 = vpack.c.b16 %v2164, %v2163
  %v2272 = vpack.c.b16 %v2166, %v2165
  %v2273 = vpack.c.b16 %v2168, %v2167
  %v2274 = vpack.c.b16 %v2170, %v2169
  %v2275 = vpack.c.b16 %v2172, %v2171
  %v2276 = vpack.c.b16 %v2174, %v2173
  %v2277 = vpack.c.b16 %v2176, %v2175
  %v2278 = vpack.c.b16 %v2178, %v2177
  %v2279 = vpack.c.b16 %v2180, %v2179
  %v2280 = vpack.c.b16 %v2182, %v2181
  %v2281 = vpack.c.b16 %v2184, %v2183
  %v2282 = vpack.c.b16 %v2186, %v2185
  %v2283 = vpack.c.b16 %v2188, %v2187
  %v2284 = vpack.c.b16 %v2190, %v2189
  %v2285 = vpack.c.b16 %v2192, %v2191
  %v2286 = vpack.c.b16 %v2194, %v2193
  %v2287 = vpack.c.b16 %v2196, %v2195
  %v2288 = vpack.c.b16 %v2198, %v2197
  %v2289 = vpack.c.b16 %v2200, %v2199
  %v2290 = vpack.c.b16 %v2202, %v2201
  %v2291 = vpack.c.b16 %v2204, %v2203
  %v2292 = vpack.c.b16 %v2206, %v2205
  %v2293 = vpack.c.b16 %v2208, %v2207
  %v2294 = vpack.c.b16 %v2210, %v2209
  %v2295 = vpack.c.b16 %v2212, %v2211
  %v2296 = vpack.c.b16 %v2214, %v2213
  %v2297 = vpack.c.b16 %v2216, %v2215
  %v2298 = vpack.c.b16 %v2218, %v2217
  %v2299 = vpack.c.b16 %v2220, %v2219
  %v2300 = vpack.c.b16 %v2222, %v2221
  %v2301 = vpack.c.b16 %v2224, %v2223
  %v2302 = vpack.c.b16 %v2226, %v2225
  %v2303 = vpack.c.b16 %v2228, %v2227
  %v2304 = vpack.c.b16 %v2230, %v2229
  %v2305 = vpack.c.b16 %v2232, %v2231
  %v2306 = vpack.c.b16 %v2234, %v2233
  %2379 = vmatpush.bf16.msra.mxu0 %v2242
  %2380 = vmatpush.bf16.msra.mxu0 %v2241
  %2381 = vmatpush.bf16.msra.mxu0 %v2240
  %2382 = vmatpush.bf16.msra.mxu0 %v2239
  %2383 = vmatpush.bf16.msra.mxu0 %v2238
  %2384 = vmatpush.bf16.msra.mxu0 %v2237
  %2385 = vmatpush.bf16.msra.mxu0 %v2236
  %2386 = vmatpush.bf16.msra.mxu0 %v2235
  %2387 = vmatmul.bf16.gmra.mxu0 %v1371
  %v2388 = vpop.f32.mrf.mxu0
  %v2389 = vadd.f32 0.0, %v2388
  %v2390 = vpop.f32.mrf.mxu0
  %v2391 = vadd.f32 0.0, %v2390
  %2392 = vmatmul.bf16.gmra.mxu0 %v1380
  %v2393 = vpop.f32.mrf.mxu0
  %v2394 = vadd.f32 0.0, %v2393
  %v2395 = vpop.f32.mrf.mxu0
  %v2396 = vadd.f32 0.0, %v2395
  %2397 = vmatmul.bf16.gmra.mxu0 %v1389
  %v2398 = vpop.f32.mrf.mxu0
  %v2399 = vadd.f32 0.0, %v2398
  %v2400 = vpop.f32.mrf.mxu0
  %v2401 = vadd.f32 0.0, %v2400
  %2402 = vmatmul.bf16.gmra.mxu0 %v1398
  %v2403 = vpop.f32.mrf.mxu0
  %v2404 = vadd.f32 0.0, %v2403
  %v2405 = vpop.f32.mrf.mxu0
  %v2406 = vadd.f32 0.0, %v2405
  %2407 = vmatmul.bf16.gmra.mxu0 %v1407
  %v2408 = vpop.f32.mrf.mxu0
  %v2409 = vadd.f32 0.0, %v2408
  %v2410 = vpop.f32.mrf.mxu0
  %v2411 = vadd.f32 0.0, %v2410
  %2412 = vmatmul.bf16.gmra.mxu0 %v1416
  %v2413 = vpop.f32.mrf.mxu0
  %v2414 = vadd.f32 0.0, %v2413
  %v2415 = vpop.f32.mrf.mxu0
  %v2416 = vadd.f32 0.0, %v2415
  %2417 = vmatmul.bf16.gmra.mxu0 %v1425
  %v2418 = vpop.f32.mrf.mxu0
  %v2419 = vadd.f32 0.0, %v2418
  %v2420 = vpop.f32.mrf.mxu0
  %v2421 = vadd.f32 0.0, %v2420
  %2422 = vmatmul.bf16.gmra.mxu0 %v1434
  %v2423 = vpop.f32.mrf.mxu0
  %v2424 = vadd.f32 0.0, %v2423
  %v2425 = vpop.f32.mrf.mxu0
  %v2426 = vadd.f32 0.0, %v2425
  %2427 = vmatmul.bf16.gmra.mxu0 %v1443
  %v2428 = vpop.f32.mrf.mxu0
  %v2429 = vadd.f32 0.0, %v2428
  %v2430 = vpop.f32.mrf.mxu0
  %v2431 = vadd.f32 0.0, %v2430
  %2432 = vmatmul.bf16.gmra.mxu0 %v1452
  %v2433 = vpop.f32.mrf.mxu0
  %v2434 = vadd.f32 0.0, %v2433
  %v2435 = vpop.f32.mrf.mxu0
  %v2436 = vadd.f32 0.0, %v2435
  %2437 = vmatmul.bf16.gmra.mxu0 %v1461
  %v2438 = vpop.f32.mrf.mxu0
  %v2439 = vadd.f32 0.0, %v2438
  %v2440 = vpop.f32.mrf.mxu0
  %v2441 = vadd.f32 0.0, %v2440
  %2442 = vmatmul.bf16.gmra.mxu0 %v1470
  %v2443 = vpop.f32.mrf.mxu0
  %v2444 = vadd.f32 0.0, %v2443
  %v2445 = vpop.f32.mrf.mxu0
  %v2446 = vadd.f32 0.0, %v2445
  %2447 = vmatmul.bf16.gmra.mxu0 %v1479
  %v2448 = vpop.f32.mrf.mxu0
  %v2449 = vadd.f32 0.0, %v2448
  %v2450 = vpop.f32.mrf.mxu0
  %v2451 = vadd.f32 0.0, %v2450
  %2452 = vmatmul.bf16.gmra.mxu0 %v1488
  %v2453 = vpop.f32.mrf.mxu0
  %v2454 = vadd.f32 0.0, %v2453
  %v2455 = vpop.f32.mrf.mxu0
  %v2456 = vadd.f32 0.0, %v2455
  %2457 = vmatmul.bf16.gmra.mxu0 %v1497
  %v2458 = vpop.f32.mrf.mxu0
  %v2459 = vadd.f32 0.0, %v2458
  %v2460 = vpop.f32.mrf.mxu0
  %v2461 = vadd.f32 0.0, %v2460
  %2462 = vmatmul.bf16.gmra.mxu0 %v1506
  %v2463 = vpop.f32.mrf.mxu0
  %v2464 = vadd.f32 0.0, %v2463
  %v2465 = vpop.f32.mrf.mxu0
  %v2466 = vadd.f32 0.0, %v2465
  %2467 = vmatmul.bf16.gmra.mxu0 %v1515
  %v2468 = vpop.f32.mrf.mxu0
  %v2469 = vadd.f32 0.0, %v2468
  %v2470 = vpop.f32.mrf.mxu0
  %v2471 = vadd.f32 0.0, %v2470
  %2472 = vmatmul.bf16.gmra.mxu0 %v1524
  %v2473 = vpop.f32.mrf.mxu0
  %v2474 = vadd.f32 0.0, %v2473
  %v2475 = vpop.f32.mrf.mxu0
  %v2476 = vadd.f32 0.0, %v2475
  %2477 = vmatmul.bf16.gmra.mxu0 %v1533
  %v2478 = vpop.f32.mrf.mxu0
  %v2479 = vadd.f32 0.0, %v2478
  %v2480 = vpop.f32.mrf.mxu0
  %v2481 = vadd.f32 0.0, %v2480
  %2482 = vmatmul.bf16.gmra.mxu0 %v1542
  %v2483 = vpop.f32.mrf.mxu0
  %v2484 = vadd.f32 0.0, %v2483
  %v2485 = vpop.f32.mrf.mxu0
  %v2486 = vadd.f32 0.0, %v2485
  %2487 = vmatmul.bf16.gmra.mxu0 %v1551
  %v2488 = vpop.f32.mrf.mxu0
  %v2489 = vadd.f32 0.0, %v2488
  %v2490 = vpop.f32.mrf.mxu0
  %v2491 = vadd.f32 0.0, %v2490
  %2492 = vmatmul.bf16.gmra.mxu0 %v1560
  %v2493 = vpop.f32.mrf.mxu0
  %v2494 = vadd.f32 0.0, %v2493
  %v2495 = vpop.f32.mrf.mxu0
  %v2496 = vadd.f32 0.0, %v2495
  %2497 = vmatmul.bf16.gmra.mxu0 %v1569
  %v2498 = vpop.f32.mrf.mxu0
  %v2499 = vadd.f32 0.0, %v2498
  %v2500 = vpop.f32.mrf.mxu0
  %v2501 = vadd.f32 0.0, %v2500
  %2502 = vmatmul.bf16.gmra.mxu0 %v1578
  %v2503 = vpop.f32.mrf.mxu0
  %v2504 = vadd.f32 0.0, %v2503
  %v2505 = vpop.f32.mrf.mxu0
  %v2506 = vadd.f32 0.0, %v2505
  %2507 = vmatmul.bf16.gmra.mxu0 %v1587
  %v2508 = vpop.f32.mrf.mxu0
  %v2509 = vadd.f32 0.0, %v2508
  %v2510 = vpop.f32.mrf.mxu0
  %v2511 = vadd.f32 0.0, %v2510
  %2512 = vmatmul.bf16.gmra.mxu0 %v1596
  %v2513 = vpop.f32.mrf.mxu0
  %v2514 = vadd.f32 0.0, %v2513
  %v2515 = vpop.f32.mrf.mxu0
  %v2516 = vadd.f32 0.0, %v2515
  %2517 = vmatmul.bf16.gmra.mxu0 %v1605
  %v2518 = vpop.f32.mrf.mxu0
  %v2519 = vadd.f32 0.0, %v2518
  %v2520 = vpop.f32.mrf.mxu0
  %v2521 = vadd.f32 0.0, %v2520
  %2522 = vmatmul.bf16.gmra.mxu0 %v1614
  %v2523 = vpop.f32.mrf.mxu0
  %v2524 = vadd.f32 0.0, %v2523
  %v2525 = vpop.f32.mrf.mxu0
  %v2526 = vadd.f32 0.0, %v2525
  %2527 = vmatmul.bf16.gmra.mxu0 %v1623
  %v2528 = vpop.f32.mrf.mxu0
  %v2529 = vadd.f32 0.0, %v2528
  %v2530 = vpop.f32.mrf.mxu0
  %v2531 = vadd.f32 0.0, %v2530
  %2532 = vmatmul.bf16.gmra.mxu0 %v1632
  %v2533 = vpop.f32.mrf.mxu0
  %v2534 = vadd.f32 0.0, %v2533
  %v2535 = vpop.f32.mrf.mxu0
  %v2536 = vadd.f32 0.0, %v2535
  %2537 = vmatmul.bf16.gmra.mxu0 %v1641
  %v2538 = vpop.f32.mrf.mxu0
  %v2539 = vadd.f32 0.0, %v2538
  %v2540 = vpop.f32.mrf.mxu0
  %v2541 = vadd.f32 0.0, %v2540
  %2542 = vmatmul.bf16.gmra.mxu0 %v1650
  %v2543 = vpop.f32.mrf.mxu0
  %v2544 = vadd.f32 0.0, %v2543
  %v2545 = vpop.f32.mrf.mxu0
  %v2546 = vadd.f32 0.0, %v2545
  %2547 = vdwg.mxu0
  %2548 = vmatpush.bf16.msra.mxu0 %v2250
  %2549 = vmatpush.bf16.msra.mxu0 %v2249
  %2550 = vmatpush.bf16.msra.mxu0 %v2248
  %2551 = vmatpush.bf16.msra.mxu0 %v2247
  %2552 = vmatpush.bf16.msra.mxu0 %v2246
  %2553 = vmatpush.bf16.msra.mxu0 %v2245
  %2554 = vmatpush.bf16.msra.mxu0 %v2244
  %2555 = vmatpush.bf16.msra.mxu0 %v2243
  %2556 = vmatmul.bf16.gmra.mxu0 %v1372
  %v2557 = vpop.f32.mrf.mxu0
  %v2558 = vadd.f32 %v2389, %v2557
  %v2559 = vpop.f32.mrf.mxu0
  %v2560 = vadd.f32 %v2391, %v2559
  %2561 = vmatmul.bf16.gmra.mxu0 %v1381
  %v2562 = vpop.f32.mrf.mxu0
  %v2563 = vadd.f32 %v2394, %v2562
  %v2564 = vpop.f32.mrf.mxu0
  %v2565 = vadd.f32 %v2396, %v2564
  %2566 = vmatmul.bf16.gmra.mxu0 %v1390
  %v2567 = vpop.f32.mrf.mxu0
  %v2568 = vadd.f32 %v2399, %v2567
  %v2569 = vpop.f32.mrf.mxu0
  %v2570 = vadd.f32 %v2401, %v2569
  %2571 = vmatmul.bf16.gmra.mxu0 %v1399
  %v2572 = vpop.f32.mrf.mxu0
  %v2573 = vadd.f32 %v2404, %v2572
  %v2574 = vpop.f32.mrf.mxu0
  %v2575 = vadd.f32 %v2406, %v2574
  %2576 = vmatmul.bf16.gmra.mxu0 %v1408
  %v2577 = vpop.f32.mrf.mxu0
  %v2578 = vadd.f32 %v2409, %v2577
  %v2579 = vpop.f32.mrf.mxu0
  %v2580 = vadd.f32 %v2411, %v2579
  %2581 = vmatmul.bf16.gmra.mxu0 %v1417
  %v2582 = vpop.f32.mrf.mxu0
  %v2583 = vadd.f32 %v2414, %v2582
  %v2584 = vpop.f32.mrf.mxu0
  %v2585 = vadd.f32 %v2416, %v2584
  %2586 = vmatmul.bf16.gmra.mxu0 %v1426
  %v2587 = vpop.f32.mrf.mxu0
  %v2588 = vadd.f32 %v2419, %v2587
  %v2589 = vpop.f32.mrf.mxu0
  %v2590 = vadd.f32 %v2421, %v2589
  %2591 = vmatmul.bf16.gmra.mxu0 %v1435
  %v2592 = vpop.f32.mrf.mxu0
  %v2593 = vadd.f32 %v2424, %v2592
  %v2594 = vpop.f32.mrf.mxu0
  %v2595 = vadd.f32 %v2426, %v2594
  %2596 = vmatmul.bf16.gmra.mxu0 %v1444
  %v2597 = vpop.f32.mrf.mxu0
  %v2598 = vadd.f32 %v2429, %v2597
  %v2599 = vpop.f32.mrf.mxu0
  %v2600 = vadd.f32 %v2431, %v2599
  %2601 = vmatmul.bf16.gmra.mxu0 %v1453
  %v2602 = vpop.f32.mrf.mxu0
  %v2603 = vadd.f32 %v2434, %v2602
  %v2604 = vpop.f32.mrf.mxu0
  %v2605 = vadd.f32 %v2436, %v2604
  %2606 = vmatmul.bf16.gmra.mxu0 %v1462
  %v2607 = vpop.f32.mrf.mxu0
  %v2608 = vadd.f32 %v2439, %v2607
  %v2609 = vpop.f32.mrf.mxu0
  %v2610 = vadd.f32 %v2441, %v2609
  %2611 = vmatmul.bf16.gmra.mxu0 %v1471
  %v2612 = vpop.f32.mrf.mxu0
  %v2613 = vadd.f32 %v2444, %v2612
  %v2614 = vpop.f32.mrf.mxu0
  %v2615 = vadd.f32 %v2446, %v2614
  %2616 = vmatmul.bf16.gmra.mxu0 %v1480
  %v2617 = vpop.f32.mrf.mxu0
  %v2618 = vadd.f32 %v2449, %v2617
  %v2619 = vpop.f32.mrf.mxu0
  %v2620 = vadd.f32 %v2451, %v2619
  %2621 = vmatmul.bf16.gmra.mxu0 %v1489
  %v2622 = vpop.f32.mrf.mxu0
  %v2623 = vadd.f32 %v2454, %v2622
  %v2624 = vpop.f32.mrf.mxu0
  %v2625 = vadd.f32 %v2456, %v2624
  %2626 = vmatmul.bf16.gmra.mxu0 %v1498
  %v2627 = vpop.f32.mrf.mxu0
  %v2628 = vadd.f32 %v2459, %v2627
  %v2629 = vpop.f32.mrf.mxu0
  %v2630 = vadd.f32 %v2461, %v2629
  %2631 = vmatmul.bf16.gmra.mxu0 %v1507
  %v2632 = vpop.f32.mrf.mxu0
  %v2633 = vadd.f32 %v2464, %v2632
  %v2634 = vpop.f32.mrf.mxu0
  %v2635 = vadd.f32 %v2466, %v2634
  %2636 = vmatmul.bf16.gmra.mxu0 %v1516
  %v2637 = vpop.f32.mrf.mxu0
  %v2638 = vadd.f32 %v2469, %v2637
  %v2639 = vpop.f32.mrf.mxu0
  %v2640 = vadd.f32 %v2471, %v2639
  %2641 = vmatmul.bf16.gmra.mxu0 %v1525
  %v2642 = vpop.f32.mrf.mxu0
  %v2643 = vadd.f32 %v2474, %v2642
  %v2644 = vpop.f32.mrf.mxu0
  %v2645 = vadd.f32 %v2476, %v2644
  %2646 = vmatmul.bf16.gmra.mxu0 %v1534
  %v2647 = vpop.f32.mrf.mxu0
  %v2648 = vadd.f32 %v2479, %v2647
  %v2649 = vpop.f32.mrf.mxu0
  %v2650 = vadd.f32 %v2481, %v2649
  %2651 = vmatmul.bf16.gmra.mxu0 %v1543
  %v2652 = vpop.f32.mrf.mxu0
  %v2653 = vadd.f32 %v2484, %v2652
  %v2654 = vpop.f32.mrf.mxu0
  %v2655 = vadd.f32 %v2486, %v2654
  %2656 = vmatmul.bf16.gmra.mxu0 %v1552
  %v2657 = vpop.f32.mrf.mxu0
  %v2658 = vadd.f32 %v2489, %v2657
  %v2659 = vpop.f32.mrf.mxu0
  %v2660 = vadd.f32 %v2491, %v2659
  %2661 = vmatmul.bf16.gmra.mxu0 %v1561
  %v2662 = vpop.f32.mrf.mxu0
  %v2663 = vadd.f32 %v2494, %v2662
  %v2664 = vpop.f32.mrf.mxu0
  %v2665 = vadd.f32 %v2496, %v2664
  %2666 = vmatmul.bf16.gmra.mxu0 %v1570
  %v2667 = vpop.f32.mrf.mxu0
  %v2668 = vadd.f32 %v2499, %v2667
  %v2669 = vpop.f32.mrf.mxu0
  %v2670 = vadd.f32 %v2501, %v2669
  %2671 = vmatmul.bf16.gmra.mxu0 %v1579
  %v2672 = vpop.f32.mrf.mxu0
  %v2673 = vadd.f32 %v2504, %v2672
  %v2674 = vpop.f32.mrf.mxu0
  %v2675 = vadd.f32 %v2506, %v2674
  %2676 = vmatmul.bf16.gmra.mxu0 %v1588
  %v2677 = vpop.f32.mrf.mxu0
  %v2678 = vadd.f32 %v2509, %v2677
  %v2679 = vpop.f32.mrf.mxu0
  %v2680 = vadd.f32 %v2511, %v2679
  %2681 = vmatmul.bf16.gmra.mxu0 %v1597
  %v2682 = vpop.f32.mrf.mxu0
  %v2683 = vadd.f32 %v2514, %v2682
  %v2684 = vpop.f32.mrf.mxu0
  %v2685 = vadd.f32 %v2516, %v2684
  %2686 = vmatmul.bf16.gmra.mxu0 %v1606
  %v2687 = vpop.f32.mrf.mxu0
  %v2688 = vadd.f32 %v2519, %v2687
  %v2689 = vpop.f32.mrf.mxu0
  %v2690 = vadd.f32 %v2521, %v2689
  %2691 = vmatmul.bf16.gmra.mxu0 %v1615
  %v2692 = vpop.f32.mrf.mxu0
  %v2693 = vadd.f32 %v2524, %v2692
  %v2694 = vpop.f32.mrf.mxu0
  %v2695 = vadd.f32 %v2526, %v2694
  %2696 = vmatmul.bf16.gmra.mxu0 %v1624
  %v2697 = vpop.f32.mrf.mxu0
  %v2698 = vadd.f32 %v2529, %v2697
  %v2699 = vpop.f32.mrf.mxu0
  %v2700 = vadd.f32 %v2531, %v2699
  %2701 = vmatmul.bf16.gmra.mxu0 %v1633
  %v2702 = vpop.f32.mrf.mxu0
  %v2703 = vadd.f32 %v2534, %v2702
  %v2704 = vpop.f32.mrf.mxu0
  %v2705 = vadd.f32 %v2536, %v2704
  %2706 = vmatmul.bf16.gmra.mxu0 %v1642
  %v2707 = vpop.f32.mrf.mxu0
  %v2708 = vadd.f32 %v2539, %v2707
  %v2709 = vpop.f32.mrf.mxu0
  %v2710 = vadd.f32 %v2541, %v2709
  %2711 = vmatmul.bf16.gmra.mxu0 %v1651
  %v2712 = vpop.f32.mrf.mxu0
  %v2713 = vadd.f32 %v2544, %v2712
  %v2714 = vpop.f32.mrf.mxu0
  %v2715 = vadd.f32 %v2546, %v2714
  %2716 = vdwg.mxu0
  %2717 = vmatpush.bf16.msra.mxu0 %v2258
  %2718 = vmatpush.bf16.msra.mxu0 %v2257
  %2719 = vmatpush.bf16.msra.mxu0 %v2256
  %2720 = vmatpush.bf16.msra.mxu0 %v2255
  %2721 = vmatpush.bf16.msra.mxu0 %v2254
  %2722 = vmatpush.bf16.msra.mxu0 %v2253
  %2723 = vmatpush.bf16.msra.mxu0 %v2252
  %2724 = vmatpush.bf16.msra.mxu0 %v2251
  %2725 = vmatmul.bf16.gmra.mxu0 %v1373
  %v2726 = vpop.f32.mrf.mxu0
  %v2727 = vadd.f32 %v2558, %v2726
  %v2728 = vpop.f32.mrf.mxu0
  %v2729 = vadd.f32 %v2560, %v2728
  %2730 = vmatmul.bf16.gmra.mxu0 %v1382
  %v2731 = vpop.f32.mrf.mxu0
  %v2732 = vadd.f32 %v2563, %v2731
  %v2733 = vpop.f32.mrf.mxu0
  %v2734 = vadd.f32 %v2565, %v2733
  %2735 = vmatmul.bf16.gmra.mxu0 %v1391
  %v2736 = vpop.f32.mrf.mxu0
  %v2737 = vadd.f32 %v2568, %v2736
  %v2738 = vpop.f32.mrf.mxu0
  %v2739 = vadd.f32 %v2570, %v2738
  %2740 = vmatmul.bf16.gmra.mxu0 %v1400
  %v2741 = vpop.f32.mrf.mxu0
  %v2742 = vadd.f32 %v2573, %v2741
  %v2743 = vpop.f32.mrf.mxu0
  %v2744 = vadd.f32 %v2575, %v2743
  %2745 = vmatmul.bf16.gmra.mxu0 %v1409
  %v2746 = vpop.f32.mrf.mxu0
  %v2747 = vadd.f32 %v2578, %v2746
  %v2748 = vpop.f32.mrf.mxu0
  %v2749 = vadd.f32 %v2580, %v2748
  %2750 = vmatmul.bf16.gmra.mxu0 %v1418
  %v2751 = vpop.f32.mrf.mxu0
  %v2752 = vadd.f32 %v2583, %v2751
  %v2753 = vpop.f32.mrf.mxu0
  %v2754 = vadd.f32 %v2585, %v2753
  %2755 = vmatmul.bf16.gmra.mxu0 %v1427
  %v2756 = vpop.f32.mrf.mxu0
  %v2757 = vadd.f32 %v2588, %v2756
  %v2758 = vpop.f32.mrf.mxu0
  %v2759 = vadd.f32 %v2590, %v2758
  %2760 = vmatmul.bf16.gmra.mxu0 %v1436
  %v2761 = vpop.f32.mrf.mxu0
  %v2762 = vadd.f32 %v2593, %v2761
  %v2763 = vpop.f32.mrf.mxu0
  %v2764 = vadd.f32 %v2595, %v2763
  %2765 = vmatmul.bf16.gmra.mxu0 %v1445
  %v2766 = vpop.f32.mrf.mxu0
  %v2767 = vadd.f32 %v2598, %v2766
  %v2768 = vpop.f32.mrf.mxu0
  %v2769 = vadd.f32 %v2600, %v2768
  %2770 = vmatmul.bf16.gmra.mxu0 %v1454
  %v2771 = vpop.f32.mrf.mxu0
  %v2772 = vadd.f32 %v2603, %v2771
  %v2773 = vpop.f32.mrf.mxu0
  %v2774 = vadd.f32 %v2605, %v2773
  %2775 = vmatmul.bf16.gmra.mxu0 %v1463
  %v2776 = vpop.f32.mrf.mxu0
  %v2777 = vadd.f32 %v2608, %v2776
  %v2778 = vpop.f32.mrf.mxu0
  %v2779 = vadd.f32 %v2610, %v2778
  %2780 = vmatmul.bf16.gmra.mxu0 %v1472
  %v2781 = vpop.f32.mrf.mxu0
  %v2782 = vadd.f32 %v2613, %v2781
  %v2783 = vpop.f32.mrf.mxu0
  %v2784 = vadd.f32 %v2615, %v2783
  %2785 = vmatmul.bf16.gmra.mxu0 %v1481
  %v2786 = vpop.f32.mrf.mxu0
  %v2787 = vadd.f32 %v2618, %v2786
  %v2788 = vpop.f32.mrf.mxu0
  %v2789 = vadd.f32 %v2620, %v2788
  %2790 = vmatmul.bf16.gmra.mxu0 %v1490
  %v2791 = vpop.f32.mrf.mxu0
  %v2792 = vadd.f32 %v2623, %v2791
  %v2793 = vpop.f32.mrf.mxu0
  %v2794 = vadd.f32 %v2625, %v2793
  %2795 = vmatmul.bf16.gmra.mxu0 %v1499
  %v2796 = vpop.f32.mrf.mxu0
  %v2797 = vadd.f32 %v2628, %v2796
  %v2798 = vpop.f32.mrf.mxu0
  %v2799 = vadd.f32 %v2630, %v2798
  %2800 = vmatmul.bf16.gmra.mxu0 %v1508
  %v2801 = vpop.f32.mrf.mxu0
  %v2802 = vadd.f32 %v2633, %v2801
  %v2803 = vpop.f32.mrf.mxu0
  %v2804 = vadd.f32 %v2635, %v2803
  %2805 = vmatmul.bf16.gmra.mxu0 %v1517
  %v2806 = vpop.f32.mrf.mxu0
  %v2807 = vadd.f32 %v2638, %v2806
  %v2808 = vpop.f32.mrf.mxu0
  %v2809 = vadd.f32 %v2640, %v2808
  %2810 = vmatmul.bf16.gmra.mxu0 %v1526
  %v2811 = vpop.f32.mrf.mxu0
  %v2812 = vadd.f32 %v2643, %v2811
  %v2813 = vpop.f32.mrf.mxu0
  %v2814 = vadd.f32 %v2645, %v2813
  %2815 = vmatmul.bf16.gmra.mxu0 %v1535
  %v2816 = vpop.f32.mrf.mxu0
  %v2817 = vadd.f32 %v2648, %v2816
  %v2818 = vpop.f32.mrf.mxu0
  %v2819 = vadd.f32 %v2650, %v2818
  %2820 = vmatmul.bf16.gmra.mxu0 %v1544
  %v2821 = vpop.f32.mrf.mxu0
  %v2822 = vadd.f32 %v2653, %v2821
  %v2823 = vpop.f32.mrf.mxu0
  %v2824 = vadd.f32 %v2655, %v2823
  %2825 = vmatmul.bf16.gmra.mxu0 %v1553
  %v2826 = vpop.f32.mrf.mxu0
  %v2827 = vadd.f32 %v2658, %v2826
  %v2828 = vpop.f32.mrf.mxu0
  %v2829 = vadd.f32 %v2660, %v2828
  %2830 = vmatmul.bf16.gmra.mxu0 %v1562
  %v2831 = vpop.f32.mrf.mxu0
  %v2832 = vadd.f32 %v2663, %v2831
  %v2833 = vpop.f32.mrf.mxu0
  %v2834 = vadd.f32 %v2665, %v2833
  %2835 = vmatmul.bf16.gmra.mxu0 %v1571
  %v2836 = vpop.f32.mrf.mxu0
  %v2837 = vadd.f32 %v2668, %v2836
  %v2838 = vpop.f32.mrf.mxu0
  %v2839 = vadd.f32 %v2670, %v2838
  %2840 = vmatmul.bf16.gmra.mxu0 %v1580
  %v2841 = vpop.f32.mrf.mxu0
  %v2842 = vadd.f32 %v2673, %v2841
  %v2843 = vpop.f32.mrf.mxu0
  %v2844 = vadd.f32 %v2675, %v2843
  %2845 = vmatmul.bf16.gmra.mxu0 %v1589
  %v2846 = vpop.f32.mrf.mxu0
  %v2847 = vadd.f32 %v2678, %v2846
  %v2848 = vpop.f32.mrf.mxu0
  %v2849 = vadd.f32 %v2680, %v2848
  %2850 = vmatmul.bf16.gmra.mxu0 %v1598
  %v2851 = vpop.f32.mrf.mxu0
  %v2852 = vadd.f32 %v2683, %v2851
  %v2853 = vpop.f32.mrf.mxu0
  %v2854 = vadd.f32 %v2685, %v2853
  %2855 = vmatmul.bf16.gmra.mxu0 %v1607
  %v2856 = vpop.f32.mrf.mxu0
  %v2857 = vadd.f32 %v2688, %v2856
  %v2858 = vpop.f32.mrf.mxu0
  %v2859 = vadd.f32 %v2690, %v2858
  %2860 = vmatmul.bf16.gmra.mxu0 %v1616
  %v2861 = vpop.f32.mrf.mxu0
  %v2862 = vadd.f32 %v2693, %v2861
  %v2863 = vpop.f32.mrf.mxu0
  %v2864 = vadd.f32 %v2695, %v2863
  %2865 = vmatmul.bf16.gmra.mxu0 %v1625
  %v2866 = vpop.f32.mrf.mxu0
  %v2867 = vadd.f32 %v2698, %v2866
  %v2868 = vpop.f32.mrf.mxu0
  %v2869 = vadd.f32 %v2700, %v2868
  %2870 = vmatmul.bf16.gmra.mxu0 %v1634
  %v2871 = vpop.f32.mrf.mxu0
  %v2872 = vadd.f32 %v2703, %v2871
  %v2873 = vpop.f32.mrf.mxu0
  %v2874 = vadd.f32 %v2705, %v2873
  %2875 = vmatmul.bf16.gmra.mxu0 %v1643
  %v2876 = vpop.f32.mrf.mxu0
  %v2877 = vadd.f32 %v2708, %v2876
  %v2878 = vpop.f32.mrf.mxu0
  %v2879 = vadd.f32 %v2710, %v2878
  %2880 = vmatmul.bf16.gmra.mxu0 %v1652
  %v2881 = vpop.f32.mrf.mxu0
  %v2882 = vadd.f32 %v2713, %v2881
  %v2883 = vpop.f32.mrf.mxu0
  %v2884 = vadd.f32 %v2715, %v2883
  %2885 = vdwg.mxu0
  %2886 = vmatpush.bf16.msra.mxu0 %v2266
  %2887 = vmatpush.bf16.msra.mxu0 %v2265
  %2888 = vmatpush.bf16.msra.mxu0 %v2264
  %2889 = vmatpush.bf16.msra.mxu0 %v2263
  %2890 = vmatpush.bf16.msra.mxu0 %v2262
  %2891 = vmatpush.bf16.msra.mxu0 %v2261
  %2892 = vmatpush.bf16.msra.mxu0 %v2260
  %2893 = vmatpush.bf16.msra.mxu0 %v2259
  %2894 = vmatmul.bf16.gmra.mxu0 %v1374
  %v2895 = vpop.f32.mrf.mxu0
  %v2896 = vadd.f32 %v2727, %v2895
  %v2897 = vpop.f32.mrf.mxu0
  %v2898 = vadd.f32 %v2729, %v2897
  %2899 = vmatmul.bf16.gmra.mxu0 %v1383
  %v2900 = vpop.f32.mrf.mxu0
  %v2901 = vadd.f32 %v2732, %v2900
  %v2902 = vpop.f32.mrf.mxu0
  %v2903 = vadd.f32 %v2734, %v2902
  %2904 = vmatmul.bf16.gmra.mxu0 %v1392
  %v2905 = vpop.f32.mrf.mxu0
  %v2906 = vadd.f32 %v2737, %v2905
  %v2907 = vpop.f32.mrf.mxu0
  %v2908 = vadd.f32 %v2739, %v2907
  %2909 = vmatmul.bf16.gmra.mxu0 %v1401
  %v2910 = vpop.f32.mrf.mxu0
  %v2911 = vadd.f32 %v2742, %v2910
  %v2912 = vpop.f32.mrf.mxu0
  %v2913 = vadd.f32 %v2744, %v2912
  %2914 = vmatmul.bf16.gmra.mxu0 %v1410
  %v2915 = vpop.f32.mrf.mxu0
  %v2916 = vadd.f32 %v2747, %v2915
  %v2917 = vpop.f32.mrf.mxu0
  %v2918 = vadd.f32 %v2749, %v2917
  %2919 = vmatmul.bf16.gmra.mxu0 %v1419
  %v2920 = vpop.f32.mrf.mxu0
  %v2921 = vadd.f32 %v2752, %v2920
  %v2922 = vpop.f32.mrf.mxu0
  %v2923 = vadd.f32 %v2754, %v2922
  %2924 = vmatmul.bf16.gmra.mxu0 %v1428
  %v2925 = vpop.f32.mrf.mxu0
  %v2926 = vadd.f32 %v2757, %v2925
  %v2927 = vpop.f32.mrf.mxu0
  %v2928 = vadd.f32 %v2759, %v2927
  %2929 = vmatmul.bf16.gmra.mxu0 %v1437
  %v2930 = vpop.f32.mrf.mxu0
  %v2931 = vadd.f32 %v2762, %v2930
  %v2932 = vpop.f32.mrf.mxu0
  %v2933 = vadd.f32 %v2764, %v2932
  %2934 = vmatmul.bf16.gmra.mxu0 %v1446
  %v2935 = vpop.f32.mrf.mxu0
  %v2936 = vadd.f32 %v2767, %v2935
  %v2937 = vpop.f32.mrf.mxu0
  %v2938 = vadd.f32 %v2769, %v2937
  %2939 = vmatmul.bf16.gmra.mxu0 %v1455
  %v2940 = vpop.f32.mrf.mxu0
  %v2941 = vadd.f32 %v2772, %v2940
  %v2942 = vpop.f32.mrf.mxu0
  %v2943 = vadd.f32 %v2774, %v2942
  %2944 = vmatmul.bf16.gmra.mxu0 %v1464
  %v2945 = vpop.f32.mrf.mxu0
  %v2946 = vadd.f32 %v2777, %v2945
  %v2947 = vpop.f32.mrf.mxu0
  %v2948 = vadd.f32 %v2779, %v2947
  %2949 = vmatmul.bf16.gmra.mxu0 %v1473
  %v2950 = vpop.f32.mrf.mxu0
  %v2951 = vadd.f32 %v2782, %v2950
  %v2952 = vpop.f32.mrf.mxu0
  %v2953 = vadd.f32 %v2784, %v2952
  %2954 = vmatmul.bf16.gmra.mxu0 %v1482
  %v2955 = vpop.f32.mrf.mxu0
  %v2956 = vadd.f32 %v2787, %v2955
  %v2957 = vpop.f32.mrf.mxu0
  %v2958 = vadd.f32 %v2789, %v2957
  %2959 = vmatmul.bf16.gmra.mxu0 %v1491
  %v2960 = vpop.f32.mrf.mxu0
  %v2961 = vadd.f32 %v2792, %v2960
  %v2962 = vpop.f32.mrf.mxu0
  %v2963 = vadd.f32 %v2794, %v2962
  %2964 = vmatmul.bf16.gmra.mxu0 %v1500
  %v2965 = vpop.f32.mrf.mxu0
  %v2966 = vadd.f32 %v2797, %v2965
  %v2967 = vpop.f32.mrf.mxu0
  %v2968 = vadd.f32 %v2799, %v2967
  %2969 = vmatmul.bf16.gmra.mxu0 %v1509
  %v2970 = vpop.f32.mrf.mxu0
  %v2971 = vadd.f32 %v2802, %v2970
  %v2972 = vpop.f32.mrf.mxu0
  %v2973 = vadd.f32 %v2804, %v2972
  %2974 = vmatmul.bf16.gmra.mxu0 %v1518
  %v2975 = vpop.f32.mrf.mxu0
  %v2976 = vadd.f32 %v2807, %v2975
  %v2977 = vpop.f32.mrf.mxu0
  %v2978 = vadd.f32 %v2809, %v2977
  %2979 = vmatmul.bf16.gmra.mxu0 %v1527
  %v2980 = vpop.f32.mrf.mxu0
  %v2981 = vadd.f32 %v2812, %v2980
  %v2982 = vpop.f32.mrf.mxu0
  %v2983 = vadd.f32 %v2814, %v2982
  %2984 = vmatmul.bf16.gmra.mxu0 %v1536
  %v2985 = vpop.f32.mrf.mxu0
  %v2986 = vadd.f32 %v2817, %v2985
  %v2987 = vpop.f32.mrf.mxu0
  %v2988 = vadd.f32 %v2819, %v2987
  %2989 = vmatmul.bf16.gmra.mxu0 %v1545
  %v2990 = vpop.f32.mrf.mxu0
  %v2991 = vadd.f32 %v2822, %v2990
  %v2992 = vpop.f32.mrf.mxu0
  %v2993 = vadd.f32 %v2824, %v2992
  %2994 = vmatmul.bf16.gmra.mxu0 %v1554
  %v2995 = vpop.f32.mrf.mxu0
  %v2996 = vadd.f32 %v2827, %v2995
  %v2997 = vpop.f32.mrf.mxu0
  %v2998 = vadd.f32 %v2829, %v2997
  %2999 = vmatmul.bf16.gmra.mxu0 %v1563
  %v3000 = vpop.f32.mrf.mxu0
  %v3001 = vadd.f32 %v2832, %v3000
  %v3002 = vpop.f32.mrf.mxu0
  %v3003 = vadd.f32 %v2834, %v3002
  %3004 = vmatmul.bf16.gmra.mxu0 %v1572
  %v3005 = vpop.f32.mrf.mxu0
  %v3006 = vadd.f32 %v2837, %v3005
  %v3007 = vpop.f32.mrf.mxu0
  %v3008 = vadd.f32 %v2839, %v3007
  %3009 = vmatmul.bf16.gmra.mxu0 %v1581
  %v3010 = vpop.f32.mrf.mxu0
  %v3011 = vadd.f32 %v2842, %v3010
  %v3012 = vpop.f32.mrf.mxu0
  %v3013 = vadd.f32 %v2844, %v3012
  %3014 = vmatmul.bf16.gmra.mxu0 %v1590
  %v3015 = vpop.f32.mrf.mxu0
  %v3016 = vadd.f32 %v2847, %v3015
  %v3017 = vpop.f32.mrf.mxu0
  %v3018 = vadd.f32 %v2849, %v3017
  %3019 = vmatmul.bf16.gmra.mxu0 %v1599
  %v3020 = vpop.f32.mrf.mxu0
  %v3021 = vadd.f32 %v2852, %v3020
  %v3022 = vpop.f32.mrf.mxu0
  %v3023 = vadd.f32 %v2854, %v3022
  %3024 = vmatmul.bf16.gmra.mxu0 %v1608
  %v3025 = vpop.f32.mrf.mxu0
  %v3026 = vadd.f32 %v2857, %v3025
  %v3027 = vpop.f32.mrf.mxu0
  %v3028 = vadd.f32 %v2859, %v3027
  %3029 = vmatmul.bf16.gmra.mxu0 %v1617
  %v3030 = vpop.f32.mrf.mxu0
  %v3031 = vadd.f32 %v2862, %v3030
  %v3032 = vpop.f32.mrf.mxu0
  %v3033 = vadd.f32 %v2864, %v3032
  %3034 = vmatmul.bf16.gmra.mxu0 %v1626
  %v3035 = vpop.f32.mrf.mxu0
  %v3036 = vadd.f32 %v2867, %v3035
  %v3037 = vpop.f32.mrf.mxu0
  %v3038 = vadd.f32 %v2869, %v3037
  %3039 = vmatmul.bf16.gmra.mxu0 %v1635
  %v3040 = vpop.f32.mrf.mxu0
  %v3041 = vadd.f32 %v2872, %v3040
  %v3042 = vpop.f32.mrf.mxu0
  %v3043 = vadd.f32 %v2874, %v3042
  %3044 = vmatmul.bf16.gmra.mxu0 %v1644
  %v3045 = vpop.f32.mrf.mxu0
  %v3046 = vadd.f32 %v2877, %v3045
  %v3047 = vpop.f32.mrf.mxu0
  %v3048 = vadd.f32 %v2879, %v3047
  %3049 = vmatmul.bf16.gmra.mxu0 %v1653
  %v3050 = vpop.f32.mrf.mxu0
  %v3051 = vadd.f32 %v2882, %v3050
  %v3052 = vpop.f32.mrf.mxu0
  %v3053 = vadd.f32 %v2884, %v3052
  %3054 = vdwg.mxu0
  %3055 = vmatpush.bf16.msra.mxu0 %v2274
  %3056 = vmatpush.bf16.msra.mxu0 %v2273
  %3057 = vmatpush.bf16.msra.mxu0 %v2272
  %3058 = vmatpush.bf16.msra.mxu0 %v2271
  %3059 = vmatpush.bf16.msra.mxu0 %v2270
  %3060 = vmatpush.bf16.msra.mxu0 %v2269
  %3061 = vmatpush.bf16.msra.mxu0 %v2268
  %3062 = vmatpush.bf16.msra.mxu0 %v2267
  %3063 = vmatmul.bf16.gmra.mxu0 %v1375
  %v3064 = vpop.f32.mrf.mxu0
  %v3065 = vadd.f32 %v2896, %v3064
  %v3066 = vpop.f32.mrf.mxu0
  %v3067 = vadd.f32 %v2898, %v3066
  %3068 = vmatmul.bf16.gmra.mxu0 %v1384
  %v3069 = vpop.f32.mrf.mxu0
  %v3070 = vadd.f32 %v2901, %v3069
  %v3071 = vpop.f32.mrf.mxu0
  %v3072 = vadd.f32 %v2903, %v3071
  %3073 = vmatmul.bf16.gmra.mxu0 %v1393
  %v3074 = vpop.f32.mrf.mxu0
  %v3075 = vadd.f32 %v2906, %v3074
  %v3076 = vpop.f32.mrf.mxu0
  %v3077 = vadd.f32 %v2908, %v3076
  %3078 = vmatmul.bf16.gmra.mxu0 %v1402
  %v3079 = vpop.f32.mrf.mxu0
  %v3080 = vadd.f32 %v2911, %v3079
  %v3081 = vpop.f32.mrf.mxu0
  %v3082 = vadd.f32 %v2913, %v3081
  %3083 = vmatmul.bf16.gmra.mxu0 %v1411
  %v3084 = vpop.f32.mrf.mxu0
  %v3085 = vadd.f32 %v2916, %v3084
  %v3086 = vpop.f32.mrf.mxu0
  %v3087 = vadd.f32 %v2918, %v3086
  %3088 = vmatmul.bf16.gmra.mxu0 %v1420
  %v3089 = vpop.f32.mrf.mxu0
  %v3090 = vadd.f32 %v2921, %v3089
  %v3091 = vpop.f32.mrf.mxu0
  %v3092 = vadd.f32 %v2923, %v3091
  %3093 = vmatmul.bf16.gmra.mxu0 %v1429
  %v3094 = vpop.f32.mrf.mxu0
  %v3095 = vadd.f32 %v2926, %v3094
  %v3096 = vpop.f32.mrf.mxu0
  %v3097 = vadd.f32 %v2928, %v3096
  %3098 = vmatmul.bf16.gmra.mxu0 %v1438
  %v3099 = vpop.f32.mrf.mxu0
  %v3100 = vadd.f32 %v2931, %v3099
  %v3101 = vpop.f32.mrf.mxu0
  %v3102 = vadd.f32 %v2933, %v3101
  %3103 = vmatmul.bf16.gmra.mxu0 %v1447
  %v3104 = vpop.f32.mrf.mxu0
  %v3105 = vadd.f32 %v2936, %v3104
  %v3106 = vpop.f32.mrf.mxu0
  %v3107 = vadd.f32 %v2938, %v3106
  %3108 = vmatmul.bf16.gmra.mxu0 %v1456
  %v3109 = vpop.f32.mrf.mxu0
  %v3110 = vadd.f32 %v2941, %v3109
  %v3111 = vpop.f32.mrf.mxu0
  %v3112 = vadd.f32 %v2943, %v3111
  %3113 = vmatmul.bf16.gmra.mxu0 %v1465
  %v3114 = vpop.f32.mrf.mxu0
  %v3115 = vadd.f32 %v2946, %v3114
  %v3116 = vpop.f32.mrf.mxu0
  %v3117 = vadd.f32 %v2948, %v3116
  %3118 = vmatmul.bf16.gmra.mxu0 %v1474
  %v3119 = vpop.f32.mrf.mxu0
  %v3120 = vadd.f32 %v2951, %v3119
  %v3121 = vpop.f32.mrf.mxu0
  %v3122 = vadd.f32 %v2953, %v3121
  %3123 = vmatmul.bf16.gmra.mxu0 %v1483
  %v3124 = vpop.f32.mrf.mxu0
  %v3125 = vadd.f32 %v2956, %v3124
  %v3126 = vpop.f32.mrf.mxu0
  %v3127 = vadd.f32 %v2958, %v3126
  %3128 = vmatmul.bf16.gmra.mxu0 %v1492
  %v3129 = vpop.f32.mrf.mxu0
  %v3130 = vadd.f32 %v2961, %v3129
  %v3131 = vpop.f32.mrf.mxu0
  %v3132 = vadd.f32 %v2963, %v3131
  %3133 = vmatmul.bf16.gmra.mxu0 %v1501
  %v3134 = vpop.f32.mrf.mxu0
  %v3135 = vadd.f32 %v2966, %v3134
  %v3136 = vpop.f32.mrf.mxu0
  %v3137 = vadd.f32 %v2968, %v3136
  %3138 = vmatmul.bf16.gmra.mxu0 %v1510
  %v3139 = vpop.f32.mrf.mxu0
  %v3140 = vadd.f32 %v2971, %v3139
  %v3141 = vpop.f32.mrf.mxu0
  %v3142 = vadd.f32 %v2973, %v3141
  %3143 = vmatmul.bf16.gmra.mxu0 %v1519
  %v3144 = vpop.f32.mrf.mxu0
  %v3145 = vadd.f32 %v2976, %v3144
  %v3146 = vpop.f32.mrf.mxu0
  %v3147 = vadd.f32 %v2978, %v3146
  %3148 = vmatmul.bf16.gmra.mxu0 %v1528
  %v3149 = vpop.f32.mrf.mxu0
  %v3150 = vadd.f32 %v2981, %v3149
  %v3151 = vpop.f32.mrf.mxu0
  %v3152 = vadd.f32 %v2983, %v3151
  %3153 = vmatmul.bf16.gmra.mxu0 %v1537
  %v3154 = vpop.f32.mrf.mxu0
  %v3155 = vadd.f32 %v2986, %v3154
  %v3156 = vpop.f32.mrf.mxu0
  %v3157 = vadd.f32 %v2988, %v3156
  %3158 = vmatmul.bf16.gmra.mxu0 %v1546
  %v3159 = vpop.f32.mrf.mxu0
  %v3160 = vadd.f32 %v2991, %v3159
  %v3161 = vpop.f32.mrf.mxu0
  %v3162 = vadd.f32 %v2993, %v3161
  %3163 = vmatmul.bf16.gmra.mxu0 %v1555
  %v3164 = vpop.f32.mrf.mxu0
  %v3165 = vadd.f32 %v2996, %v3164
  %v3166 = vpop.f32.mrf.mxu0
  %v3167 = vadd.f32 %v2998, %v3166
  %3168 = vmatmul.bf16.gmra.mxu0 %v1564
  %v3169 = vpop.f32.mrf.mxu0
  %v3170 = vadd.f32 %v3001, %v3169
  %v3171 = vpop.f32.mrf.mxu0
  %v3172 = vadd.f32 %v3003, %v3171
  %3173 = vmatmul.bf16.gmra.mxu0 %v1573
  %v3174 = vpop.f32.mrf.mxu0
  %v3175 = vadd.f32 %v3006, %v3174
  %v3176 = vpop.f32.mrf.mxu0
  %v3177 = vadd.f32 %v3008, %v3176
  %3178 = vmatmul.bf16.gmra.mxu0 %v1582
  %v3179 = vpop.f32.mrf.mxu0
  %v3180 = vadd.f32 %v3011, %v3179
  %v3181 = vpop.f32.mrf.mxu0
  %v3182 = vadd.f32 %v3013, %v3181
  %3183 = vmatmul.bf16.gmra.mxu0 %v1591
  %v3184 = vpop.f32.mrf.mxu0
  %v3185 = vadd.f32 %v3016, %v3184
  %v3186 = vpop.f32.mrf.mxu0
  %v3187 = vadd.f32 %v3018, %v3186
  %3188 = vmatmul.bf16.gmra.mxu0 %v1600
  %v3189 = vpop.f32.mrf.mxu0
  %v3190 = vadd.f32 %v3021, %v3189
  %v3191 = vpop.f32.mrf.mxu0
  %v3192 = vadd.f32 %v3023, %v3191
  %3193 = vmatmul.bf16.gmra.mxu0 %v1609
  %v3194 = vpop.f32.mrf.mxu0
  %v3195 = vadd.f32 %v3026, %v3194
  %v3196 = vpop.f32.mrf.mxu0
  %v3197 = vadd.f32 %v3028, %v3196
  %3198 = vmatmul.bf16.gmra.mxu0 %v1618
  %v3199 = vpop.f32.mrf.mxu0
  %v3200 = vadd.f32 %v3031, %v3199
  %v3201 = vpop.f32.mrf.mxu0
  %v3202 = vadd.f32 %v3033, %v3201
  %3203 = vmatmul.bf16.gmra.mxu0 %v1627
  %v3204 = vpop.f32.mrf.mxu0
  %v3205 = vadd.f32 %v3036, %v3204
  %v3206 = vpop.f32.mrf.mxu0
  %v3207 = vadd.f32 %v3038, %v3206
  %3208 = vmatmul.bf16.gmra.mxu0 %v1636
  %v3209 = vpop.f32.mrf.mxu0
  %v3210 = vadd.f32 %v3041, %v3209
  %v3211 = vpop.f32.mrf.mxu0
  %v3212 = vadd.f32 %v3043, %v3211
  %3213 = vmatmul.bf16.gmra.mxu0 %v1645
  %v3214 = vpop.f32.mrf.mxu0
  %v3215 = vadd.f32 %v3046, %v3214
  %v3216 = vpop.f32.mrf.mxu0
  %v3217 = vadd.f32 %v3048, %v3216
  %3218 = vmatmul.bf16.gmra.mxu0 %v1654
  %v3219 = vpop.f32.mrf.mxu0
  %v3220 = vadd.f32 %v3051, %v3219
  %v3221 = vpop.f32.mrf.mxu0
  %v3222 = vadd.f32 %v3053, %v3221
  %3223 = vdwg.mxu0
  %3224 = vmatpush.bf16.msra.mxu0 %v2282
  %3225 = vmatpush.bf16.msra.mxu0 %v2281
  %3226 = vmatpush.bf16.msra.mxu0 %v2280
  %3227 = vmatpush.bf16.msra.mxu0 %v2279
  %3228 = vmatpush.bf16.msra.mxu0 %v2278
  %3229 = vmatpush.bf16.msra.mxu0 %v2277
  %3230 = vmatpush.bf16.msra.mxu0 %v2276
  %3231 = vmatpush.bf16.msra.mxu0 %v2275
  %3232 = vmatmul.bf16.gmra.mxu0 %v1376
  %v3233 = vpop.f32.mrf.mxu0
  %v3234 = vadd.f32 %v3065, %v3233
  %v3235 = vpop.f32.mrf.mxu0
  %v3236 = vadd.f32 %v3067, %v3235
  %3237 = vmatmul.bf16.gmra.mxu0 %v1385
  %v3238 = vpop.f32.mrf.mxu0
  %v3239 = vadd.f32 %v3070, %v3238
  %v3240 = vpop.f32.mrf.mxu0
  %v3241 = vadd.f32 %v3072, %v3240
  %3242 = vmatmul.bf16.gmra.mxu0 %v1394
  %v3243 = vpop.f32.mrf.mxu0
  %v3244 = vadd.f32 %v3075, %v3243
  %v3245 = vpop.f32.mrf.mxu0
  %v3246 = vadd.f32 %v3077, %v3245
  %3247 = vmatmul.bf16.gmra.mxu0 %v1403
  %v3248 = vpop.f32.mrf.mxu0
  %v3249 = vadd.f32 %v3080, %v3248
  %v3250 = vpop.f32.mrf.mxu0
  %v3251 = vadd.f32 %v3082, %v3250
  %3252 = vmatmul.bf16.gmra.mxu0 %v1412
  %v3253 = vpop.f32.mrf.mxu0
  %v3254 = vadd.f32 %v3085, %v3253
  %v3255 = vpop.f32.mrf.mxu0
  %v3256 = vadd.f32 %v3087, %v3255
  %3257 = vmatmul.bf16.gmra.mxu0 %v1421
  %v3258 = vpop.f32.mrf.mxu0
  %v3259 = vadd.f32 %v3090, %v3258
  %v3260 = vpop.f32.mrf.mxu0
  %v3261 = vadd.f32 %v3092, %v3260
  %3262 = vmatmul.bf16.gmra.mxu0 %v1430
  %v3263 = vpop.f32.mrf.mxu0
  %v3264 = vadd.f32 %v3095, %v3263
  %v3265 = vpop.f32.mrf.mxu0
  %v3266 = vadd.f32 %v3097, %v3265
  %3267 = vmatmul.bf16.gmra.mxu0 %v1439
  %v3268 = vpop.f32.mrf.mxu0
  %v3269 = vadd.f32 %v3100, %v3268
  %v3270 = vpop.f32.mrf.mxu0
  %v3271 = vadd.f32 %v3102, %v3270
  %3272 = vmatmul.bf16.gmra.mxu0 %v1448
  %v3273 = vpop.f32.mrf.mxu0
  %v3274 = vadd.f32 %v3105, %v3273
  %v3275 = vpop.f32.mrf.mxu0
  %v3276 = vadd.f32 %v3107, %v3275
  %3277 = vmatmul.bf16.gmra.mxu0 %v1457
  %v3278 = vpop.f32.mrf.mxu0
  %v3279 = vadd.f32 %v3110, %v3278
  %v3280 = vpop.f32.mrf.mxu0
  %v3281 = vadd.f32 %v3112, %v3280
  %3282 = vmatmul.bf16.gmra.mxu0 %v1466
  %v3283 = vpop.f32.mrf.mxu0
  %v3284 = vadd.f32 %v3115, %v3283
  %v3285 = vpop.f32.mrf.mxu0
  %v3286 = vadd.f32 %v3117, %v3285
  %3287 = vmatmul.bf16.gmra.mxu0 %v1475
  %v3288 = vpop.f32.mrf.mxu0
  %v3289 = vadd.f32 %v3120, %v3288
  %v3290 = vpop.f32.mrf.mxu0
  %v3291 = vadd.f32 %v3122, %v3290
  %3292 = vmatmul.bf16.gmra.mxu0 %v1484
  %v3293 = vpop.f32.mrf.mxu0
  %v3294 = vadd.f32 %v3125, %v3293
  %v3295 = vpop.f32.mrf.mxu0
  %v3296 = vadd.f32 %v3127, %v3295
  %3297 = vmatmul.bf16.gmra.mxu0 %v1493
  %v3298 = vpop.f32.mrf.mxu0
  %v3299 = vadd.f32 %v3130, %v3298
  %v3300 = vpop.f32.mrf.mxu0
  %v3301 = vadd.f32 %v3132, %v3300
  %3302 = vmatmul.bf16.gmra.mxu0 %v1502
  %v3303 = vpop.f32.mrf.mxu0
  %v3304 = vadd.f32 %v3135, %v3303
  %v3305 = vpop.f32.mrf.mxu0
  %v3306 = vadd.f32 %v3137, %v3305
  %3307 = vmatmul.bf16.gmra.mxu0 %v1511
  %v3308 = vpop.f32.mrf.mxu0
  %v3309 = vadd.f32 %v3140, %v3308
  %v3310 = vpop.f32.mrf.mxu0
  %v3311 = vadd.f32 %v3142, %v3310
  %3312 = vmatmul.bf16.gmra.mxu0 %v1520
  %v3313 = vpop.f32.mrf.mxu0
  %v3314 = vadd.f32 %v3145, %v3313
  %v3315 = vpop.f32.mrf.mxu0
  %v3316 = vadd.f32 %v3147, %v3315
  %3317 = vmatmul.bf16.gmra.mxu0 %v1529
  %v3318 = vpop.f32.mrf.mxu0
  %v3319 = vadd.f32 %v3150, %v3318
  %v3320 = vpop.f32.mrf.mxu0
  %v3321 = vadd.f32 %v3152, %v3320
  %3322 = vmatmul.bf16.gmra.mxu0 %v1538
  %v3323 = vpop.f32.mrf.mxu0
  %v3324 = vadd.f32 %v3155, %v3323
  %v3325 = vpop.f32.mrf.mxu0
  %v3326 = vadd.f32 %v3157, %v3325
  %3327 = vmatmul.bf16.gmra.mxu0 %v1547
  %v3328 = vpop.f32.mrf.mxu0
  %v3329 = vadd.f32 %v3160, %v3328
  %v3330 = vpop.f32.mrf.mxu0
  %v3331 = vadd.f32 %v3162, %v3330
  %3332 = vmatmul.bf16.gmra.mxu0 %v1556
  %v3333 = vpop.f32.mrf.mxu0
  %v3334 = vadd.f32 %v3165, %v3333
  %v3335 = vpop.f32.mrf.mxu0
  %v3336 = vadd.f32 %v3167, %v3335
  %3337 = vmatmul.bf16.gmra.mxu0 %v1565
  %v3338 = vpop.f32.mrf.mxu0
  %v3339 = vadd.f32 %v3170, %v3338
  %v3340 = vpop.f32.mrf.mxu0
  %v3341 = vadd.f32 %v3172, %v3340
  %3342 = vmatmul.bf16.gmra.mxu0 %v1574
  %v3343 = vpop.f32.mrf.mxu0
  %v3344 = vadd.f32 %v3175, %v3343
  %v3345 = vpop.f32.mrf.mxu0
  %v3346 = vadd.f32 %v3177, %v3345
  %3347 = vmatmul.bf16.gmra.mxu0 %v1583
  %v3348 = vpop.f32.mrf.mxu0
  %v3349 = vadd.f32 %v3180, %v3348
  %v3350 = vpop.f32.mrf.mxu0
  %v3351 = vadd.f32 %v3182, %v3350
  %3352 = vmatmul.bf16.gmra.mxu0 %v1592
  %v3353 = vpop.f32.mrf.mxu0
  %v3354 = vadd.f32 %v3185, %v3353
  %v3355 = vpop.f32.mrf.mxu0
  %v3356 = vadd.f32 %v3187, %v3355
  %3357 = vmatmul.bf16.gmra.mxu0 %v1601
  %v3358 = vpop.f32.mrf.mxu0
  %v3359 = vadd.f32 %v3190, %v3358
  %v3360 = vpop.f32.mrf.mxu0
  %v3361 = vadd.f32 %v3192, %v3360
  %3362 = vmatmul.bf16.gmra.mxu0 %v1610
  %v3363 = vpop.f32.mrf.mxu0
  %v3364 = vadd.f32 %v3195, %v3363
  %v3365 = vpop.f32.mrf.mxu0
  %v3366 = vadd.f32 %v3197, %v3365
  %3367 = vmatmul.bf16.gmra.mxu0 %v1619
  %v3368 = vpop.f32.mrf.mxu0
  %v3369 = vadd.f32 %v3200, %v3368
  %v3370 = vpop.f32.mrf.mxu0
  %v3371 = vadd.f32 %v3202, %v3370
  %3372 = vmatmul.bf16.gmra.mxu0 %v1628
  %v3373 = vpop.f32.mrf.mxu0
  %v3374 = vadd.f32 %v3205, %v3373
  %v3375 = vpop.f32.mrf.mxu0
  %v3376 = vadd.f32 %v3207, %v3375
  %3377 = vmatmul.bf16.gmra.mxu0 %v1637
  %v3378 = vpop.f32.mrf.mxu0
  %v3379 = vadd.f32 %v3210, %v3378
  %v3380 = vpop.f32.mrf.mxu0
  %v3381 = vadd.f32 %v3212, %v3380
  %3382 = vmatmul.bf16.gmra.mxu0 %v1646
  %v3383 = vpop.f32.mrf.mxu0
  %v3384 = vadd.f32 %v3215, %v3383
  %v3385 = vpop.f32.mrf.mxu0
  %v3386 = vadd.f32 %v3217, %v3385
  %3387 = vmatmul.bf16.gmra.mxu0 %v1655
  %v3388 = vpop.f32.mrf.mxu0
  %v3389 = vadd.f32 %v3220, %v3388
  %v3390 = vpop.f32.mrf.mxu0
  %v3391 = vadd.f32 %v3222, %v3390
  %3392 = vdwg.mxu0
  %3393 = vmatpush.bf16.msra.mxu0 %v2290
  %3394 = vmatpush.bf16.msra.mxu0 %v2289
  %3395 = vmatpush.bf16.msra.mxu0 %v2288
  %3396 = vmatpush.bf16.msra.mxu0 %v2287
  %3397 = vmatpush.bf16.msra.mxu0 %v2286
  %3398 = vmatpush.bf16.msra.mxu0 %v2285
  %3399 = vmatpush.bf16.msra.mxu0 %v2284
  %3400 = vmatpush.bf16.msra.mxu0 %v2283
  %3401 = vmatmul.bf16.gmra.mxu0 %v1377
  %v3402 = vpop.f32.mrf.mxu0
  %v3403 = vadd.f32 %v3234, %v3402
  %v3404 = vpop.f32.mrf.mxu0
  %v3405 = vadd.f32 %v3236, %v3404
  %3406 = vmatmul.bf16.gmra.mxu0 %v1386
  %v3407 = vpop.f32.mrf.mxu0
  %v3408 = vadd.f32 %v3239, %v3407
  %v3409 = vpop.f32.mrf.mxu0
  %v3410 = vadd.f32 %v3241, %v3409
  %3411 = vmatmul.bf16.gmra.mxu0 %v1395
  %v3412 = vpop.f32.mrf.mxu0
  %v3413 = vadd.f32 %v3244, %v3412
  %v3414 = vpop.f32.mrf.mxu0
  %v3415 = vadd.f32 %v3246, %v3414
  %3416 = vmatmul.bf16.gmra.mxu0 %v1404
  %v3417 = vpop.f32.mrf.mxu0
  %v3418 = vadd.f32 %v3249, %v3417
  %v3419 = vpop.f32.mrf.mxu0
  %v3420 = vadd.f32 %v3251, %v3419
  %3421 = vmatmul.bf16.gmra.mxu0 %v1413
  %v3422 = vpop.f32.mrf.mxu0
  %v3423 = vadd.f32 %v3254, %v3422
  %v3424 = vpop.f32.mrf.mxu0
  %v3425 = vadd.f32 %v3256, %v3424
  %3426 = vmatmul.bf16.gmra.mxu0 %v1422
  %v3427 = vpop.f32.mrf.mxu0
  %v3428 = vadd.f32 %v3259, %v3427
  %v3429 = vpop.f32.mrf.mxu0
  %v3430 = vadd.f32 %v3261, %v3429
  %3431 = vmatmul.bf16.gmra.mxu0 %v1431
  %v3432 = vpop.f32.mrf.mxu0
  %v3433 = vadd.f32 %v3264, %v3432
  %v3434 = vpop.f32.mrf.mxu0
  %v3435 = vadd.f32 %v3266, %v3434
  %3436 = vmatmul.bf16.gmra.mxu0 %v1440
  %v3437 = vpop.f32.mrf.mxu0
  %v3438 = vadd.f32 %v3269, %v3437
  %v3439 = vpop.f32.mrf.mxu0
  %v3440 = vadd.f32 %v3271, %v3439
  %3441 = vmatmul.bf16.gmra.mxu0 %v1449
  %v3442 = vpop.f32.mrf.mxu0
  %v3443 = vadd.f32 %v3274, %v3442
  %v3444 = vpop.f32.mrf.mxu0
  %v3445 = vadd.f32 %v3276, %v3444
  %3446 = vmatmul.bf16.gmra.mxu0 %v1458
  %v3447 = vpop.f32.mrf.mxu0
  %v3448 = vadd.f32 %v3279, %v3447
  %v3449 = vpop.f32.mrf.mxu0
  %v3450 = vadd.f32 %v3281, %v3449
  %3451 = vmatmul.bf16.gmra.mxu0 %v1467
  %v3452 = vpop.f32.mrf.mxu0
  %v3453 = vadd.f32 %v3284, %v3452
  %v3454 = vpop.f32.mrf.mxu0
  %v3455 = vadd.f32 %v3286, %v3454
  %3456 = vmatmul.bf16.gmra.mxu0 %v1476
  %v3457 = vpop.f32.mrf.mxu0
  %v3458 = vadd.f32 %v3289, %v3457
  %v3459 = vpop.f32.mrf.mxu0
  %v3460 = vadd.f32 %v3291, %v3459
  %3461 = vmatmul.bf16.gmra.mxu0 %v1485
  %v3462 = vpop.f32.mrf.mxu0
  %v3463 = vadd.f32 %v3294, %v3462
  %v3464 = vpop.f32.mrf.mxu0
  %v3465 = vadd.f32 %v3296, %v3464
  %3466 = vmatmul.bf16.gmra.mxu0 %v1494
  %v3467 = vpop.f32.mrf.mxu0
  %v3468 = vadd.f32 %v3299, %v3467
  %v3469 = vpop.f32.mrf.mxu0
  %v3470 = vadd.f32 %v3301, %v3469
  %3471 = vmatmul.bf16.gmra.mxu0 %v1503
  %v3472 = vpop.f32.mrf.mxu0
  %v3473 = vadd.f32 %v3304, %v3472
  %v3474 = vpop.f32.mrf.mxu0
  %v3475 = vadd.f32 %v3306, %v3474
  %3476 = vmatmul.bf16.gmra.mxu0 %v1512
  %v3477 = vpop.f32.mrf.mxu0
  %v3478 = vadd.f32 %v3309, %v3477
  %v3479 = vpop.f32.mrf.mxu0
  %v3480 = vadd.f32 %v3311, %v3479
  %3481 = vmatmul.bf16.gmra.mxu0 %v1521
  %v3482 = vpop.f32.mrf.mxu0
  %v3483 = vadd.f32 %v3314, %v3482
  %v3484 = vpop.f32.mrf.mxu0
  %v3485 = vadd.f32 %v3316, %v3484
  %3486 = vmatmul.bf16.gmra.mxu0 %v1530
  %v3487 = vpop.f32.mrf.mxu0
  %v3488 = vadd.f32 %v3319, %v3487
  %v3489 = vpop.f32.mrf.mxu0
  %v3490 = vadd.f32 %v3321, %v3489
  %3491 = vmatmul.bf16.gmra.mxu0 %v1539
  %v3492 = vpop.f32.mrf.mxu0
  %v3493 = vadd.f32 %v3324, %v3492
  %v3494 = vpop.f32.mrf.mxu0
  %v3495 = vadd.f32 %v3326, %v3494
  %3496 = vmatmul.bf16.gmra.mxu0 %v1548
  %v3497 = vpop.f32.mrf.mxu0
  %v3498 = vadd.f32 %v3329, %v3497
  %v3499 = vpop.f32.mrf.mxu0
  %v3500 = vadd.f32 %v3331, %v3499
  %3501 = vmatmul.bf16.gmra.mxu0 %v1557
  %v3502 = vpop.f32.mrf.mxu0
  %v3503 = vadd.f32 %v3334, %v3502
  %v3504 = vpop.f32.mrf.mxu0
  %v3505 = vadd.f32 %v3336, %v3504
  %3506 = vmatmul.bf16.gmra.mxu0 %v1566
  %v3507 = vpop.f32.mrf.mxu0
  %v3508 = vadd.f32 %v3339, %v3507
  %v3509 = vpop.f32.mrf.mxu0
  %v3510 = vadd.f32 %v3341, %v3509
  %3511 = vmatmul.bf16.gmra.mxu0 %v1575
  %v3512 = vpop.f32.mrf.mxu0
  %v3513 = vadd.f32 %v3344, %v3512
  %v3514 = vpop.f32.mrf.mxu0
  %v3515 = vadd.f32 %v3346, %v3514
  %3516 = vmatmul.bf16.gmra.mxu0 %v1584
  %v3517 = vpop.f32.mrf.mxu0
  %v3518 = vadd.f32 %v3349, %v3517
  %v3519 = vpop.f32.mrf.mxu0
  %v3520 = vadd.f32 %v3351, %v3519
  %3521 = vmatmul.bf16.gmra.mxu0 %v1593
  %v3522 = vpop.f32.mrf.mxu0
  %v3523 = vadd.f32 %v3354, %v3522
  %v3524 = vpop.f32.mrf.mxu0
  %v3525 = vadd.f32 %v3356, %v3524
  %3526 = vmatmul.bf16.gmra.mxu0 %v1602
  %v3527 = vpop.f32.mrf.mxu0
  %v3528 = vadd.f32 %v3359, %v3527
  %v3529 = vpop.f32.mrf.mxu0
  %v3530 = vadd.f32 %v3361, %v3529
  %3531 = vmatmul.bf16.gmra.mxu0 %v1611
  %v3532 = vpop.f32.mrf.mxu0
  %v3533 = vadd.f32 %v3364, %v3532
  %v3534 = vpop.f32.mrf.mxu0
  %v3535 = vadd.f32 %v3366, %v3534
  %3536 = vmatmul.bf16.gmra.mxu0 %v1620
  %v3537 = vpop.f32.mrf.mxu0
  %v3538 = vadd.f32 %v3369, %v3537
  %v3539 = vpop.f32.mrf.mxu0
  %v3540 = vadd.f32 %v3371, %v3539
  %3541 = vmatmul.bf16.gmra.mxu0 %v1629
  %v3542 = vpop.f32.mrf.mxu0
  %v3543 = vadd.f32 %v3374, %v3542
  %v3544 = vpop.f32.mrf.mxu0
  %v3545 = vadd.f32 %v3376, %v3544
  %3546 = vmatmul.bf16.gmra.mxu0 %v1638
  %v3547 = vpop.f32.mrf.mxu0
  %v3548 = vadd.f32 %v3379, %v3547
  %v3549 = vpop.f32.mrf.mxu0
  %v3550 = vadd.f32 %v3381, %v3549
  %3551 = vmatmul.bf16.gmra.mxu0 %v1647
  %v3552 = vpop.f32.mrf.mxu0
  %v3553 = vadd.f32 %v3384, %v3552
  %v3554 = vpop.f32.mrf.mxu0
  %v3555 = vadd.f32 %v3386, %v3554
  %3556 = vmatmul.bf16.gmra.mxu0 %v1656
  %v3557 = vpop.f32.mrf.mxu0
  %v3558 = vadd.f32 %v3389, %v3557
  %v3559 = vpop.f32.mrf.mxu0
  %v3560 = vadd.f32 %v3391, %v3559
  %3561 = vdwg.mxu0
  %3562 = vmatpush.bf16.msra.mxu0 %v2298
  %3563 = vmatpush.bf16.msra.mxu0 %v2297
  %3564 = vmatpush.bf16.msra.mxu0 %v2296
  %3565 = vmatpush.bf16.msra.mxu0 %v2295
  %3566 = vmatpush.bf16.msra.mxu0 %v2294
  %3567 = vmatpush.bf16.msra.mxu0 %v2293
  %3568 = vmatpush.bf16.msra.mxu0 %v2292
  %3569 = vmatpush.bf16.msra.mxu0 %v2291
  %3570 = vmatmul.bf16.gmra.mxu0 %v1378
  %v3571 = vpop.f32.mrf.mxu0
  %v3572 = vadd.f32 %v3403, %v3571
  %v3573 = vpop.f32.mrf.mxu0
  %v3574 = vadd.f32 %v3405, %v3573
  %3575 = vmatmul.bf16.gmra.mxu0 %v1387
  %v3576 = vpop.f32.mrf.mxu0
  %v3577 = vadd.f32 %v3408, %v3576
  %v3578 = vpop.f32.mrf.mxu0
  %v3579 = vadd.f32 %v3410, %v3578
  %3580 = vmatmul.bf16.gmra.mxu0 %v1396
  %v3581 = vpop.f32.mrf.mxu0
  %v3582 = vadd.f32 %v3413, %v3581
  %v3583 = vpop.f32.mrf.mxu0
  %v3584 = vadd.f32 %v3415, %v3583
  %3585 = vmatmul.bf16.gmra.mxu0 %v1405
  %v3586 = vpop.f32.mrf.mxu0
  %v3587 = vadd.f32 %v3418, %v3586
  %v3588 = vpop.f32.mrf.mxu0
  %v3589 = vadd.f32 %v3420, %v3588
  %3590 = vmatmul.bf16.gmra.mxu0 %v1414
  %v3591 = vpop.f32.mrf.mxu0
  %v3592 = vadd.f32 %v3423, %v3591
  %v3593 = vpop.f32.mrf.mxu0
  %v3594 = vadd.f32 %v3425, %v3593
  %3595 = vmatmul.bf16.gmra.mxu0 %v1423
  %v3596 = vpop.f32.mrf.mxu0
  %v3597 = vadd.f32 %v3428, %v3596
  %v3598 = vpop.f32.mrf.mxu0
  %v3599 = vadd.f32 %v3430, %v3598
  %3600 = vmatmul.bf16.gmra.mxu0 %v1432
  %v3601 = vpop.f32.mrf.mxu0
  %v3602 = vadd.f32 %v3433, %v3601
  %v3603 = vpop.f32.mrf.mxu0
  %v3604 = vadd.f32 %v3435, %v3603
  %3605 = vmatmul.bf16.gmra.mxu0 %v1441
  %v3606 = vpop.f32.mrf.mxu0
  %v3607 = vadd.f32 %v3438, %v3606
  %v3608 = vpop.f32.mrf.mxu0
  %v3609 = vadd.f32 %v3440, %v3608
  %3610 = vmatmul.bf16.gmra.mxu0 %v1450
  %v3611 = vpop.f32.mrf.mxu0
  %v3612 = vadd.f32 %v3443, %v3611
  %v3613 = vpop.f32.mrf.mxu0
  %v3614 = vadd.f32 %v3445, %v3613
  %3615 = vmatmul.bf16.gmra.mxu0 %v1459
  %v3616 = vpop.f32.mrf.mxu0
  %v3617 = vadd.f32 %v3448, %v3616
  %v3618 = vpop.f32.mrf.mxu0
  %v3619 = vadd.f32 %v3450, %v3618
  %3620 = vmatmul.bf16.gmra.mxu0 %v1468
  %v3621 = vpop.f32.mrf.mxu0
  %v3622 = vadd.f32 %v3453, %v3621
  %v3623 = vpop.f32.mrf.mxu0
  %v3624 = vadd.f32 %v3455, %v3623
  %3625 = vmatmul.bf16.gmra.mxu0 %v1477
  %v3626 = vpop.f32.mrf.mxu0
  %v3627 = vadd.f32 %v3458, %v3626
  %v3628 = vpop.f32.mrf.mxu0
  %v3629 = vadd.f32 %v3460, %v3628
  %3630 = vmatmul.bf16.gmra.mxu0 %v1486
  %v3631 = vpop.f32.mrf.mxu0
  %v3632 = vadd.f32 %v3463, %v3631
  %v3633 = vpop.f32.mrf.mxu0
  %v3634 = vadd.f32 %v3465, %v3633
  %3635 = vmatmul.bf16.gmra.mxu0 %v1495
  %v3636 = vpop.f32.mrf.mxu0
  %v3637 = vadd.f32 %v3468, %v3636
  %v3638 = vpop.f32.mrf.mxu0
  %v3639 = vadd.f32 %v3470, %v3638
  %3640 = vmatmul.bf16.gmra.mxu0 %v1504
  %v3641 = vpop.f32.mrf.mxu0
  %v3642 = vadd.f32 %v3473, %v3641
  %v3643 = vpop.f32.mrf.mxu0
  %v3644 = vadd.f32 %v3475, %v3643
  %3645 = vmatmul.bf16.gmra.mxu0 %v1513
  %v3646 = vpop.f32.mrf.mxu0
  %v3647 = vadd.f32 %v3478, %v3646
  %v3648 = vpop.f32.mrf.mxu0
  %v3649 = vadd.f32 %v3480, %v3648
  %3650 = vmatmul.bf16.gmra.mxu0 %v1522
  %v3651 = vpop.f32.mrf.mxu0
  %v3652 = vadd.f32 %v3483, %v3651
  %v3653 = vpop.f32.mrf.mxu0
  %v3654 = vadd.f32 %v3485, %v3653
  %3655 = vmatmul.bf16.gmra.mxu0 %v1531
  %v3656 = vpop.f32.mrf.mxu0
  %v3657 = vadd.f32 %v3488, %v3656
  %v3658 = vpop.f32.mrf.mxu0
  %v3659 = vadd.f32 %v3490, %v3658
  %3660 = vmatmul.bf16.gmra.mxu0 %v1540
  %v3661 = vpop.f32.mrf.mxu0
  %v3662 = vadd.f32 %v3493, %v3661
  %v3663 = vpop.f32.mrf.mxu0
  %v3664 = vadd.f32 %v3495, %v3663
  %3665 = vmatmul.bf16.gmra.mxu0 %v1549
  %v3666 = vpop.f32.mrf.mxu0
  %v3667 = vadd.f32 %v3498, %v3666
  %v3668 = vpop.f32.mrf.mxu0
  %v3669 = vadd.f32 %v3500, %v3668
  %3670 = vmatmul.bf16.gmra.mxu0 %v1558
  %v3671 = vpop.f32.mrf.mxu0
  %v3672 = vadd.f32 %v3503, %v3671
  %v3673 = vpop.f32.mrf.mxu0
  %v3674 = vadd.f32 %v3505, %v3673
  %3675 = vmatmul.bf16.gmra.mxu0 %v1567
  %v3676 = vpop.f32.mrf.mxu0
  %v3677 = vadd.f32 %v3508, %v3676
  %v3678 = vpop.f32.mrf.mxu0
  %v3679 = vadd.f32 %v3510, %v3678
  %3680 = vmatmul.bf16.gmra.mxu0 %v1576
  %v3681 = vpop.f32.mrf.mxu0
  %v3682 = vadd.f32 %v3513, %v3681
  %v3683 = vpop.f32.mrf.mxu0
  %v3684 = vadd.f32 %v3515, %v3683
  %3685 = vmatmul.bf16.gmra.mxu0 %v1585
  %v3686 = vpop.f32.mrf.mxu0
  %v3687 = vadd.f32 %v3518, %v3686
  %v3688 = vpop.f32.mrf.mxu0
  %v3689 = vadd.f32 %v3520, %v3688
  %3690 = vmatmul.bf16.gmra.mxu0 %v1594
  %v3691 = vpop.f32.mrf.mxu0
  %v3692 = vadd.f32 %v3523, %v3691
  %v3693 = vpop.f32.mrf.mxu0
  %v3694 = vadd.f32 %v3525, %v3693
  %3695 = vmatmul.bf16.gmra.mxu0 %v1603
  %v3696 = vpop.f32.mrf.mxu0
  %v3697 = vadd.f32 %v3528, %v3696
  %v3698 = vpop.f32.mrf.mxu0
  %v3699 = vadd.f32 %v3530, %v3698
  %3700 = vmatmul.bf16.gmra.mxu0 %v1612
  %v3701 = vpop.f32.mrf.mxu0
  %v3702 = vadd.f32 %v3533, %v3701
  %v3703 = vpop.f32.mrf.mxu0
  %v3704 = vadd.f32 %v3535, %v3703
  %3705 = vmatmul.bf16.gmra.mxu0 %v1621
  %v3706 = vpop.f32.mrf.mxu0
  %v3707 = vadd.f32 %v3538, %v3706
  %v3708 = vpop.f32.mrf.mxu0
  %v3709 = vadd.f32 %v3540, %v3708
  %3710 = vmatmul.bf16.gmra.mxu0 %v1630
  %v3711 = vpop.f32.mrf.mxu0
  %v3712 = vadd.f32 %v3543, %v3711
  %v3713 = vpop.f32.mrf.mxu0
  %v3714 = vadd.f32 %v3545, %v3713
  %3715 = vmatmul.bf16.gmra.mxu0 %v1639
  %v3716 = vpop.f32.mrf.mxu0
  %v3717 = vadd.f32 %v3548, %v3716
  %v3718 = vpop.f32.mrf.mxu0
  %v3719 = vadd.f32 %v3550, %v3718
  %3720 = vmatmul.bf16.gmra.mxu0 %v1648
  %v3721 = vpop.f32.mrf.mxu0
  %v3722 = vadd.f32 %v3553, %v3721
  %v3723 = vpop.f32.mrf.mxu0
  %v3724 = vadd.f32 %v3555, %v3723
  %3725 = vmatmul.bf16.gmra.mxu0 %v1657
  %v3726 = vpop.f32.mrf.mxu0
  %v3727 = vadd.f32 %v3558, %v3726
  %v3728 = vpop.f32.mrf.mxu0
  %v3729 = vadd.f32 %v3560, %v3728
  %3730 = vdwg.mxu0
  %3731 = vmatpush.bf16.msra.mxu0 %v2306
  %3732 = vmatpush.bf16.msra.mxu0 %v2305
  %3733 = vmatpush.bf16.msra.mxu0 %v2304
  %3734 = vmatpush.bf16.msra.mxu0 %v2303
  %3735 = vmatpush.bf16.msra.mxu0 %v2302
  %3736 = vmatpush.bf16.msra.mxu0 %v2301
  %3737 = vmatpush.bf16.msra.mxu0 %v2300
  %3738 = vmatpush.bf16.msra.mxu0 %v2299
  %3739 = vmatmul.bf16.gmra.mxu0 %v1379
  %v3740 = vpop.f32.mrf.mxu0
  %v3741 = vadd.f32 %v3572, %v3740
  %v3742 = vpop.f32.mrf.mxu0
  %v3743 = vadd.f32 %v3574, %v3742
  %3744 = vmatmul.bf16.gmra.mxu0 %v1388
  %v3745 = vpop.f32.mrf.mxu0
  %v3746 = vadd.f32 %v3577, %v3745
  %v3747 = vpop.f32.mrf.mxu0
  %v3748 = vadd.f32 %v3579, %v3747
  %3749 = vmatmul.bf16.gmra.mxu0 %v1397
  %v3750 = vpop.f32.mrf.mxu0
  %v3751 = vadd.f32 %v3582, %v3750
  %v3752 = vpop.f32.mrf.mxu0
  %v3753 = vadd.f32 %v3584, %v3752
  %3754 = vmatmul.bf16.gmra.mxu0 %v1406
  %v3755 = vpop.f32.mrf.mxu0
  %v3756 = vadd.f32 %v3587, %v3755
  %v3757 = vpop.f32.mrf.mxu0
  %v3758 = vadd.f32 %v3589, %v3757
  %3759 = vmatmul.bf16.gmra.mxu0 %v1415
  %v3760 = vpop.f32.mrf.mxu0
  %v3761 = vadd.f32 %v3592, %v3760
  %v3762 = vpop.f32.mrf.mxu0
  %v3763 = vadd.f32 %v3594, %v3762
  %3764 = vmatmul.bf16.gmra.mxu0 %v1424
  %v3765 = vpop.f32.mrf.mxu0
  %v3766 = vadd.f32 %v3597, %v3765
  %v3767 = vpop.f32.mrf.mxu0
  %v3768 = vadd.f32 %v3599, %v3767
  %3769 = vmatmul.bf16.gmra.mxu0 %v1433
  %v3770 = vpop.f32.mrf.mxu0
  %v3771 = vadd.f32 %v3602, %v3770
  %v3772 = vpop.f32.mrf.mxu0
  %v3773 = vadd.f32 %v3604, %v3772
  %3774 = vmatmul.bf16.gmra.mxu0 %v1442
  %v3775 = vpop.f32.mrf.mxu0
  %v3776 = vadd.f32 %v3607, %v3775
  %v3777 = vpop.f32.mrf.mxu0
  %v3778 = vadd.f32 %v3609, %v3777
  %3779 = vmatmul.bf16.gmra.mxu0 %v1451
  %v3780 = vpop.f32.mrf.mxu0
  %v3781 = vadd.f32 %v3612, %v3780
  %v3782 = vpop.f32.mrf.mxu0
  %v3783 = vadd.f32 %v3614, %v3782
  %3784 = vmatmul.bf16.gmra.mxu0 %v1460
  %v3785 = vpop.f32.mrf.mxu0
  %v3786 = vadd.f32 %v3617, %v3785
  %v3787 = vpop.f32.mrf.mxu0
  %v3788 = vadd.f32 %v3619, %v3787
  %3789 = vmatmul.bf16.gmra.mxu0 %v1469
  %v3790 = vpop.f32.mrf.mxu0
  %v3791 = vadd.f32 %v3622, %v3790
  %v3792 = vpop.f32.mrf.mxu0
  %v3793 = vadd.f32 %v3624, %v3792
  %3794 = vmatmul.bf16.gmra.mxu0 %v1478
  %v3795 = vpop.f32.mrf.mxu0
  %v3796 = vadd.f32 %v3627, %v3795
  %v3797 = vpop.f32.mrf.mxu0
  %v3798 = vadd.f32 %v3629, %v3797
  %3799 = vmatmul.bf16.gmra.mxu0 %v1487
  %v3800 = vpop.f32.mrf.mxu0
  %v3801 = vadd.f32 %v3632, %v3800
  %v3802 = vpop.f32.mrf.mxu0
  %v3803 = vadd.f32 %v3634, %v3802
  %3804 = vmatmul.bf16.gmra.mxu0 %v1496
  %v3805 = vpop.f32.mrf.mxu0
  %v3806 = vadd.f32 %v3637, %v3805
  %v3807 = vpop.f32.mrf.mxu0
  %v3808 = vadd.f32 %v3639, %v3807
  %3809 = vmatmul.bf16.gmra.mxu0 %v1505
  %v3810 = vpop.f32.mrf.mxu0
  %v3811 = vadd.f32 %v3642, %v3810
  %v3812 = vpop.f32.mrf.mxu0
  %v3813 = vadd.f32 %v3644, %v3812
  %3814 = vmatmul.bf16.gmra.mxu0 %v1514
  %v3815 = vpop.f32.mrf.mxu0
  %v3816 = vadd.f32 %v3647, %v3815
  %v3817 = vpop.f32.mrf.mxu0
  %v3818 = vadd.f32 %v3649, %v3817
  %3819 = vmatmul.bf16.gmra.mxu0 %v1523
  %v3820 = vpop.f32.mrf.mxu0
  %v3821 = vadd.f32 %v3652, %v3820
  %v3822 = vpop.f32.mrf.mxu0
  %v3823 = vadd.f32 %v3654, %v3822
  %3824 = vmatmul.bf16.gmra.mxu0 %v1532
  %v3825 = vpop.f32.mrf.mxu0
  %v3826 = vadd.f32 %v3657, %v3825
  %v3827 = vpop.f32.mrf.mxu0
  %v3828 = vadd.f32 %v3659, %v3827
  %3829 = vmatmul.bf16.gmra.mxu0 %v1541
  %v3830 = vpop.f32.mrf.mxu0
  %v3831 = vadd.f32 %v3662, %v3830
  %v3832 = vpop.f32.mrf.mxu0
  %v3833 = vadd.f32 %v3664, %v3832
  %3834 = vmatmul.bf16.gmra.mxu0 %v1550
  %v3835 = vpop.f32.mrf.mxu0
  %v3836 = vadd.f32 %v3667, %v3835
  %v3837 = vpop.f32.mrf.mxu0
  %v3838 = vadd.f32 %v3669, %v3837
  %3839 = vmatmul.bf16.gmra.mxu0 %v1559
  %v3840 = vpop.f32.mrf.mxu0
  %v3841 = vadd.f32 %v3672, %v3840
  %v3842 = vpop.f32.mrf.mxu0
  %v3843 = vadd.f32 %v3674, %v3842
  %3844 = vmatmul.bf16.gmra.mxu0 %v1568
  %v3845 = vpop.f32.mrf.mxu0
  %v3846 = vadd.f32 %v3677, %v3845
  %v3847 = vpop.f32.mrf.mxu0
  %v3848 = vadd.f32 %v3679, %v3847
  %3849 = vmatmul.bf16.gmra.mxu0 %v1577
  %v3850 = vpop.f32.mrf.mxu0
  %v3851 = vadd.f32 %v3682, %v3850
  %v3852 = vpop.f32.mrf.mxu0
  %v3853 = vadd.f32 %v3684, %v3852
  %3854 = vmatmul.bf16.gmra.mxu0 %v1586
  %v3855 = vpop.f32.mrf.mxu0
  %v3856 = vadd.f32 %v3687, %v3855
  %v3857 = vpop.f32.mrf.mxu0
  %v3858 = vadd.f32 %v3689, %v3857
  %3859 = vmatmul.bf16.gmra.mxu0 %v1595
  %v3860 = vpop.f32.mrf.mxu0
  %v3861 = vadd.f32 %v3692, %v3860
  %v3862 = vpop.f32.mrf.mxu0
  %v3863 = vadd.f32 %v3694, %v3862
  %3864 = vmatmul.bf16.gmra.mxu0 %v1604
  %v3865 = vpop.f32.mrf.mxu0
  %v3866 = vadd.f32 %v3697, %v3865
  %v3867 = vpop.f32.mrf.mxu0
  %v3868 = vadd.f32 %v3699, %v3867
  %3869 = vmatmul.bf16.gmra.mxu0 %v1613
  %v3870 = vpop.f32.mrf.mxu0
  %v3871 = vadd.f32 %v3702, %v3870
  %v3872 = vpop.f32.mrf.mxu0
  %v3873 = vadd.f32 %v3704, %v3872
  %3874 = vmatmul.bf16.gmra.mxu0 %v1622
  %v3875 = vpop.f32.mrf.mxu0
  %v3876 = vadd.f32 %v3707, %v3875
  %v3877 = vpop.f32.mrf.mxu0
  %v3878 = vadd.f32 %v3709, %v3877
  %3879 = vmatmul.bf16.gmra.mxu0 %v1631
  %v3880 = vpop.f32.mrf.mxu0
  %v3881 = vadd.f32 %v3712, %v3880
  %v3882 = vpop.f32.mrf.mxu0
  %v3883 = vadd.f32 %v3714, %v3882
  %3884 = vmatmul.bf16.gmra.mxu0 %v1640
  %v3885 = vpop.f32.mrf.mxu0
  %v3886 = vadd.f32 %v3717, %v3885
  %v3887 = vpop.f32.mrf.mxu0
  %v3888 = vadd.f32 %v3719, %v3887
  %3889 = vmatmul.bf16.gmra.mxu0 %v1649
  %v3890 = vpop.f32.mrf.mxu0
  %v3891 = vadd.f32 %v3722, %v3890
  %v3892 = vpop.f32.mrf.mxu0
  %v3893 = vadd.f32 %v3724, %v3892
  %3894 = vmatmul.bf16.gmra.mxu0 %v1658
  %v3895 = vpop.f32.mrf.mxu0
  %v3896 = vadd.f32 %v3727, %v3895
  %v3897 = vpop.f32.mrf.mxu0
  %v3898 = vadd.f32 %v3729, %v3897
  %3899 = vdwg.mxu0
  %v3900 = vadd.f32 %v3741, %v3743
  %v3901 = vadd.f32 %v3900, %v3746
  %v3902 = vadd.f32 %v3901, %v3748
  %v3903 = vadd.f32 %v3902, %v3751
  %v3904 = vadd.f32 %v3903, %v3753
  %v3905 = vadd.f32 %v3904, %v3756
  %v3906 = vadd.f32 %v3905, %v3758
  %v3907 = vadd.f32 %v3906, %v3761
  %v3908 = vadd.f32 %v3907, %v3763
  %v3909 = vadd.f32 %v3908, %v3766
  %v3910 = vadd.f32 %v3909, %v3768
  %v3911 = vadd.f32 %v3910, %v3771
  %v3912 = vadd.f32 %v3911, %v3773
  %v3913 = vadd.f32 %v3912, %v3776
  %v3914 = vadd.f32 %v3913, %v3778
  %v3915 = vadd.f32 %v3914, %v3781
  %v3916 = vadd.f32 %v3915, %v3783
  %v3917 = vadd.f32 %v3916, %v3786
  %v3918 = vadd.f32 %v3917, %v3788
  %v3919 = vadd.f32 %v3918, %v3791
  %v3920 = vadd.f32 %v3919, %v3793
  %v3921 = vadd.f32 %v3920, %v3796
  %v3922 = vadd.f32 %v3921, %v3798
  %v3923 = vadd.f32 %v3922, %v3801
  %v3924 = vadd.f32 %v3923, %v3803
  %v3925 = vadd.f32 %v3924, %v3806
  %v3926 = vadd.f32 %v3925, %v3808
  %v3927 = vadd.f32 %v3926, %v3811
  %v3928 = vadd.f32 %v3927, %v3813
  %v3929 = vadd.f32 %v3928, %v3816
  %v3930 = vadd.f32 %v3929, %v3818
  %v3931 = vadd.f32 %v3930, %v3821
  %v3932 = vadd.f32 %v3931, %v3823
  %v3933 = vadd.f32 %v3932, %v3826
  %v3934 = vadd.f32 %v3933, %v3828
  %v3935 = vadd.f32 %v3934, %v3831
  %v3936 = vadd.f32 %v3935, %v3833
  %v3937 = vadd.f32 %v3936, %v3836
  %v3938 = vadd.f32 %v3937, %v3838
  %v3939 = vadd.f32 %v3938, %v3841
  %v3940 = vadd.f32 %v3939, %v3843
  %v3941 = vadd.f32 %v3940, %v3846
  %v3942 = vadd.f32 %v3941, %v3848
  %v3943 = vadd.f32 %v3942, %v3851
  %v3944 = vadd.f32 %v3943, %v3853
  %v3945 = vadd.f32 %v3944, %v3856
  %v3946 = vadd.f32 %v3945, %v3858
  %v3947 = vadd.f32 %v3946, %v3861
  %v3948 = vadd.f32 %v3947, %v3863
  %v3949 = vadd.f32 %v3948, %v3866
  %v3950 = vadd.f32 %v3949, %v3868
  %v3951 = vadd.f32 %v3950, %v3871
  %v3952 = vadd.f32 %v3951, %v3873
  %v3953 = vadd.f32 %v3952, %v3876
  %v3954 = vadd.f32 %v3953, %v3878
  %v3955 = vadd.f32 %v3954, %v3881
  %v3956 = vadd.f32 %v3955, %v3883
  %v3957 = vadd.f32 %v3956, %v3886
  %v3958 = vadd.f32 %v3957, %v3888
  %v3959 = vadd.f32 %v3958, %v3891
  %v3960 = vadd.f32 %v3959, %v3893
  %v3961 = vadd.f32 %v3960, %v3896
  %v3962 = vadd.f32 %v3961, %v3898
  %v3963 = vrot.slane %v3962, 4
  %v3964 = vadd.f32 %v3962, %v3963
  %v3965 = vrot.slane %v3964, 2
  %v3966 = vadd.f32 %v3964, %v3965
  %v3967 = vrot.slane %v3966, 1
  %v3968 = vadd.f32 %v3966, %v3967
  %v3969 = vmul.f32 %v3968, 0.001953125
  %v3970 = vmul.f32 %v3741, %v3741
  %v3971 = vmul.f32 %v3743, %v3743
  %v3972 = vmul.f32 %v3746, %v3746
  %v3973 = vmul.f32 %v3748, %v3748
  %v3974 = vmul.f32 %v3751, %v3751
  %v3975 = vmul.f32 %v3753, %v3753
  %v3976 = vmul.f32 %v3756, %v3756
  %v3977 = vmul.f32 %v3758, %v3758
  %v3978 = vmul.f32 %v3761, %v3761
  %v3979 = vmul.f32 %v3763, %v3763
  %v3980 = vmul.f32 %v3766, %v3766
  %v3981 = vmul.f32 %v3768, %v3768
  %v3982 = vmul.f32 %v3771, %v3771
  %v3983 = vmul.f32 %v3773, %v3773
  %v3984 = vmul.f32 %v3776, %v3776
  %v3985 = vmul.f32 %v3778, %v3778
  %v3986 = vmul.f32 %v3781, %v3781
  %v3987 = vmul.f32 %v3783, %v3783
  %v3988 = vmul.f32 %v3786, %v3786
  %v3989 = vmul.f32 %v3788, %v3788
  %v3990 = vmul.f32 %v3791, %v3791
  %v3991 = vmul.f32 %v3793, %v3793
  %v3992 = vmul.f32 %v3796, %v3796
  %v3993 = vmul.f32 %v3798, %v3798
  %v3994 = vmul.f32 %v3801, %v3801
  %v3995 = vmul.f32 %v3803, %v3803
  %v3996 = vmul.f32 %v3806, %v3806
  %v3997 = vmul.f32 %v3808, %v3808
  %v3998 = vmul.f32 %v3811, %v3811
  %v3999 = vmul.f32 %v3813, %v3813
  %v4000 = vmul.f32 %v3816, %v3816
  %v4001 = vmul.f32 %v3818, %v3818
  %v4002 = vmul.f32 %v3821, %v3821
  %v4003 = vmul.f32 %v3823, %v3823
  %v4004 = vmul.f32 %v3826, %v3826
  %v4005 = vmul.f32 %v3828, %v3828
  %v4006 = vmul.f32 %v3831, %v3831
  %v4007 = vmul.f32 %v3833, %v3833
  %v4008 = vmul.f32 %v3836, %v3836
  %v4009 = vmul.f32 %v3838, %v3838
  %v4010 = vmul.f32 %v3841, %v3841
  %v4011 = vmul.f32 %v3843, %v3843
  %v4012 = vmul.f32 %v3846, %v3846
  %v4013 = vmul.f32 %v3848, %v3848
  %v4014 = vmul.f32 %v3851, %v3851
  %v4015 = vmul.f32 %v3853, %v3853
  %v4016 = vmul.f32 %v3856, %v3856
  %v4017 = vmul.f32 %v3858, %v3858
  %v4018 = vmul.f32 %v3861, %v3861
  %v4019 = vmul.f32 %v3863, %v3863
  %v4020 = vmul.f32 %v3866, %v3866
  %v4021 = vmul.f32 %v3868, %v3868
  %v4022 = vmul.f32 %v3871, %v3871
  %v4023 = vmul.f32 %v3873, %v3873
  %v4024 = vmul.f32 %v3876, %v3876
  %v4025 = vmul.f32 %v3878, %v3878
  %v4026 = vmul.f32 %v3881, %v3881
  %v4027 = vmul.f32 %v3883, %v3883
  %v4028 = vmul.f32 %v3886, %v3886
  %v4029 = vmul.f32 %v3888, %v3888
  %v4030 = vmul.f32 %v3891, %v3891
  %v4031 = vmul.f32 %v3893, %v3893
  %v4032 = vmul.f32 %v3896, %v3896
  %v4033 = vmul.f32 %v3898, %v3898
  %v4034 = vadd.f32 %v3970, %v3971
  %v4035 = vadd.f32 %v4034, %v3972
  %v4036 = vadd.f32 %v4035, %v3973
  %v4037 = vadd.f32 %v4036, %v3974
  %v4038 = vadd.f32 %v4037, %v3975
  %v4039 = vadd.f32 %v4038, %v3976
  %v4040 = vadd.f32 %v4039, %v3977
  %v4041 = vadd.f32 %v4040, %v3978
  %v4042 = vadd.f32 %v4041, %v3979
  %v4043 = vadd.f32 %v4042, %v3980
  %v4044 = vadd.f32 %v4043, %v3981
  %v4045 = vadd.f32 %v4044, %v3982
  %v4046 = vadd.f32 %v4045, %v3983
  %v4047 = vadd.f32 %v4046, %v3984
  %v4048 = vadd.f32 %v4047, %v3985
  %v4049 = vadd.f32 %v4048, %v3986
  %v4050 = vadd.f32 %v4049, %v3987
  %v4051 = vadd.f32 %v4050, %v3988
  %v4052 = vadd.f32 %v4051, %v3989
  %v4053 = vadd.f32 %v4052, %v3990
  %v4054 = vadd.f32 %v4053, %v3991
  %v4055 = vadd.f32 %v4054, %v3992
  %v4056 = vadd.f32 %v4055, %v3993
  %v4057 = vadd.f32 %v4056, %v3994
  %v4058 = vadd.f32 %v4057, %v3995
  %v4059 = vadd.f32 %v4058, %v3996
  %v4060 = vadd.f32 %v4059, %v3997
  %v4061 = vadd.f32 %v4060, %v3998
  %v4062 = vadd.f32 %v4061, %v3999
  %v4063 = vadd.f32 %v4062, %v4000
  %v4064 = vadd.f32 %v4063, %v4001
  %v4065 = vadd.f32 %v4064, %v4002
  %v4066 = vadd.f32 %v4065, %v4003
  %v4067 = vadd.f32 %v4066, %v4004
  %v4068 = vadd.f32 %v4067, %v4005
  %v4069 = vadd.f32 %v4068, %v4006
  %v4070 = vadd.f32 %v4069, %v4007
  %v4071 = vadd.f32 %v4070, %v4008
  %v4072 = vadd.f32 %v4071, %v4009
  %v4073 = vadd.f32 %v4072, %v4010
  %v4074 = vadd.f32 %v4073, %v4011
  %v4075 = vadd.f32 %v4074, %v4012
  %v4076 = vadd.f32 %v4075, %v4013
  %v4077 = vadd.f32 %v4076, %v4014
  %v4078 = vadd.f32 %v4077, %v4015
  %v4079 = vadd.f32 %v4078, %v4016
  %v4080 = vadd.f32 %v4079, %v4017
  %v4081 = vadd.f32 %v4080, %v4018
  %v4082 = vadd.f32 %v4081, %v4019
  %v4083 = vadd.f32 %v4082, %v4020
  %v4084 = vadd.f32 %v4083, %v4021
  %v4085 = vadd.f32 %v4084, %v4022
  %v4086 = vadd.f32 %v4085, %v4023
  %v4087 = vadd.f32 %v4086, %v4024
  %v4088 = vadd.f32 %v4087, %v4025
  %v4089 = vadd.f32 %v4088, %v4026
  %v4090 = vadd.f32 %v4089, %v4027
  %v4091 = vadd.f32 %v4090, %v4028
  %v4092 = vadd.f32 %v4091, %v4029
  %v4093 = vadd.f32 %v4092, %v4030
  %v4094 = vadd.f32 %v4093, %v4031
  %v4095 = vadd.f32 %v4094, %v4032
  %v4096 = vadd.f32 %v4095, %v4033
  %v4097 = vrot.slane %v4096, 4
  %v4098 = vadd.f32 %v4096, %v4097
  %v4099 = vrot.slane %v4098, 2
  %v4100 = vadd.f32 %v4098, %v4099
  %v4101 = vrot.slane %v4100, 1
  %v4102 = vadd.f32 %v4100, %v4101
  %v4103 = vmul.f32 %v4102, 0.001953125
  %v4104 = vmul.f32 %v3969, %v3969
  %v4105 = vsub.f32 %v4103, %v4104
  %v4106 = vmax.f32 %v4105, 0.0
  %v4107 = vadd.f32 %v4106, 1e-05
  %v4108 = vrsqrt.pop %v4107
  %v4109 = vmul.f32 %v4108, %v4107
  %v4110 = vmul.f32 %v4109, %v4108
  %v4111 = vmul.f32 0.5, %v4110
  %v4112 = vsub.f32 1.5, %v4111
  %v4113 = vmul.f32 %v4108, %v4112
  %vm4114 = vweird.f32 %v4107
  %vm4115 = vweird.f32 %v4108
  %vm4116 = vmor %vm4114, %vm4115
  %v4117 = vsel %vm4116, %v4108, %v4113
  %v4118 = vpack.c.bf16 %v3741, %v3741
  %v4119 = vpack.c.bf16 %v3743, %v3743
  %v4120 = vpack.c.bf16 %v3746, %v3746
  %v4121 = vpack.c.bf16 %v3748, %v3748
  %v4122 = vpack.c.bf16 %v3751, %v3751
  %v4123 = vpack.c.bf16 %v3753, %v3753
  %v4124 = vpack.c.bf16 %v3756, %v3756
  %v4125 = vpack.c.bf16 %v3758, %v3758
  %v4126 = vpack.c.bf16 %v3761, %v3761
  %v4127 = vpack.c.bf16 %v3763, %v3763
  %v4128 = vpack.c.bf16 %v3766, %v3766
  %v4129 = vpack.c.bf16 %v3768, %v3768
  %v4130 = vpack.c.bf16 %v3771, %v3771
  %v4131 = vpack.c.bf16 %v3773, %v3773
  %v4132 = vpack.c.bf16 %v3776, %v3776
  %v4133 = vpack.c.bf16 %v3778, %v3778
  %v4134 = vpack.c.bf16 %v3781, %v3781
  %v4135 = vpack.c.bf16 %v3783, %v3783
  %v4136 = vpack.c.bf16 %v3786, %v3786
  %v4137 = vpack.c.bf16 %v3788, %v3788
  %v4138 = vpack.c.bf16 %v3791, %v3791
  %v4139 = vpack.c.bf16 %v3793, %v3793
  %v4140 = vpack.c.bf16 %v3796, %v3796
  %v4141 = vpack.c.bf16 %v3798, %v3798
  %v4142 = vpack.c.bf16 %v3801, %v3801
  %v4143 = vpack.c.bf16 %v3803, %v3803
  %v4144 = vpack.c.bf16 %v3806, %v3806
  %v4145 = vpack.c.bf16 %v3808, %v3808
  %v4146 = vpack.c.bf16 %v3811, %v3811
  %v4147 = vpack.c.bf16 %v3813, %v3813
  %v4148 = vpack.c.bf16 %v3816, %v3816
  %v4149 = vpack.c.bf16 %v3818, %v3818
  %v4150 = vpack.c.bf16 %v3821, %v3821
  %v4151 = vpack.c.bf16 %v3823, %v3823
  %v4152 = vpack.c.bf16 %v3826, %v3826
  %v4153 = vpack.c.bf16 %v3828, %v3828
  %v4154 = vpack.c.bf16 %v3831, %v3831
  %v4155 = vpack.c.bf16 %v3833, %v3833
  %v4156 = vpack.c.bf16 %v3836, %v3836
  %v4157 = vpack.c.bf16 %v3838, %v3838
  %v4158 = vpack.c.bf16 %v3841, %v3841
  %v4159 = vpack.c.bf16 %v3843, %v3843
  %v4160 = vpack.c.bf16 %v3846, %v3846
  %v4161 = vpack.c.bf16 %v3848, %v3848
  %v4162 = vpack.c.bf16 %v3851, %v3851
  %v4163 = vpack.c.bf16 %v3853, %v3853
  %v4164 = vpack.c.bf16 %v3856, %v3856
  %v4165 = vpack.c.bf16 %v3858, %v3858
  %v4166 = vpack.c.bf16 %v3861, %v3861
  %v4167 = vpack.c.bf16 %v3863, %v3863
  %v4168 = vpack.c.bf16 %v3866, %v3866
  %v4169 = vpack.c.bf16 %v3868, %v3868
  %v4170 = vpack.c.bf16 %v3871, %v3871
  %v4171 = vpack.c.bf16 %v3873, %v3873
  %v4172 = vpack.c.bf16 %v3876, %v3876
  %v4173 = vpack.c.bf16 %v3878, %v3878
  %v4174 = vpack.c.bf16 %v3881, %v3881
  %v4175 = vpack.c.bf16 %v3883, %v3883
  %v4176 = vpack.c.bf16 %v3886, %v3886
  %v4177 = vpack.c.bf16 %v3888, %v3888
  %v4178 = vpack.c.bf16 %v3891, %v3891
  %v4179 = vpack.c.bf16 %v3893, %v3893
  %v4180 = vpack.c.bf16 %v3896, %v3896
  %v4181 = vpack.c.bf16 %v3898, %v3898
  %v4182 = vpack.c.bf16 %v3969, %v3969
  %v4183 = vunpack.c.l.bf16 %v4118
  %v4184 = vunpack.c.l.bf16 %v4119
  %v4185 = vunpack.c.l.bf16 %v4120
  %v4186 = vunpack.c.l.bf16 %v4121
  %v4187 = vunpack.c.l.bf16 %v4122
  %v4188 = vunpack.c.l.bf16 %v4123
  %v4189 = vunpack.c.l.bf16 %v4124
  %v4190 = vunpack.c.l.bf16 %v4125
  %v4191 = vunpack.c.l.bf16 %v4126
  %v4192 = vunpack.c.l.bf16 %v4127
  %v4193 = vunpack.c.l.bf16 %v4128
  %v4194 = vunpack.c.l.bf16 %v4129
  %v4195 = vunpack.c.l.bf16 %v4130
  %v4196 = vunpack.c.l.bf16 %v4131
  %v4197 = vunpack.c.l.bf16 %v4132
  %v4198 = vunpack.c.l.bf16 %v4133
  %v4199 = vunpack.c.l.bf16 %v4134
  %v4200 = vunpack.c.l.bf16 %v4135
  %v4201 = vunpack.c.l.bf16 %v4136
  %v4202 = vunpack.c.l.bf16 %v4137
  %v4203 = vunpack.c.l.bf16 %v4138
  %v4204 = vunpack.c.l.bf16 %v4139
  %v4205 = vunpack.c.l.bf16 %v4140
  %v4206 = vunpack.c.l.bf16 %v4141
  %v4207 = vunpack.c.l.bf16 %v4142
  %v4208 = vunpack.c.l.bf16 %v4143
  %v4209 = vunpack.c.l.bf16 %v4144
  %v4210 = vunpack.c.l.bf16 %v4145
  %v4211 = vunpack.c.l.bf16 %v4146
  %v4212 = vunpack.c.l.bf16 %v4147
  %v4213 = vunpack.c.l.bf16 %v4148
  %v4214 = vunpack.c.l.bf16 %v4149
  %v4215 = vunpack.c.l.bf16 %v4150
  %v4216 = vunpack.c.l.bf16 %v4151
  %v4217 = vunpack.c.l.bf16 %v4152
  %v4218 = vunpack.c.l.bf16 %v4153
  %v4219 = vunpack.c.l.bf16 %v4154
  %v4220 = vunpack.c.l.bf16 %v4155
  %v4221 = vunpack.c.l.bf16 %v4156
  %v4222 = vunpack.c.l.bf16 %v4157
  %v4223 = vunpack.c.l.bf16 %v4158
  %v4224 = vunpack.c.l.bf16 %v4159
  %v4225 = vunpack.c.l.bf16 %v4160
  %v4226 = vunpack.c.l.bf16 %v4161
  %v4227 = vunpack.c.l.bf16 %v4162
  %v4228 = vunpack.c.l.bf16 %v4163
  %v4229 = vunpack.c.l.bf16 %v4164
  %v4230 = vunpack.c.l.bf16 %v4165
  %v4231 = vunpack.c.l.bf16 %v4166
  %v4232 = vunpack.c.l.bf16 %v4167
  %v4233 = vunpack.c.l.bf16 %v4168
  %v4234 = vunpack.c.l.bf16 %v4169
  %v4235 = vunpack.c.l.bf16 %v4170
  %v4236 = vunpack.c.l.bf16 %v4171
  %v4237 = vunpack.c.l.bf16 %v4172
  %v4238 = vunpack.c.l.bf16 %v4173
  %v4239 = vunpack.c.l.bf16 %v4174
  %v4240 = vunpack.c.l.bf16 %v4175
  %v4241 = vunpack.c.l.bf16 %v4176
  %v4242 = vunpack.c.l.bf16 %v4177
  %v4243 = vunpack.c.l.bf16 %v4178
  %v4244 = vunpack.c.l.bf16 %v4179
  %v4245 = vunpack.c.l.bf16 %v4180
  %v4246 = vunpack.c.l.bf16 %v4181
  %v4247 = vunpack.c.l.bf16 %v4182
  %v4248 = vsub.f32 %v4183, %v4247
  %v4249 = vsub.f32 %v4184, %v4247
  %v4250 = vsub.f32 %v4185, %v4247
  %v4251 = vsub.f32 %v4186, %v4247
  %v4252 = vsub.f32 %v4187, %v4247
  %v4253 = vsub.f32 %v4188, %v4247
  %v4254 = vsub.f32 %v4189, %v4247
  %v4255 = vsub.f32 %v4190, %v4247
  %v4256 = vsub.f32 %v4191, %v4247
  %v4257 = vsub.f32 %v4192, %v4247
  %v4258 = vsub.f32 %v4193, %v4247
  %v4259 = vsub.f32 %v4194, %v4247
  %v4260 = vsub.f32 %v4195, %v4247
  %v4261 = vsub.f32 %v4196, %v4247
  %v4262 = vsub.f32 %v4197, %v4247
  %v4263 = vsub.f32 %v4198, %v4247
  %v4264 = vsub.f32 %v4199, %v4247
  %v4265 = vsub.f32 %v4200, %v4247
  %v4266 = vsub.f32 %v4201, %v4247
  %v4267 = vsub.f32 %v4202, %v4247
  %v4268 = vsub.f32 %v4203, %v4247
  %v4269 = vsub.f32 %v4204, %v4247
  %v4270 = vsub.f32 %v4205, %v4247
  %v4271 = vsub.f32 %v4206, %v4247
  %v4272 = vsub.f32 %v4207, %v4247
  %v4273 = vsub.f32 %v4208, %v4247
  %v4274 = vsub.f32 %v4209, %v4247
  %v4275 = vsub.f32 %v4210, %v4247
  %v4276 = vsub.f32 %v4211, %v4247
  %v4277 = vsub.f32 %v4212, %v4247
  %v4278 = vsub.f32 %v4213, %v4247
  %v4279 = vsub.f32 %v4214, %v4247
  %v4280 = vsub.f32 %v4215, %v4247
  %v4281 = vsub.f32 %v4216, %v4247
  %v4282 = vsub.f32 %v4217, %v4247
  %v4283 = vsub.f32 %v4218, %v4247
  %v4284 = vsub.f32 %v4219, %v4247
  %v4285 = vsub.f32 %v4220, %v4247
  %v4286 = vsub.f32 %v4221, %v4247
  %v4287 = vsub.f32 %v4222, %v4247
  %v4288 = vsub.f32 %v4223, %v4247
  %v4289 = vsub.f32 %v4224, %v4247
  %v4290 = vsub.f32 %v4225, %v4247
  %v4291 = vsub.f32 %v4226, %v4247
  %v4292 = vsub.f32 %v4227, %v4247
  %v4293 = vsub.f32 %v4228, %v4247
  %v4294 = vsub.f32 %v4229, %v4247
  %v4295 = vsub.f32 %v4230, %v4247
  %v4296 = vsub.f32 %v4231, %v4247
  %v4297 = vsub.f32 %v4232, %v4247
  %v4298 = vsub.f32 %v4233, %v4247
  %v4299 = vsub.f32 %v4234, %v4247
  %v4300 = vsub.f32 %v4235, %v4247
  %v4301 = vsub.f32 %v4236, %v4247
  %v4302 = vsub.f32 %v4237, %v4247
  %v4303 = vsub.f32 %v4238, %v4247
  %v4304 = vsub.f32 %v4239, %v4247
  %v4305 = vsub.f32 %v4240, %v4247
  %v4306 = vsub.f32 %v4241, %v4247
  %v4307 = vsub.f32 %v4242, %v4247
  %v4308 = vsub.f32 %v4243, %v4247
  %v4309 = vsub.f32 %v4244, %v4247
  %v4310 = vsub.f32 %v4245, %v4247
  %v4311 = vsub.f32 %v4246, %v4247
  %v4312 = vpack.c.bf16 %v4248, %v4248
  %v4313 = vpack.c.bf16 %v4249, %v4249
  %v4314 = vpack.c.bf16 %v4250, %v4250
  %v4315 = vpack.c.bf16 %v4251, %v4251
  %v4316 = vpack.c.bf16 %v4252, %v4252
  %v4317 = vpack.c.bf16 %v4253, %v4253
  %v4318 = vpack.c.bf16 %v4254, %v4254
  %v4319 = vpack.c.bf16 %v4255, %v4255
  %v4320 = vpack.c.bf16 %v4256, %v4256
  %v4321 = vpack.c.bf16 %v4257, %v4257
  %v4322 = vpack.c.bf16 %v4258, %v4258
  %v4323 = vpack.c.bf16 %v4259, %v4259
  %v4324 = vpack.c.bf16 %v4260, %v4260
  %v4325 = vpack.c.bf16 %v4261, %v4261
  %v4326 = vpack.c.bf16 %v4262, %v4262
  %v4327 = vpack.c.bf16 %v4263, %v4263
  %v4328 = vpack.c.bf16 %v4264, %v4264
  %v4329 = vpack.c.bf16 %v4265, %v4265
  %v4330 = vpack.c.bf16 %v4266, %v4266
  %v4331 = vpack.c.bf16 %v4267, %v4267
  %v4332 = vpack.c.bf16 %v4268, %v4268
  %v4333 = vpack.c.bf16 %v4269, %v4269
  %v4334 = vpack.c.bf16 %v4270, %v4270
  %v4335 = vpack.c.bf16 %v4271, %v4271
  %v4336 = vpack.c.bf16 %v4272, %v4272
  %v4337 = vpack.c.bf16 %v4273, %v4273
  %v4338 = vpack.c.bf16 %v4274, %v4274
  %v4339 = vpack.c.bf16 %v4275, %v4275
  %v4340 = vpack.c.bf16 %v4276, %v4276
  %v4341 = vpack.c.bf16 %v4277, %v4277
  %v4342 = vpack.c.bf16 %v4278, %v4278
  %v4343 = vpack.c.bf16 %v4279, %v4279
  %v4344 = vpack.c.bf16 %v4280, %v4280
  %v4345 = vpack.c.bf16 %v4281, %v4281
  %v4346 = vpack.c.bf16 %v4282, %v4282
  %v4347 = vpack.c.bf16 %v4283, %v4283
  %v4348 = vpack.c.bf16 %v4284, %v4284
  %v4349 = vpack.c.bf16 %v4285, %v4285
  %v4350 = vpack.c.bf16 %v4286, %v4286
  %v4351 = vpack.c.bf16 %v4287, %v4287
  %v4352 = vpack.c.bf16 %v4288, %v4288
  %v4353 = vpack.c.bf16 %v4289, %v4289
  %v4354 = vpack.c.bf16 %v4290, %v4290
  %v4355 = vpack.c.bf16 %v4291, %v4291
  %v4356 = vpack.c.bf16 %v4292, %v4292
  %v4357 = vpack.c.bf16 %v4293, %v4293
  %v4358 = vpack.c.bf16 %v4294, %v4294
  %v4359 = vpack.c.bf16 %v4295, %v4295
  %v4360 = vpack.c.bf16 %v4296, %v4296
  %v4361 = vpack.c.bf16 %v4297, %v4297
  %v4362 = vpack.c.bf16 %v4298, %v4298
  %v4363 = vpack.c.bf16 %v4299, %v4299
  %v4364 = vpack.c.bf16 %v4300, %v4300
  %v4365 = vpack.c.bf16 %v4301, %v4301
  %v4366 = vpack.c.bf16 %v4302, %v4302
  %v4367 = vpack.c.bf16 %v4303, %v4303
  %v4368 = vpack.c.bf16 %v4304, %v4304
  %v4369 = vpack.c.bf16 %v4305, %v4305
  %v4370 = vpack.c.bf16 %v4306, %v4306
  %v4371 = vpack.c.bf16 %v4307, %v4307
  %v4372 = vpack.c.bf16 %v4308, %v4308
  %v4373 = vpack.c.bf16 %v4309, %v4309
  %v4374 = vpack.c.bf16 %v4310, %v4310
  %v4375 = vpack.c.bf16 %v4311, %v4311
  %v4376 = vpack.c.bf16 %v4117, %v4117
  %v4377 = vunpack.c.l.bf16 %v4312
  %v4378 = vunpack.c.l.bf16 %v4313
  %v4379 = vunpack.c.l.bf16 %v4314
  %v4380 = vunpack.c.l.bf16 %v4315
  %v4381 = vunpack.c.l.bf16 %v4316
  %v4382 = vunpack.c.l.bf16 %v4317
  %v4383 = vunpack.c.l.bf16 %v4318
  %v4384 = vunpack.c.l.bf16 %v4319
  %v4385 = vunpack.c.l.bf16 %v4320
  %v4386 = vunpack.c.l.bf16 %v4321
  %v4387 = vunpack.c.l.bf16 %v4322
  %v4388 = vunpack.c.l.bf16 %v4323
  %v4389 = vunpack.c.l.bf16 %v4324
  %v4390 = vunpack.c.l.bf16 %v4325
  %v4391 = vunpack.c.l.bf16 %v4326
  %v4392 = vunpack.c.l.bf16 %v4327
  %v4393 = vunpack.c.l.bf16 %v4328
  %v4394 = vunpack.c.l.bf16 %v4329
  %v4395 = vunpack.c.l.bf16 %v4330
  %v4396 = vunpack.c.l.bf16 %v4331
  %v4397 = vunpack.c.l.bf16 %v4332
  %v4398 = vunpack.c.l.bf16 %v4333
  %v4399 = vunpack.c.l.bf16 %v4334
  %v4400 = vunpack.c.l.bf16 %v4335
  %v4401 = vunpack.c.l.bf16 %v4336
  %v4402 = vunpack.c.l.bf16 %v4337
  %v4403 = vunpack.c.l.bf16 %v4338
  %v4404 = vunpack.c.l.bf16 %v4339
  %v4405 = vunpack.c.l.bf16 %v4340
  %v4406 = vunpack.c.l.bf16 %v4341
  %v4407 = vunpack.c.l.bf16 %v4342
  %v4408 = vunpack.c.l.bf16 %v4343
  %v4409 = vunpack.c.l.bf16 %v4344
  %v4410 = vunpack.c.l.bf16 %v4345
  %v4411 = vunpack.c.l.bf16 %v4346
  %v4412 = vunpack.c.l.bf16 %v4347
  %v4413 = vunpack.c.l.bf16 %v4348
  %v4414 = vunpack.c.l.bf16 %v4349
  %v4415 = vunpack.c.l.bf16 %v4350
  %v4416 = vunpack.c.l.bf16 %v4351
  %v4417 = vunpack.c.l.bf16 %v4352
  %v4418 = vunpack.c.l.bf16 %v4353
  %v4419 = vunpack.c.l.bf16 %v4354
  %v4420 = vunpack.c.l.bf16 %v4355
  %v4421 = vunpack.c.l.bf16 %v4356
  %v4422 = vunpack.c.l.bf16 %v4357
  %v4423 = vunpack.c.l.bf16 %v4358
  %v4424 = vunpack.c.l.bf16 %v4359
  %v4425 = vunpack.c.l.bf16 %v4360
  %v4426 = vunpack.c.l.bf16 %v4361
  %v4427 = vunpack.c.l.bf16 %v4362
  %v4428 = vunpack.c.l.bf16 %v4363
  %v4429 = vunpack.c.l.bf16 %v4364
  %v4430 = vunpack.c.l.bf16 %v4365
  %v4431 = vunpack.c.l.bf16 %v4366
  %v4432 = vunpack.c.l.bf16 %v4367
  %v4433 = vunpack.c.l.bf16 %v4368
  %v4434 = vunpack.c.l.bf16 %v4369
  %v4435 = vunpack.c.l.bf16 %v4370
  %v4436 = vunpack.c.l.bf16 %v4371
  %v4437 = vunpack.c.l.bf16 %v4372
  %v4438 = vunpack.c.l.bf16 %v4373
  %v4439 = vunpack.c.l.bf16 %v4374
  %v4440 = vunpack.c.l.bf16 %v4375
  %v4441 = vunpack.c.l.bf16 %v4376
  %v4442 = vmul.f32 %v4377, %v4441
  %v4443 = vmul.f32 %v4378, %v4441
  %v4444 = vmul.f32 %v4379, %v4441
  %v4445 = vmul.f32 %v4380, %v4441
  %v4446 = vmul.f32 %v4381, %v4441
  %v4447 = vmul.f32 %v4382, %v4441
  %v4448 = vmul.f32 %v4383, %v4441
  %v4449 = vmul.f32 %v4384, %v4441
  %v4450 = vmul.f32 %v4385, %v4441
  %v4451 = vmul.f32 %v4386, %v4441
  %v4452 = vmul.f32 %v4387, %v4441
  %v4453 = vmul.f32 %v4388, %v4441
  %v4454 = vmul.f32 %v4389, %v4441
  %v4455 = vmul.f32 %v4390, %v4441
  %v4456 = vmul.f32 %v4391, %v4441
  %v4457 = vmul.f32 %v4392, %v4441
  %v4458 = vmul.f32 %v4393, %v4441
  %v4459 = vmul.f32 %v4394, %v4441
  %v4460 = vmul.f32 %v4395, %v4441
  %v4461 = vmul.f32 %v4396, %v4441
  %v4462 = vmul.f32 %v4397, %v4441
  %v4463 = vmul.f32 %v4398, %v4441
  %v4464 = vmul.f32 %v4399, %v4441
  %v4465 = vmul.f32 %v4400, %v4441
  %v4466 = vmul.f32 %v4401, %v4441
  %v4467 = vmul.f32 %v4402, %v4441
  %v4468 = vmul.f32 %v4403, %v4441
  %v4469 = vmul.f32 %v4404, %v4441
  %v4470 = vmul.f32 %v4405, %v4441
  %v4471 = vmul.f32 %v4406, %v4441
  %v4472 = vmul.f32 %v4407, %v4441
  %v4473 = vmul.f32 %v4408, %v4441
  %v4474 = vmul.f32 %v4409, %v4441
  %v4475 = vmul.f32 %v4410, %v4441
  %v4476 = vmul.f32 %v4411, %v4441
  %v4477 = vmul.f32 %v4412, %v4441
  %v4478 = vmul.f32 %v4413, %v4441
  %v4479 = vmul.f32 %v4414, %v4441
  %v4480 = vmul.f32 %v4415, %v4441
  %v4481 = vmul.f32 %v4416, %v4441
  %v4482 = vmul.f32 %v4417, %v4441
  %v4483 = vmul.f32 %v4418, %v4441
  %v4484 = vmul.f32 %v4419, %v4441
  %v4485 = vmul.f32 %v4420, %v4441
  %v4486 = vmul.f32 %v4421, %v4441
  %v4487 = vmul.f32 %v4422, %v4441
  %v4488 = vmul.f32 %v4423, %v4441
  %v4489 = vmul.f32 %v4424, %v4441
  %v4490 = vmul.f32 %v4425, %v4441
  %v4491 = vmul.f32 %v4426, %v4441
  %v4492 = vmul.f32 %v4427, %v4441
  %v4493 = vmul.f32 %v4428, %v4441
  %v4494 = vmul.f32 %v4429, %v4441
  %v4495 = vmul.f32 %v4430, %v4441
  %v4496 = vmul.f32 %v4431, %v4441
  %v4497 = vmul.f32 %v4432, %v4441
  %v4498 = vmul.f32 %v4433, %v4441
  %v4499 = vmul.f32 %v4434, %v4441
  %v4500 = vmul.f32 %v4435, %v4441
  %v4501 = vmul.f32 %v4436, %v4441
  %v4502 = vmul.f32 %v4437, %v4441
  %v4503 = vmul.f32 %v4438, %v4441
  %v4504 = vmul.f32 %v4439, %v4441
  %v4505 = vmul.f32 %v4440, %v4441
  %v4506 = vpack.c.bf16 %v4442, %v4442
  %v4507 = vpack.c.bf16 %v4443, %v4443
  %v4508 = vpack.c.bf16 %v4444, %v4444
  %v4509 = vpack.c.bf16 %v4445, %v4445
  %v4510 = vpack.c.bf16 %v4446, %v4446
  %v4511 = vpack.c.bf16 %v4447, %v4447
  %v4512 = vpack.c.bf16 %v4448, %v4448
  %v4513 = vpack.c.bf16 %v4449, %v4449
  %v4514 = vpack.c.bf16 %v4450, %v4450
  %v4515 = vpack.c.bf16 %v4451, %v4451
  %v4516 = vpack.c.bf16 %v4452, %v4452
  %v4517 = vpack.c.bf16 %v4453, %v4453
  %v4518 = vpack.c.bf16 %v4454, %v4454
  %v4519 = vpack.c.bf16 %v4455, %v4455
  %v4520 = vpack.c.bf16 %v4456, %v4456
  %v4521 = vpack.c.bf16 %v4457, %v4457
  %v4522 = vpack.c.bf16 %v4458, %v4458
  %v4523 = vpack.c.bf16 %v4459, %v4459
  %v4524 = vpack.c.bf16 %v4460, %v4460
  %v4525 = vpack.c.bf16 %v4461, %v4461
  %v4526 = vpack.c.bf16 %v4462, %v4462
  %v4527 = vpack.c.bf16 %v4463, %v4463
  %v4528 = vpack.c.bf16 %v4464, %v4464
  %v4529 = vpack.c.bf16 %v4465, %v4465
  %v4530 = vpack.c.bf16 %v4466, %v4466
  %v4531 = vpack.c.bf16 %v4467, %v4467
  %v4532 = vpack.c.bf16 %v4468, %v4468
  %v4533 = vpack.c.bf16 %v4469, %v4469
  %v4534 = vpack.c.bf16 %v4470, %v4470
  %v4535 = vpack.c.bf16 %v4471, %v4471
  %v4536 = vpack.c.bf16 %v4472, %v4472
  %v4537 = vpack.c.bf16 %v4473, %v4473
  %v4538 = vpack.c.bf16 %v4474, %v4474
  %v4539 = vpack.c.bf16 %v4475, %v4475
  %v4540 = vpack.c.bf16 %v4476, %v4476
  %v4541 = vpack.c.bf16 %v4477, %v4477
  %v4542 = vpack.c.bf16 %v4478, %v4478
  %v4543 = vpack.c.bf16 %v4479, %v4479
  %v4544 = vpack.c.bf16 %v4480, %v4480
  %v4545 = vpack.c.bf16 %v4481, %v4481
  %v4546 = vpack.c.bf16 %v4482, %v4482
  %v4547 = vpack.c.bf16 %v4483, %v4483
  %v4548 = vpack.c.bf16 %v4484, %v4484
  %v4549 = vpack.c.bf16 %v4485, %v4485
  %v4550 = vpack.c.bf16 %v4486, %v4486
  %v4551 = vpack.c.bf16 %v4487, %v4487
  %v4552 = vpack.c.bf16 %v4488, %v4488
  %v4553 = vpack.c.bf16 %v4489, %v4489
  %v4554 = vpack.c.bf16 %v4490, %v4490
  %v4555 = vpack.c.bf16 %v4491, %v4491
  %v4556 = vpack.c.bf16 %v4492, %v4492
  %v4557 = vpack.c.bf16 %v4493, %v4493
  %v4558 = vpack.c.bf16 %v4494, %v4494
  %v4559 = vpack.c.bf16 %v4495, %v4495
  %v4560 = vpack.c.bf16 %v4496, %v4496
  %v4561 = vpack.c.bf16 %v4497, %v4497
  %v4562 = vpack.c.bf16 %v4498, %v4498
  %v4563 = vpack.c.bf16 %v4499, %v4499
  %v4564 = vpack.c.bf16 %v4500, %v4500
  %v4565 = vpack.c.bf16 %v4501, %v4501
  %v4566 = vpack.c.bf16 %v4502, %v4502
  %v4567 = vpack.c.bf16 %v4503, %v4503
  %v4568 = vpack.c.bf16 %v4504, %v4504
  %v4569 = vpack.c.bf16 %v4505, %v4505
  %v4570 = vunpack.c.l.bf16 %v4506
  %v4571 = vunpack.c.l.bf16 %v4507
  %v4572 = vunpack.c.l.bf16 %v4508
  %v4573 = vunpack.c.l.bf16 %v4509
  %v4574 = vunpack.c.l.bf16 %v4510
  %v4575 = vunpack.c.l.bf16 %v4511
  %v4576 = vunpack.c.l.bf16 %v4512
  %v4577 = vunpack.c.l.bf16 %v4513
  %v4578 = vunpack.c.l.bf16 %v4514
  %v4579 = vunpack.c.l.bf16 %v4515
  %v4580 = vunpack.c.l.bf16 %v4516
  %v4581 = vunpack.c.l.bf16 %v4517
  %v4582 = vunpack.c.l.bf16 %v4518
  %v4583 = vunpack.c.l.bf16 %v4519
  %v4584 = vunpack.c.l.bf16 %v4520
  %v4585 = vunpack.c.l.bf16 %v4521
  %v4586 = vunpack.c.l.bf16 %v4522
  %v4587 = vunpack.c.l.bf16 %v4523
  %v4588 = vunpack.c.l.bf16 %v4524
  %v4589 = vunpack.c.l.bf16 %v4525
  %v4590 = vunpack.c.l.bf16 %v4526
  %v4591 = vunpack.c.l.bf16 %v4527
  %v4592 = vunpack.c.l.bf16 %v4528
  %v4593 = vunpack.c.l.bf16 %v4529
  %v4594 = vunpack.c.l.bf16 %v4530
  %v4595 = vunpack.c.l.bf16 %v4531
  %v4596 = vunpack.c.l.bf16 %v4532
  %v4597 = vunpack.c.l.bf16 %v4533
  %v4598 = vunpack.c.l.bf16 %v4534
  %v4599 = vunpack.c.l.bf16 %v4535
  %v4600 = vunpack.c.l.bf16 %v4536
  %v4601 = vunpack.c.l.bf16 %v4537
  %v4602 = vunpack.c.l.bf16 %v4538
  %v4603 = vunpack.c.l.bf16 %v4539
  %v4604 = vunpack.c.l.bf16 %v4540
  %v4605 = vunpack.c.l.bf16 %v4541
  %v4606 = vunpack.c.l.bf16 %v4542
  %v4607 = vunpack.c.l.bf16 %v4543
  %v4608 = vunpack.c.l.bf16 %v4544
  %v4609 = vunpack.c.l.bf16 %v4545
  %v4610 = vunpack.c.l.bf16 %v4546
  %v4611 = vunpack.c.l.bf16 %v4547
  %v4612 = vunpack.c.l.bf16 %v4548
  %v4613 = vunpack.c.l.bf16 %v4549
  %v4614 = vunpack.c.l.bf16 %v4550
  %v4615 = vunpack.c.l.bf16 %v4551
  %v4616 = vunpack.c.l.bf16 %v4552
  %v4617 = vunpack.c.l.bf16 %v4553
  %v4618 = vunpack.c.l.bf16 %v4554
  %v4619 = vunpack.c.l.bf16 %v4555
  %v4620 = vunpack.c.l.bf16 %v4556
  %v4621 = vunpack.c.l.bf16 %v4557
  %v4622 = vunpack.c.l.bf16 %v4558
  %v4623 = vunpack.c.l.bf16 %v4559
  %v4624 = vunpack.c.l.bf16 %v4560
  %v4625 = vunpack.c.l.bf16 %v4561
  %v4626 = vunpack.c.l.bf16 %v4562
  %v4627 = vunpack.c.l.bf16 %v4563
  %v4628 = vunpack.c.l.bf16 %v4564
  %v4629 = vunpack.c.l.bf16 %v4565
  %v4630 = vunpack.c.l.bf16 %v4566
  %v4631 = vunpack.c.l.bf16 %v4567
  %v4632 = vunpack.c.l.bf16 %v4568
  %v4633 = vunpack.c.l.bf16 %v4569
  %vm4634 = vcmp.gt.f32.partialorder %v4570, 0.0
  %vm4635 = vcmp.gt.f32.partialorder %v4571, 0.0
  %vm4636 = vcmp.gt.f32.partialorder %v4572, 0.0
  %vm4637 = vcmp.gt.f32.partialorder %v4573, 0.0
  %vm4638 = vcmp.gt.f32.partialorder %v4574, 0.0
  %vm4639 = vcmp.gt.f32.partialorder %v4575, 0.0
  %vm4640 = vcmp.gt.f32.partialorder %v4576, 0.0
  %vm4641 = vcmp.gt.f32.partialorder %v4577, 0.0
  %vm4642 = vcmp.gt.f32.partialorder %v4578, 0.0
  %vm4643 = vcmp.gt.f32.partialorder %v4579, 0.0
  %vm4644 = vcmp.gt.f32.partialorder %v4580, 0.0
  %vm4645 = vcmp.gt.f32.partialorder %v4581, 0.0
  %vm4646 = vcmp.gt.f32.partialorder %v4582, 0.0
  %vm4647 = vcmp.gt.f32.partialorder %v4583, 0.0
  %vm4648 = vcmp.gt.f32.partialorder %v4584, 0.0
  %vm4649 = vcmp.gt.f32.partialorder %v4585, 0.0
  %vm4650 = vcmp.gt.f32.partialorder %v4586, 0.0
  %vm4651 = vcmp.gt.f32.partialorder %v4587, 0.0
  %vm4652 = vcmp.gt.f32.partialorder %v4588, 0.0
  %vm4653 = vcmp.gt.f32.partialorder %v4589, 0.0
  %vm4654 = vcmp.gt.f32.partialorder %v4590, 0.0
  %vm4655 = vcmp.gt.f32.partialorder %v4591, 0.0
  %vm4656 = vcmp.gt.f32.partialorder %v4592, 0.0
  %vm4657 = vcmp.gt.f32.partialorder %v4593, 0.0
  %vm4658 = vcmp.gt.f32.partialorder %v4594, 0.0
  %vm4659 = vcmp.gt.f32.partialorder %v4595, 0.0
  %vm4660 = vcmp.gt.f32.partialorder %v4596, 0.0
  %vm4661 = vcmp.gt.f32.partialorder %v4597, 0.0
  %vm4662 = vcmp.gt.f32.partialorder %v4598, 0.0
  %vm4663 = vcmp.gt.f32.partialorder %v4599, 0.0
  %vm4664 = vcmp.gt.f32.partialorder %v4600, 0.0
  %vm4665 = vcmp.gt.f32.partialorder %v4601, 0.0
  %vm4666 = vcmp.gt.f32.partialorder %v4602, 0.0
  %vm4667 = vcmp.gt.f32.partialorder %v4603, 0.0
  %vm4668 = vcmp.gt.f32.partialorder %v4604, 0.0
  %vm4669 = vcmp.gt.f32.partialorder %v4605, 0.0
  %vm4670 = vcmp.gt.f32.partialorder %v4606, 0.0
  %vm4671 = vcmp.gt.f32.partialorder %v4607, 0.0
  %vm4672 = vcmp.gt.f32.partialorder %v4608, 0.0
  %vm4673 = vcmp.gt.f32.partialorder %v4609, 0.0
  %vm4674 = vcmp.gt.f32.partialorder %v4610, 0.0
  %vm4675 = vcmp.gt.f32.partialorder %v4611, 0.0
  %vm4676 = vcmp.gt.f32.partialorder %v4612, 0.0
  %vm4677 = vcmp.gt.f32.partialorder %v4613, 0.0
  %vm4678 = vcmp.gt.f32.partialorder %v4614, 0.0
  %vm4679 = vcmp.gt.f32.partialorder %v4615, 0.0
  %vm4680 = vcmp.gt.f32.partialorder %v4616, 0.0
  %vm4681 = vcmp.gt.f32.partialorder %v4617, 0.0
  %vm4682 = vcmp.gt.f32.partialorder %v4618, 0.0
  %vm4683 = vcmp.gt.f32.partialorder %v4619, 0.0
  %vm4684 = vcmp.gt.f32.partialorder %v4620, 0.0
  %vm4685 = vcmp.gt.f32.partialorder %v4621, 0.0
  %vm4686 = vcmp.gt.f32.partialorder %v4622, 0.0
  %vm4687 = vcmp.gt.f32.partialorder %v4623, 0.0
  %vm4688 = vcmp.gt.f32.partialorder %v4624, 0.0
  %vm4689 = vcmp.gt.f32.partialorder %v4625, 0.0
  %vm4690 = vcmp.gt.f32.partialorder %v4626, 0.0
  %vm4691 = vcmp.gt.f32.partialorder %v4627, 0.0
  %vm4692 = vcmp.gt.f32.partialorder %v4628, 0.0
  %vm4693 = vcmp.gt.f32.partialorder %v4629, 0.0
  %vm4694 = vcmp.gt.f32.partialorder %v4630, 0.0
  %vm4695 = vcmp.gt.f32.partialorder %v4631, 0.0
  %vm4696 = vcmp.gt.f32.partialorder %v4632, 0.0
  %vm4697 = vcmp.gt.f32.partialorder %v4633, 0.0
  %v4698 = vmul.f32 %v4570, 0.20019531
  %v4699 = vmul.f32 %v4571, 0.20019531
  %v4700 = vmul.f32 %v4572, 0.20019531
  %v4701 = vmul.f32 %v4573, 0.20019531
  %v4702 = vmul.f32 %v4574, 0.20019531
  %v4703 = vmul.f32 %v4575, 0.20019531
  %v4704 = vmul.f32 %v4576, 0.20019531
  %v4705 = vmul.f32 %v4577, 0.20019531
  %v4706 = vmul.f32 %v4578, 0.20019531
  %v4707 = vmul.f32 %v4579, 0.20019531
  %v4708 = vmul.f32 %v4580, 0.20019531
  %v4709 = vmul.f32 %v4581, 0.20019531
  %v4710 = vmul.f32 %v4582, 0.20019531
  %v4711 = vmul.f32 %v4583, 0.20019531
  %v4712 = vmul.f32 %v4584, 0.20019531
  %v4713 = vmul.f32 %v4585, 0.20019531
  %v4714 = vmul.f32 %v4586, 0.20019531
  %v4715 = vmul.f32 %v4587, 0.20019531
  %v4716 = vmul.f32 %v4588, 0.20019531
  %v4717 = vmul.f32 %v4589, 0.20019531
  %v4718 = vmul.f32 %v4590, 0.20019531
  %v4719 = vmul.f32 %v4591, 0.20019531
  %v4720 = vmul.f32 %v4592, 0.20019531
  %v4721 = vmul.f32 %v4593, 0.20019531
  %v4722 = vmul.f32 %v4594, 0.20019531
  %v4723 = vmul.f32 %v4595, 0.20019531
  %v4724 = vmul.f32 %v4596, 0.20019531
  %v4725 = vmul.f32 %v4597, 0.20019531
  %v4726 = vmul.f32 %v4598, 0.20019531
  %v4727 = vmul.f32 %v4599, 0.20019531
  %v4728 = vmul.f32 %v4600, 0.20019531
  %v4729 = vmul.f32 %v4601, 0.20019531
  %v4730 = vmul.f32 %v4602, 0.20019531
  %v4731 = vmul.f32 %v4603, 0.20019531
  %v4732 = vmul.f32 %v4604, 0.20019531
  %v4733 = vmul.f32 %v4605, 0.20019531
  %v4734 = vmul.f32 %v4606, 0.20019531
  %v4735 = vmul.f32 %v4607, 0.20019531
  %v4736 = vmul.f32 %v4608, 0.20019531
  %v4737 = vmul.f32 %v4609, 0.20019531
  %v4738 = vmul.f32 %v4610, 0.20019531
  %v4739 = vmul.f32 %v4611, 0.20019531
  %v4740 = vmul.f32 %v4612, 0.20019531
  %v4741 = vmul.f32 %v4613, 0.20019531
  %v4742 = vmul.f32 %v4614, 0.20019531
  %v4743 = vmul.f32 %v4615, 0.20019531
  %v4744 = vmul.f32 %v4616, 0.20019531
  %v4745 = vmul.f32 %v4617, 0.20019531
  %v4746 = vmul.f32 %v4618, 0.20019531
  %v4747 = vmul.f32 %v4619, 0.20019531
  %v4748 = vmul.f32 %v4620, 0.20019531
  %v4749 = vmul.f32 %v4621, 0.20019531
  %v4750 = vmul.f32 %v4622, 0.20019531
  %v4751 = vmul.f32 %v4623, 0.20019531
  %v4752 = vmul.f32 %v4624, 0.20019531
  %v4753 = vmul.f32 %v4625, 0.20019531
  %v4754 = vmul.f32 %v4626, 0.20019531
  %v4755 = vmul.f32 %v4627, 0.20019531
  %v4756 = vmul.f32 %v4628, 0.20019531
  %v4757 = vmul.f32 %v4629, 0.20019531
  %v4758 = vmul.f32 %v4630, 0.20019531
  %v4759 = vmul.f32 %v4631, 0.20019531
  %v4760 = vmul.f32 %v4632, 0.20019531
  %v4761 = vmul.f32 %v4633, 0.20019531
  %v4762 = vpack.c.bf16 %v4698, %v4698
  %v4763 = vpack.c.bf16 %v4699, %v4699
  %v4764 = vpack.c.bf16 %v4700, %v4700
  %v4765 = vpack.c.bf16 %v4701, %v4701
  %v4766 = vpack.c.bf16 %v4702, %v4702
  %v4767 = vpack.c.bf16 %v4703, %v4703
  %v4768 = vpack.c.bf16 %v4704, %v4704
  %v4769 = vpack.c.bf16 %v4705, %v4705
  %v4770 = vpack.c.bf16 %v4706, %v4706
  %v4771 = vpack.c.bf16 %v4707, %v4707
  %v4772 = vpack.c.bf16 %v4708, %v4708
  %v4773 = vpack.c.bf16 %v4709, %v4709
  %v4774 = vpack.c.bf16 %v4710, %v4710
  %v4775 = vpack.c.bf16 %v4711, %v4711
  %v4776 = vpack.c.bf16 %v4712, %v4712
  %v4777 = vpack.c.bf16 %v4713, %v4713
  %v4778 = vpack.c.bf16 %v4714, %v4714
  %v4779 = vpack.c.bf16 %v4715, %v4715
  %v4780 = vpack.c.bf16 %v4716, %v4716
  %v4781 = vpack.c.bf16 %v4717, %v4717
  %v4782 = vpack.c.bf16 %v4718, %v4718
  %v4783 = vpack.c.bf16 %v4719, %v4719
  %v4784 = vpack.c.bf16 %v4720, %v4720
  %v4785 = vpack.c.bf16 %v4721, %v4721
  %v4786 = vpack.c.bf16 %v4722, %v4722
  %v4787 = vpack.c.bf16 %v4723, %v4723
  %v4788 = vpack.c.bf16 %v4724, %v4724
  %v4789 = vpack.c.bf16 %v4725, %v4725
  %v4790 = vpack.c.bf16 %v4726, %v4726
  %v4791 = vpack.c.bf16 %v4727, %v4727
  %v4792 = vpack.c.bf16 %v4728, %v4728
  %v4793 = vpack.c.bf16 %v4729, %v4729
  %v4794 = vpack.c.bf16 %v4730, %v4730
  %v4795 = vpack.c.bf16 %v4731, %v4731
  %v4796 = vpack.c.bf16 %v4732, %v4732
  %v4797 = vpack.c.bf16 %v4733, %v4733
  %v4798 = vpack.c.bf16 %v4734, %v4734
  %v4799 = vpack.c.bf16 %v4735, %v4735
  %v4800 = vpack.c.bf16 %v4736, %v4736
  %v4801 = vpack.c.bf16 %v4737, %v4737
  %v4802 = vpack.c.bf16 %v4738, %v4738
  %v4803 = vpack.c.bf16 %v4739, %v4739
  %v4804 = vpack.c.bf16 %v4740, %v4740
  %v4805 = vpack.c.bf16 %v4741, %v4741
  %v4806 = vpack.c.bf16 %v4742, %v4742
  %v4807 = vpack.c.bf16 %v4743, %v4743
  %v4808 = vpack.c.bf16 %v4744, %v4744
  %v4809 = vpack.c.bf16 %v4745, %v4745
  %v4810 = vpack.c.bf16 %v4746, %v4746
  %v4811 = vpack.c.bf16 %v4747, %v4747
  %v4812 = vpack.c.bf16 %v4748, %v4748
  %v4813 = vpack.c.bf16 %v4749, %v4749
  %v4814 = vpack.c.bf16 %v4750, %v4750
  %v4815 = vpack.c.bf16 %v4751, %v4751
  %v4816 = vpack.c.bf16 %v4752, %v4752
  %v4817 = vpack.c.bf16 %v4753, %v4753
  %v4818 = vpack.c.bf16 %v4754, %v4754
  %v4819 = vpack.c.bf16 %v4755, %v4755
  %v4820 = vpack.c.bf16 %v4756, %v4756
  %v4821 = vpack.c.bf16 %v4757, %v4757
  %v4822 = vpack.c.bf16 %v4758, %v4758
  %v4823 = vpack.c.bf16 %v4759, %v4759
  %v4824 = vpack.c.bf16 %v4760, %v4760
  %v4825 = vpack.c.bf16 %v4761, %v4761
  %vm4826 = vmpackc.low %vm4634, %vm4634
  %vm4827 = vmpackc.low %vm4635, %vm4635
  %vm4828 = vmpackc.low %vm4636, %vm4636
  %vm4829 = vmpackc.low %vm4637, %vm4637
  %vm4830 = vmpackc.low %vm4638, %vm4638
  %vm4831 = vmpackc.low %vm4639, %vm4639
  %vm4832 = vmpackc.low %vm4640, %vm4640
  %vm4833 = vmpackc.low %vm4641, %vm4641
  %vm4834 = vmpackc.low %vm4642, %vm4642
  %vm4835 = vmpackc.low %vm4643, %vm4643
  %vm4836 = vmpackc.low %vm4644, %vm4644
  %vm4837 = vmpackc.low %vm4645, %vm4645
  %vm4838 = vmpackc.low %vm4646, %vm4646
  %vm4839 = vmpackc.low %vm4647, %vm4647
  %vm4840 = vmpackc.low %vm4648, %vm4648
  %vm4841 = vmpackc.low %vm4649, %vm4649
  %vm4842 = vmpackc.low %vm4650, %vm4650
  %vm4843 = vmpackc.low %vm4651, %vm4651
  %vm4844 = vmpackc.low %vm4652, %vm4652
  %vm4845 = vmpackc.low %vm4653, %vm4653
  %vm4846 = vmpackc.low %vm4654, %vm4654
  %vm4847 = vmpackc.low %vm4655, %vm4655
  %vm4848 = vmpackc.low %vm4656, %vm4656
  %vm4849 = vmpackc.low %vm4657, %vm4657
  %vm4850 = vmpackc.low %vm4658, %vm4658
  %vm4851 = vmpackc.low %vm4659, %vm4659
  %vm4852 = vmpackc.low %vm4660, %vm4660
  %vm4853 = vmpackc.low %vm4661, %vm4661
  %vm4854 = vmpackc.low %vm4662, %vm4662
  %vm4855 = vmpackc.low %vm4663, %vm4663
  %vm4856 = vmpackc.low %vm4664, %vm4664
  %vm4857 = vmpackc.low %vm4665, %vm4665
  %vm4858 = vmpackc.low %vm4666, %vm4666
  %vm4859 = vmpackc.low %vm4667, %vm4667
  %vm4860 = vmpackc.low %vm4668, %vm4668
  %vm4861 = vmpackc.low %vm4669, %vm4669
  %vm4862 = vmpackc.low %vm4670, %vm4670
  %vm4863 = vmpackc.low %vm4671, %vm4671
  %vm4864 = vmpackc.low %vm4672, %vm4672
  %vm4865 = vmpackc.low %vm4673, %vm4673
  %vm4866 = vmpackc.low %vm4674, %vm4674
  %vm4867 = vmpackc.low %vm4675, %vm4675
  %vm4868 = vmpackc.low %vm4676, %vm4676
  %vm4869 = vmpackc.low %vm4677, %vm4677
  %vm4870 = vmpackc.low %vm4678, %vm4678
  %vm4871 = vmpackc.low %vm4679, %vm4679
  %vm4872 = vmpackc.low %vm4680, %vm4680
  %vm4873 = vmpackc.low %vm4681, %vm4681
  %vm4874 = vmpackc.low %vm4682, %vm4682
  %vm4875 = vmpackc.low %vm4683, %vm4683
  %vm4876 = vmpackc.low %vm4684, %vm4684
  %vm4877 = vmpackc.low %vm4685, %vm4685
  %vm4878 = vmpackc.low %vm4686, %vm4686
  %vm4879 = vmpackc.low %vm4687, %vm4687
  %vm4880 = vmpackc.low %vm4688, %vm4688
  %vm4881 = vmpackc.low %vm4689, %vm4689
  %vm4882 = vmpackc.low %vm4690, %vm4690
  %vm4883 = vmpackc.low %vm4691, %vm4691
  %vm4884 = vmpackc.low %vm4692, %vm4692
  %vm4885 = vmpackc.low %vm4693, %vm4693
  %vm4886 = vmpackc.low %vm4694, %vm4694
  %vm4887 = vmpackc.low %vm4695, %vm4695
  %vm4888 = vmpackc.low %vm4696, %vm4696
  %vm4889 = vmpackc.low %vm4697, %vm4697
  %v4890 = vsel %vm4826, %v4506, %v4762
  %v4891 = vsel %vm4827, %v4507, %v4763
  %v4892 = vsel %vm4828, %v4508, %v4764
  %v4893 = vsel %vm4829, %v4509, %v4765
  %v4894 = vsel %vm4830, %v4510, %v4766
  %v4895 = vsel %vm4831, %v4511, %v4767
  %v4896 = vsel %vm4832, %v4512, %v4768
  %v4897 = vsel %vm4833, %v4513, %v4769
  %v4898 = vsel %vm4834, %v4514, %v4770
  %v4899 = vsel %vm4835, %v4515, %v4771
  %v4900 = vsel %vm4836, %v4516, %v4772
  %v4901 = vsel %vm4837, %v4517, %v4773
  %v4902 = vsel %vm4838, %v4518, %v4774
  %v4903 = vsel %vm4839, %v4519, %v4775
  %v4904 = vsel %vm4840, %v4520, %v4776
  %v4905 = vsel %vm4841, %v4521, %v4777
  %v4906 = vsel %vm4842, %v4522, %v4778
  %v4907 = vsel %vm4843, %v4523, %v4779
  %v4908 = vsel %vm4844, %v4524, %v4780
  %v4909 = vsel %vm4845, %v4525, %v4781
  %v4910 = vsel %vm4846, %v4526, %v4782
  %v4911 = vsel %vm4847, %v4527, %v4783
  %v4912 = vsel %vm4848, %v4528, %v4784
  %v4913 = vsel %vm4849, %v4529, %v4785
  %v4914 = vsel %vm4850, %v4530, %v4786
  %v4915 = vsel %vm4851, %v4531, %v4787
  %v4916 = vsel %vm4852, %v4532, %v4788
  %v4917 = vsel %vm4853, %v4533, %v4789
  %v4918 = vsel %vm4854, %v4534, %v4790
  %v4919 = vsel %vm4855, %v4535, %v4791
  %v4920 = vsel %vm4856, %v4536, %v4792
  %v4921 = vsel %vm4857, %v4537, %v4793
  %v4922 = vsel %vm4858, %v4538, %v4794
  %v4923 = vsel %vm4859, %v4539, %v4795
  %v4924 = vsel %vm4860, %v4540, %v4796
  %v4925 = vsel %vm4861, %v4541, %v4797
  %v4926 = vsel %vm4862, %v4542, %v4798
  %v4927 = vsel %vm4863, %v4543, %v4799
  %v4928 = vsel %vm4864, %v4544, %v4800
  %v4929 = vsel %vm4865, %v4545, %v4801
  %v4930 = vsel %vm4866, %v4546, %v4802
  %v4931 = vsel %vm4867, %v4547, %v4803
  %v4932 = vsel %vm4868, %v4548, %v4804
  %v4933 = vsel %vm4869, %v4549, %v4805
  %v4934 = vsel %vm4870, %v4550, %v4806
  %v4935 = vsel %vm4871, %v4551, %v4807
  %v4936 = vsel %vm4872, %v4552, %v4808
  %v4937 = vsel %vm4873, %v4553, %v4809
  %v4938 = vsel %vm4874, %v4554, %v4810
  %v4939 = vsel %vm4875, %v4555, %v4811
  %v4940 = vsel %vm4876, %v4556, %v4812
  %v4941 = vsel %vm4877, %v4557, %v4813
  %v4942 = vsel %vm4878, %v4558, %v4814
  %v4943 = vsel %vm4879, %v4559, %v4815
  %v4944 = vsel %vm4880, %v4560, %v4816
  %v4945 = vsel %vm4881, %v4561, %v4817
  %v4946 = vsel %vm4882, %v4562, %v4818
  %v4947 = vsel %vm4883, %v4563, %v4819
  %v4948 = vsel %vm4884, %v4564, %v4820
  %v4949 = vsel %vm4885, %v4565, %v4821
  %v4950 = vsel %vm4886, %v4566, %v4822
  %v4951 = vsel %vm4887, %v4567, %v4823
  %v4952 = vsel %vm4888, %v4568, %v4824
  %v4953 = vsel %vm4889, %v4569, %v4825
  %4954 = vst [vmem:[%s2] sm:$0xf] %v4890
  %4955 = vst [vmem:[%s2 + $0x4] sm:$0xf] %v4891
  %4956 = vst [vmem:[%s2 + $0x8] sm:$0xf] %v4892
  %4957 = vst [vmem:[%s2 + $0xc] sm:$0xf] %v4893
  %4958 = vst [vmem:[%s2 + $0x10] sm:$0xf] %v4894
  %4959 = vst [vmem:[%s2 + $0x14] sm:$0xf] %v4895
  %4960 = vst [vmem:[%s2 + $0x18] sm:$0xf] %v4896
  %4961 = vst [vmem:[%s2 + $0x1c] sm:$0xf] %v4897
  %4962 = vst [vmem:[%s2 + $0x20] sm:$0xf] %v4898
  %4963 = vst [vmem:[%s2 + $0x24] sm:$0xf] %v4899
  %4964 = vst [vmem:[%s2 + $0x28] sm:$0xf] %v4900
  %4965 = vst [vmem:[%s2 + $0x2c] sm:$0xf] %v4901
  %4966 = vst [vmem:[%s2 + $0x30] sm:$0xf] %v4902
  %4967 = vst [vmem:[%s2 + $0x34] sm:$0xf] %v4903
  %4968 = vst [vmem:[%s2 + $0x38] sm:$0xf] %v4904
  %4969 = vst [vmem:[%s2 + $0x3c] sm:$0xf] %v4905
  %4970 = vst [vmem:[%s2 + $0x40] sm:$0xf] %v4906
  %4971 = vst [vmem:[%s2 + $0x44] sm:$0xf] %v4907
  %4972 = vst [vmem:[%s2 + $0x48] sm:$0xf] %v4908
  %4973 = vst [vmem:[%s2 + $0x4c] sm:$0xf] %v4909
  %4974 = vst [vmem:[%s2 + $0x50] sm:$0xf] %v4910
  %4975 = vst [vmem:[%s2 + $0x54] sm:$0xf] %v4911
  %4976 = vst [vmem:[%s2 + $0x58] sm:$0xf] %v4912
  %4977 = vst [vmem:[%s2 + $0x5c] sm:$0xf] %v4913
  %4978 = vst [vmem:[%s2 + $0x60] sm:$0xf] %v4914
  %4979 = vst [vmem:[%s2 + $0x64] sm:$0xf] %v4915
  %4980 = vst [vmem:[%s2 + $0x68] sm:$0xf] %v4916
  %4981 = vst [vmem:[%s2 + $0x6c] sm:$0xf] %v4917
  %4982 = vst [vmem:[%s2 + $0x70] sm:$0xf] %v4918
  %4983 = vst [vmem:[%s2 + $0x74] sm:$0xf] %v4919
  %4984 = vst [vmem:[%s2 + $0x78] sm:$0xf] %v4920
  %4985 = vst [vmem:[%s2 + $0x7c] sm:$0xf] %v4921
  %4986 = vst [vmem:[%s2 + $0x80] sm:$0xf] %v4922
  %4987 = vst [vmem:[%s2 + $0x84] sm:$0xf] %v4923
  %4988 = vst [vmem:[%s2 + $0x88] sm:$0xf] %v4924
  %4989 = vst [vmem:[%s2 + $0x8c] sm:$0xf] %v4925
  %4990 = vst [vmem:[%s2 + $0x90] sm:$0xf] %v4926
  %4991 = vst [vmem:[%s2 + $0x94] sm:$0xf] %v4927
  %4992 = vst [vmem:[%s2 + $0x98] sm:$0xf] %v4928
  %4993 = vst [vmem:[%s2 + $0x9c] sm:$0xf] %v4929
  %4994 = vst [vmem:[%s2 + $0xa0] sm:$0xf] %v4930
  %4995 = vst [vmem:[%s2 + $0xa4] sm:$0xf] %v4931
  %4996 = vst [vmem:[%s2 + $0xa8] sm:$0xf] %v4932
  %4997 = vst [vmem:[%s2 + $0xac] sm:$0xf] %v4933
  %4998 = vst [vmem:[%s2 + $0xb0] sm:$0xf] %v4934
  %4999 = vst [vmem:[%s2 + $0xb4] sm:$0xf] %v4935
  %5000 = vst [vmem:[%s2 + $0xb8] sm:$0xf] %v4936
  %5001 = vst [vmem:[%s2 + $0xbc] sm:$0xf] %v4937
  %5002 = vst [vmem:[%s2 + $0xc0] sm:$0xf] %v4938
  %5003 = vst [vmem:[%s2 + $0xc4] sm:$0xf] %v4939
  %5004 = vst [vmem:[%s2 + $0xc8] sm:$0xf] %v4940
  %5005 = vst [vmem:[%s2 + $0xcc] sm:$0xf] %v4941
  %5006 = vst [vmem:[%s2 + $0xd0] sm:$0xf] %v4942
  %5007 = vst [vmem:[%s2 + $0xd4] sm:$0xf] %v4943
  %5008 = vst [vmem:[%s2 + $0xd8] sm:$0xf] %v4944
  %5009 = vst [vmem:[%s2 + $0xdc] sm:$0xf] %v4945
  %5010 = vst [vmem:[%s2 + $0xe0] sm:$0xf] %v4946
  %5011 = vst [vmem:[%s2 + $0xe4] sm:$0xf] %v4947
  %5012 = vst [vmem:[%s2 + $0xe8] sm:$0xf] %v4948
  %5013 = vst [vmem:[%s2 + $0xec] sm:$0xf] %v4949
  %5014 = vst [vmem:[%s2 + $0xf0] sm:$0xf] %v4950
  %5015 = vst [vmem:[%s2 + $0xf4] sm:$0xf] %v4951
  %5016 = vst [vmem:[%s2 + $0xf8] sm:$0xf] %v4952
  %5017 = vst [vmem:[%s2 + $0xfc] sm:$0xf] %v4953
  // Predicated region
  $region10: #{discriminator_forward.10} parent=0 // pred_check
    _
  $region11: #{discriminator_forward.10} parent=0 // pred_check_branch
    %5019 = sbr.rel (0) target = $region13
  $region12: #{discriminator_forward.10} parent=0 // pred_region
    _
  $region13: #{discriminator_forward.10} parent=0 // pred_fallthru
    _
  // Predicated region
  $region14: #{discriminator_forward.10} parent=0 // pred_check
    _
  $region15: #{discriminator_forward.10} parent=0 // pred_check_branch
    %5021 = sbr.rel (0) target = $region17
  $region16: #{discriminator_forward.10} parent=0 // pred_region
    _
  $region17: #{discriminator_forward.10} parent=0 // pred_fallthru
    _

// kernel: discriminator_forward.12
$region0: #{discriminator_forward.12}
  #allocation0 [shape = 'u32[]', space=smem, size = 0x4, offset = 0x4, fixed_abs, tag = 'smem constant byte address 0x4 - core index']
  #allocation1 [shape = 'u32[72,128]{1,0:T(1,128)}', space=vmem, size = 0x9000, scoped, tag = 'internal scratch']
  %s0 = inlined_call_operand.vmem [shape: bf16[128,1152], index: 0, kind: input, shape index: {}]
  %s1 = inlined_call_operand.vmem [shape: bf16[1152,128], index: 1, kind: input, shape index: {}]
  %s2 = inlined_call_operand.vmem [shape: bf16[128,128], index: 2, kind: output, shape index: {}]
  %s3 = sld [smem:[#allocation0]]
  $region18: #{discriminator_forward.12} parent=0
    _
  %s5 = ssub.s32 1, %s3
  %s6 = scalar_select 0, %s5, %s3
  // Predicated region
  $region2: #{discriminator_forward.12} parent=0 // pred_check
    _
  $region3: #{discriminator_forward.12} parent=0 // pred_check_branch
    %8 = sbr.rel (0) target = $region5
  $region4: #{discriminator_forward.12} parent=0 // pred_region
    _
  $region5: #{discriminator_forward.12} parent=0 // pred_fallthru
    _
  // Predicated region
  $region6: #{discriminator_forward.12} parent=0 // pred_check
    _
  $region7: #{discriminator_forward.12} parent=0 // pred_check_branch
    %10 = sbr.rel (0) target = $region9
  $region8: #{discriminator_forward.12} parent=0 // pred_region
    _
  $region9: #{discriminator_forward.12} parent=0 // pred_fallthru
    _
  %v11 = vld [vmem:[%s0] sm:$0xff]
  %v12 = vld [vmem:[%s0 + $0x8] sm:$0xff]
  %v13 = vld [vmem:[%s0 + $0x10] sm:$0xff]
  %v14 = vld [vmem:[%s0 + $0x18] sm:$0xff]
  %v15 = vld [vmem:[%s0 + $0x20] sm:$0xf]
  %v16 = vld [vmem:[%s0 + $0x24] sm:$0xff]
  %v17 = vld [vmem:[%s0 + $0x2c] sm:$0xff]
  %v18 = vld [vmem:[%s0 + $0x34] sm:$0xff]
  %v19 = vld [vmem:[%s0 + $0x3c] sm:$0xff]
  %v20 = vld [vmem:[%s0 + $0x44] sm:$0xf]
  %v21 = vld [vmem:[%s0 + $0x48] sm:$0xff]
  %v22 = vld [vmem:[%s0 + $0x50] sm:$0xff]
  %v23 = vld [vmem:[%s0 + $0x58] sm:$0xff]
  %v24 = vld [vmem:[%s0 + $0x60] sm:$0xff]
  %v25 = vld [vmem:[%s0 + $0x68] sm:$0xf]
  %v26 = vld [vmem:[%s0 + $0x6c] sm:$0xff]
  %v27 = vld [vmem:[%s0 + $0x74] sm:$0xff]
  %v28 = vld [vmem:[%s0 + $0x7c] sm:$0xff]
  %v29 = vld [vmem:[%s0 + $0x84] sm:$0xff]
  %v30 = vld [vmem:[%s0 + $0x8c] sm:$0xf]
  %v31 = vld [vmem:[%s0 + $0x90] sm:$0xff]
  %v32 = vld [vmem:[%s0 + $0x98] sm:$0xff]
  %v33 = vld [vmem:[%s0 + $0xa0] sm:$0xff]
  %v34 = vld [vmem:[%s0 + $0xa8] sm:$0xff]
  %v35 = vld [vmem:[%s0 + $0xb0] sm:$0xf]
  %v36 = vld [vmem:[%s0 + $0xb4] sm:$0xff]
  %v37 = vld [vmem:[%s0 + $0xbc] sm:$0xff]
  %v38 = vld [vmem:[%s0 + $0xc4] sm:$0xff]
  %v39 = vld [vmem:[%s0 + $0xcc] sm:$0xff]
  %v40 = vld [vmem:[%s0 + $0xd4] sm:$0xf]
  %v41 = vld [vmem:[%s0 + $0xd8] sm:$0xff]
  %v42 = vld [vmem:[%s0 + $0xe0] sm:$0xff]
  %v43 = vld [vmem:[%s0 + $0xe8] sm:$0xff]
  %v44 = vld [vmem:[%s0 + $0xf0] sm:$0xff]
  %v45 = vld [vmem:[%s0 + $0xf8] sm:$0xf]
  %v46 = vld [vmem:[%s0 + $0xfc] sm:$0xff]
  %v47 = vld [vmem:[%s0 + $0x104] sm:$0xff]
  %v48 = vld [vmem:[%s0 + $0x10c] sm:$0xff]
  %v49 = vld [vmem:[%s0 + $0x114] sm:$0xff]
  %v50 = vld [vmem:[%s0 + $0x11c] sm:$0xf]
  %v51 = vld [vmem:[%s0 + $0x120] sm:$0xff]
  %v52 = vld [vmem:[%s0 + $0x128] sm:$0xff]
  %v53 = vld [vmem:[%s0 + $0x130] sm:$0xff]
  %v54 = vld [vmem:[%s0 + $0x138] sm:$0xff]
  %v55 = vld [vmem:[%s0 + $0x140] sm:$0xf]
  %v56 = vld [vmem:[%s0 + $0x144] sm:$0xff]
  %v57 = vld [vmem:[%s0 + $0x14c] sm:$0xff]
  %v58 = vld [vmem:[%s0 + $0x154] sm:$0xff]
  %v59 = vld [vmem:[%s0 + $0x15c] sm:$0xff]
  %v60 = vld [vmem:[%s0 + $0x164] sm:$0xf]
  %v61 = vld [vmem:[%s0 + $0x168] sm:$0xff]
  %v62 = vld [vmem:[%s0 + $0x170] sm:$0xff]
  %v63 = vld [vmem:[%s0 + $0x178] sm:$0xff]
  %v64 = vld [vmem:[%s0 + $0x180] sm:$0xff]
  %v65 = vld [vmem:[%s0 + $0x188] sm:$0xf]
  %v66 = vld [vmem:[%s0 + $0x18c] sm:$0xff]
  %v67 = vld [vmem:[%s0 + $0x194] sm:$0xff]
  %v68 = vld [vmem:[%s0 + $0x19c] sm:$0xff]
  %v69 = vld [vmem:[%s0 + $0x1a4] sm:$0xff]
  %v70 = vld [vmem:[%s0 + $0x1ac] sm:$0xf]
  %v71 = vld [vmem:[%s0 + $0x1b0] sm:$0xff]
  %v72 = vld [vmem:[%s0 + $0x1b8] sm:$0xff]
  %v73 = vld [vmem:[%s0 + $0x1c0] sm:$0xff]
  %v74 = vld [vmem:[%s0 + $0x1c8] sm:$0xff]
  %v75 = vld [vmem:[%s0 + $0x1d0] sm:$0xf]
  %v76 = vld [vmem:[%s0 + $0x1d4] sm:$0xff]
  %v77 = vld [vmem:[%s0 + $0x1dc] sm:$0xff]
  %v78 = vld [vmem:[%s0 + $0x1e4] sm:$0xff]
  %v79 = vld [vmem:[%s0 + $0x1ec] sm:$0xff]
  %v80 = vld [vmem:[%s0 + $0x1f4] sm:$0xf]
  %v81 = vld [vmem:[%s0 + $0x1f8] sm:$0xff]
  %v82 = vld [vmem:[%s0 + $0x200] sm:$0xff]
  %v83 = vld [vmem:[%s0 + $0x208] sm:$0xff]
  %v84 = vld [vmem:[%s0 + $0x210] sm:$0xff]
  %v85 = vld [vmem:[%s0 + $0x218] sm:$0xf]
  %v86 = vld [vmem:[%s0 + $0x21c] sm:$0xff]
  %v87 = vld [vmem:[%s0 + $0x224] sm:$0xff]
  %v88 = vld [vmem:[%s0 + $0x22c] sm:$0xff]
  %v89 = vld [vmem:[%s0 + $0x234] sm:$0xff]
  %v90 = vld [vmem:[%s0 + $0x23c] sm:$0xf]
  %v91 = vld [vmem:[%s1] sm:$0xf]
  %v92 = vld [vmem:[%s1 + $0x4] sm:$0xf]
  %v93 = vld [vmem:[%s1 + $0x8] sm:$0xf]
  %v94 = vld [vmem:[%s1 + $0xc] sm:$0xf]
  %v95 = vld [vmem:[%s1 + $0x10] sm:$0xf]
  %v96 = vld [vmem:[%s1 + $0x14] sm:$0xf]
  %v97 = vld [vmem:[%s1 + $0x18] sm:$0xf]
  %v98 = vld [vmem:[%s1 + $0x1c] sm:$0xf]
  %v99 = vld [vmem:[%s1 + $0x20] sm:$0xf]
  %v100 = vld [vmem:[%s1 + $0x24] sm:$0xf]
  %v101 = vld [vmem:[%s1 + $0x28] sm:$0xf]
  %v102 = vld [vmem:[%s1 + $0x2c] sm:$0xf]
  %v103 = vld [vmem:[%s1 + $0x30] sm:$0xf]
  %v104 = vld [vmem:[%s1 + $0x34] sm:$0xf]
  %v105 = vld [vmem:[%s1 + $0x38] sm:$0xf]
  %v106 = vld [vmem:[%s1 + $0x3c] sm:$0xf]
  %v107 = vld [vmem:[%s1 + $0x40] sm:$0xf]
  %v108 = vld [vmem:[%s1 + $0x44] sm:$0xf]
  %v109 = vld [vmem:[%s1 + $0x48] sm:$0xf]
  %v110 = vld [vmem:[%s1 + $0x4c] sm:$0xf]
  %v111 = vld [vmem:[%s1 + $0x50] sm:$0xf]
  %v112 = vld [vmem:[%s1 + $0x54] sm:$0xf]
  %v113 = vld [vmem:[%s1 + $0x58] sm:$0xf]
  %v114 = vld [vmem:[%s1 + $0x5c] sm:$0xf]
  %v115 = vld [vmem:[%s1 + $0x60] sm:$0xf]
  %v116 = vld [vmem:[%s1 + $0x64] sm:$0xf]
  %v117 = vld [vmem:[%s1 + $0x68] sm:$0xf]
  %v118 = vld [vmem:[%s1 + $0x6c] sm:$0xf]
  %v119 = vld [vmem:[%s1 + $0x70] sm:$0xf]
  %v120 = vld [vmem:[%s1 + $0x74] sm:$0xf]
  %v121 = vld [vmem:[%s1 + $0x78] sm:$0xf]
  %v122 = vld [vmem:[%s1 + $0x7c] sm:$0xf]
  %v123 = vld [vmem:[%s1 + $0x80] sm:$0xf]
  %v124 = vld [vmem:[%s1 + $0x84] sm:$0xf]
  %v125 = vld [vmem:[%s1 + $0x88] sm:$0xf]
  %v126 = vld [vmem:[%s1 + $0x8c] sm:$0xf]
  %v127 = vld [vmem:[%s1 + $0x90] sm:$0xf]
  %v128 = vld [vmem:[%s1 + $0x94] sm:$0xf]
  %v129 = vld [vmem:[%s1 + $0x98] sm:$0xf]
  %v130 = vld [vmem:[%s1 + $0x9c] sm:$0xf]
  %v131 = vld [vmem:[%s1 + $0xa0] sm:$0xf]
  %v132 = vld [vmem:[%s1 + $0xa4] sm:$0xf]
  %v133 = vld [vmem:[%s1 + $0xa8] sm:$0xf]
  %v134 = vld [vmem:[%s1 + $0xac] sm:$0xf]
  %v135 = vld [vmem:[%s1 + $0xb0] sm:$0xf]
  %v136 = vld [vmem:[%s1 + $0xb4] sm:$0xf]
  %v137 = vld [vmem:[%s1 + $0xb8] sm:$0xf]
  %v138 = vld [vmem:[%s1 + $0xbc] sm:$0xf]
  %v139 = vld [vmem:[%s1 + $0xc0] sm:$0xf]
  %v140 = vld [vmem:[%s1 + $0xc4] sm:$0xf]
  %v141 = vld [vmem:[%s1 + $0xc8] sm:$0xf]
  %v142 = vld [vmem:[%s1 + $0xcc] sm:$0xf]
  %v143 = vld [vmem:[%s1 + $0xd0] sm:$0xf]
  %v144 = vld [vmem:[%s1 + $0xd4] sm:$0xf]
  %v145 = vld [vmem:[%s1 + $0xd8] sm:$0xf]
  %v146 = vld [vmem:[%s1 + $0xdc] sm:$0xf]
  %v147 = vld [vmem:[%s1 + $0xe0] sm:$0xf]
  %v148 = vld [vmem:[%s1 + $0xe4] sm:$0xf]
  %v149 = vld [vmem:[%s1 + $0xe8] sm:$0xf]
  %v150 = vld [vmem:[%s1 + $0xec] sm:$0xf]
  %v151 = vld [vmem:[%s1 + $0xf0] sm:$0xf]
  %v152 = vld [vmem:[%s1 + $0xf4] sm:$0xf]
  %v153 = vld [vmem:[%s1 + $0xf8] sm:$0xf]
  %v154 = vld [vmem:[%s1 + $0xfc] sm:$0xf]
  %v155 = vld [vmem:[%s1 + $0x100] sm:$0xf]
  %v156 = vld [vmem:[%s1 + $0x104] sm:$0xf]
  %v157 = vld [vmem:[%s1 + $0x108] sm:$0xf]
  %v158 = vld [vmem:[%s1 + $0x10c] sm:$0xf]
  %v159 = vld [vmem:[%s1 + $0x110] sm:$0xf]
  %v160 = vld [vmem:[%s1 + $0x114] sm:$0xf]
  %v161 = vld [vmem:[%s1 + $0x118] sm:$0xf]
  %v162 = vld [vmem:[%s1 + $0x11c] sm:$0xf]
  %v163 = vld [vmem:[%s1 + $0x120] sm:$0xf]
  %v164 = vld [vmem:[%s1 + $0x124] sm:$0xf]
  %v165 = vld [vmem:[%s1 + $0x128] sm:$0xf]
  %v166 = vld [vmem:[%s1 + $0x12c] sm:$0xf]
  %v167 = vld [vmem:[%s1 + $0x130] sm:$0xf]
  %v168 = vld [vmem:[%s1 + $0x134] sm:$0xf]
  %v169 = vld [vmem:[%s1 + $0x138] sm:$0xf]
  %v170 = vld [vmem:[%s1 + $0x13c] sm:$0xf]
  %v171 = vld [vmem:[%s1 + $0x140] sm:$0xf]
  %v172 = vld [vmem:[%s1 + $0x144] sm:$0xf]
  %v173 = vld [vmem:[%s1 + $0x148] sm:$0xf]
  %v174 = vld [vmem:[%s1 + $0x14c] sm:$0xf]
  %v175 = vld [vmem:[%s1 + $0x150] sm:$0xf]
  %v176 = vld [vmem:[%s1 + $0x154] sm:$0xf]
  %v177 = vld [vmem:[%s1 + $0x158] sm:$0xf]
  %v178 = vld [vmem:[%s1 + $0x15c] sm:$0xf]
  %v179 = vld [vmem:[%s1 + $0x160] sm:$0xf]
  %v180 = vld [vmem:[%s1 + $0x164] sm:$0xf]
  %v181 = vld [vmem:[%s1 + $0x168] sm:$0xf]
  %v182 = vld [vmem:[%s1 + $0x16c] sm:$0xf]
  %v183 = vld [vmem:[%s1 + $0x170] sm:$0xf]
  %v184 = vld [vmem:[%s1 + $0x174] sm:$0xf]
  %v185 = vld [vmem:[%s1 + $0x178] sm:$0xf]
  %v186 = vld [vmem:[%s1 + $0x17c] sm:$0xf]
  %v187 = vld [vmem:[%s1 + $0x180] sm:$0xf]
  %v188 = vld [vmem:[%s1 + $0x184] sm:$0xf]
  %v189 = vld [vmem:[%s1 + $0x188] sm:$0xf]
  %v190 = vld [vmem:[%s1 + $0x18c] sm:$0xf]
  %v191 = vld [vmem:[%s1 + $0x190] sm:$0xf]
  %v192 = vld [vmem:[%s1 + $0x194] sm:$0xf]
  %v193 = vld [vmem:[%s1 + $0x198] sm:$0xf]
  %v194 = vld [vmem:[%s1 + $0x19c] sm:$0xf]
  %v195 = vld [vmem:[%s1 + $0x1a0] sm:$0xf]
  %v196 = vld [vmem:[%s1 + $0x1a4] sm:$0xf]
  %v197 = vld [vmem:[%s1 + $0x1a8] sm:$0xf]
  %v198 = vld [vmem:[%s1 + $0x1ac] sm:$0xf]
  %v199 = vld [vmem:[%s1 + $0x1b0] sm:$0xf]
  %v200 = vld [vmem:[%s1 + $0x1b4] sm:$0xf]
  %v201 = vld [vmem:[%s1 + $0x1b8] sm:$0xf]
  %v202 = vld [vmem:[%s1 + $0x1bc] sm:$0xf]
  %v203 = vld [vmem:[%s1 + $0x1c0] sm:$0xf]
  %v204 = vld [vmem:[%s1 + $0x1c4] sm:$0xf]
  %v205 = vld [vmem:[%s1 + $0x1c8] sm:$0xf]
  %v206 = vld [vmem:[%s1 + $0x1cc] sm:$0xf]
  %v207 = vld [vmem:[%s1 + $0x1d0] sm:$0xf]
  %v208 = vld [vmem:[%s1 + $0x1d4] sm:$0xf]
  %v209 = vld [vmem:[%s1 + $0x1d8] sm:$0xf]
  %v210 = vld [vmem:[%s1 + $0x1dc] sm:$0xf]
  %v211 = vld [vmem:[%s1 + $0x1e0] sm:$0xf]
  %v212 = vld [vmem:[%s1 + $0x1e4] sm:$0xf]
  %v213 = vld [vmem:[%s1 + $0x1e8] sm:$0xf]
  %v214 = vld [vmem:[%s1 + $0x1ec] sm:$0xf]
  %v215 = vld [vmem:[%s1 + $0x1f0] sm:$0xf]
  %v216 = vld [vmem:[%s1 + $0x1f4] sm:$0xf]
  %v217 = vld [vmem:[%s1 + $0x1f8] sm:$0xf]
  %v218 = vld [vmem:[%s1 + $0x1fc] sm:$0xf]
  %v219 = vld [vmem:[%s1 + $0x200] sm:$0xf]
  %v220 = vld [vmem:[%s1 + $0x204] sm:$0xf]
  %v221 = vld [vmem:[%s1 + $0x208] sm:$0xf]
  %v222 = vld [vmem:[%s1 + $0x20c] sm:$0xf]
  %v223 = vld [vmem:[%s1 + $0x210] sm:$0xf]
  %v224 = vld [vmem:[%s1 + $0x214] sm:$0xf]
  %v225 = vld [vmem:[%s1 + $0x218] sm:$0xf]
  %v226 = vld [vmem:[%s1 + $0x21c] sm:$0xf]
  %v227 = vld [vmem:[%s1 + $0x220] sm:$0xf]
  %v228 = vld [vmem:[%s1 + $0x224] sm:$0xf]
  %v229 = vld [vmem:[%s1 + $0x228] sm:$0xf]
  %v230 = vld [vmem:[%s1 + $0x22c] sm:$0xf]
  %v231 = vld [vmem:[%s1 + $0x230] sm:$0xf]
  %v232 = vld [vmem:[%s1 + $0x234] sm:$0xf]
  %v233 = vld [vmem:[%s1 + $0x238] sm:$0xf]
  %v234 = vld [vmem:[%s1 + $0x23c] sm:$0xf]
  %v315 = vunpack.c.l.b16 %v11
  %v316 = vunpack.c.h.b16 %v11
  %v317 = vunpack.c.l.b16 %v12
  %v318 = vunpack.c.h.b16 %v12
  %v319 = vunpack.c.l.b16 %v13
  %v320 = vunpack.c.h.b16 %v13
  %v321 = vunpack.c.l.b16 %v14
  %v322 = vunpack.c.h.b16 %v14
  %v323 = vunpack.c.l.b16 %v15
  %v324 = vunpack.c.l.b16 %v16
  %v325 = vunpack.c.h.b16 %v16
  %v326 = vunpack.c.l.b16 %v17
  %v327 = vunpack.c.h.b16 %v17
  %v328 = vunpack.c.l.b16 %v18
  %v329 = vunpack.c.h.b16 %v18
  %v330 = vunpack.c.l.b16 %v19
  %v331 = vunpack.c.h.b16 %v19
  %v332 = vunpack.c.l.b16 %v20
  %v333 = vunpack.c.l.b16 %v21
  %v334 = vunpack.c.h.b16 %v21
  %v335 = vunpack.c.l.b16 %v22
  %v336 = vunpack.c.h.b16 %v22
  %v337 = vunpack.c.l.b16 %v23
  %v338 = vunpack.c.h.b16 %v23
  %v339 = vunpack.c.l.b16 %v24
  %v340 = vunpack.c.h.b16 %v24
  %v341 = vunpack.c.l.b16 %v25
  %v342 = vunpack.c.l.b16 %v26
  %v343 = vunpack.c.h.b16 %v26
  %v344 = vunpack.c.l.b16 %v27
  %v345 = vunpack.c.h.b16 %v27
  %v346 = vunpack.c.l.b16 %v28
  %v347 = vunpack.c.h.b16 %v28
  %v348 = vunpack.c.l.b16 %v29
  %v349 = vunpack.c.h.b16 %v29
  %v350 = vunpack.c.l.b16 %v30
  %v351 = vunpack.c.l.b16 %v31
  %v352 = vunpack.c.h.b16 %v31
  %v353 = vunpack.c.l.b16 %v32
  %v354 = vunpack.c.h.b16 %v32
  %v355 = vunpack.c.l.b16 %v33
  %v356 = vunpack.c.h.b16 %v33
  %v357 = vunpack.c.l.b16 %v34
  %v358 = vunpack.c.h.b16 %v34
  %v359 = vunpack.c.l.b16 %v35
  %v360 = vunpack.c.l.b16 %v36
  %v361 = vunpack.c.h.b16 %v36
  %v362 = vunpack.c.l.b16 %v37
  %v363 = vunpack.c.h.b16 %v37
  %v364 = vunpack.c.l.b16 %v38
  %v365 = vunpack.c.h.b16 %v38
  %v366 = vunpack.c.l.b16 %v39
  %v367 = vunpack.c.h.b16 %v39
  %v368 = vunpack.c.l.b16 %v40
  %v369 = vunpack.c.l.b16 %v41
  %v370 = vunpack.c.h.b16 %v41
  %v371 = vunpack.c.l.b16 %v42
  %v372 = vunpack.c.h.b16 %v42
  %v373 = vunpack.c.l.b16 %v43
  %v374 = vunpack.c.h.b16 %v43
  %v375 = vunpack.c.l.b16 %v44
  %v376 = vunpack.c.h.b16 %v44
  %v377 = vunpack.c.l.b16 %v45
  %v378 = vunpack.c.l.b16 %v46
  %v379 = vunpack.c.h.b16 %v46
  %v380 = vunpack.c.l.b16 %v47
  %v381 = vunpack.c.h.b16 %v47
  %v382 = vunpack.c.l.b16 %v48
  %v383 = vunpack.c.h.b16 %v48
  %v384 = vunpack.c.l.b16 %v49
  %v385 = vunpack.c.h.b16 %v49
  %v386 = vunpack.c.l.b16 %v50
  %v387 = vunpack.c.l.b16 %v51
  %v388 = vunpack.c.h.b16 %v51
  %v389 = vunpack.c.l.b16 %v52
  %v390 = vunpack.c.h.b16 %v52
  %v391 = vunpack.c.l.b16 %v53
  %v392 = vunpack.c.h.b16 %v53
  %v393 = vunpack.c.l.b16 %v54
  %v394 = vunpack.c.h.b16 %v54
  %v395 = vunpack.c.l.b16 %v55
  %v396 = vunpack.c.l.b16 %v56
  %v397 = vunpack.c.h.b16 %v56
  %v398 = vunpack.c.l.b16 %v57
  %v399 = vunpack.c.h.b16 %v57
  %v400 = vunpack.c.l.b16 %v58
  %v401 = vunpack.c.h.b16 %v58
  %v402 = vunpack.c.l.b16 %v59
  %v403 = vunpack.c.h.b16 %v59
  %v404 = vunpack.c.l.b16 %v60
  %v405 = vunpack.c.l.b16 %v61
  %v406 = vunpack.c.h.b16 %v61
  %v407 = vunpack.c.l.b16 %v62
  %v408 = vunpack.c.h.b16 %v62
  %v409 = vunpack.c.l.b16 %v63
  %v410 = vunpack.c.h.b16 %v63
  %v411 = vunpack.c.l.b16 %v64
  %v412 = vunpack.c.h.b16 %v64
  %v413 = vunpack.c.l.b16 %v65
  %v414 = vunpack.c.l.b16 %v66
  %v415 = vunpack.c.h.b16 %v66
  %v416 = vunpack.c.l.b16 %v67
  %v417 = vunpack.c.h.b16 %v67
  %v418 = vunpack.c.l.b16 %v68
  %v419 = vunpack.c.h.b16 %v68
  %v420 = vunpack.c.l.b16 %v69
  %v421 = vunpack.c.h.b16 %v69
  %v422 = vunpack.c.l.b16 %v70
  %v423 = vunpack.c.l.b16 %v71
  %v424 = vunpack.c.h.b16 %v71
  %v425 = vunpack.c.l.b16 %v72
  %v426 = vunpack.c.h.b16 %v72
  %v427 = vunpack.c.l.b16 %v73
  %v428 = vunpack.c.h.b16 %v73
  %v429 = vunpack.c.l.b16 %v74
  %v430 = vunpack.c.h.b16 %v74
  %v431 = vunpack.c.l.b16 %v75
  %v432 = vunpack.c.l.b16 %v76
  %v433 = vunpack.c.h.b16 %v76
  %v434 = vunpack.c.l.b16 %v77
  %v435 = vunpack.c.h.b16 %v77
  %v436 = vunpack.c.l.b16 %v78
  %v437 = vunpack.c.h.b16 %v78
  %v438 = vunpack.c.l.b16 %v79
  %v439 = vunpack.c.h.b16 %v79
  %v440 = vunpack.c.l.b16 %v80
  %v441 = vunpack.c.l.b16 %v81
  %v442 = vunpack.c.h.b16 %v81
  %v443 = vunpack.c.l.b16 %v82
  %v444 = vunpack.c.h.b16 %v82
  %v445 = vunpack.c.l.b16 %v83
  %v446 = vunpack.c.h.b16 %v83
  %v447 = vunpack.c.l.b16 %v84
  %v448 = vunpack.c.h.b16 %v84
  %v449 = vunpack.c.l.b16 %v85
  %v450 = vunpack.c.l.b16 %v86
  %v451 = vunpack.c.h.b16 %v86
  %v452 = vunpack.c.l.b16 %v87
  %v453 = vunpack.c.h.b16 %v87
  %v454 = vunpack.c.l.b16 %v88
  %v455 = vunpack.c.h.b16 %v88
  %v456 = vunpack.c.l.b16 %v89
  %v457 = vunpack.c.h.b16 %v89
  %v458 = vunpack.c.l.b16 %v90
  %v459 = vpack.c.b16 %v324, %v315
  %v460 = vpack.c.b16 %v325, %v316
  %v461 = vpack.c.b16 %v326, %v317
  %v462 = vpack.c.b16 %v327, %v318
  %v463 = vpack.c.b16 %v328, %v319
  %v464 = vpack.c.b16 %v329, %v320
  %v465 = vpack.c.b16 %v330, %v321
  %v466 = vpack.c.b16 %v331, %v322
  %v467 = vpack.c.b16 %v332, %v323
  %v468 = vpack.c.b16 %v342, %v333
  %v469 = vpack.c.b16 %v343, %v334
  %v470 = vpack.c.b16 %v344, %v335
  %v471 = vpack.c.b16 %v345, %v336
  %v472 = vpack.c.b16 %v346, %v337
  %v473 = vpack.c.b16 %v347, %v338
  %v474 = vpack.c.b16 %v348, %v339
  %v475 = vpack.c.b16 %v349, %v340
  %v476 = vpack.c.b16 %v350, %v341
  %v477 = vpack.c.b16 %v360, %v351
  %v478 = vpack.c.b16 %v361, %v352
  %v479 = vpack.c.b16 %v362, %v353
  %v480 = vpack.c.b16 %v363, %v354
  %v481 = vpack.c.b16 %v364, %v355
  %v482 = vpack.c.b16 %v365, %v356
  %v483 = vpack.c.b16 %v366, %v357
  %v484 = vpack.c.b16 %v367, %v358
  %v485 = vpack.c.b16 %v368, %v359
  %v486 = vpack.c.b16 %v378, %v369
  %v487 = vpack.c.b16 %v379, %v370
  %v488 = vpack.c.b16 %v380, %v371
  %v489 = vpack.c.b16 %v381, %v372
  %v490 = vpack.c.b16 %v382, %v373
  %v491 = vpack.c.b16 %v383, %v374
  %v492 = vpack.c.b16 %v384, %v375
  %v493 = vpack.c.b16 %v385, %v376
  %v494 = vpack.c.b16 %v386, %v377
  %v495 = vpack.c.b16 %v396, %v387
  %v496 = vpack.c.b16 %v397, %v388
  %v497 = vpack.c.b16 %v398, %v389
  %v498 = vpack.c.b16 %v399, %v390
  %v499 = vpack.c.b16 %v400, %v391
  %v500 = vpack.c.b16 %v401, %v392
  %v501 = vpack.c.b16 %v402, %v393
  %v502 = vpack.c.b16 %v403, %v394
  %v503 = vpack.c.b16 %v404, %v395
  %v504 = vpack.c.b16 %v414, %v405
  %v505 = vpack.c.b16 %v415, %v406
  %v506 = vpack.c.b16 %v416, %v407
  %v507 = vpack.c.b16 %v417, %v408
  %v508 = vpack.c.b16 %v418, %v409
  %v509 = vpack.c.b16 %v419, %v410
  %v510 = vpack.c.b16 %v420, %v411
  %v511 = vpack.c.b16 %v421, %v412
  %v512 = vpack.c.b16 %v422, %v413
  %v513 = vpack.c.b16 %v432, %v423
  %v514 = vpack.c.b16 %v433, %v424
  %v515 = vpack.c.b16 %v434, %v425
  %v516 = vpack.c.b16 %v435, %v426
  %v517 = vpack.c.b16 %v436, %v427
  %v518 = vpack.c.b16 %v437, %v428
  %v519 = vpack.c.b16 %v438, %v429
  %v520 = vpack.c.b16 %v439, %v430
  %v521 = vpack.c.b16 %v440, %v431
  %v522 = vpack.c.b16 %v450, %v441
  %v523 = vpack.c.b16 %v451, %v442
  %v524 = vpack.c.b16 %v452, %v443
  %v525 = vpack.c.b16 %v453, %v444
  %v526 = vpack.c.b16 %v454, %v445
  %v527 = vpack.c.b16 %v455, %v446
  %v528 = vpack.c.b16 %v456, %v447
  %v529 = vpack.c.b16 %v457, %v448
  %v530 = vpack.c.b16 %v458, %v449
  %v747 = vunpack.c.l.b16 %v91
  %v748 = vunpack.c.l.b16 %v92
  %v749 = vunpack.c.l.b16 %v93
  %v750 = vunpack.c.l.b16 %v94
  %v751 = vunpack.c.l.b16 %v95
  %v752 = vunpack.c.l.b16 %v96
  %v753 = vunpack.c.l.b16 %v97
  %v754 = vunpack.c.l.b16 %v98
  %v755 = vunpack.c.l.b16 %v99
  %v756 = vunpack.c.l.b16 %v100
  %v757 = vunpack.c.l.b16 %v101
  %v758 = vunpack.c.l.b16 %v102
  %v759 = vunpack.c.l.b16 %v103
  %v760 = vunpack.c.l.b16 %v104
  %v761 = vunpack.c.l.b16 %v105
  %v762 = vunpack.c.l.b16 %v106
  %v763 = vunpack.c.l.b16 %v107
  %v764 = vunpack.c.l.b16 %v108
  %v765 = vunpack.c.l.b16 %v109
  %v766 = vunpack.c.l.b16 %v110
  %v767 = vunpack.c.l.b16 %v111
  %v768 = vunpack.c.l.b16 %v112
  %v769 = vunpack.c.l.b16 %v113
  %v770 = vunpack.c.l.b16 %v114
  %v771 = vunpack.c.l.b16 %v115
  %v772 = vunpack.c.l.b16 %v116
  %v773 = vunpack.c.l.b16 %v117
  %v774 = vunpack.c.l.b16 %v118
  %v775 = vunpack.c.l.b16 %v119
  %v776 = vunpack.c.l.b16 %v120
  %v777 = vunpack.c.l.b16 %v121
  %v778 = vunpack.c.l.b16 %v122
  %v779 = vunpack.c.l.b16 %v123
  %v780 = vunpack.c.l.b16 %v124
  %v781 = vunpack.c.l.b16 %v125
  %v782 = vunpack.c.l.b16 %v126
  %v783 = vunpack.c.l.b16 %v127
  %v784 = vunpack.c.l.b16 %v128
  %v785 = vunpack.c.l.b16 %v129
  %v786 = vunpack.c.l.b16 %v130
  %v787 = vunpack.c.l.b16 %v131
  %v788 = vunpack.c.l.b16 %v132
  %v789 = vunpack.c.l.b16 %v133
  %v790 = vunpack.c.l.b16 %v134
  %v791 = vunpack.c.l.b16 %v135
  %v792 = vunpack.c.l.b16 %v136
  %v793 = vunpack.c.l.b16 %v137
  %v794 = vunpack.c.l.b16 %v138
  %v795 = vunpack.c.l.b16 %v139
  %v796 = vunpack.c.l.b16 %v140
  %v797 = vunpack.c.l.b16 %v141
  %v798 = vunpack.c.l.b16 %v142
  %v799 = vunpack.c.l.b16 %v143
  %v800 = vunpack.c.l.b16 %v144
  %v801 = vunpack.c.l.b16 %v145
  %v802 = vunpack.c.l.b16 %v146
  %v803 = vunpack.c.l.b16 %v147
  %v804 = vunpack.c.l.b16 %v148
  %v805 = vunpack.c.l.b16 %v149
  %v806 = vunpack.c.l.b16 %v150
  %v807 = vunpack.c.l.b16 %v151
  %v808 = vunpack.c.l.b16 %v152
  %v809 = vunpack.c.l.b16 %v153
  %v810 = vunpack.c.l.b16 %v154
  %v811 = vunpack.c.l.b16 %v155
  %v812 = vunpack.c.l.b16 %v156
  %v813 = vunpack.c.l.b16 %v157
  %v814 = vunpack.c.l.b16 %v158
  %v815 = vunpack.c.l.b16 %v159
  %v816 = vunpack.c.l.b16 %v160
  %v817 = vunpack.c.l.b16 %v161
  %v818 = vunpack.c.l.b16 %v162
  %v819 = vunpack.c.l.b16 %v163
  %v820 = vunpack.c.l.b16 %v164
  %v821 = vunpack.c.l.b16 %v165
  %v822 = vunpack.c.l.b16 %v166
  %v823 = vunpack.c.l.b16 %v167
  %v824 = vunpack.c.l.b16 %v168
  %v825 = vunpack.c.l.b16 %v169
  %v826 = vunpack.c.l.b16 %v170
  %v827 = vunpack.c.l.b16 %v171
  %v828 = vunpack.c.l.b16 %v172
  %v829 = vunpack.c.l.b16 %v173
  %v830 = vunpack.c.l.b16 %v174
  %v831 = vunpack.c.l.b16 %v175
  %v832 = vunpack.c.l.b16 %v176
  %v833 = vunpack.c.l.b16 %v177
  %v834 = vunpack.c.l.b16 %v178
  %v835 = vunpack.c.l.b16 %v179
  %v836 = vunpack.c.l.b16 %v180
  %v837 = vunpack.c.l.b16 %v181
  %v838 = vunpack.c.l.b16 %v182
  %v839 = vunpack.c.l.b16 %v183
  %v840 = vunpack.c.l.b16 %v184
  %v841 = vunpack.c.l.b16 %v185
  %v842 = vunpack.c.l.b16 %v186
  %v843 = vunpack.c.l.b16 %v187
  %v844 = vunpack.c.l.b16 %v188
  %v845 = vunpack.c.l.b16 %v189
  %v846 = vunpack.c.l.b16 %v190
  %v847 = vunpack.c.l.b16 %v191
  %v848 = vunpack.c.l.b16 %v192
  %v849 = vunpack.c.l.b16 %v193
  %v850 = vunpack.c.l.b16 %v194
  %v851 = vunpack.c.l.b16 %v195
  %v852 = vunpack.c.l.b16 %v196
  %v853 = vunpack.c.l.b16 %v197
  %v854 = vunpack.c.l.b16 %v198
  %v855 = vunpack.c.l.b16 %v199
  %v856 = vunpack.c.l.b16 %v200
  %v857 = vunpack.c.l.b16 %v201
  %v858 = vunpack.c.l.b16 %v202
  %v859 = vunpack.c.l.b16 %v203
  %v860 = vunpack.c.l.b16 %v204
  %v861 = vunpack.c.l.b16 %v205
  %v862 = vunpack.c.l.b16 %v206
  %v863 = vunpack.c.l.b16 %v207
  %v864 = vunpack.c.l.b16 %v208
  %v865 = vunpack.c.l.b16 %v209
  %v866 = vunpack.c.l.b16 %v210
  %v867 = vunpack.c.l.b16 %v211
  %v868 = vunpack.c.l.b16 %v212
  %v869 = vunpack.c.l.b16 %v213
  %v870 = vunpack.c.l.b16 %v214
  %v871 = vunpack.c.l.b16 %v215
  %v872 = vunpack.c.l.b16 %v216
  %v873 = vunpack.c.l.b16 %v217
  %v874 = vunpack.c.l.b16 %v218
  %v875 = vunpack.c.l.b16 %v219
  %v876 = vunpack.c.l.b16 %v220
  %v877 = vunpack.c.l.b16 %v221
  %v878 = vunpack.c.l.b16 %v222
  %v879 = vunpack.c.l.b16 %v223
  %v880 = vunpack.c.l.b16 %v224
  %v881 = vunpack.c.l.b16 %v225
  %v882 = vunpack.c.l.b16 %v226
  %v883 = vunpack.c.l.b16 %v227
  %v884 = vunpack.c.l.b16 %v228
  %v885 = vunpack.c.l.b16 %v229
  %v886 = vunpack.c.l.b16 %v230
  %v887 = vunpack.c.l.b16 %v231
  %v888 = vunpack.c.l.b16 %v232
  %v889 = vunpack.c.l.b16 %v233
  %v890 = vunpack.c.l.b16 %v234
  %v891 = vpack.c.b16 %v748, %v747
  %v892 = vpack.c.b16 %v750, %v749
  %v893 = vpack.c.b16 %v752, %v751
  %v894 = vpack.c.b16 %v754, %v753
  %v895 = vpack.c.b16 %v756, %v755
  %v896 = vpack.c.b16 %v758, %v757
  %v897 = vpack.c.b16 %v760, %v759
  %v898 = vpack.c.b16 %v762, %v761
  %v899 = vpack.c.b16 %v764, %v763
  %v900 = vpack.c.b16 %v766, %v765
  %v901 = vpack.c.b16 %v768, %v767
  %v902 = vpack.c.b16 %v770, %v769
  %v903 = vpack.c.b16 %v772, %v771
  %v904 = vpack.c.b16 %v774, %v773
  %v905 = vpack.c.b16 %v776, %v775
  %v906 = vpack.c.b16 %v778, %v777
  %v907 = vpack.c.b16 %v780, %v779
  %v908 = vpack.c.b16 %v782, %v781
  %v909 = vpack.c.b16 %v784, %v783
  %v910 = vpack.c.b16 %v786, %v785
  %v911 = vpack.c.b16 %v788, %v787
  %v912 = vpack.c.b16 %v790, %v789
  %v913 = vpack.c.b16 %v792, %v791
  %v914 = vpack.c.b16 %v794, %v793
  %v915 = vpack.c.b16 %v796, %v795
  %v916 = vpack.c.b16 %v798, %v797
  %v917 = vpack.c.b16 %v800, %v799
  %v918 = vpack.c.b16 %v802, %v801
  %v919 = vpack.c.b16 %v804, %v803
  %v920 = vpack.c.b16 %v806, %v805
  %v921 = vpack.c.b16 %v808, %v807
  %v922 = vpack.c.b16 %v810, %v809
  %v923 = vpack.c.b16 %v812, %v811
  %v924 = vpack.c.b16 %v814, %v813
  %v925 = vpack.c.b16 %v816, %v815
  %v926 = vpack.c.b16 %v818, %v817
  %v927 = vpack.c.b16 %v820, %v819
  %v928 = vpack.c.b16 %v822, %v821
  %v929 = vpack.c.b16 %v824, %v823
  %v930 = vpack.c.b16 %v826, %v825
  %v931 = vpack.c.b16 %v828, %v827
  %v932 = vpack.c.b16 %v830, %v829
  %v933 = vpack.c.b16 %v832, %v831
  %v934 = vpack.c.b16 %v834, %v833
  %v935 = vpack.c.b16 %v836, %v835
  %v936 = vpack.c.b16 %v838, %v837
  %v937 = vpack.c.b16 %v840, %v839
  %v938 = vpack.c.b16 %v842, %v841
  %v939 = vpack.c.b16 %v844, %v843
  %v940 = vpack.c.b16 %v846, %v845
  %v941 = vpack.c.b16 %v848, %v847
  %v942 = vpack.c.b16 %v850, %v849
  %v943 = vpack.c.b16 %v852, %v851
  %v944 = vpack.c.b16 %v854, %v853
  %v945 = vpack.c.b16 %v856, %v855
  %v946 = vpack.c.b16 %v858, %v857
  %v947 = vpack.c.b16 %v860, %v859
  %v948 = vpack.c.b16 %v862, %v861
  %v949 = vpack.c.b16 %v864, %v863
  %v950 = vpack.c.b16 %v866, %v865
  %v951 = vpack.c.b16 %v868, %v867
  %v952 = vpack.c.b16 %v870, %v869
  %v953 = vpack.c.b16 %v872, %v871
  %v954 = vpack.c.b16 %v874, %v873
  %v955 = vpack.c.b16 %v876, %v875
  %v956 = vpack.c.b16 %v878, %v877
  %v957 = vpack.c.b16 %v880, %v879
  %v958 = vpack.c.b16 %v882, %v881
  %v959 = vpack.c.b16 %v884, %v883
  %v960 = vpack.c.b16 %v886, %v885
  %v961 = vpack.c.b16 %v888, %v887
  %v962 = vpack.c.b16 %v890, %v889
  %1035 = vmatpush.bf16.msra.mxu0 %v898
  %1036 = vmatpush.bf16.msra.mxu0 %v897
  %1037 = vmatpush.bf16.msra.mxu0 %v896
  %1038 = vmatpush.bf16.msra.mxu0 %v895
  %1039 = vmatpush.bf16.msra.mxu0 %v894
  %1040 = vmatpush.bf16.msra.mxu0 %v893
  %1041 = vmatpush.bf16.msra.mxu0 %v892
  %1042 = vmatpush.bf16.msra.mxu0 %v891
  %1043 = vmatmul.bf16.gmra.mxu0 %v459
  %v1044 = vpop.f32.mrf.mxu0
  %v1045 = vadd.f32 0.0, %v1044
  %v1046 = vpop.f32.mrf.mxu0
  %v1047 = vadd.f32 0.0, %v1046
  %1048 = vmatmul.bf16.gmra.mxu0 %v468
  %v1049 = vpop.f32.mrf.mxu0
  %v1050 = vadd.f32 0.0, %v1049
  %v1051 = vpop.f32.mrf.mxu0
  %v1052 = vadd.f32 0.0, %v1051
  %1053 = vmatmul.bf16.gmra.mxu0 %v477
  %v1054 = vpop.f32.mrf.mxu0
  %v1055 = vadd.f32 0.0, %v1054
  %v1056 = vpop.f32.mrf.mxu0
  %v1057 = vadd.f32 0.0, %v1056
  %1058 = vmatmul.bf16.gmra.mxu0 %v486
  %v1059 = vpop.f32.mrf.mxu0
  %v1060 = vadd.f32 0.0, %v1059
  %v1061 = vpop.f32.mrf.mxu0
  %v1062 = vadd.f32 0.0, %v1061
  %1063 = vmatmul.bf16.gmra.mxu0 %v495
  %v1064 = vpop.f32.mrf.mxu0
  %v1065 = vadd.f32 0.0, %v1064
  %v1066 = vpop.f32.mrf.mxu0
  %v1067 = vadd.f32 0.0, %v1066
  %1068 = vmatmul.bf16.gmra.mxu0 %v504
  %v1069 = vpop.f32.mrf.mxu0
  %v1070 = vadd.f32 0.0, %v1069
  %v1071 = vpop.f32.mrf.mxu0
  %v1072 = vadd.f32 0.0, %v1071
  %1073 = vmatmul.bf16.gmra.mxu0 %v513
  %v1074 = vpop.f32.mrf.mxu0
  %v1075 = vadd.f32 0.0, %v1074
  %v1076 = vpop.f32.mrf.mxu0
  %v1077 = vadd.f32 0.0, %v1076
  %1078 = vmatmul.bf16.gmra.mxu0 %v522
  %v1079 = vpop.f32.mrf.mxu0
  %v1080 = vadd.f32 0.0, %v1079
  %v1081 = vpop.f32.mrf.mxu0
  %v1082 = vadd.f32 0.0, %v1081
  %1083 = vdwg.mxu0
  %1084 = vmatpush.bf16.msra.mxu0 %v906
  %1085 = vmatpush.bf16.msra.mxu0 %v905
  %1086 = vmatpush.bf16.msra.mxu0 %v904
  %1087 = vmatpush.bf16.msra.mxu0 %v903
  %1088 = vmatpush.bf16.msra.mxu0 %v902
  %1089 = vmatpush.bf16.msra.mxu0 %v901
  %1090 = vmatpush.bf16.msra.mxu0 %v900
  %1091 = vmatpush.bf16.msra.mxu0 %v899
  %1092 = vmatmul.bf16.gmra.mxu0 %v460
  %v1093 = vpop.f32.mrf.mxu0
  %v1094 = vadd.f32 %v1045, %v1093
  %v1095 = vpop.f32.mrf.mxu0
  %v1096 = vadd.f32 %v1047, %v1095
  %1097 = vmatmul.bf16.gmra.mxu0 %v469
  %v1098 = vpop.f32.mrf.mxu0
  %v1099 = vadd.f32 %v1050, %v1098
  %v1100 = vpop.f32.mrf.mxu0
  %v1101 = vadd.f32 %v1052, %v1100
  %1102 = vmatmul.bf16.gmra.mxu0 %v478
  %v1103 = vpop.f32.mrf.mxu0
  %v1104 = vadd.f32 %v1055, %v1103
  %v1105 = vpop.f32.mrf.mxu0
  %v1106 = vadd.f32 %v1057, %v1105
  %1107 = vmatmul.bf16.gmra.mxu0 %v487
  %v1108 = vpop.f32.mrf.mxu0
  %v1109 = vadd.f32 %v1060, %v1108
  %v1110 = vpop.f32.mrf.mxu0
  %v1111 = vadd.f32 %v1062, %v1110
  %1112 = vmatmul.bf16.gmra.mxu0 %v496
  %v1113 = vpop.f32.mrf.mxu0
  %v1114 = vadd.f32 %v1065, %v1113
  %v1115 = vpop.f32.mrf.mxu0
  %v1116 = vadd.f32 %v1067, %v1115
  %1117 = vmatmul.bf16.gmra.mxu0 %v505
  %v1118 = vpop.f32.mrf.mxu0
  %v1119 = vadd.f32 %v1070, %v1118
  %v1120 = vpop.f32.mrf.mxu0
  %v1121 = vadd.f32 %v1072, %v1120
  %1122 = vmatmul.bf16.gmra.mxu0 %v514
  %v1123 = vpop.f32.mrf.mxu0
  %v1124 = vadd.f32 %v1075, %v1123
  %v1125 = vpop.f32.mrf.mxu0
  %v1126 = vadd.f32 %v1077, %v1125
  %1127 = vmatmul.bf16.gmra.mxu0 %v523
  %v1128 = vpop.f32.mrf.mxu0
  %v1129 = vadd.f32 %v1080, %v1128
  %v1130 = vpop.f32.mrf.mxu0
  %v1131 = vadd.f32 %v1082, %v1130
  %1132 = vdwg.mxu0
  %1133 = vmatpush.bf16.msra.mxu0 %v914
  %1134 = vmatpush.bf16.msra.mxu0 %v913
  %1135 = vmatpush.bf16.msra.mxu0 %v912
  %1136 = vmatpush.bf16.msra.mxu0 %v911
  %1137 = vmatpush.bf16.msra.mxu0 %v910
  %1138 = vmatpush.bf16.msra.mxu0 %v909
  %1139 = vmatpush.bf16.msra.mxu0 %v908
  %1140 = vmatpush.bf16.msra.mxu0 %v907
  %1141 = vmatmul.bf16.gmra.mxu0 %v461
  %v1142 = vpop.f32.mrf.mxu0
  %v1143 = vadd.f32 %v1094, %v1142
  %v1144 = vpop.f32.mrf.mxu0
  %v1145 = vadd.f32 %v1096, %v1144
  %1146 = vmatmul.bf16.gmra.mxu0 %v470
  %v1147 = vpop.f32.mrf.mxu0
  %v1148 = vadd.f32 %v1099, %v1147
  %v1149 = vpop.f32.mrf.mxu0
  %v1150 = vadd.f32 %v1101, %v1149
  %1151 = vmatmul.bf16.gmra.mxu0 %v479
  %v1152 = vpop.f32.mrf.mxu0
  %v1153 = vadd.f32 %v1104, %v1152
  %v1154 = vpop.f32.mrf.mxu0
  %v1155 = vadd.f32 %v1106, %v1154
  %1156 = vmatmul.bf16.gmra.mxu0 %v488
  %v1157 = vpop.f32.mrf.mxu0
  %v1158 = vadd.f32 %v1109, %v1157
  %v1159 = vpop.f32.mrf.mxu0
  %v1160 = vadd.f32 %v1111, %v1159
  %1161 = vmatmul.bf16.gmra.mxu0 %v497
  %v1162 = vpop.f32.mrf.mxu0
  %v1163 = vadd.f32 %v1114, %v1162
  %v1164 = vpop.f32.mrf.mxu0
  %v1165 = vadd.f32 %v1116, %v1164
  %1166 = vmatmul.bf16.gmra.mxu0 %v506
  %v1167 = vpop.f32.mrf.mxu0
  %v1168 = vadd.f32 %v1119, %v1167
  %v1169 = vpop.f32.mrf.mxu0
  %v1170 = vadd.f32 %v1121, %v1169
  %1171 = vmatmul.bf16.gmra.mxu0 %v515
  %v1172 = vpop.f32.mrf.mxu0
  %v1173 = vadd.f32 %v1124, %v1172
  %v1174 = vpop.f32.mrf.mxu0
  %v1175 = vadd.f32 %v1126, %v1174
  %1176 = vmatmul.bf16.gmra.mxu0 %v524
  %v1177 = vpop.f32.mrf.mxu0
  %v1178 = vadd.f32 %v1129, %v1177
  %v1179 = vpop.f32.mrf.mxu0
  %v1180 = vadd.f32 %v1131, %v1179
  %1181 = vdwg.mxu0
  %1182 = vmatpush.bf16.msra.mxu0 %v922
  %1183 = vmatpush.bf16.msra.mxu0 %v921
  %1184 = vmatpush.bf16.msra.mxu0 %v920
  %1185 = vmatpush.bf16.msra.mxu0 %v919
  %1186 = vmatpush.bf16.msra.mxu0 %v918
  %1187 = vmatpush.bf16.msra.mxu0 %v917
  %1188 = vmatpush.bf16.msra.mxu0 %v916
  %1189 = vmatpush.bf16.msra.mxu0 %v915
  %1190 = vmatmul.bf16.gmra.mxu0 %v462
  %v1191 = vpop.f32.mrf.mxu0
  %v1192 = vadd.f32 %v1143, %v1191
  %v1193 = vpop.f32.mrf.mxu0
  %v1194 = vadd.f32 %v1145, %v1193
  %1195 = vmatmul.bf16.gmra.mxu0 %v471
  %v1196 = vpop.f32.mrf.mxu0
  %v1197 = vadd.f32 %v1148, %v1196
  %v1198 = vpop.f32.mrf.mxu0
  %v1199 = vadd.f32 %v1150, %v1198
  %1200 = vmatmul.bf16.gmra.mxu0 %v480
  %v1201 = vpop.f32.mrf.mxu0
  %v1202 = vadd.f32 %v1153, %v1201
  %v1203 = vpop.f32.mrf.mxu0
  %v1204 = vadd.f32 %v1155, %v1203
  %1205 = vmatmul.bf16.gmra.mxu0 %v489
  %v1206 = vpop.f32.mrf.mxu0
  %v1207 = vadd.f32 %v1158, %v1206
  %v1208 = vpop.f32.mrf.mxu0
  %v1209 = vadd.f32 %v1160, %v1208
  %1210 = vmatmul.bf16.gmra.mxu0 %v498
  %v1211 = vpop.f32.mrf.mxu0
  %v1212 = vadd.f32 %v1163, %v1211
  %v1213 = vpop.f32.mrf.mxu0
  %v1214 = vadd.f32 %v1165, %v1213
  %1215 = vmatmul.bf16.gmra.mxu0 %v507
  %v1216 = vpop.f32.mrf.mxu0
  %v1217 = vadd.f32 %v1168, %v1216
  %v1218 = vpop.f32.mrf.mxu0
  %v1219 = vadd.f32 %v1170, %v1218
  %1220 = vmatmul.bf16.gmra.mxu0 %v516
  %v1221 = vpop.f32.mrf.mxu0
  %v1222 = vadd.f32 %v1173, %v1221
  %v1223 = vpop.f32.mrf.mxu0
  %v1224 = vadd.f32 %v1175, %v1223
  %1225 = vmatmul.bf16.gmra.mxu0 %v525
  %v1226 = vpop.f32.mrf.mxu0
  %v1227 = vadd.f32 %v1178, %v1226
  %v1228 = vpop.f32.mrf.mxu0
  %v1229 = vadd.f32 %v1180, %v1228
  %1230 = vdwg.mxu0
  %1231 = vmatpush.bf16.msra.mxu0 %v930
  %1232 = vmatpush.bf16.msra.mxu0 %v929
  %1233 = vmatpush.bf16.msra.mxu0 %v928
  %1234 = vmatpush.bf16.msra.mxu0 %v927
  %1235 = vmatpush.bf16.msra.mxu0 %v926
  %1236 = vmatpush.bf16.msra.mxu0 %v925
  %1237 = vmatpush.bf16.msra.mxu0 %v924
  %1238 = vmatpush.bf16.msra.mxu0 %v923
  %1239 = vmatmul.bf16.gmra.mxu0 %v463
  %v1240 = vpop.f32.mrf.mxu0
  %v1241 = vadd.f32 %v1192, %v1240
  %v1242 = vpop.f32.mrf.mxu0
  %v1243 = vadd.f32 %v1194, %v1242
  %1244 = vmatmul.bf16.gmra.mxu0 %v472
  %v1245 = vpop.f32.mrf.mxu0
  %v1246 = vadd.f32 %v1197, %v1245
  %v1247 = vpop.f32.mrf.mxu0
  %v1248 = vadd.f32 %v1199, %v1247
  %1249 = vmatmul.bf16.gmra.mxu0 %v481
  %v1250 = vpop.f32.mrf.mxu0
  %v1251 = vadd.f32 %v1202, %v1250
  %v1252 = vpop.f32.mrf.mxu0
  %v1253 = vadd.f32 %v1204, %v1252
  %1254 = vmatmul.bf16.gmra.mxu0 %v490
  %v1255 = vpop.f32.mrf.mxu0
  %v1256 = vadd.f32 %v1207, %v1255
  %v1257 = vpop.f32.mrf.mxu0
  %v1258 = vadd.f32 %v1209, %v1257
  %1259 = vmatmul.bf16.gmra.mxu0 %v499
  %v1260 = vpop.f32.mrf.mxu0
  %v1261 = vadd.f32 %v1212, %v1260
  %v1262 = vpop.f32.mrf.mxu0
  %v1263 = vadd.f32 %v1214, %v1262
  %1264 = vmatmul.bf16.gmra.mxu0 %v508
  %v1265 = vpop.f32.mrf.mxu0
  %v1266 = vadd.f32 %v1217, %v1265
  %v1267 = vpop.f32.mrf.mxu0
  %v1268 = vadd.f32 %v1219, %v1267
  %1269 = vmatmul.bf16.gmra.mxu0 %v517
  %v1270 = vpop.f32.mrf.mxu0
  %v1271 = vadd.f32 %v1222, %v1270
  %v1272 = vpop.f32.mrf.mxu0
  %v1273 = vadd.f32 %v1224, %v1272
  %1274 = vmatmul.bf16.gmra.mxu0 %v526
  %v1275 = vpop.f32.mrf.mxu0
  %v1276 = vadd.f32 %v1227, %v1275
  %v1277 = vpop.f32.mrf.mxu0
  %v1278 = vadd.f32 %v1229, %v1277
  %1279 = vdwg.mxu0
  %1280 = vmatpush.bf16.msra.mxu0 %v938
  %1281 = vmatpush.bf16.msra.mxu0 %v937
  %1282 = vmatpush.bf16.msra.mxu0 %v936
  %1283 = vmatpush.bf16.msra.mxu0 %v935
  %1284 = vmatpush.bf16.msra.mxu0 %v934
  %1285 = vmatpush.bf16.msra.mxu0 %v933
  %1286 = vmatpush.bf16.msra.mxu0 %v932
  %1287 = vmatpush.bf16.msra.mxu0 %v931
  %1288 = vmatmul.bf16.gmra.mxu0 %v464
  %v1289 = vpop.f32.mrf.mxu0
  %v1290 = vadd.f32 %v1241, %v1289
  %v1291 = vpop.f32.mrf.mxu0
  %v1292 = vadd.f32 %v1243, %v1291
  %1293 = vmatmul.bf16.gmra.mxu0 %v473
  %v1294 = vpop.f32.mrf.mxu0
  %v1295 = vadd.f32 %v1246, %v1294
  %v1296 = vpop.f32.mrf.mxu0
  %v1297 = vadd.f32 %v1248, %v1296
  %1298 = vmatmul.bf16.gmra.mxu0 %v482
  %v1299 = vpop.f32.mrf.mxu0
  %v1300 = vadd.f32 %v1251, %v1299
  %v1301 = vpop.f32.mrf.mxu0
  %v1302 = vadd.f32 %v1253, %v1301
  %1303 = vmatmul.bf16.gmra.mxu0 %v491
  %v1304 = vpop.f32.mrf.mxu0
  %v1305 = vadd.f32 %v1256, %v1304
  %v1306 = vpop.f32.mrf.mxu0
  %v1307 = vadd.f32 %v1258, %v1306
  %1308 = vmatmul.bf16.gmra.mxu0 %v500
  %v1309 = vpop.f32.mrf.mxu0
  %v1310 = vadd.f32 %v1261, %v1309
  %v1311 = vpop.f32.mrf.mxu0
  %v1312 = vadd.f32 %v1263, %v1311
  %1313 = vmatmul.bf16.gmra.mxu0 %v509
  %v1314 = vpop.f32.mrf.mxu0
  %v1315 = vadd.f32 %v1266, %v1314
  %v1316 = vpop.f32.mrf.mxu0
  %v1317 = vadd.f32 %v1268, %v1316
  %1318 = vmatmul.bf16.gmra.mxu0 %v518
  %v1319 = vpop.f32.mrf.mxu0
  %v1320 = vadd.f32 %v1271, %v1319
  %v1321 = vpop.f32.mrf.mxu0
  %v1322 = vadd.f32 %v1273, %v1321
  %1323 = vmatmul.bf16.gmra.mxu0 %v527
  %v1324 = vpop.f32.mrf.mxu0
  %v1325 = vadd.f32 %v1276, %v1324
  %v1326 = vpop.f32.mrf.mxu0
  %v1327 = vadd.f32 %v1278, %v1326
  %1328 = vdwg.mxu0
  %1329 = vmatpush.bf16.msra.mxu0 %v946
  %1330 = vmatpush.bf16.msra.mxu0 %v945
  %1331 = vmatpush.bf16.msra.mxu0 %v944
  %1332 = vmatpush.bf16.msra.mxu0 %v943
  %1333 = vmatpush.bf16.msra.mxu0 %v942
  %1334 = vmatpush.bf16.msra.mxu0 %v941
  %1335 = vmatpush.bf16.msra.mxu0 %v940
  %1336 = vmatpush.bf16.msra.mxu0 %v939
  %1337 = vmatmul.bf16.gmra.mxu0 %v465
  %v1338 = vpop.f32.mrf.mxu0
  %v1339 = vadd.f32 %v1290, %v1338
  %v1340 = vpop.f32.mrf.mxu0
  %v1341 = vadd.f32 %v1292, %v1340
  %1342 = vmatmul.bf16.gmra.mxu0 %v474
  %v1343 = vpop.f32.mrf.mxu0
  %v1344 = vadd.f32 %v1295, %v1343
  %v1345 = vpop.f32.mrf.mxu0
  %v1346 = vadd.f32 %v1297, %v1345
  %1347 = vmatmul.bf16.gmra.mxu0 %v483
  %v1348 = vpop.f32.mrf.mxu0
  %v1349 = vadd.f32 %v1300, %v1348
  %v1350 = vpop.f32.mrf.mxu0
  %v1351 = vadd.f32 %v1302, %v1350
  %1352 = vmatmul.bf16.gmra.mxu0 %v492
  %v1353 = vpop.f32.mrf.mxu0
  %v1354 = vadd.f32 %v1305, %v1353
  %v1355 = vpop.f32.mrf.mxu0
  %v1356 = vadd.f32 %v1307, %v1355
  %1357 = vmatmul.bf16.gmra.mxu0 %v501
  %v1358 = vpop.f32.mrf.mxu0
  %v1359 = vadd.f32 %v1310, %v1358
  %v1360 = vpop.f32.mrf.mxu0
  %v1361 = vadd.f32 %v1312, %v1360
  %1362 = vmatmul.bf16.gmra.mxu0 %v510
  %v1363 = vpop.f32.mrf.mxu0
  %v1364 = vadd.f32 %v1315, %v1363
  %v1365 = vpop.f32.mrf.mxu0
  %v1366 = vadd.f32 %v1317, %v1365
  %1367 = vmatmul.bf16.gmra.mxu0 %v519
  %v1368 = vpop.f32.mrf.mxu0
  %v1369 = vadd.f32 %v1320, %v1368
  %v1370 = vpop.f32.mrf.mxu0
  %v1371 = vadd.f32 %v1322, %v1370
  %1372 = vmatmul.bf16.gmra.mxu0 %v528
  %v1373 = vpop.f32.mrf.mxu0
  %v1374 = vadd.f32 %v1325, %v1373
  %v1375 = vpop.f32.mrf.mxu0
  %v1376 = vadd.f32 %v1327, %v1375
  %1377 = vdwg.mxu0
  %1378 = vmatpush.bf16.msra.mxu0 %v954
  %1379 = vmatpush.bf16.msra.mxu0 %v953
  %1380 = vmatpush.bf16.msra.mxu0 %v952
  %1381 = vmatpush.bf16.msra.mxu0 %v951
  %1382 = vmatpush.bf16.msra.mxu0 %v950
  %1383 = vmatpush.bf16.msra.mxu0 %v949
  %1384 = vmatpush.bf16.msra.mxu0 %v948
  %1385 = vmatpush.bf16.msra.mxu0 %v947
  %1386 = vmatmul.bf16.gmra.mxu0 %v466
  %v1387 = vpop.f32.mrf.mxu0
  %v1388 = vadd.f32 %v1339, %v1387
  %v1389 = vpop.f32.mrf.mxu0
  %v1390 = vadd.f32 %v1341, %v1389
  %1391 = vmatmul.bf16.gmra.mxu0 %v475
  %v1392 = vpop.f32.mrf.mxu0
  %v1393 = vadd.f32 %v1344, %v1392
  %v1394 = vpop.f32.mrf.mxu0
  %v1395 = vadd.f32 %v1346, %v1394
  %1396 = vmatmul.bf16.gmra.mxu0 %v484
  %v1397 = vpop.f32.mrf.mxu0
  %v1398 = vadd.f32 %v1349, %v1397
  %v1399 = vpop.f32.mrf.mxu0
  %v1400 = vadd.f32 %v1351, %v1399
  %1401 = vmatmul.bf16.gmra.mxu0 %v493
  %v1402 = vpop.f32.mrf.mxu0
  %v1403 = vadd.f32 %v1354, %v1402
  %v1404 = vpop.f32.mrf.mxu0
  %v1405 = vadd.f32 %v1356, %v1404
  %1406 = vmatmul.bf16.gmra.mxu0 %v502
  %v1407 = vpop.f32.mrf.mxu0
  %v1408 = vadd.f32 %v1359, %v1407
  %v1409 = vpop.f32.mrf.mxu0
  %v1410 = vadd.f32 %v1361, %v1409
  %1411 = vmatmul.bf16.gmra.mxu0 %v511
  %v1412 = vpop.f32.mrf.mxu0
  %v1413 = vadd.f32 %v1364, %v1412
  %v1414 = vpop.f32.mrf.mxu0
  %v1415 = vadd.f32 %v1366, %v1414
  %1416 = vmatmul.bf16.gmra.mxu0 %v520
  %v1417 = vpop.f32.mrf.mxu0
  %v1418 = vadd.f32 %v1369, %v1417
  %v1419 = vpop.f32.mrf.mxu0
  %v1420 = vadd.f32 %v1371, %v1419
  %1421 = vmatmul.bf16.gmra.mxu0 %v529
  %v1422 = vpop.f32.mrf.mxu0
  %v1423 = vadd.f32 %v1374, %v1422
  %v1424 = vpop.f32.mrf.mxu0
  %v1425 = vadd.f32 %v1376, %v1424
  %1426 = vdwg.mxu0
  %1427 = vmatpush.bf16.msra.mxu0 %v962
  %1428 = vmatpush.bf16.msra.mxu0 %v961
  %1429 = vmatpush.bf16.msra.mxu0 %v960
  %1430 = vmatpush.bf16.msra.mxu0 %v959
  %1431 = vmatpush.bf16.msra.mxu0 %v958
  %1432 = vmatpush.bf16.msra.mxu0 %v957
  %1433 = vmatpush.bf16.msra.mxu0 %v956
  %1434 = vmatpush.bf16.msra.mxu0 %v955
  %1435 = vmatmul.bf16.gmra.mxu0 %v467
  %v1436 = vpop.f32.mrf.mxu0
  %v1437 = vadd.f32 %v1388, %v1436
  %v1438 = vpop.f32.mrf.mxu0
  %v1439 = vadd.f32 %v1390, %v1438
  %1440 = vmatmul.bf16.gmra.mxu0 %v476
  %v1441 = vpop.f32.mrf.mxu0
  %v1442 = vadd.f32 %v1393, %v1441
  %v1443 = vpop.f32.mrf.mxu0
  %v1444 = vadd.f32 %v1395, %v1443
  %1445 = vmatmul.bf16.gmra.mxu0 %v485
  %v1446 = vpop.f32.mrf.mxu0
  %v1447 = vadd.f32 %v1398, %v1446
  %v1448 = vpop.f32.mrf.mxu0
  %v1449 = vadd.f32 %v1400, %v1448
  %1450 = vmatmul.bf16.gmra.mxu0 %v494
  %v1451 = vpop.f32.mrf.mxu0
  %v1452 = vadd.f32 %v1403, %v1451
  %v1453 = vpop.f32.mrf.mxu0
  %v1454 = vadd.f32 %v1405, %v1453
  %1455 = vmatmul.bf16.gmra.mxu0 %v503
  %v1456 = vpop.f32.mrf.mxu0
  %v1457 = vadd.f32 %v1408, %v1456
  %v1458 = vpop.f32.mrf.mxu0
  %v1459 = vadd.f32 %v1410, %v1458
  %1460 = vmatmul.bf16.gmra.mxu0 %v512
  %v1461 = vpop.f32.mrf.mxu0
  %v1462 = vadd.f32 %v1413, %v1461
  %v1463 = vpop.f32.mrf.mxu0
  %v1464 = vadd.f32 %v1415, %v1463
  %1465 = vmatmul.bf16.gmra.mxu0 %v521
  %v1466 = vpop.f32.mrf.mxu0
  %v1467 = vadd.f32 %v1418, %v1466
  %v1468 = vpop.f32.mrf.mxu0
  %v1469 = vadd.f32 %v1420, %v1468
  %1470 = vmatmul.bf16.gmra.mxu0 %v530
  %v1471 = vpop.f32.mrf.mxu0
  %v1472 = vadd.f32 %v1423, %v1471
  %v1473 = vpop.f32.mrf.mxu0
  %v1474 = vadd.f32 %v1425, %v1473
  %1475 = vdwg.mxu0
  %v1476 = vadd.f32 %v1437, %v1439
  %v1477 = vadd.f32 %v1476, %v1442
  %v1478 = vadd.f32 %v1477, %v1444
  %v1479 = vadd.f32 %v1478, %v1447
  %v1480 = vadd.f32 %v1479, %v1449
  %v1481 = vadd.f32 %v1480, %v1452
  %v1482 = vadd.f32 %v1481, %v1454
  %v1483 = vadd.f32 %v1482, %v1457
  %v1484 = vadd.f32 %v1483, %v1459
  %v1485 = vadd.f32 %v1484, %v1462
  %v1486 = vadd.f32 %v1485, %v1464
  %v1487 = vadd.f32 %v1486, %v1467
  %v1488 = vadd.f32 %v1487, %v1469
  %v1489 = vadd.f32 %v1488, %v1472
  %v1490 = vadd.f32 %v1489, %v1474
  %v1491 = vrot.slane %v1490, 4
  %v1492 = vadd.f32 %v1490, %v1491
  %v1493 = vrot.slane %v1492, 2
  %v1494 = vadd.f32 %v1492, %v1493
  %v1495 = vrot.slane %v1494, 1
  %v1496 = vadd.f32 %v1494, %v1495
  %v1497 = vmul.f32 %v1496, 0.0078125
  %v1498 = vmul.f32 %v1437, %v1437
  %v1499 = vmul.f32 %v1439, %v1439
  %v1500 = vmul.f32 %v1442, %v1442
  %v1501 = vmul.f32 %v1444, %v1444
  %v1502 = vmul.f32 %v1447, %v1447
  %v1503 = vmul.f32 %v1449, %v1449
  %v1504 = vmul.f32 %v1452, %v1452
  %v1505 = vmul.f32 %v1454, %v1454
  %v1506 = vmul.f32 %v1457, %v1457
  %v1507 = vmul.f32 %v1459, %v1459
  %v1508 = vmul.f32 %v1462, %v1462
  %v1509 = vmul.f32 %v1464, %v1464
  %v1510 = vmul.f32 %v1467, %v1467
  %v1511 = vmul.f32 %v1469, %v1469
  %v1512 = vmul.f32 %v1472, %v1472
  %v1513 = vmul.f32 %v1474, %v1474
  %v1514 = vadd.f32 %v1498, %v1499
  %v1515 = vadd.f32 %v1514, %v1500
  %v1516 = vadd.f32 %v1515, %v1501
  %v1517 = vadd.f32 %v1516, %v1502
  %v1518 = vadd.f32 %v1517, %v1503
  %v1519 = vadd.f32 %v1518, %v1504
  %v1520 = vadd.f32 %v1519, %v1505
  %v1521 = vadd.f32 %v1520, %v1506
  %v1522 = vadd.f32 %v1521, %v1507
  %v1523 = vadd.f32 %v1522, %v1508
  %v1524 = vadd.f32 %v1523, %v1509
  %v1525 = vadd.f32 %v1524, %v1510
  %v1526 = vadd.f32 %v1525, %v1511
  %v1527 = vadd.f32 %v1526, %v1512
  %v1528 = vadd.f32 %v1527, %v1513
  %v1529 = vrot.slane %v1528, 4
  %v1530 = vadd.f32 %v1528, %v1529
  %v1531 = vrot.slane %v1530, 2
  %v1532 = vadd.f32 %v1530, %v1531
  %v1533 = vrot.slane %v1532, 1
  %v1534 = vadd.f32 %v1532, %v1533
  %v1535 = vmul.f32 %v1534, 0.0078125
  %v1536 = vmul.f32 %v1497, %v1497
  %v1537 = vsub.f32 %v1535, %v1536
  %v1538 = vmax.f32 %v1537, 0.0
  %v1539 = vadd.f32 %v1538, 1e-05
  %v1540 = vrsqrt.pop %v1539
  %v1541 = vmul.f32 %v1540, %v1539
  %v1542 = vmul.f32 %v1541, %v1540
  %v1543 = vmul.f32 0.5, %v1542
  %v1544 = vsub.f32 1.5, %v1543
  %v1545 = vmul.f32 %v1540, %v1544
  %vm1546 = vweird.f32 %v1539
  %vm1547 = vweird.f32 %v1540
  %vm1548 = vmor %vm1546, %vm1547
  %v1549 = vsel %vm1548, %v1540, %v1545
  %v1550 = vpack.c.bf16 %v1437, %v1437
  %v1551 = vpack.c.bf16 %v1439, %v1439
  %v1552 = vpack.c.bf16 %v1442, %v1442
  %v1553 = vpack.c.bf16 %v1444, %v1444
  %v1554 = vpack.c.bf16 %v1447, %v1447
  %v1555 = vpack.c.bf16 %v1449, %v1449
  %v1556 = vpack.c.bf16 %v1452, %v1452
  %v1557 = vpack.c.bf16 %v1454, %v1454
  %v1558 = vpack.c.bf16 %v1457, %v1457
  %v1559 = vpack.c.bf16 %v1459, %v1459
  %v1560 = vpack.c.bf16 %v1462, %v1462
  %v1561 = vpack.c.bf16 %v1464, %v1464
  %v1562 = vpack.c.bf16 %v1467, %v1467
  %v1563 = vpack.c.bf16 %v1469, %v1469
  %v1564 = vpack.c.bf16 %v1472, %v1472
  %v1565 = vpack.c.bf16 %v1474, %v1474
  %v1566 = vpack.c.bf16 %v1497, %v1497
  %v1567 = vunpack.c.l.bf16 %v1550
  %v1568 = vunpack.c.l.bf16 %v1551
  %v1569 = vunpack.c.l.bf16 %v1552
  %v1570 = vunpack.c.l.bf16 %v1553
  %v1571 = vunpack.c.l.bf16 %v1554
  %v1572 = vunpack.c.l.bf16 %v1555
  %v1573 = vunpack.c.l.bf16 %v1556
  %v1574 = vunpack.c.l.bf16 %v1557
  %v1575 = vunpack.c.l.bf16 %v1558
  %v1576 = vunpack.c.l.bf16 %v1559
  %v1577 = vunpack.c.l.bf16 %v1560
  %v1578 = vunpack.c.l.bf16 %v1561
  %v1579 = vunpack.c.l.bf16 %v1562
  %v1580 = vunpack.c.l.bf16 %v1563
  %v1581 = vunpack.c.l.bf16 %v1564
  %v1582 = vunpack.c.l.bf16 %v1565
  %v1583 = vunpack.c.l.bf16 %v1566
  %v1584 = vsub.f32 %v1567, %v1583
  %v1585 = vsub.f32 %v1568, %v1583
  %v1586 = vsub.f32 %v1569, %v1583
  %v1587 = vsub.f32 %v1570, %v1583
  %v1588 = vsub.f32 %v1571, %v1583
  %v1589 = vsub.f32 %v1572, %v1583
  %v1590 = vsub.f32 %v1573, %v1583
  %v1591 = vsub.f32 %v1574, %v1583
  %v1592 = vsub.f32 %v1575, %v1583
  %v1593 = vsub.f32 %v1576, %v1583
  %v1594 = vsub.f32 %v1577, %v1583
  %v1595 = vsub.f32 %v1578, %v1583
  %v1596 = vsub.f32 %v1579, %v1583
  %v1597 = vsub.f32 %v1580, %v1583
  %v1598 = vsub.f32 %v1581, %v1583
  %v1599 = vsub.f32 %v1582, %v1583
  %v1600 = vpack.c.bf16 %v1584, %v1584
  %v1601 = vpack.c.bf16 %v1585, %v1585
  %v1602 = vpack.c.bf16 %v1586, %v1586
  %v1603 = vpack.c.bf16 %v1587, %v1587
  %v1604 = vpack.c.bf16 %v1588, %v1588
  %v1605 = vpack.c.bf16 %v1589, %v1589
  %v1606 = vpack.c.bf16 %v1590, %v1590
  %v1607 = vpack.c.bf16 %v1591, %v1591
  %v1608 = vpack.c.bf16 %v1592, %v1592
  %v1609 = vpack.c.bf16 %v1593, %v1593
  %v1610 = vpack.c.bf16 %v1594, %v1594
  %v1611 = vpack.c.bf16 %v1595, %v1595
  %v1612 = vpack.c.bf16 %v1596, %v1596
  %v1613 = vpack.c.bf16 %v1597, %v1597
  %v1614 = vpack.c.bf16 %v1598, %v1598
  %v1615 = vpack.c.bf16 %v1599, %v1599
  %v1616 = vpack.c.bf16 %v1549, %v1549
  %v1617 = vunpack.c.l.bf16 %v1600
  %v1618 = vunpack.c.l.bf16 %v1601
  %v1619 = vunpack.c.l.bf16 %v1602
  %v1620 = vunpack.c.l.bf16 %v1603
  %v1621 = vunpack.c.l.bf16 %v1604
  %v1622 = vunpack.c.l.bf16 %v1605
  %v1623 = vunpack.c.l.bf16 %v1606
  %v1624 = vunpack.c.l.bf16 %v1607
  %v1625 = vunpack.c.l.bf16 %v1608
  %v1626 = vunpack.c.l.bf16 %v1609
  %v1627 = vunpack.c.l.bf16 %v1610
  %v1628 = vunpack.c.l.bf16 %v1611
  %v1629 = vunpack.c.l.bf16 %v1612
  %v1630 = vunpack.c.l.bf16 %v1613
  %v1631 = vunpack.c.l.bf16 %v1614
  %v1632 = vunpack.c.l.bf16 %v1615
  %v1633 = vunpack.c.l.bf16 %v1616
  %v1634 = vmul.f32 %v1617, %v1633
  %v1635 = vmul.f32 %v1618, %v1633
  %v1636 = vmul.f32 %v1619, %v1633
  %v1637 = vmul.f32 %v1620, %v1633
  %v1638 = vmul.f32 %v1621, %v1633
  %v1639 = vmul.f32 %v1622, %v1633
  %v1640 = vmul.f32 %v1623, %v1633
  %v1641 = vmul.f32 %v1624, %v1633
  %v1642 = vmul.f32 %v1625, %v1633
  %v1643 = vmul.f32 %v1626, %v1633
  %v1644 = vmul.f32 %v1627, %v1633
  %v1645 = vmul.f32 %v1628, %v1633
  %v1646 = vmul.f32 %v1629, %v1633
  %v1647 = vmul.f32 %v1630, %v1633
  %v1648 = vmul.f32 %v1631, %v1633
  %v1649 = vmul.f32 %v1632, %v1633
  %v1650 = vpack.c.bf16 %v1634, %v1634
  %v1651 = vpack.c.bf16 %v1635, %v1635
  %v1652 = vpack.c.bf16 %v1636, %v1636
  %v1653 = vpack.c.bf16 %v1637, %v1637
  %v1654 = vpack.c.bf16 %v1638, %v1638
  %v1655 = vpack.c.bf16 %v1639, %v1639
  %v1656 = vpack.c.bf16 %v1640, %v1640
  %v1657 = vpack.c.bf16 %v1641, %v1641
  %v1658 = vpack.c.bf16 %v1642, %v1642
  %v1659 = vpack.c.bf16 %v1643, %v1643
  %v1660 = vpack.c.bf16 %v1644, %v1644
  %v1661 = vpack.c.bf16 %v1645, %v1645
  %v1662 = vpack.c.bf16 %v1646, %v1646
  %v1663 = vpack.c.bf16 %v1647, %v1647
  %v1664 = vpack.c.bf16 %v1648, %v1648
  %v1665 = vpack.c.bf16 %v1649, %v1649
  %v1666 = vunpack.c.l.bf16 %v1650
  %v1667 = vunpack.c.l.bf16 %v1651
  %v1668 = vunpack.c.l.bf16 %v1652
  %v1669 = vunpack.c.l.bf16 %v1653
  %v1670 = vunpack.c.l.bf16 %v1654
  %v1671 = vunpack.c.l.bf16 %v1655
  %v1672 = vunpack.c.l.bf16 %v1656
  %v1673 = vunpack.c.l.bf16 %v1657
  %v1674 = vunpack.c.l.bf16 %v1658
  %v1675 = vunpack.c.l.bf16 %v1659
  %v1676 = vunpack.c.l.bf16 %v1660
  %v1677 = vunpack.c.l.bf16 %v1661
  %v1678 = vunpack.c.l.bf16 %v1662
  %v1679 = vunpack.c.l.bf16 %v1663
  %v1680 = vunpack.c.l.bf16 %v1664
  %v1681 = vunpack.c.l.bf16 %v1665
  %vm1682 = vcmp.gt.f32.partialorder %v1666, 0.0
  %vm1683 = vcmp.gt.f32.partialorder %v1667, 0.0
  %vm1684 = vcmp.gt.f32.partialorder %v1668, 0.0
  %vm1685 = vcmp.gt.f32.partialorder %v1669, 0.0
  %vm1686 = vcmp.gt.f32.partialorder %v1670, 0.0
  %vm1687 = vcmp.gt.f32.partialorder %v1671, 0.0
  %vm1688 = vcmp.gt.f32.partialorder %v1672, 0.0
  %vm1689 = vcmp.gt.f32.partialorder %v1673, 0.0
  %vm1690 = vcmp.gt.f32.partialorder %v1674, 0.0
  %vm1691 = vcmp.gt.f32.partialorder %v1675, 0.0
  %vm1692 = vcmp.gt.f32.partialorder %v1676, 0.0
  %vm1693 = vcmp.gt.f32.partialorder %v1677, 0.0
  %vm1694 = vcmp.gt.f32.partialorder %v1678, 0.0
  %vm1695 = vcmp.gt.f32.partialorder %v1679, 0.0
  %vm1696 = vcmp.gt.f32.partialorder %v1680, 0.0
  %vm1697 = vcmp.gt.f32.partialorder %v1681, 0.0
  %v1698 = vmul.f32 %v1666, 0.20019531
  %v1699 = vmul.f32 %v1667, 0.20019531
  %v1700 = vmul.f32 %v1668, 0.20019531
  %v1701 = vmul.f32 %v1669, 0.20019531
  %v1702 = vmul.f32 %v1670, 0.20019531
  %v1703 = vmul.f32 %v1671, 0.20019531
  %v1704 = vmul.f32 %v1672, 0.20019531
  %v1705 = vmul.f32 %v1673, 0.20019531
  %v1706 = vmul.f32 %v1674, 0.20019531
  %v1707 = vmul.f32 %v1675, 0.20019531
  %v1708 = vmul.f32 %v1676, 0.20019531
  %v1709 = vmul.f32 %v1677, 0.20019531
  %v1710 = vmul.f32 %v1678, 0.20019531
  %v1711 = vmul.f32 %v1679, 0.20019531
  %v1712 = vmul.f32 %v1680, 0.20019531
  %v1713 = vmul.f32 %v1681, 0.20019531
  %v1714 = vpack.c.bf16 %v1698, %v1698
  %v1715 = vpack.c.bf16 %v1699, %v1699
  %v1716 = vpack.c.bf16 %v1700, %v1700
  %v1717 = vpack.c.bf16 %v1701, %v1701
  %v1718 = vpack.c.bf16 %v1702, %v1702
  %v1719 = vpack.c.bf16 %v1703, %v1703
  %v1720 = vpack.c.bf16 %v1704, %v1704
  %v1721 = vpack.c.bf16 %v1705, %v1705
  %v1722 = vpack.c.bf16 %v1706, %v1706
  %v1723 = vpack.c.bf16 %v1707, %v1707
  %v1724 = vpack.c.bf16 %v1708, %v1708
  %v1725 = vpack.c.bf16 %v1709, %v1709
  %v1726 = vpack.c.bf16 %v1710, %v1710
  %v1727 = vpack.c.bf16 %v1711, %v1711
  %v1728 = vpack.c.bf16 %v1712, %v1712
  %v1729 = vpack.c.bf16 %v1713, %v1713
  %vm1730 = vmpackc.low %vm1682, %vm1682
  %vm1731 = vmpackc.low %vm1683, %vm1683
  %vm1732 = vmpackc.low %vm1684, %vm1684
  %vm1733 = vmpackc.low %vm1685, %vm1685
  %vm1734 = vmpackc.low %vm1686, %vm1686
  %vm1735 = vmpackc.low %vm1687, %vm1687
  %vm1736 = vmpackc.low %vm1688, %vm1688
  %vm1737 = vmpackc.low %vm1689, %vm1689
  %vm1738 = vmpackc.low %vm1690, %vm1690
  %vm1739 = vmpackc.low %vm1691, %vm1691
  %vm1740 = vmpackc.low %vm1692, %vm1692
  %vm1741 = vmpackc.low %vm1693, %vm1693
  %vm1742 = vmpackc.low %vm1694, %vm1694
  %vm1743 = vmpackc.low %vm1695, %vm1695
  %vm1744 = vmpackc.low %vm1696, %vm1696
  %vm1745 = vmpackc.low %vm1697, %vm1697
  %v1746 = vsel %vm1730, %v1650, %v1714
  %v1747 = vsel %vm1731, %v1651, %v1715
  %v1748 = vsel %vm1732, %v1652, %v1716
  %v1749 = vsel %vm1733, %v1653, %v1717
  %v1750 = vsel %vm1734, %v1654, %v1718
  %v1751 = vsel %vm1735, %v1655, %v1719
  %v1752 = vsel %vm1736, %v1656, %v1720
  %v1753 = vsel %vm1737, %v1657, %v1721
  %v1754 = vsel %vm1738, %v1658, %v1722
  %v1755 = vsel %vm1739, %v1659, %v1723
  %v1756 = vsel %vm1740, %v1660, %v1724
  %v1757 = vsel %vm1741, %v1661, %v1725
  %v1758 = vsel %vm1742, %v1662, %v1726
  %v1759 = vsel %vm1743, %v1663, %v1727
  %v1760 = vsel %vm1744, %v1664, %v1728
  %v1761 = vsel %vm1745, %v1665, %v1729
  %1762 = vst [vmem:[%s2] sm:$0xf] %v1746
  %1763 = vst [vmem:[%s2 + $0x4] sm:$0xf] %v1747
  %1764 = vst [vmem:[%s2 + $0x8] sm:$0xf] %v1748
  %1765 = vst [vmem:[%s2 + $0xc] sm:$0xf] %v1749
  %1766 = vst [vmem:[%s2 + $0x10] sm:$0xf] %v1750
  %1767 = vst [vmem:[%s2 + $0x14] sm:$0xf] %v1751
  %1768 = vst [vmem:[%s2 + $0x18] sm:$0xf] %v1752
  %1769 = vst [vmem:[%s2 + $0x1c] sm:$0xf] %v1753
  %1770 = vst [vmem:[%s2 + $0x20] sm:$0xf] %v1754
  %1771 = vst [vmem:[%s2 + $0x24] sm:$0xf] %v1755
  %1772 = vst [vmem:[%s2 + $0x28] sm:$0xf] %v1756
  %1773 = vst [vmem:[%s2 + $0x2c] sm:$0xf] %v1757
  %1774 = vst [vmem:[%s2 + $0x30] sm:$0xf] %v1758
  %1775 = vst [vmem:[%s2 + $0x34] sm:$0xf] %v1759
  %1776 = vst [vmem:[%s2 + $0x38] sm:$0xf] %v1760
  %1777 = vst [vmem:[%s2 + $0x3c] sm:$0xf] %v1761
  // Predicated region
  $region10: #{discriminator_forward.12} parent=0 // pred_check
    _
  $region11: #{discriminator_forward.12} parent=0 // pred_check_branch
    %1779 = sbr.rel (0) target = $region13
  $region12: #{discriminator_forward.12} parent=0 // pred_region
    _
  $region13: #{discriminator_forward.12} parent=0 // pred_fallthru
    _
  // Predicated region
  $region14: #{discriminator_forward.12} parent=0 // pred_check
    _
  $region15: #{discriminator_forward.12} parent=0 // pred_check_branch
    %1781 = sbr.rel (0) target = $region17
  $region16: #{discriminator_forward.12} parent=0 // pred_region
    _
  $region17: #{discriminator_forward.12} parent=0 // pred_fallthru
    _

// kernel: discriminator_forward.14
$region0: #{discriminator_forward.14}
  #allocation0 [shape = 'u32[]', space=smem, size = 0x4, offset = 0x4, fixed_abs, tag = 'smem constant byte address 0x4 - core index']
  #allocation1 [shape = 'u32[72,128]{1,0:T(1,128)}', space=vmem, size = 0x9000, scoped, tag = 'internal scratch']
  %s0 = inlined_call_operand.vmem [shape: bf16[32,1152], index: 0, kind: input, shape index: {}]
  %s1 = inlined_call_operand.vmem [shape: bf16[1152,128], index: 1, kind: input, shape index: {}]
  %s2 = inlined_call_operand.vmem [shape: bf16[32,128], index: 2, kind: output, shape index: {}]
  %s3 = sld [smem:[#allocation0]]
  $region18: #{discriminator_forward.14} parent=0
    _
  %s5 = ssub.s32 1, %s3
  %s6 = scalar_select 0, %s5, %s3
  // Predicated region
  $region2: #{discriminator_forward.14} parent=0 // pred_check
    _
  $region3: #{discriminator_forward.14} parent=0 // pred_check_branch
    %8 = sbr.rel (0) target = $region5
  $region4: #{discriminator_forward.14} parent=0 // pred_region
    _
  $region5: #{discriminator_forward.14} parent=0 // pred_fallthru
    _
  // Predicated region
  $region6: #{discriminator_forward.14} parent=0 // pred_check
    _
  $region7: #{discriminator_forward.14} parent=0 // pred_check_branch
    %10 = sbr.rel (0) target = $region9
  $region8: #{discriminator_forward.14} parent=0 // pred_region
    _
  $region9: #{discriminator_forward.14} parent=0 // pred_fallthru
    _
  %v11 = vld [vmem:[%s0] sm:$0xff]
  %v12 = vld [vmem:[%s0 + $0x8] sm:$0xff]
  %v13 = vld [vmem:[%s0 + $0x10] sm:$0xff]
  %v14 = vld [vmem:[%s0 + $0x18] sm:$0xff]
  %v15 = vld [vmem:[%s0 + $0x20] sm:$0xf]
  %v16 = vld [vmem:[%s0 + $0x24] sm:$0xff]
  %v17 = vld [vmem:[%s0 + $0x2c] sm:$0xff]
  %v18 = vld [vmem:[%s0 + $0x34] sm:$0xff]
  %v19 = vld [vmem:[%s0 + $0x3c] sm:$0xff]
  %v20 = vld [vmem:[%s0 + $0x44] sm:$0xf]
  %v21 = vld [vmem:[%s0 + $0x48] sm:$0xff]
  %v22 = vld [vmem:[%s0 + $0x50] sm:$0xff]
  %v23 = vld [vmem:[%s0 + $0x58] sm:$0xff]
  %v24 = vld [vmem:[%s0 + $0x60] sm:$0xff]
  %v25 = vld [vmem:[%s0 + $0x68] sm:$0xf]
  %v26 = vld [vmem:[%s0 + $0x6c] sm:$0xff]
  %v27 = vld [vmem:[%s0 + $0x74] sm:$0xff]
  %v28 = vld [vmem:[%s0 + $0x7c] sm:$0xff]
  %v29 = vld [vmem:[%s0 + $0x84] sm:$0xff]
  %v30 = vld [vmem:[%s0 + $0x8c] sm:$0xf]
  %v31 = vld [vmem:[%s1] sm:$0xf]
  %v32 = vld [vmem:[%s1 + $0x4] sm:$0xf]
  %v33 = vld [vmem:[%s1 + $0x8] sm:$0xf]
  %v34 = vld [vmem:[%s1 + $0xc] sm:$0xf]
  %v35 = vld [vmem:[%s1 + $0x10] sm:$0xf]
  %v36 = vld [vmem:[%s1 + $0x14] sm:$0xf]
  %v37 = vld [vmem:[%s1 + $0x18] sm:$0xf]
  %v38 = vld [vmem:[%s1 + $0x1c] sm:$0xf]
  %v39 = vld [vmem:[%s1 + $0x20] sm:$0xf]
  %v40 = vld [vmem:[%s1 + $0x24] sm:$0xf]
  %v41 = vld [vmem:[%s1 + $0x28] sm:$0xf]
  %v42 = vld [vmem:[%s1 + $0x2c] sm:$0xf]
  %v43 = vld [vmem:[%s1 + $0x30] sm:$0xf]
  %v44 = vld [vmem:[%s1 + $0x34] sm:$0xf]
  %v45 = vld [vmem:[%s1 + $0x38] sm:$0xf]
  %v46 = vld [vmem:[%s1 + $0x3c] sm:$0xf]
  %v47 = vld [vmem:[%s1 + $0x40] sm:$0xf]
  %v48 = vld [vmem:[%s1 + $0x44] sm:$0xf]
  %v49 = vld [vmem:[%s1 + $0x48] sm:$0xf]
  %v50 = vld [vmem:[%s1 + $0x4c] sm:$0xf]
  %v51 = vld [vmem:[%s1 + $0x50] sm:$0xf]
  %v52 = vld [vmem:[%s1 + $0x54] sm:$0xf]
  %v53 = vld [vmem:[%s1 + $0x58] sm:$0xf]
  %v54 = vld [vmem:[%s1 + $0x5c] sm:$0xf]
  %v55 = vld [vmem:[%s1 + $0x60] sm:$0xf]
  %v56 = vld [vmem:[%s1 + $0x64] sm:$0xf]
  %v57 = vld [vmem:[%s1 + $0x68] sm:$0xf]
  %v58 = vld [vmem:[%s1 + $0x6c] sm:$0xf]
  %v59 = vld [vmem:[%s1 + $0x70] sm:$0xf]
  %v60 = vld [vmem:[%s1 + $0x74] sm:$0xf]
  %v61 = vld [vmem:[%s1 + $0x78] sm:$0xf]
  %v62 = vld [vmem:[%s1 + $0x7c] sm:$0xf]
  %v63 = vld [vmem:[%s1 + $0x80] sm:$0xf]
  %v64 = vld [vmem:[%s1 + $0x84] sm:$0xf]
  %v65 = vld [vmem:[%s1 + $0x88] sm:$0xf]
  %v66 = vld [vmem:[%s1 + $0x8c] sm:$0xf]
  %v67 = vld [vmem:[%s1 + $0x90] sm:$0xf]
  %v68 = vld [vmem:[%s1 + $0x94] sm:$0xf]
  %v69 = vld [vmem:[%s1 + $0x98] sm:$0xf]
  %v70 = vld [vmem:[%s1 + $0x9c] sm:$0xf]
  %v71 = vld [vmem:[%s1 + $0xa0] sm:$0xf]
  %v72 = vld [vmem:[%s1 + $0xa4] sm:$0xf]
  %v73 = vld [vmem:[%s1 + $0xa8] sm:$0xf]
  %v74 = vld [vmem:[%s1 + $0xac] sm:$0xf]
  %v75 = vld [vmem:[%s1 + $0xb0] sm:$0xf]
  %v76 = vld [vmem:[%s1 + $0xb4] sm:$0xf]
  %v77 = vld [vmem:[%s1 + $0xb8] sm:$0xf]
  %v78 = vld [vmem:[%s1 + $0xbc] sm:$0xf]
  %v79 = vld [vmem:[%s1 + $0xc0] sm:$0xf]
  %v80 = vld [vmem:[%s1 + $0xc4] sm:$0xf]
  %v81 = vld [vmem:[%s1 + $0xc8] sm:$0xf]
  %v82 = vld [vmem:[%s1 + $0xcc] sm:$0xf]
  %v83 = vld [vmem:[%s1 + $0xd0] sm:$0xf]
  %v84 = vld [vmem:[%s1 + $0xd4] sm:$0xf]
  %v85 = vld [vmem:[%s1 + $0xd8] sm:$0xf]
  %v86 = vld [vmem:[%s1 + $0xdc] sm:$0xf]
  %v87 = vld [vmem:[%s1 + $0xe0] sm:$0xf]
  %v88 = vld [vmem:[%s1 + $0xe4] sm:$0xf]
  %v89 = vld [vmem:[%s1 + $0xe8] sm:$0xf]
  %v90 = vld [vmem:[%s1 + $0xec] sm:$0xf]
  %v91 = vld [vmem:[%s1 + $0xf0] sm:$0xf]
  %v92 = vld [vmem:[%s1 + $0xf4] sm:$0xf]
  %v93 = vld [vmem:[%s1 + $0xf8] sm:$0xf]
  %v94 = vld [vmem:[%s1 + $0xfc] sm:$0xf]
  %v95 = vld [vmem:[%s1 + $0x100] sm:$0xf]
  %v96 = vld [vmem:[%s1 + $0x104] sm:$0xf]
  %v97 = vld [vmem:[%s1 + $0x108] sm:$0xf]
  %v98 = vld [vmem:[%s1 + $0x10c] sm:$0xf]
  %v99 = vld [vmem:[%s1 + $0x110] sm:$0xf]
  %v100 = vld [vmem:[%s1 + $0x114] sm:$0xf]
  %v101 = vld [vmem:[%s1 + $0x118] sm:$0xf]
  %v102 = vld [vmem:[%s1 + $0x11c] sm:$0xf]
  %v103 = vld [vmem:[%s1 + $0x120] sm:$0xf]
  %v104 = vld [vmem:[%s1 + $0x124] sm:$0xf]
  %v105 = vld [vmem:[%s1 + $0x128] sm:$0xf]
  %v106 = vld [vmem:[%s1 + $0x12c] sm:$0xf]
  %v107 = vld [vmem:[%s1 + $0x130] sm:$0xf]
  %v108 = vld [vmem:[%s1 + $0x134] sm:$0xf]
  %v109 = vld [vmem:[%s1 + $0x138] sm:$0xf]
  %v110 = vld [vmem:[%s1 + $0x13c] sm:$0xf]
  %v111 = vld [vmem:[%s1 + $0x140] sm:$0xf]
  %v112 = vld [vmem:[%s1 + $0x144] sm:$0xf]
  %v113 = vld [vmem:[%s1 + $0x148] sm:$0xf]
  %v114 = vld [vmem:[%s1 + $0x14c] sm:$0xf]
  %v115 = vld [vmem:[%s1 + $0x150] sm:$0xf]
  %v116 = vld [vmem:[%s1 + $0x154] sm:$0xf]
  %v117 = vld [vmem:[%s1 + $0x158] sm:$0xf]
  %v118 = vld [vmem:[%s1 + $0x15c] sm:$0xf]
  %v119 = vld [vmem:[%s1 + $0x160] sm:$0xf]
  %v120 = vld [vmem:[%s1 + $0x164] sm:$0xf]
  %v121 = vld [vmem:[%s1 + $0x168] sm:$0xf]
  %v122 = vld [vmem:[%s1 + $0x16c] sm:$0xf]
  %v123 = vld [vmem:[%s1 + $0x170] sm:$0xf]
  %v124 = vld [vmem:[%s1 + $0x174] sm:$0xf]
  %v125 = vld [vmem:[%s1 + $0x178] sm:$0xf]
  %v126 = vld [vmem:[%s1 + $0x17c] sm:$0xf]
  %v127 = vld [vmem:[%s1 + $0x180] sm:$0xf]
  %v128 = vld [vmem:[%s1 + $0x184] sm:$0xf]
  %v129 = vld [vmem:[%s1 + $0x188] sm:$0xf]
  %v130 = vld [vmem:[%s1 + $0x18c] sm:$0xf]
  %v131 = vld [vmem:[%s1 + $0x190] sm:$0xf]
  %v132 = vld [vmem:[%s1 + $0x194] sm:$0xf]
  %v133 = vld [vmem:[%s1 + $0x198] sm:$0xf]
  %v134 = vld [vmem:[%s1 + $0x19c] sm:$0xf]
  %v135 = vld [vmem:[%s1 + $0x1a0] sm:$0xf]
  %v136 = vld [vmem:[%s1 + $0x1a4] sm:$0xf]
  %v137 = vld [vmem:[%s1 + $0x1a8] sm:$0xf]
  %v138 = vld [vmem:[%s1 + $0x1ac] sm:$0xf]
  %v139 = vld [vmem:[%s1 + $0x1b0] sm:$0xf]
  %v140 = vld [vmem:[%s1 + $0x1b4] sm:$0xf]
  %v141 = vld [vmem:[%s1 + $0x1b8] sm:$0xf]
  %v142 = vld [vmem:[%s1 + $0x1bc] sm:$0xf]
  %v143 = vld [vmem:[%s1 + $0x1c0] sm:$0xf]
  %v144 = vld [vmem:[%s1 + $0x1c4] sm:$0xf]
  %v145 = vld [vmem:[%s1 + $0x1c8] sm:$0xf]
  %v146 = vld [vmem:[%s1 + $0x1cc] sm:$0xf]
  %v147 = vld [vmem:[%s1 + $0x1d0] sm:$0xf]
  %v148 = vld [vmem:[%s1 + $0x1d4] sm:$0xf]
  %v149 = vld [vmem:[%s1 + $0x1d8] sm:$0xf]
  %v150 = vld [vmem:[%s1 + $0x1dc] sm:$0xf]
  %v151 = vld [vmem:[%s1 + $0x1e0] sm:$0xf]
  %v152 = vld [vmem:[%s1 + $0x1e4] sm:$0xf]
  %v153 = vld [vmem:[%s1 + $0x1e8] sm:$0xf]
  %v154 = vld [vmem:[%s1 + $0x1ec] sm:$0xf]
  %v155 = vld [vmem:[%s1 + $0x1f0] sm:$0xf]
  %v156 = vld [vmem:[%s1 + $0x1f4] sm:$0xf]
  %v157 = vld [vmem:[%s1 + $0x1f8] sm:$0xf]
  %v158 = vld [vmem:[%s1 + $0x1fc] sm:$0xf]
  %v159 = vld [vmem:[%s1 + $0x200] sm:$0xf]
  %v160 = vld [vmem:[%s1 + $0x204] sm:$0xf]
  %v161 = vld [vmem:[%s1 + $0x208] sm:$0xf]
  %v162 = vld [vmem:[%s1 + $0x20c] sm:$0xf]
  %v163 = vld [vmem:[%s1 + $0x210] sm:$0xf]
  %v164 = vld [vmem:[%s1 + $0x214] sm:$0xf]
  %v165 = vld [vmem:[%s1 + $0x218] sm:$0xf]
  %v166 = vld [vmem:[%s1 + $0x21c] sm:$0xf]
  %v167 = vld [vmem:[%s1 + $0x220] sm:$0xf]
  %v168 = vld [vmem:[%s1 + $0x224] sm:$0xf]
  %v169 = vld [vmem:[%s1 + $0x228] sm:$0xf]
  %v170 = vld [vmem:[%s1 + $0x22c] sm:$0xf]
  %v171 = vld [vmem:[%s1 + $0x230] sm:$0xf]
  %v172 = vld [vmem:[%s1 + $0x234] sm:$0xf]
  %v173 = vld [vmem:[%s1 + $0x238] sm:$0xf]
  %v174 = vld [vmem:[%s1 + $0x23c] sm:$0xf]
  %v195 = vunpack.c.l.b16 %v11
  %v196 = vunpack.c.h.b16 %v11
  %v197 = vunpack.c.l.b16 %v12
  %v198 = vunpack.c.h.b16 %v12
  %v199 = vunpack.c.l.b16 %v13
  %v200 = vunpack.c.h.b16 %v13
  %v201 = vunpack.c.l.b16 %v14
  %v202 = vunpack.c.h.b16 %v14
  %v203 = vunpack.c.l.b16 %v15
  %v204 = vunpack.c.l.b16 %v16
  %v205 = vunpack.c.h.b16 %v16
  %v206 = vunpack.c.l.b16 %v17
  %v207 = vunpack.c.h.b16 %v17
  %v208 = vunpack.c.l.b16 %v18
  %v209 = vunpack.c.h.b16 %v18
  %v210 = vunpack.c.l.b16 %v19
  %v211 = vunpack.c.h.b16 %v19
  %v212 = vunpack.c.l.b16 %v20
  %v213 = vunpack.c.l.b16 %v21
  %v214 = vunpack.c.h.b16 %v21
  %v215 = vunpack.c.l.b16 %v22
  %v216 = vunpack.c.h.b16 %v22
  %v217 = vunpack.c.l.b16 %v23
  %v218 = vunpack.c.h.b16 %v23
  %v219 = vunpack.c.l.b16 %v24
  %v220 = vunpack.c.h.b16 %v24
  %v221 = vunpack.c.l.b16 %v25
  %v222 = vunpack.c.l.b16 %v26
  %v223 = vunpack.c.h.b16 %v26
  %v224 = vunpack.c.l.b16 %v27
  %v225 = vunpack.c.h.b16 %v27
  %v226 = vunpack.c.l.b16 %v28
  %v227 = vunpack.c.h.b16 %v28
  %v228 = vunpack.c.l.b16 %v29
  %v229 = vunpack.c.h.b16 %v29
  %v230 = vunpack.c.l.b16 %v30
  %v231 = vpack.c.b16 %v204, %v195
  %v232 = vpack.c.b16 %v205, %v196
  %v233 = vpack.c.b16 %v206, %v197
  %v234 = vpack.c.b16 %v207, %v198
  %v235 = vpack.c.b16 %v208, %v199
  %v236 = vpack.c.b16 %v209, %v200
  %v237 = vpack.c.b16 %v210, %v201
  %v238 = vpack.c.b16 %v211, %v202
  %v239 = vpack.c.b16 %v212, %v203
  %v240 = vpack.c.b16 %v222, %v213
  %v241 = vpack.c.b16 %v223, %v214
  %v242 = vpack.c.b16 %v224, %v215
  %v243 = vpack.c.b16 %v225, %v216
  %v244 = vpack.c.b16 %v226, %v217
  %v245 = vpack.c.b16 %v227, %v218
  %v246 = vpack.c.b16 %v228, %v219
  %v247 = vpack.c.b16 %v229, %v220
  %v248 = vpack.c.b16 %v230, %v221
  %v411 = vunpack.c.l.b16 %v31
  %v412 = vunpack.c.l.b16 %v32
  %v413 = vunpack.c.l.b16 %v33
  %v414 = vunpack.c.l.b16 %v34
  %v415 = vunpack.c.l.b16 %v35
  %v416 = vunpack.c.l.b16 %v36
  %v417 = vunpack.c.l.b16 %v37
  %v418 = vunpack.c.l.b16 %v38
  %v419 = vunpack.c.l.b16 %v39
  %v420 = vunpack.c.l.b16 %v40
  %v421 = vunpack.c.l.b16 %v41
  %v422 = vunpack.c.l.b16 %v42
  %v423 = vunpack.c.l.b16 %v43
  %v424 = vunpack.c.l.b16 %v44
  %v425 = vunpack.c.l.b16 %v45
  %v426 = vunpack.c.l.b16 %v46
  %v427 = vunpack.c.l.b16 %v47
  %v428 = vunpack.c.l.b16 %v48
  %v429 = vunpack.c.l.b16 %v49
  %v430 = vunpack.c.l.b16 %v50
  %v431 = vunpack.c.l.b16 %v51
  %v432 = vunpack.c.l.b16 %v52
  %v433 = vunpack.c.l.b16 %v53
  %v434 = vunpack.c.l.b16 %v54
  %v435 = vunpack.c.l.b16 %v55
  %v436 = vunpack.c.l.b16 %v56
  %v437 = vunpack.c.l.b16 %v57
  %v438 = vunpack.c.l.b16 %v58
  %v439 = vunpack.c.l.b16 %v59
  %v440 = vunpack.c.l.b16 %v60
  %v441 = vunpack.c.l.b16 %v61
  %v442 = vunpack.c.l.b16 %v62
  %v443 = vunpack.c.l.b16 %v63
  %v444 = vunpack.c.l.b16 %v64
  %v445 = vunpack.c.l.b16 %v65
  %v446 = vunpack.c.l.b16 %v66
  %v447 = vunpack.c.l.b16 %v67
  %v448 = vunpack.c.l.b16 %v68
  %v449 = vunpack.c.l.b16 %v69
  %v450 = vunpack.c.l.b16 %v70
  %v451 = vunpack.c.l.b16 %v71
  %v452 = vunpack.c.l.b16 %v72
  %v453 = vunpack.c.l.b16 %v73
  %v454 = vunpack.c.l.b16 %v74
  %v455 = vunpack.c.l.b16 %v75
  %v456 = vunpack.c.l.b16 %v76
  %v457 = vunpack.c.l.b16 %v77
  %v458 = vunpack.c.l.b16 %v78
  %v459 = vunpack.c.l.b16 %v79
  %v460 = vunpack.c.l.b16 %v80
  %v461 = vunpack.c.l.b16 %v81
  %v462 = vunpack.c.l.b16 %v82
  %v463 = vunpack.c.l.b16 %v83
  %v464 = vunpack.c.l.b16 %v84
  %v465 = vunpack.c.l.b16 %v85
  %v466 = vunpack.c.l.b16 %v86
  %v467 = vunpack.c.l.b16 %v87
  %v468 = vunpack.c.l.b16 %v88
  %v469 = vunpack.c.l.b16 %v89
  %v470 = vunpack.c.l.b16 %v90
  %v471 = vunpack.c.l.b16 %v91
  %v472 = vunpack.c.l.b16 %v92
  %v473 = vunpack.c.l.b16 %v93
  %v474 = vunpack.c.l.b16 %v94
  %v475 = vunpack.c.l.b16 %v95
  %v476 = vunpack.c.l.b16 %v96
  %v477 = vunpack.c.l.b16 %v97
  %v478 = vunpack.c.l.b16 %v98
  %v479 = vunpack.c.l.b16 %v99
  %v480 = vunpack.c.l.b16 %v100
  %v481 = vunpack.c.l.b16 %v101
  %v482 = vunpack.c.l.b16 %v102
  %v483 = vunpack.c.l.b16 %v103
  %v484 = vunpack.c.l.b16 %v104
  %v485 = vunpack.c.l.b16 %v105
  %v486 = vunpack.c.l.b16 %v106
  %v487 = vunpack.c.l.b16 %v107
  %v488 = vunpack.c.l.b16 %v108
  %v489 = vunpack.c.l.b16 %v109
  %v490 = vunpack.c.l.b16 %v110
  %v491 = vunpack.c.l.b16 %v111
  %v492 = vunpack.c.l.b16 %v112
  %v493 = vunpack.c.l.b16 %v113
  %v494 = vunpack.c.l.b16 %v114
  %v495 = vunpack.c.l.b16 %v115
  %v496 = vunpack.c.l.b16 %v116
  %v497 = vunpack.c.l.b16 %v117
  %v498 = vunpack.c.l.b16 %v118
  %v499 = vunpack.c.l.b16 %v119
  %v500 = vunpack.c.l.b16 %v120
  %v501 = vunpack.c.l.b16 %v121
  %v502 = vunpack.c.l.b16 %v122
  %v503 = vunpack.c.l.b16 %v123
  %v504 = vunpack.c.l.b16 %v124
  %v505 = vunpack.c.l.b16 %v125
  %v506 = vunpack.c.l.b16 %v126
  %v507 = vunpack.c.l.b16 %v127
  %v508 = vunpack.c.l.b16 %v128
  %v509 = vunpack.c.l.b16 %v129
  %v510 = vunpack.c.l.b16 %v130
  %v511 = vunpack.c.l.b16 %v131
  %v512 = vunpack.c.l.b16 %v132
  %v513 = vunpack.c.l.b16 %v133
  %v514 = vunpack.c.l.b16 %v134
  %v515 = vunpack.c.l.b16 %v135
  %v516 = vunpack.c.l.b16 %v136
  %v517 = vunpack.c.l.b16 %v137
  %v518 = vunpack.c.l.b16 %v138
  %v519 = vunpack.c.l.b16 %v139
  %v520 = vunpack.c.l.b16 %v140
  %v521 = vunpack.c.l.b16 %v141
  %v522 = vunpack.c.l.b16 %v142
  %v523 = vunpack.c.l.b16 %v143
  %v524 = vunpack.c.l.b16 %v144
  %v525 = vunpack.c.l.b16 %v145
  %v526 = vunpack.c.l.b16 %v146
  %v527 = vunpack.c.l.b16 %v147
  %v528 = vunpack.c.l.b16 %v148
  %v529 = vunpack.c.l.b16 %v149
  %v530 = vunpack.c.l.b16 %v150
  %v531 = vunpack.c.l.b16 %v151
  %v532 = vunpack.c.l.b16 %v152
  %v533 = vunpack.c.l.b16 %v153
  %v534 = vunpack.c.l.b16 %v154
  %v535 = vunpack.c.l.b16 %v155
  %v536 = vunpack.c.l.b16 %v156
  %v537 = vunpack.c.l.b16 %v157
  %v538 = vunpack.c.l.b16 %v158
  %v539 = vunpack.c.l.b16 %v159
  %v540 = vunpack.c.l.b16 %v160
  %v541 = vunpack.c.l.b16 %v161
  %v542 = vunpack.c.l.b16 %v162
  %v543 = vunpack.c.l.b16 %v163
  %v544 = vunpack.c.l.b16 %v164
  %v545 = vunpack.c.l.b16 %v165
  %v546 = vunpack.c.l.b16 %v166
  %v547 = vunpack.c.l.b16 %v167
  %v548 = vunpack.c.l.b16 %v168
  %v549 = vunpack.c.l.b16 %v169
  %v550 = vunpack.c.l.b16 %v170
  %v551 = vunpack.c.l.b16 %v171
  %v552 = vunpack.c.l.b16 %v172
  %v553 = vunpack.c.l.b16 %v173
  %v554 = vunpack.c.l.b16 %v174
  %v555 = vpack.c.b16 %v412, %v411
  %v556 = vpack.c.b16 %v414, %v413
  %v557 = vpack.c.b16 %v416, %v415
  %v558 = vpack.c.b16 %v418, %v417
  %v559 = vpack.c.b16 %v420, %v419
  %v560 = vpack.c.b16 %v422, %v421
  %v561 = vpack.c.b16 %v424, %v423
  %v562 = vpack.c.b16 %v426, %v425
  %v563 = vpack.c.b16 %v428, %v427
  %v564 = vpack.c.b16 %v430, %v429
  %v565 = vpack.c.b16 %v432, %v431
  %v566 = vpack.c.b16 %v434, %v433
  %v567 = vpack.c.b16 %v436, %v435
  %v568 = vpack.c.b16 %v438, %v437
  %v569 = vpack.c.b16 %v440, %v439
  %v570 = vpack.c.b16 %v442, %v441
  %v571 = vpack.c.b16 %v444, %v443
  %v572 = vpack.c.b16 %v446, %v445
  %v573 = vpack.c.b16 %v448, %v447
  %v574 = vpack.c.b16 %v450, %v449
  %v575 = vpack.c.b16 %v452, %v451
  %v576 = vpack.c.b16 %v454, %v453
  %v577 = vpack.c.b16 %v456, %v455
  %v578 = vpack.c.b16 %v458, %v457
  %v579 = vpack.c.b16 %v460, %v459
  %v580 = vpack.c.b16 %v462, %v461
  %v581 = vpack.c.b16 %v464, %v463
  %v582 = vpack.c.b16 %v466, %v465
  %v583 = vpack.c.b16 %v468, %v467
  %v584 = vpack.c.b16 %v470, %v469
  %v585 = vpack.c.b16 %v472, %v471
  %v586 = vpack.c.b16 %v474, %v473
  %v587 = vpack.c.b16 %v476, %v475
  %v588 = vpack.c.b16 %v478, %v477
  %v589 = vpack.c.b16 %v480, %v479
  %v590 = vpack.c.b16 %v482, %v481
  %v591 = vpack.c.b16 %v484, %v483
  %v592 = vpack.c.b16 %v486, %v485
  %v593 = vpack.c.b16 %v488, %v487
  %v594 = vpack.c.b16 %v490, %v489
  %v595 = vpack.c.b16 %v492, %v491
  %v596 = vpack.c.b16 %v494, %v493
  %v597 = vpack.c.b16 %v496, %v495
  %v598 = vpack.c.b16 %v498, %v497
  %v599 = vpack.c.b16 %v500, %v499
  %v600 = vpack.c.b16 %v502, %v501
  %v601 = vpack.c.b16 %v504, %v503
  %v602 = vpack.c.b16 %v506, %v505
  %v603 = vpack.c.b16 %v508, %v507
  %v604 = vpack.c.b16 %v510, %v509
  %v605 = vpack.c.b16 %v512, %v511
  %v606 = vpack.c.b16 %v514, %v513
  %v607 = vpack.c.b16 %v516, %v515
  %v608 = vpack.c.b16 %v518, %v517
  %v609 = vpack.c.b16 %v520, %v519
  %v610 = vpack.c.b16 %v522, %v521
  %v611 = vpack.c.b16 %v524, %v523
  %v612 = vpack.c.b16 %v526, %v525
  %v613 = vpack.c.b16 %v528, %v527
  %v614 = vpack.c.b16 %v530, %v529
  %v615 = vpack.c.b16 %v532, %v531
  %v616 = vpack.c.b16 %v534, %v533
  %v617 = vpack.c.b16 %v536, %v535
  %v618 = vpack.c.b16 %v538, %v537
  %v619 = vpack.c.b16 %v540, %v539
  %v620 = vpack.c.b16 %v542, %v541
  %v621 = vpack.c.b16 %v544, %v543
  %v622 = vpack.c.b16 %v546, %v545
  %v623 = vpack.c.b16 %v548, %v547
  %v624 = vpack.c.b16 %v550, %v549
  %v625 = vpack.c.b16 %v552, %v551
  %v626 = vpack.c.b16 %v554, %v553
  %699 = vmatpush.bf16.msra.mxu0 %v562
  %700 = vmatpush.bf16.msra.mxu0 %v561
  %701 = vmatpush.bf16.msra.mxu0 %v560
  %702 = vmatpush.bf16.msra.mxu0 %v559
  %703 = vmatpush.bf16.msra.mxu0 %v558
  %704 = vmatpush.bf16.msra.mxu0 %v557
  %705 = vmatpush.bf16.msra.mxu0 %v556
  %706 = vmatpush.bf16.msra.mxu0 %v555
  %707 = vmatmul.bf16.gmra.mxu0 %v231
  %v708 = vpop.f32.mrf.mxu0
  %v709 = vadd.f32 0.0, %v708
  %v710 = vpop.f32.mrf.mxu0
  %v711 = vadd.f32 0.0, %v710
  %712 = vmatmul.bf16.gmra.mxu0 %v240
  %v713 = vpop.f32.mrf.mxu0
  %v714 = vadd.f32 0.0, %v713
  %v715 = vpop.f32.mrf.mxu0
  %v716 = vadd.f32 0.0, %v715
  %717 = vdwg.mxu0
  %718 = vmatpush.bf16.msra.mxu0 %v570
  %719 = vmatpush.bf16.msra.mxu0 %v569
  %720 = vmatpush.bf16.msra.mxu0 %v568
  %721 = vmatpush.bf16.msra.mxu0 %v567
  %722 = vmatpush.bf16.msra.mxu0 %v566
  %723 = vmatpush.bf16.msra.mxu0 %v565
  %724 = vmatpush.bf16.msra.mxu0 %v564
  %725 = vmatpush.bf16.msra.mxu0 %v563
  %726 = vmatmul.bf16.gmra.mxu0 %v232
  %v727 = vpop.f32.mrf.mxu0
  %v728 = vadd.f32 %v709, %v727
  %v729 = vpop.f32.mrf.mxu0
  %v730 = vadd.f32 %v711, %v729
  %731 = vmatmul.bf16.gmra.mxu0 %v241
  %v732 = vpop.f32.mrf.mxu0
  %v733 = vadd.f32 %v714, %v732
  %v734 = vpop.f32.mrf.mxu0
  %v735 = vadd.f32 %v716, %v734
  %736 = vdwg.mxu0
  %737 = vmatpush.bf16.msra.mxu0 %v578
  %738 = vmatpush.bf16.msra.mxu0 %v577
  %739 = vmatpush.bf16.msra.mxu0 %v576
  %740 = vmatpush.bf16.msra.mxu0 %v575
  %741 = vmatpush.bf16.msra.mxu0 %v574
  %742 = vmatpush.bf16.msra.mxu0 %v573
  %743 = vmatpush.bf16.msra.mxu0 %v572
  %744 = vmatpush.bf16.msra.mxu0 %v571
  %745 = vmatmul.bf16.gmra.mxu0 %v233
  %v746 = vpop.f32.mrf.mxu0
  %v747 = vadd.f32 %v728, %v746
  %v748 = vpop.f32.mrf.mxu0
  %v749 = vadd.f32 %v730, %v748
  %750 = vmatmul.bf16.gmra.mxu0 %v242
  %v751 = vpop.f32.mrf.mxu0
  %v752 = vadd.f32 %v733, %v751
  %v753 = vpop.f32.mrf.mxu0
  %v754 = vadd.f32 %v735, %v753
  %755 = vdwg.mxu0
  %756 = vmatpush.bf16.msra.mxu0 %v586
  %757 = vmatpush.bf16.msra.mxu0 %v585
  %758 = vmatpush.bf16.msra.mxu0 %v584
  %759 = vmatpush.bf16.msra.mxu0 %v583
  %760 = vmatpush.bf16.msra.mxu0 %v582
  %761 = vmatpush.bf16.msra.mxu0 %v581
  %762 = vmatpush.bf16.msra.mxu0 %v580
  %763 = vmatpush.bf16.msra.mxu0 %v579
  %764 = vmatmul.bf16.gmra.mxu0 %v234
  %v765 = vpop.f32.mrf.mxu0
  %v766 = vadd.f32 %v747, %v765
  %v767 = vpop.f32.mrf.mxu0
  %v768 = vadd.f32 %v749, %v767
  %769 = vmatmul.bf16.gmra.mxu0 %v243
  %v770 = vpop.f32.mrf.mxu0
  %v771 = vadd.f32 %v752, %v770
  %v772 = vpop.f32.mrf.mxu0
  %v773 = vadd.f32 %v754, %v772
  %774 = vdwg.mxu0
  %775 = vmatpush.bf16.msra.mxu0 %v594
  %776 = vmatpush.bf16.msra.mxu0 %v593
  %777 = vmatpush.bf16.msra.mxu0 %v592
  %778 = vmatpush.bf16.msra.mxu0 %v591
  %779 = vmatpush.bf16.msra.mxu0 %v590
  %780 = vmatpush.bf16.msra.mxu0 %v589
  %781 = vmatpush.bf16.msra.mxu0 %v588
  %782 = vmatpush.bf16.msra.mxu0 %v587
  %783 = vmatmul.bf16.gmra.mxu0 %v235
  %v784 = vpop.f32.mrf.mxu0
  %v785 = vadd.f32 %v766, %v784
  %v786 = vpop.f32.mrf.mxu0
  %v787 = vadd.f32 %v768, %v786
  %788 = vmatmul.bf16.gmra.mxu0 %v244
  %v789 = vpop.f32.mrf.mxu0
  %v790 = vadd.f32 %v771, %v789
  %v791 = vpop.f32.mrf.mxu0
  %v792 = vadd.f32 %v773, %v791
  %793 = vdwg.mxu0
  %794 = vmatpush.bf16.msra.mxu0 %v602
  %795 = vmatpush.bf16.msra.mxu0 %v601
  %796 = vmatpush.bf16.msra.mxu0 %v600
  %797 = vmatpush.bf16.msra.mxu0 %v599
  %798 = vmatpush.bf16.msra.mxu0 %v598
  %799 = vmatpush.bf16.msra.mxu0 %v597
  %800 = vmatpush.bf16.msra.mxu0 %v596
  %801 = vmatpush.bf16.msra.mxu0 %v595
  %802 = vmatmul.bf16.gmra.mxu0 %v236
  %v803 = vpop.f32.mrf.mxu0
  %v804 = vadd.f32 %v785, %v803
  %v805 = vpop.f32.mrf.mxu0
  %v806 = vadd.f32 %v787, %v805
  %807 = vmatmul.bf16.gmra.mxu0 %v245
  %v808 = vpop.f32.mrf.mxu0
  %v809 = vadd.f32 %v790, %v808
  %v810 = vpop.f32.mrf.mxu0
  %v811 = vadd.f32 %v792, %v810
  %812 = vdwg.mxu0
  %813 = vmatpush.bf16.msra.mxu0 %v610
  %814 = vmatpush.bf16.msra.mxu0 %v609
  %815 = vmatpush.bf16.msra.mxu0 %v608
  %816 = vmatpush.bf16.msra.mxu0 %v607
  %817 = vmatpush.bf16.msra.mxu0 %v606
  %818 = vmatpush.bf16.msra.mxu0 %v605
  %819 = vmatpush.bf16.msra.mxu0 %v604
  %820 = vmatpush.bf16.msra.mxu0 %v603
  %821 = vmatmul.bf16.gmra.mxu0 %v237
  %v822 = vpop.f32.mrf.mxu0
  %v823 = vadd.f32 %v804, %v822
  %v824 = vpop.f32.mrf.mxu0
  %v825 = vadd.f32 %v806, %v824
  %826 = vmatmul.bf16.gmra.mxu0 %v246
  %v827 = vpop.f32.mrf.mxu0
  %v828 = vadd.f32 %v809, %v827
  %v829 = vpop.f32.mrf.mxu0
  %v830 = vadd.f32 %v811, %v829
  %831 = vdwg.mxu0
  %832 = vmatpush.bf16.msra.mxu0 %v618
  %833 = vmatpush.bf16.msra.mxu0 %v617
  %834 = vmatpush.bf16.msra.mxu0 %v616
  %835 = vmatpush.bf16.msra.mxu0 %v615
  %836 = vmatpush.bf16.msra.mxu0 %v614
  %837 = vmatpush.bf16.msra.mxu0 %v613
  %838 = vmatpush.bf16.msra.mxu0 %v612
  %839 = vmatpush.bf16.msra.mxu0 %v611
  %840 = vmatmul.bf16.gmra.mxu0 %v238
  %v841 = vpop.f32.mrf.mxu0
  %v842 = vadd.f32 %v823, %v841
  %v843 = vpop.f32.mrf.mxu0
  %v844 = vadd.f32 %v825, %v843
  %845 = vmatmul.bf16.gmra.mxu0 %v247
  %v846 = vpop.f32.mrf.mxu0
  %v847 = vadd.f32 %v828, %v846
  %v848 = vpop.f32.mrf.mxu0
  %v849 = vadd.f32 %v830, %v848
  %850 = vdwg.mxu0
  %851 = vmatpush.bf16.msra.mxu0 %v626
  %852 = vmatpush.bf16.msra.mxu0 %v625
  %853 = vmatpush.bf16.msra.mxu0 %v624
  %854 = vmatpush.bf16.msra.mxu0 %v623
  %855 = vmatpush.bf16.msra.mxu0 %v622
  %856 = vmatpush.bf16.msra.mxu0 %v621
  %857 = vmatpush.bf16.msra.mxu0 %v620
  %858 = vmatpush.bf16.msra.mxu0 %v619
  %859 = vmatmul.bf16.gmra.mxu0 %v239
  %v860 = vpop.f32.mrf.mxu0
  %v861 = vadd.f32 %v842, %v860
  %v862 = vpop.f32.mrf.mxu0
  %v863 = vadd.f32 %v844, %v862
  %864 = vmatmul.bf16.gmra.mxu0 %v248
  %v865 = vpop.f32.mrf.mxu0
  %v866 = vadd.f32 %v847, %v865
  %v867 = vpop.f32.mrf.mxu0
  %v868 = vadd.f32 %v849, %v867
  %869 = vdwg.mxu0
  %v870 = vadd.f32 %v861, %v863
  %v871 = vadd.f32 %v870, %v866
  %v872 = vadd.f32 %v871, %v868
  %v873 = vrot.slane %v872, 4
  %v874 = vadd.f32 %v872, %v873
  %v875 = vrot.slane %v874, 2
  %v876 = vadd.f32 %v874, %v875
  %v877 = vrot.slane %v876, 1
  %v878 = vadd.f32 %v876, %v877
  %v879 = vmul.f32 %v878, 0.03125
  %v880 = vmul.f32 %v861, %v861
  %v881 = vmul.f32 %v863, %v863
  %v882 = vmul.f32 %v866, %v866
  %v883 = vmul.f32 %v868, %v868
  %v884 = vadd.f32 %v880, %v881
  %v885 = vadd.f32 %v884, %v882
  %v886 = vadd.f32 %v885, %v883
  %v887 = vrot.slane %v886, 4
  %v888 = vadd.f32 %v886, %v887
  %v889 = vrot.slane %v888, 2
  %v890 = vadd.f32 %v888, %v889
  %v891 = vrot.slane %v890, 1
  %v892 = vadd.f32 %v890, %v891
  %v893 = vmul.f32 %v892, 0.03125
  %v894 = vmul.f32 %v879, %v879
  %v895 = vsub.f32 %v893, %v894
  %v896 = vmax.f32 %v895, 0.0
  %v897 = vadd.f32 %v896, 1e-05
  %v898 = vrsqrt.pop %v897
  %v899 = vmul.f32 %v898, %v897
  %v900 = vmul.f32 %v899, %v898
  %v901 = vmul.f32 0.5, %v900
  %v902 = vsub.f32 1.5, %v901
  %v903 = vmul.f32 %v898, %v902
  %vm904 = vweird.f32 %v897
  %vm905 = vweird.f32 %v898
  %vm906 = vmor %vm904, %vm905
  %v907 = vsel %vm906, %v898, %v903
  %v908 = vpack.c.bf16 %v861, %v861
  %v909 = vpack.c.bf16 %v863, %v863
  %v910 = vpack.c.bf16 %v866, %v866
  %v911 = vpack.c.bf16 %v868, %v868
  %v912 = vpack.c.bf16 %v879, %v879
  %v913 = vunpack.c.l.bf16 %v908
  %v914 = vunpack.c.l.bf16 %v909
  %v915 = vunpack.c.l.bf16 %v910
  %v916 = vunpack.c.l.bf16 %v911
  %v917 = vunpack.c.l.bf16 %v912
  %v918 = vsub.f32 %v913, %v917
  %v919 = vsub.f32 %v914, %v917
  %v920 = vsub.f32 %v915, %v917
  %v921 = vsub.f32 %v916, %v917
  %v922 = vpack.c.bf16 %v918, %v918
  %v923 = vpack.c.bf16 %v919, %v919
  %v924 = vpack.c.bf16 %v920, %v920
  %v925 = vpack.c.bf16 %v921, %v921
  %v926 = vpack.c.bf16 %v907, %v907
  %v927 = vunpack.c.l.bf16 %v922
  %v928 = vunpack.c.l.bf16 %v923
  %v929 = vunpack.c.l.bf16 %v924
  %v930 = vunpack.c.l.bf16 %v925
  %v931 = vunpack.c.l.bf16 %v926
  %v932 = vmul.f32 %v927, %v931
  %v933 = vmul.f32 %v928, %v931
  %v934 = vmul.f32 %v929, %v931
  %v935 = vmul.f32 %v930, %v931
  %v936 = vpack.c.bf16 %v932, %v932
  %v937 = vpack.c.bf16 %v933, %v933
  %v938 = vpack.c.bf16 %v934, %v934
  %v939 = vpack.c.bf16 %v935, %v935
  %v940 = vunpack.c.l.bf16 %v936
  %v941 = vunpack.c.l.bf16 %v937
  %v942 = vunpack.c.l.bf16 %v938
  %v943 = vunpack.c.l.bf16 %v939
  %vm944 = vcmp.gt.f32.partialorder %v940, 0.0
  %vm945 = vcmp.gt.f32.partialorder %v941, 0.0
  %vm946 = vcmp.gt.f32.partialorder %v942, 0.0
  %vm947 = vcmp.gt.f32.partialorder %v943, 0.0
  %v948 = vmul.f32 %v940, 0.20019531
  %v949 = vmul.f32 %v941, 0.20019531
  %v950 = vmul.f32 %v942, 0.20019531
  %v951 = vmul.f32 %v943, 0.20019531
  %v952 = vpack.c.bf16 %v948, %v948
  %v953 = vpack.c.bf16 %v949, %v949
  %v954 = vpack.c.bf16 %v950, %v950
  %v955 = vpack.c.bf16 %v951, %v951
  %vm956 = vmpackc.low %vm944, %vm944
  %vm957 = vmpackc.low %vm945, %vm945
  %vm958 = vmpackc.low %vm946, %vm946
  %vm959 = vmpackc.low %vm947, %vm947
  %v960 = vsel %vm956, %v936, %v952
  %v961 = vsel %vm957, %v937, %v953
  %v962 = vsel %vm958, %v938, %v954
  %v963 = vsel %vm959, %v939, %v955
  %964 = vst [vmem:[%s2] sm:$0xf] %v960
  %965 = vst [vmem:[%s2 + $0x4] sm:$0xf] %v961
  %966 = vst [vmem:[%s2 + $0x8] sm:$0xf] %v962
  %967 = vst [vmem:[%s2 + $0xc] sm:$0xf] %v963
  // Predicated region
  $region10: #{discriminator_forward.14} parent=0 // pred_check
    _
  $region11: #{discriminator_forward.14} parent=0 // pred_check_branch
    %969 = sbr.rel (0) target = $region13
  $region12: #{discriminator_forward.14} parent=0 // pred_region
    _
  $region13: #{discriminator_forward.14} parent=0 // pred_fallthru
    _
  // Predicated region
  $region14: #{discriminator_forward.14} parent=0 // pred_check
    _
  $region15: #{discriminator_forward.14} parent=0 // pred_check_branch
    %971 = sbr.rel (0) target = $region17
  $region16: #{discriminator_forward.14} parent=0 // pred_region
    _
  $region17: #{discriminator_forward.14} parent=0 // pred_fallthru
    _

// kernel: discriminator_forward.16
$region0: #{discriminator_forward.16}
  #allocation0 [shape = 'u32[]', space=smem, size = 0x4, offset = 0x4, fixed_abs, tag = 'smem constant byte address 0x4 - core index']
  #allocation1 [shape = 'u32[72,128]{1,0:T(1,128)}', space=vmem, size = 0x9000, scoped, tag = 'internal scratch']
  %s0 = inlined_call_operand.vmem [shape: bf16[8,1152], index: 0, kind: input, shape index: {}]
  %s1 = inlined_call_operand.vmem [shape: bf16[1152,128], index: 1, kind: input, shape index: {}]
  %s2 = inlined_call_operand.vmem [shape: bf16[8,128], index: 2, kind: output, shape index: {}]
  %s3 = sld [smem:[#allocation0]]
  $region18: #{discriminator_forward.16} parent=0
    _
  %s5 = ssub.s32 1, %s3
  %s6 = scalar_select 0, %s5, %s3
  // Predicated region
  $region2: #{discriminator_forward.16} parent=0 // pred_check
    _
  $region3: #{discriminator_forward.16} parent=0 // pred_check_branch
    %8 = sbr.rel (0) target = $region5
  $region4: #{discriminator_forward.16} parent=0 // pred_region
    _
  $region5: #{discriminator_forward.16} parent=0 // pred_fallthru
    _
  // Predicated region
  $region6: #{discriminator_forward.16} parent=0 // pred_check
    _
  $region7: #{discriminator_forward.16} parent=0 // pred_check_branch
    %10 = sbr.rel (0) target = $region9
  $region8: #{discriminator_forward.16} parent=0 // pred_region
    _
  $region9: #{discriminator_forward.16} parent=0 // pred_fallthru
    _
  %v11 = vld [vmem:[%s0] sm:$0xff]
  %v12 = vld [vmem:[%s0 + $0x8] sm:$0xff]
  %v13 = vld [vmem:[%s0 + $0x10] sm:$0xff]
  %v14 = vld [vmem:[%s0 + $0x18] sm:$0xff]
  %v15 = vld [vmem:[%s0 + $0x20] sm:$0xf]
  %v16 = vld [vmem:[%s1] sm:$0xf]
  %v17 = vld [vmem:[%s1 + $0x4] sm:$0xf]
  %v18 = vld [vmem:[%s1 + $0x8] sm:$0xf]
  %v19 = vld [vmem:[%s1 + $0xc] sm:$0xf]
  %v20 = vld [vmem:[%s1 + $0x10] sm:$0xf]
  %v21 = vld [vmem:[%s1 + $0x14] sm:$0xf]
  %v22 = vld [vmem:[%s1 + $0x18] sm:$0xf]
  %v23 = vld [vmem:[%s1 + $0x1c] sm:$0xf]
  %v24 = vld [vmem:[%s1 + $0x20] sm:$0xf]
  %v25 = vld [vmem:[%s1 + $0x24] sm:$0xf]
  %v26 = vld [vmem:[%s1 + $0x28] sm:$0xf]
  %v27 = vld [vmem:[%s1 + $0x2c] sm:$0xf]
  %v28 = vld [vmem:[%s1 + $0x30] sm:$0xf]
  %v29 = vld [vmem:[%s1 + $0x34] sm:$0xf]
  %v30 = vld [vmem:[%s1 + $0x38] sm:$0xf]
  %v31 = vld [vmem:[%s1 + $0x3c] sm:$0xf]
  %v32 = vld [vmem:[%s1 + $0x40] sm:$0xf]
  %v33 = vld [vmem:[%s1 + $0x44] sm:$0xf]
  %v34 = vld [vmem:[%s1 + $0x48] sm:$0xf]
  %v35 = vld [vmem:[%s1 + $0x4c] sm:$0xf]
  %v36 = vld [vmem:[%s1 + $0x50] sm:$0xf]
  %v37 = vld [vmem:[%s1 + $0x54] sm:$0xf]
  %v38 = vld [vmem:[%s1 + $0x58] sm:$0xf]
  %v39 = vld [vmem:[%s1 + $0x5c] sm:$0xf]
  %v40 = vld [vmem:[%s1 + $0x60] sm:$0xf]
  %v41 = vld [vmem:[%s1 + $0x64] sm:$0xf]
  %v42 = vld [vmem:[%s1 + $0x68] sm:$0xf]
  %v43 = vld [vmem:[%s1 + $0x6c] sm:$0xf]
  %v44 = vld [vmem:[%s1 + $0x70] sm:$0xf]
  %v45 = vld [vmem:[%s1 + $0x74] sm:$0xf]
  %v46 = vld [vmem:[%s1 + $0x78] sm:$0xf]
  %v47 = vld [vmem:[%s1 + $0x7c] sm:$0xf]
  %v48 = vld [vmem:[%s1 + $0x80] sm:$0xf]
  %v49 = vld [vmem:[%s1 + $0x84] sm:$0xf]
  %v50 = vld [vmem:[%s1 + $0x88] sm:$0xf]
  %v51 = vld [vmem:[%s1 + $0x8c] sm:$0xf]
  %v52 = vld [vmem:[%s1 + $0x90] sm:$0xf]
  %v53 = vld [vmem:[%s1 + $0x94] sm:$0xf]
  %v54 = vld [vmem:[%s1 + $0x98] sm:$0xf]
  %v55 = vld [vmem:[%s1 + $0x9c] sm:$0xf]
  %v56 = vld [vmem:[%s1 + $0xa0] sm:$0xf]
  %v57 = vld [vmem:[%s1 + $0xa4] sm:$0xf]
  %v58 = vld [vmem:[%s1 + $0xa8] sm:$0xf]
  %v59 = vld [vmem:[%s1 + $0xac] sm:$0xf]
  %v60 = vld [vmem:[%s1 + $0xb0] sm:$0xf]
  %v61 = vld [vmem:[%s1 + $0xb4] sm:$0xf]
  %v62 = vld [vmem:[%s1 + $0xb8] sm:$0xf]
  %v63 = vld [vmem:[%s1 + $0xbc] sm:$0xf]
  %v64 = vld [vmem:[%s1 + $0xc0] sm:$0xf]
  %v65 = vld [vmem:[%s1 + $0xc4] sm:$0xf]
  %v66 = vld [vmem:[%s1 + $0xc8] sm:$0xf]
  %v67 = vld [vmem:[%s1 + $0xcc] sm:$0xf]
  %v68 = vld [vmem:[%s1 + $0xd0] sm:$0xf]
  %v69 = vld [vmem:[%s1 + $0xd4] sm:$0xf]
  %v70 = vld [vmem:[%s1 + $0xd8] sm:$0xf]
  %v71 = vld [vmem:[%s1 + $0xdc] sm:$0xf]
  %v72 = vld [vmem:[%s1 + $0xe0] sm:$0xf]
  %v73 = vld [vmem:[%s1 + $0xe4] sm:$0xf]
  %v74 = vld [vmem:[%s1 + $0xe8] sm:$0xf]
  %v75 = vld [vmem:[%s1 + $0xec] sm:$0xf]
  %v76 = vld [vmem:[%s1 + $0xf0] sm:$0xf]
  %v77 = vld [vmem:[%s1 + $0xf4] sm:$0xf]
  %v78 = vld [vmem:[%s1 + $0xf8] sm:$0xf]
  %v79 = vld [vmem:[%s1 + $0xfc] sm:$0xf]
  %v80 = vld [vmem:[%s1 + $0x100] sm:$0xf]
  %v81 = vld [vmem:[%s1 + $0x104] sm:$0xf]
  %v82 = vld [vmem:[%s1 + $0x108] sm:$0xf]
  %v83 = vld [vmem:[%s1 + $0x10c] sm:$0xf]
  %v84 = vld [vmem:[%s1 + $0x110] sm:$0xf]
  %v85 = vld [vmem:[%s1 + $0x114] sm:$0xf]
  %v86 = vld [vmem:[%s1 + $0x118] sm:$0xf]
  %v87 = vld [vmem:[%s1 + $0x11c] sm:$0xf]
  %v88 = vld [vmem:[%s1 + $0x120] sm:$0xf]
  %v89 = vld [vmem:[%s1 + $0x124] sm:$0xf]
  %v90 = vld [vmem:[%s1 + $0x128] sm:$0xf]
  %v91 = vld [vmem:[%s1 + $0x12c] sm:$0xf]
  %v92 = vld [vmem:[%s1 + $0x130] sm:$0xf]
  %v93 = vld [vmem:[%s1 + $0x134] sm:$0xf]
  %v94 = vld [vmem:[%s1 + $0x138] sm:$0xf]
  %v95 = vld [vmem:[%s1 + $0x13c] sm:$0xf]
  %v96 = vld [vmem:[%s1 + $0x140] sm:$0xf]
  %v97 = vld [vmem:[%s1 + $0x144] sm:$0xf]
  %v98 = vld [vmem:[%s1 + $0x148] sm:$0xf]
  %v99 = vld [vmem:[%s1 + $0x14c] sm:$0xf]
  %v100 = vld [vmem:[%s1 + $0x150] sm:$0xf]
  %v101 = vld [vmem:[%s1 + $0x154] sm:$0xf]
  %v102 = vld [vmem:[%s1 + $0x158] sm:$0xf]
  %v103 = vld [vmem:[%s1 + $0x15c] sm:$0xf]
  %v104 = vld [vmem:[%s1 + $0x160] sm:$0xf]
  %v105 = vld [vmem:[%s1 + $0x164] sm:$0xf]
  %v106 = vld [vmem:[%s1 + $0x168] sm:$0xf]
  %v107 = vld [vmem:[%s1 + $0x16c] sm:$0xf]
  %v108 = vld [vmem:[%s1 + $0x170] sm:$0xf]
  %v109 = vld [vmem:[%s1 + $0x174] sm:$0xf]
  %v110 = vld [vmem:[%s1 + $0x178] sm:$0xf]
  %v111 = vld [vmem:[%s1 + $0x17c] sm:$0xf]
  %v112 = vld [vmem:[%s1 + $0x180] sm:$0xf]
  %v113 = vld [vmem:[%s1 + $0x184] sm:$0xf]
  %v114 = vld [vmem:[%s1 + $0x188] sm:$0xf]
  %v115 = vld [vmem:[%s1 + $0x18c] sm:$0xf]
  %v116 = vld [vmem:[%s1 + $0x190] sm:$0xf]
  %v117 = vld [vmem:[%s1 + $0x194] sm:$0xf]
  %v118 = vld [vmem:[%s1 + $0x198] sm:$0xf]
  %v119 = vld [vmem:[%s1 + $0x19c] sm:$0xf]
  %v120 = vld [vmem:[%s1 + $0x1a0] sm:$0xf]
  %v121 = vld [vmem:[%s1 + $0x1a4] sm:$0xf]
  %v122 = vld [vmem:[%s1 + $0x1a8] sm:$0xf]
  %v123 = vld [vmem:[%s1 + $0x1ac] sm:$0xf]
  %v124 = vld [vmem:[%s1 + $0x1b0] sm:$0xf]
  %v125 = vld [vmem:[%s1 + $0x1b4] sm:$0xf]
  %v126 = vld [vmem:[%s1 + $0x1b8] sm:$0xf]
  %v127 = vld [vmem:[%s1 + $0x1bc] sm:$0xf]
  %v128 = vld [vmem:[%s1 + $0x1c0] sm:$0xf]
  %v129 = vld [vmem:[%s1 + $0x1c4] sm:$0xf]
  %v130 = vld [vmem:[%s1 + $0x1c8] sm:$0xf]
  %v131 = vld [vmem:[%s1 + $0x1cc] sm:$0xf]
  %v132 = vld [vmem:[%s1 + $0x1d0] sm:$0xf]
  %v133 = vld [vmem:[%s1 + $0x1d4] sm:$0xf]
  %v134 = vld [vmem:[%s1 + $0x1d8] sm:$0xf]
  %v135 = vld [vmem:[%s1 + $0x1dc] sm:$0xf]
  %v136 = vld [vmem:[%s1 + $0x1e0] sm:$0xf]
  %v137 = vld [vmem:[%s1 + $0x1e4] sm:$0xf]
  %v138 = vld [vmem:[%s1 + $0x1e8] sm:$0xf]
  %v139 = vld [vmem:[%s1 + $0x1ec] sm:$0xf]
  %v140 = vld [vmem:[%s1 + $0x1f0] sm:$0xf]
  %v141 = vld [vmem:[%s1 + $0x1f4] sm:$0xf]
  %v142 = vld [vmem:[%s1 + $0x1f8] sm:$0xf]
  %v143 = vld [vmem:[%s1 + $0x1fc] sm:$0xf]
  %v144 = vld [vmem:[%s1 + $0x200] sm:$0xf]
  %v145 = vld [vmem:[%s1 + $0x204] sm:$0xf]
  %v146 = vld [vmem:[%s1 + $0x208] sm:$0xf]
  %v147 = vld [vmem:[%s1 + $0x20c] sm:$0xf]
  %v148 = vld [vmem:[%s1 + $0x210] sm:$0xf]
  %v149 = vld [vmem:[%s1 + $0x214] sm:$0xf]
  %v150 = vld [vmem:[%s1 + $0x218] sm:$0xf]
  %v151 = vld [vmem:[%s1 + $0x21c] sm:$0xf]
  %v152 = vld [vmem:[%s1 + $0x220] sm:$0xf]
  %v153 = vld [vmem:[%s1 + $0x224] sm:$0xf]
  %v154 = vld [vmem:[%s1 + $0x228] sm:$0xf]
  %v155 = vld [vmem:[%s1 + $0x22c] sm:$0xf]
  %v156 = vld [vmem:[%s1 + $0x230] sm:$0xf]
  %v157 = vld [vmem:[%s1 + $0x234] sm:$0xf]
  %v158 = vld [vmem:[%s1 + $0x238] sm:$0xf]
  %v159 = vld [vmem:[%s1 + $0x23c] sm:$0xf]
  %v165 = vunpack.c.l.b16 %v11
  %v166 = vunpack.c.h.b16 %v11
  %v167 = vunpack.c.l.b16 %v12
  %v168 = vunpack.c.h.b16 %v12
  %v169 = vunpack.c.l.b16 %v13
  %v170 = vunpack.c.h.b16 %v13
  %v171 = vunpack.c.l.b16 %v14
  %v172 = vunpack.c.h.b16 %v14
  %v173 = vunpack.c.l.b16 %v15
  %v174 = vpack.c.b16 %v165, %v165
  %v175 = vpack.c.b16 %v166, %v166
  %v176 = vpack.c.b16 %v167, %v167
  %v177 = vpack.c.b16 %v168, %v168
  %v178 = vpack.c.b16 %v169, %v169
  %v179 = vpack.c.b16 %v170, %v170
  %v180 = vpack.c.b16 %v171, %v171
  %v181 = vpack.c.b16 %v172, %v172
  %v182 = vpack.c.b16 %v173, %v173
  %v336 = vunpack.c.l.b16 %v16
  %v337 = vunpack.c.l.b16 %v17
  %v338 = vunpack.c.l.b16 %v18
  %v339 = vunpack.c.l.b16 %v19
  %v340 = vunpack.c.l.b16 %v20
  %v341 = vunpack.c.l.b16 %v21
  %v342 = vunpack.c.l.b16 %v22
  %v343 = vunpack.c.l.b16 %v23
  %v344 = vunpack.c.l.b16 %v24
  %v345 = vunpack.c.l.b16 %v25
  %v346 = vunpack.c.l.b16 %v26
  %v347 = vunpack.c.l.b16 %v27
  %v348 = vunpack.c.l.b16 %v28
  %v349 = vunpack.c.l.b16 %v29
  %v350 = vunpack.c.l.b16 %v30
  %v351 = vunpack.c.l.b16 %v31
  %v352 = vunpack.c.l.b16 %v32
  %v353 = vunpack.c.l.b16 %v33
  %v354 = vunpack.c.l.b16 %v34
  %v355 = vunpack.c.l.b16 %v35
  %v356 = vunpack.c.l.b16 %v36
  %v357 = vunpack.c.l.b16 %v37
  %v358 = vunpack.c.l.b16 %v38
  %v359 = vunpack.c.l.b16 %v39
  %v360 = vunpack.c.l.b16 %v40
  %v361 = vunpack.c.l.b16 %v41
  %v362 = vunpack.c.l.b16 %v42
  %v363 = vunpack.c.l.b16 %v43
  %v364 = vunpack.c.l.b16 %v44
  %v365 = vunpack.c.l.b16 %v45
  %v366 = vunpack.c.l.b16 %v46
  %v367 = vunpack.c.l.b16 %v47
  %v368 = vunpack.c.l.b16 %v48
  %v369 = vunpack.c.l.b16 %v49
  %v370 = vunpack.c.l.b16 %v50
  %v371 = vunpack.c.l.b16 %v51
  %v372 = vunpack.c.l.b16 %v52
  %v373 = vunpack.c.l.b16 %v53
  %v374 = vunpack.c.l.b16 %v54
  %v375 = vunpack.c.l.b16 %v55
  %v376 = vunpack.c.l.b16 %v56
  %v377 = vunpack.c.l.b16 %v57
  %v378 = vunpack.c.l.b16 %v58
  %v379 = vunpack.c.l.b16 %v59
  %v380 = vunpack.c.l.b16 %v60
  %v381 = vunpack.c.l.b16 %v61
  %v382 = vunpack.c.l.b16 %v62
  %v383 = vunpack.c.l.b16 %v63
  %v384 = vunpack.c.l.b16 %v64
  %v385 = vunpack.c.l.b16 %v65
  %v386 = vunpack.c.l.b16 %v66
  %v387 = vunpack.c.l.b16 %v67
  %v388 = vunpack.c.l.b16 %v68
  %v389 = vunpack.c.l.b16 %v69
  %v390 = vunpack.c.l.b16 %v70
  %v391 = vunpack.c.l.b16 %v71
  %v392 = vunpack.c.l.b16 %v72
  %v393 = vunpack.c.l.b16 %v73
  %v394 = vunpack.c.l.b16 %v74
  %v395 = vunpack.c.l.b16 %v75
  %v396 = vunpack.c.l.b16 %v76
  %v397 = vunpack.c.l.b16 %v77
  %v398 = vunpack.c.l.b16 %v78
  %v399 = vunpack.c.l.b16 %v79
  %v400 = vunpack.c.l.b16 %v80
  %v401 = vunpack.c.l.b16 %v81
  %v402 = vunpack.c.l.b16 %v82
  %v403 = vunpack.c.l.b16 %v83
  %v404 = vunpack.c.l.b16 %v84
  %v405 = vunpack.c.l.b16 %v85
  %v406 = vunpack.c.l.b16 %v86
  %v407 = vunpack.c.l.b16 %v87
  %v408 = vunpack.c.l.b16 %v88
  %v409 = vunpack.c.l.b16 %v89
  %v410 = vunpack.c.l.b16 %v90
  %v411 = vunpack.c.l.b16 %v91
  %v412 = vunpack.c.l.b16 %v92
  %v413 = vunpack.c.l.b16 %v93
  %v414 = vunpack.c.l.b16 %v94
  %v415 = vunpack.c.l.b16 %v95
  %v416 = vunpack.c.l.b16 %v96
  %v417 = vunpack.c.l.b16 %v97
  %v418 = vunpack.c.l.b16 %v98
  %v419 = vunpack.c.l.b16 %v99
  %v420 = vunpack.c.l.b16 %v100
  %v421 = vunpack.c.l.b16 %v101
  %v422 = vunpack.c.l.b16 %v102
  %v423 = vunpack.c.l.b16 %v103
  %v424 = vunpack.c.l.b16 %v104
  %v425 = vunpack.c.l.b16 %v105
  %v426 = vunpack.c.l.b16 %v106
  %v427 = vunpack.c.l.b16 %v107
  %v428 = vunpack.c.l.b16 %v108
  %v429 = vunpack.c.l.b16 %v109
  %v430 = vunpack.c.l.b16 %v110
  %v431 = vunpack.c.l.b16 %v111
  %v432 = vunpack.c.l.b16 %v112
  %v433 = vunpack.c.l.b16 %v113
  %v434 = vunpack.c.l.b16 %v114
  %v435 = vunpack.c.l.b16 %v115
  %v436 = vunpack.c.l.b16 %v116
  %v437 = vunpack.c.l.b16 %v117
  %v438 = vunpack.c.l.b16 %v118
  %v439 = vunpack.c.l.b16 %v119
  %v440 = vunpack.c.l.b16 %v120
  %v441 = vunpack.c.l.b16 %v121
  %v442 = vunpack.c.l.b16 %v122
  %v443 = vunpack.c.l.b16 %v123
  %v444 = vunpack.c.l.b16 %v124
  %v445 = vunpack.c.l.b16 %v125
  %v446 = vunpack.c.l.b16 %v126
  %v447 = vunpack.c.l.b16 %v127
  %v448 = vunpack.c.l.b16 %v128
  %v449 = vunpack.c.l.b16 %v129
  %v450 = vunpack.c.l.b16 %v130
  %v451 = vunpack.c.l.b16 %v131
  %v452 = vunpack.c.l.b16 %v132
  %v453 = vunpack.c.l.b16 %v133
  %v454 = vunpack.c.l.b16 %v134
  %v455 = vunpack.c.l.b16 %v135
  %v456 = vunpack.c.l.b16 %v136
  %v457 = vunpack.c.l.b16 %v137
  %v458 = vunpack.c.l.b16 %v138
  %v459 = vunpack.c.l.b16 %v139
  %v460 = vunpack.c.l.b16 %v140
  %v461 = vunpack.c.l.b16 %v141
  %v462 = vunpack.c.l.b16 %v142
  %v463 = vunpack.c.l.b16 %v143
  %v464 = vunpack.c.l.b16 %v144
  %v465 = vunpack.c.l.b16 %v145
  %v466 = vunpack.c.l.b16 %v146
  %v467 = vunpack.c.l.b16 %v147
  %v468 = vunpack.c.l.b16 %v148
  %v469 = vunpack.c.l.b16 %v149
  %v470 = vunpack.c.l.b16 %v150
  %v471 = vunpack.c.l.b16 %v151
  %v472 = vunpack.c.l.b16 %v152
  %v473 = vunpack.c.l.b16 %v153
  %v474 = vunpack.c.l.b16 %v154
  %v475 = vunpack.c.l.b16 %v155
  %v476 = vunpack.c.l.b16 %v156
  %v477 = vunpack.c.l.b16 %v157
  %v478 = vunpack.c.l.b16 %v158
  %v479 = vunpack.c.l.b16 %v159
  %v480 = vpack.c.b16 %v337, %v336
  %v481 = vpack.c.b16 %v339, %v338
  %v482 = vpack.c.b16 %v341, %v340
  %v483 = vpack.c.b16 %v343, %v342
  %v484 = vpack.c.b16 %v345, %v344
  %v485 = vpack.c.b16 %v347, %v346
  %v486 = vpack.c.b16 %v349, %v348
  %v487 = vpack.c.b16 %v351, %v350
  %v488 = vpack.c.b16 %v353, %v352
  %v489 = vpack.c.b16 %v355, %v354
  %v490 = vpack.c.b16 %v357, %v356
  %v491 = vpack.c.b16 %v359, %v358
  %v492 = vpack.c.b16 %v361, %v360
  %v493 = vpack.c.b16 %v363, %v362
  %v494 = vpack.c.b16 %v365, %v364
  %v495 = vpack.c.b16 %v367, %v366
  %v496 = vpack.c.b16 %v369, %v368
  %v497 = vpack.c.b16 %v371, %v370
  %v498 = vpack.c.b16 %v373, %v372
  %v499 = vpack.c.b16 %v375, %v374
  %v500 = vpack.c.b16 %v377, %v376
  %v501 = vpack.c.b16 %v379, %v378
  %v502 = vpack.c.b16 %v381, %v380
  %v503 = vpack.c.b16 %v383, %v382
  %v504 = vpack.c.b16 %v385, %v384
  %v505 = vpack.c.b16 %v387, %v386
  %v506 = vpack.c.b16 %v389, %v388
  %v507 = vpack.c.b16 %v391, %v390
  %v508 = vpack.c.b16 %v393, %v392
  %v509 = vpack.c.b16 %v395, %v394
  %v510 = vpack.c.b16 %v397, %v396
  %v511 = vpack.c.b16 %v399, %v398
  %v512 = vpack.c.b16 %v401, %v400
  %v513 = vpack.c.b16 %v403, %v402
  %v514 = vpack.c.b16 %v405, %v404
  %v515 = vpack.c.b16 %v407, %v406
  %v516 = vpack.c.b16 %v409, %v408
  %v517 = vpack.c.b16 %v411, %v410
  %v518 = vpack.c.b16 %v413, %v412
  %v519 = vpack.c.b16 %v415, %v414
  %v520 = vpack.c.b16 %v417, %v416
  %v521 = vpack.c.b16 %v419, %v418
  %v522 = vpack.c.b16 %v421, %v420
  %v523 = vpack.c.b16 %v423, %v422
  %v524 = vpack.c.b16 %v425, %v424
  %v525 = vpack.c.b16 %v427, %v426
  %v526 = vpack.c.b16 %v429, %v428
  %v527 = vpack.c.b16 %v431, %v430
  %v528 = vpack.c.b16 %v433, %v432
  %v529 = vpack.c.b16 %v435, %v434
  %v530 = vpack.c.b16 %v437, %v436
  %v531 = vpack.c.b16 %v439, %v438
  %v532 = vpack.c.b16 %v441, %v440
  %v533 = vpack.c.b16 %v443, %v442
  %v534 = vpack.c.b16 %v445, %v444
  %v535 = vpack.c.b16 %v447, %v446
  %v536 = vpack.c.b16 %v449, %v448
  %v537 = vpack.c.b16 %v451, %v450
  %v538 = vpack.c.b16 %v453, %v452
  %v539 = vpack.c.b16 %v455, %v454
  %v540 = vpack.c.b16 %v457, %v456
  %v541 = vpack.c.b16 %v459, %v458
  %v542 = vpack.c.b16 %v461, %v460
  %v543 = vpack.c.b16 %v463, %v462
  %v544 = vpack.c.b16 %v465, %v464
  %v545 = vpack.c.b16 %v467, %v466
  %v546 = vpack.c.b16 %v469, %v468
  %v547 = vpack.c.b16 %v471, %v470
  %v548 = vpack.c.b16 %v473, %v472
  %v549 = vpack.c.b16 %v475, %v474
  %v550 = vpack.c.b16 %v477, %v476
  %v551 = vpack.c.b16 %v479, %v478
  %624 = vmatpush.bf16.msra.mxu0 %v487
  %625 = vmatpush.bf16.msra.mxu0 %v486
  %626 = vmatpush.bf16.msra.mxu0 %v485
  %627 = vmatpush.bf16.msra.mxu0 %v484
  %628 = vmatpush.bf16.msra.mxu0 %v483
  %629 = vmatpush.bf16.msra.mxu0 %v482
  %630 = vmatpush.bf16.msra.mxu0 %v481
  %631 = vmatpush.bf16.msra.mxu0 %v480
  %632 = vmatmul.bf16.gmra.mxu0 %v174
  %v633 = vpop.f32.mrf.mxu0
  %v634 = vadd.f32 0.0, %v633
  %v635 = vpop.f32.mrf.mxu0
  %636 = vdwg.mxu0
  %637 = vmatpush.bf16.msra.mxu0 %v495
  %638 = vmatpush.bf16.msra.mxu0 %v494
  %639 = vmatpush.bf16.msra.mxu0 %v493
  %640 = vmatpush.bf16.msra.mxu0 %v492
  %641 = vmatpush.bf16.msra.mxu0 %v491
  %642 = vmatpush.bf16.msra.mxu0 %v490
  %643 = vmatpush.bf16.msra.mxu0 %v489
  %644 = vmatpush.bf16.msra.mxu0 %v488
  %645 = vmatmul.bf16.gmra.mxu0 %v175
  %v646 = vpop.f32.mrf.mxu0
  %v647 = vadd.f32 %v634, %v646
  %v648 = vpop.f32.mrf.mxu0
  %649 = vdwg.mxu0
  %650 = vmatpush.bf16.msra.mxu0 %v503
  %651 = vmatpush.bf16.msra.mxu0 %v502
  %652 = vmatpush.bf16.msra.mxu0 %v501
  %653 = vmatpush.bf16.msra.mxu0 %v500
  %654 = vmatpush.bf16.msra.mxu0 %v499
  %655 = vmatpush.bf16.msra.mxu0 %v498
  %656 = vmatpush.bf16.msra.mxu0 %v497
  %657 = vmatpush.bf16.msra.mxu0 %v496
  %658 = vmatmul.bf16.gmra.mxu0 %v176
  %v659 = vpop.f32.mrf.mxu0
  %v660 = vadd.f32 %v647, %v659
  %v661 = vpop.f32.mrf.mxu0
  %662 = vdwg.mxu0
  %663 = vmatpush.bf16.msra.mxu0 %v511
  %664 = vmatpush.bf16.msra.mxu0 %v510
  %665 = vmatpush.bf16.msra.mxu0 %v509
  %666 = vmatpush.bf16.msra.mxu0 %v508
  %667 = vmatpush.bf16.msra.mxu0 %v507
  %668 = vmatpush.bf16.msra.mxu0 %v506
  %669 = vmatpush.bf16.msra.mxu0 %v505
  %670 = vmatpush.bf16.msra.mxu0 %v504
  %671 = vmatmul.bf16.gmra.mxu0 %v177
  %v672 = vpop.f32.mrf.mxu0
  %v673 = vadd.f32 %v660, %v672
  %v674 = vpop.f32.mrf.mxu0
  %675 = vdwg.mxu0
  %676 = vmatpush.bf16.msra.mxu0 %v519
  %677 = vmatpush.bf16.msra.mxu0 %v518
  %678 = vmatpush.bf16.msra.mxu0 %v517
  %679 = vmatpush.bf16.msra.mxu0 %v516
  %680 = vmatpush.bf16.msra.mxu0 %v515
  %681 = vmatpush.bf16.msra.mxu0 %v514
  %682 = vmatpush.bf16.msra.mxu0 %v513
  %683 = vmatpush.bf16.msra.mxu0 %v512
  %684 = vmatmul.bf16.gmra.mxu0 %v178
  %v685 = vpop.f32.mrf.mxu0
  %v686 = vadd.f32 %v673, %v685
  %v687 = vpop.f32.mrf.mxu0
  %688 = vdwg.mxu0
  %689 = vmatpush.bf16.msra.mxu0 %v527
  %690 = vmatpush.bf16.msra.mxu0 %v526
  %691 = vmatpush.bf16.msra.mxu0 %v525
  %692 = vmatpush.bf16.msra.mxu0 %v524
  %693 = vmatpush.bf16.msra.mxu0 %v523
  %694 = vmatpush.bf16.msra.mxu0 %v522
  %695 = vmatpush.bf16.msra.mxu0 %v521
  %696 = vmatpush.bf16.msra.mxu0 %v520
  %697 = vmatmul.bf16.gmra.mxu0 %v179
  %v698 = vpop.f32.mrf.mxu0
  %v699 = vadd.f32 %v686, %v698
  %v700 = vpop.f32.mrf.mxu0
  %701 = vdwg.mxu0
  %702 = vmatpush.bf16.msra.mxu0 %v535
  %703 = vmatpush.bf16.msra.mxu0 %v534
  %704 = vmatpush.bf16.msra.mxu0 %v533
  %705 = vmatpush.bf16.msra.mxu0 %v532
  %706 = vmatpush.bf16.msra.mxu0 %v531
  %707 = vmatpush.bf16.msra.mxu0 %v530
  %708 = vmatpush.bf16.msra.mxu0 %v529
  %709 = vmatpush.bf16.msra.mxu0 %v528
  %710 = vmatmul.bf16.gmra.mxu0 %v180
  %v711 = vpop.f32.mrf.mxu0
  %v712 = vadd.f32 %v699, %v711
  %v713 = vpop.f32.mrf.mxu0
  %714 = vdwg.mxu0
  %715 = vmatpush.bf16.msra.mxu0 %v543
  %716 = vmatpush.bf16.msra.mxu0 %v542
  %717 = vmatpush.bf16.msra.mxu0 %v541
  %718 = vmatpush.bf16.msra.mxu0 %v540
  %719 = vmatpush.bf16.msra.mxu0 %v539
  %720 = vmatpush.bf16.msra.mxu0 %v538
  %721 = vmatpush.bf16.msra.mxu0 %v537
  %722 = vmatpush.bf16.msra.mxu0 %v536
  %723 = vmatmul.bf16.gmra.mxu0 %v181
  %v724 = vpop.f32.mrf.mxu0
  %v725 = vadd.f32 %v712, %v724
  %v726 = vpop.f32.mrf.mxu0
  %727 = vdwg.mxu0
  %728 = vmatpush.bf16.msra.mxu0 %v551
  %729 = vmatpush.bf16.msra.mxu0 %v550
  %730 = vmatpush.bf16.msra.mxu0 %v549
  %731 = vmatpush.bf16.msra.mxu0 %v548
  %732 = vmatpush.bf16.msra.mxu0 %v547
  %733 = vmatpush.bf16.msra.mxu0 %v546
  %734 = vmatpush.bf16.msra.mxu0 %v545
  %735 = vmatpush.bf16.msra.mxu0 %v544
  %736 = vmatmul.bf16.gmra.mxu0 %v182
  %v737 = vpop.f32.mrf.mxu0
  %v738 = vadd.f32 %v725, %v737
  %v739 = vpop.f32.mrf.mxu0
  %740 = vdwg.mxu0
  %v741 = vrot.slane %v738, 4
  %v742 = vadd.f32 %v738, %v741
  %v743 = vrot.slane %v742, 2
  %v744 = vadd.f32 %v742, %v743
  %v745 = vrot.slane %v744, 1
  %v746 = vadd.f32 %v744, %v745
  %v747 = vmul.f32 %v746, 0.125
  %v748 = vmul.f32 %v738, %v738
  %v749 = vrot.slane %v748, 4
  %v750 = vadd.f32 %v748, %v749
  %v751 = vrot.slane %v750, 2
  %v752 = vadd.f32 %v750, %v751
  %v753 = vrot.slane %v752, 1
  %v754 = vadd.f32 %v752, %v753
  %v755 = vmul.f32 %v754, 0.125
  %v756 = vmul.f32 %v747, %v747
  %v757 = vsub.f32 %v755, %v756
  %v758 = vmax.f32 %v757, 0.0
  %v759 = vadd.f32 %v758, 1e-05
  %v760 = vrsqrt.pop %v759
  %v761 = vmul.f32 %v760, %v759
  %v762 = vmul.f32 %v761, %v760
  %v763 = vmul.f32 0.5, %v762
  %v764 = vsub.f32 1.5, %v763
  %v765 = vmul.f32 %v760, %v764
  %vm766 = vweird.f32 %v759
  %vm767 = vweird.f32 %v760
  %vm768 = vmor %vm766, %vm767
  %v769 = vsel %vm768, %v760, %v765
  %v770 = vpack.c.bf16 %v738, %v738
  %v771 = vpack.c.bf16 %v747, %v747
  %v772 = vunpack.c.l.bf16 %v770
  %v773 = vunpack.c.l.bf16 %v771
  %v774 = vsub.f32 %v772, %v773
  %v775 = vpack.c.bf16 %v774, %v774
  %v776 = vpack.c.bf16 %v769, %v769
  %v777 = vunpack.c.l.bf16 %v775
  %v778 = vunpack.c.l.bf16 %v776
  %v779 = vmul.f32 %v777, %v778
  %v780 = vpack.c.bf16 %v779, %v779
  %v781 = vunpack.c.l.bf16 %v780
  %vm782 = vcmp.gt.f32.partialorder %v781, 0.0
  %v783 = vmul.f32 %v781, 0.20019531
  %v784 = vpack.c.bf16 %v783, %v783
  %vm785 = vmpackc.low %vm782, %vm782
  %v786 = vsel %vm785, %v780, %v784
  %787 = vst [vmem:[%s2] sm:$0xf] %v786
  // Predicated region
  $region10: #{discriminator_forward.16} parent=0 // pred_check
    _
  $region11: #{discriminator_forward.16} parent=0 // pred_check_branch
    %789 = sbr.rel (0) target = $region13
  $region12: #{discriminator_forward.16} parent=0 // pred_region
    _
  $region13: #{discriminator_forward.16} parent=0 // pred_fallthru
    _
  // Predicated region
  $region14: #{discriminator_forward.16} parent=0 // pred_check
    _
  $region15: #{discriminator_forward.16} parent=0 // pred_check_branch
    %791 = sbr.rel (0) target = $region17
  $region16: #{discriminator_forward.16} parent=0 // pred_region
    _
  $region17: #{discriminator_forward.16} parent=0 // pred_fallthru
    _

// kernel: discriminator_forward.17
$region0: #{discriminator_forward.17}
  #allocation0 [shape = 'u32[]', space=smem, size = 0x4, offset = 0x4, fixed_abs, tag = 'smem constant byte address 0x4 - core index']
  #allocation1 [shape = 'u32[72,128]{1,0:T(1,128)}', space=vmem, size = 0x9000, scoped, tag = 'internal scratch']
  %s0 = inlined_call_operand.vmem [shape: bf16[8,512], index: 0, kind: input, shape index: {}]
  %s1 = inlined_call_operand.vmem [shape: bf16[512,1024], index: 1, kind: input, shape index: {}]
  %s2 = inlined_call_operand.vmem [shape: f32[1,1024], index: 2, kind: input, shape index: {}]
  %s3 = inlined_call_operand.vmem [shape: bf16[1024,128], index: 3, kind: input, shape index: {}]
  %s4 = inlined_call_operand.vmem [shape: f32[1,128], index: 4, kind: input, shape index: {}]
  %s5 = inlined_call_operand.vmem [shape: f32[8,128], index: 5, kind: output, shape index: {}]
  %s6 = sld [smem:[#allocation0]]
  $region30: #{discriminator_forward.17} parent=0
    _
  %s8 = ssub.s32 1, %s6
  %s9 = scalar_select 0, %s8, %s6
  // Predicated region
  $region2: #{discriminator_forward.17} parent=0 // pred_check
    _
  $region3: #{discriminator_forward.17} parent=0 // pred_check_branch
    %11 = sbr.rel (0) target = $region5
  $region4: #{discriminator_forward.17} parent=0 // pred_region
    _
  $region5: #{discriminator_forward.17} parent=0 // pred_fallthru
    _
  // Predicated region
  $region6: #{discriminator_forward.17} parent=0 // pred_check
    _
  $region7: #{discriminator_forward.17} parent=0 // pred_check_branch
    %13 = sbr.rel (0) target = $region9
  $region8: #{discriminator_forward.17} parent=0 // pred_region
    _
  $region9: #{discriminator_forward.17} parent=0 // pred_fallthru
    _
  // Predicated region
  $region10: #{discriminator_forward.17} parent=0 // pred_check
    _
  $region11: #{discriminator_forward.17} parent=0 // pred_check_branch
    %15 = sbr.rel (0) target = $region13
  $region12: #{discriminator_forward.17} parent=0 // pred_region
    _
  $region13: #{discriminator_forward.17} parent=0 // pred_fallthru
    _
  // Predicated region
  $region14: #{discriminator_forward.17} parent=0 // pred_check
    _
  $region15: #{discriminator_forward.17} parent=0 // pred_check_branch
    %17 = sbr.rel (0) target = $region17
  $region16: #{discriminator_forward.17} parent=0 // pred_region
    _
  $region17: #{discriminator_forward.17} parent=0 // pred_fallthru
    _
  // Predicated region
  $region18: #{discriminator_forward.17} parent=0 // pred_check
    _
  $region19: #{discriminator_forward.17} parent=0 // pred_check_branch
    %19 = sbr.rel (0) target = $region21
  $region20: #{discriminator_forward.17} parent=0 // pred_region
    _
  $region21: #{discriminator_forward.17} parent=0 // pred_fallthru
    _
  %v20 = vld [vmem:[%s0] sm:$0xff]
  %v21 = vld [vmem:[%s0 + $0x8] sm:$0xff]
  %v22 = vld [vmem:[%s1] sm:$0xff]
  %v23 = vld [vmem:[%s1 + $0x8] sm:$0xff]
  %v24 = vld [vmem:[%s1 + $0x10] sm:$0xff]
  %v25 = vld [vmem:[%s1 + $0x18] sm:$0xff]
  %v26 = vld [vmem:[%s1 + $0x20] sm:$0xff]
  %v27 = vld [vmem:[%s1 + $0x28] sm:$0xff]
  %v28 = vld [vmem:[%s1 + $0x30] sm:$0xff]
  %v29 = vld [vmem:[%s1 + $0x38] sm:$0xff]
  %v30 = vld [vmem:[%s1 + $0x40] sm:$0xff]
  %v31 = vld [vmem:[%s1 + $0x48] sm:$0xff]
  %v32 = vld [vmem:[%s1 + $0x50] sm:$0xff]
  %v33 = vld [vmem:[%s1 + $0x58] sm:$0xff]
  %v34 = vld [vmem:[%s1 + $0x60] sm:$0xff]
  %v35 = vld [vmem:[%s1 + $0x68] sm:$0xff]
  %v36 = vld [vmem:[%s1 + $0x70] sm:$0xff]
  %v37 = vld [vmem:[%s1 + $0x78] sm:$0xff]
  %v38 = vld [vmem:[%s1 + $0x80] sm:$0xff]
  %v39 = vld [vmem:[%s1 + $0x88] sm:$0xff]
  %v40 = vld [vmem:[%s1 + $0x90] sm:$0xff]
  %v41 = vld [vmem:[%s1 + $0x98] sm:$0xff]
  %v42 = vld [vmem:[%s1 + $0xa0] sm:$0xff]
  %v43 = vld [vmem:[%s1 + $0xa8] sm:$0xff]
  %v44 = vld [vmem:[%s1 + $0xb0] sm:$0xff]
  %v45 = vld [vmem:[%s1 + $0xb8] sm:$0xff]
  %v46 = vld [vmem:[%s1 + $0xc0] sm:$0xff]
  %v47 = vld [vmem:[%s1 + $0xc8] sm:$0xff]
  %v48 = vld [vmem:[%s1 + $0xd0] sm:$0xff]
  %v49 = vld [vmem:[%s1 + $0xd8] sm:$0xff]
  %v50 = vld [vmem:[%s1 + $0xe0] sm:$0xff]
  %v51 = vld [vmem:[%s1 + $0xe8] sm:$0xff]
  %v52 = vld [vmem:[%s1 + $0xf0] sm:$0xff]
  %v53 = vld [vmem:[%s1 + $0xf8] sm:$0xff]
  %v54 = vld [vmem:[%s1 + $0x100] sm:$0xff]
  %v55 = vld [vmem:[%s1 + $0x108] sm:$0xff]
  %v56 = vld [vmem:[%s1 + $0x110] sm:$0xff]
  %v57 = vld [vmem:[%s1 + $0x118] sm:$0xff]
  %v58 = vld [vmem:[%s1 + $0x120] sm:$0xff]
  %v59 = vld [vmem:[%s1 + $0x128] sm:$0xff]
  %v60 = vld [vmem:[%s1 + $0x130] sm:$0xff]
  %v61 = vld [vmem:[%s1 + $0x138] sm:$0xff]
  %v62 = vld [vmem:[%s1 + $0x140] sm:$0xff]
  %v63 = vld [vmem:[%s1 + $0x148] sm:$0xff]
  %v64 = vld [vmem:[%s1 + $0x150] sm:$0xff]
  %v65 = vld [vmem:[%s1 + $0x158] sm:$0xff]
  %v66 = vld [vmem:[%s1 + $0x160] sm:$0xff]
  %v67 = vld [vmem:[%s1 + $0x168] sm:$0xff]
  %v68 = vld [vmem:[%s1 + $0x170] sm:$0xff]
  %v69 = vld [vmem:[%s1 + $0x178] sm:$0xff]
  %v70 = vld [vmem:[%s1 + $0x180] sm:$0xff]
  %v71 = vld [vmem:[%s1 + $0x188] sm:$0xff]
  %v72 = vld [vmem:[%s1 + $0x190] sm:$0xff]
  %v73 = vld [vmem:[%s1 + $0x198] sm:$0xff]
  %v74 = vld [vmem:[%s1 + $0x1a0] sm:$0xff]
  %v75 = vld [vmem:[%s1 + $0x1a8] sm:$0xff]
  %v76 = vld [vmem:[%s1 + $0x1b0] sm:$0xff]
  %v77 = vld [vmem:[%s1 + $0x1b8] sm:$0xff]
  %v78 = vld [vmem:[%s1 + $0x1c0] sm:$0xff]
  %v79 = vld [vmem:[%s1 + $0x1c8] sm:$0xff]
  %v80 = vld [vmem:[%s1 + $0x1d0] sm:$0xff]
  %v81 = vld [vmem:[%s1 + $0x1d8] sm:$0xff]
  %v82 = vld [vmem:[%s1 + $0x1e0] sm:$0xff]
  %v83 = vld [vmem:[%s1 + $0x1e8] sm:$0xff]
  %v84 = vld [vmem:[%s1 + $0x1f0] sm:$0xff]
  %v85 = vld [vmem:[%s1 + $0x1f8] sm:$0xff]
  %v86 = vld [vmem:[%s1 + $0x200] sm:$0xff]
  %v87 = vld [vmem:[%s1 + $0x208] sm:$0xff]
  %v88 = vld [vmem:[%s1 + $0x210] sm:$0xff]
  %v89 = vld [vmem:[%s1 + $0x218] sm:$0xff]
  %v90 = vld [vmem:[%s1 + $0x220] sm:$0xff]
  %v91 = vld [vmem:[%s1 + $0x228] sm:$0xff]
  %v92 = vld [vmem:[%s1 + $0x230] sm:$0xff]
  %v93 = vld [vmem:[%s1 + $0x238] sm:$0xff]
  %v94 = vld [vmem:[%s1 + $0x240] sm:$0xff]
  %v95 = vld [vmem:[%s1 + $0x248] sm:$0xff]
  %v96 = vld [vmem:[%s1 + $0x250] sm:$0xff]
  %v97 = vld [vmem:[%s1 + $0x258] sm:$0xff]
  %v98 = vld [vmem:[%s1 + $0x260] sm:$0xff]
  %v99 = vld [vmem:[%s1 + $0x268] sm:$0xff]
  %v100 = vld [vmem:[%s1 + $0x270] sm:$0xff]
  %v101 = vld [vmem:[%s1 + $0x278] sm:$0xff]
  %v102 = vld [vmem:[%s1 + $0x280] sm:$0xff]
  %v103 = vld [vmem:[%s1 + $0x288] sm:$0xff]
  %v104 = vld [vmem:[%s1 + $0x290] sm:$0xff]
  %v105 = vld [vmem:[%s1 + $0x298] sm:$0xff]
  %v106 = vld [vmem:[%s1 + $0x2a0] sm:$0xff]
  %v107 = vld [vmem:[%s1 + $0x2a8] sm:$0xff]
  %v108 = vld [vmem:[%s1 + $0x2b0] sm:$0xff]
  %v109 = vld [vmem:[%s1 + $0x2b8] sm:$0xff]
  %v110 = vld [vmem:[%s1 + $0x2c0] sm:$0xff]
  %v111 = vld [vmem:[%s1 + $0x2c8] sm:$0xff]
  %v112 = vld [vmem:[%s1 + $0x2d0] sm:$0xff]
  %v113 = vld [vmem:[%s1 + $0x2d8] sm:$0xff]
  %v114 = vld [vmem:[%s1 + $0x2e0] sm:$0xff]
  %v115 = vld [vmem:[%s1 + $0x2e8] sm:$0xff]
  %v116 = vld [vmem:[%s1 + $0x2f0] sm:$0xff]
  %v117 = vld [vmem:[%s1 + $0x2f8] sm:$0xff]
  %v118 = vld [vmem:[%s1 + $0x300] sm:$0xff]
  %v119 = vld [vmem:[%s1 + $0x308] sm:$0xff]
  %v120 = vld [vmem:[%s1 + $0x310] sm:$0xff]
  %v121 = vld [vmem:[%s1 + $0x318] sm:$0xff]
  %v122 = vld [vmem:[%s1 + $0x320] sm:$0xff]
  %v123 = vld [vmem:[%s1 + $0x328] sm:$0xff]
  %v124 = vld [vmem:[%s1 + $0x330] sm:$0xff]
  %v125 = vld [vmem:[%s1 + $0x338] sm:$0xff]
  %v126 = vld [vmem:[%s1 + $0x340] sm:$0xff]
  %v127 = vld [vmem:[%s1 + $0x348] sm:$0xff]
  %v128 = vld [vmem:[%s1 + $0x350] sm:$0xff]
  %v129 = vld [vmem:[%s1 + $0x358] sm:$0xff]
  %v130 = vld [vmem:[%s1 + $0x360] sm:$0xff]
  %v131 = vld [vmem:[%s1 + $0x368] sm:$0xff]
  %v132 = vld [vmem:[%s1 + $0x370] sm:$0xff]
  %v133 = vld [vmem:[%s1 + $0x378] sm:$0xff]
  %v134 = vld [vmem:[%s1 + $0x380] sm:$0xff]
  %v135 = vld [vmem:[%s1 + $0x388] sm:$0xff]
  %v136 = vld [vmem:[%s1 + $0x390] sm:$0xff]
  %v137 = vld [vmem:[%s1 + $0x398] sm:$0xff]
  %v138 = vld [vmem:[%s1 + $0x3a0] sm:$0xff]
  %v139 = vld [vmem:[%s1 + $0x3a8] sm:$0xff]
  %v140 = vld [vmem:[%s1 + $0x3b0] sm:$0xff]
  %v141 = vld [vmem:[%s1 + $0x3b8] sm:$0xff]
  %v142 = vld [vmem:[%s1 + $0x3c0] sm:$0xff]
  %v143 = vld [vmem:[%s1 + $0x3c8] sm:$0xff]
  %v144 = vld [vmem:[%s1 + $0x3d0] sm:$0xff]
  %v145 = vld [vmem:[%s1 + $0x3d8] sm:$0xff]
  %v146 = vld [vmem:[%s1 + $0x3e0] sm:$0xff]
  %v147 = vld [vmem:[%s1 + $0x3e8] sm:$0xff]
  %v148 = vld [vmem:[%s1 + $0x3f0] sm:$0xff]
  %v149 = vld [vmem:[%s1 + $0x3f8] sm:$0xff]
  %v150 = vld [vmem:[%s1 + $0x400] sm:$0xff]
  %v151 = vld [vmem:[%s1 + $0x408] sm:$0xff]
  %v152 = vld [vmem:[%s1 + $0x410] sm:$0xff]
  %v153 = vld [vmem:[%s1 + $0x418] sm:$0xff]
  %v154 = vld [vmem:[%s1 + $0x420] sm:$0xff]
  %v155 = vld [vmem:[%s1 + $0x428] sm:$0xff]
  %v156 = vld [vmem:[%s1 + $0x430] sm:$0xff]
  %v157 = vld [vmem:[%s1 + $0x438] sm:$0xff]
  %v158 = vld [vmem:[%s1 + $0x440] sm:$0xff]
  %v159 = vld [vmem:[%s1 + $0x448] sm:$0xff]
  %v160 = vld [vmem:[%s1 + $0x450] sm:$0xff]
  %v161 = vld [vmem:[%s1 + $0x458] sm:$0xff]
  %v162 = vld [vmem:[%s1 + $0x460] sm:$0xff]
  %v163 = vld [vmem:[%s1 + $0x468] sm:$0xff]
  %v164 = vld [vmem:[%s1 + $0x470] sm:$0xff]
  %v165 = vld [vmem:[%s1 + $0x478] sm:$0xff]
  %v166 = vld [vmem:[%s1 + $0x480] sm:$0xff]
  %v167 = vld [vmem:[%s1 + $0x488] sm:$0xff]
  %v168 = vld [vmem:[%s1 + $0x490] sm:$0xff]
  %v169 = vld [vmem:[%s1 + $0x498] sm:$0xff]
  %v170 = vld [vmem:[%s1 + $0x4a0] sm:$0xff]
  %v171 = vld [vmem:[%s1 + $0x4a8] sm:$0xff]
  %v172 = vld [vmem:[%s1 + $0x4b0] sm:$0xff]
  %v173 = vld [vmem:[%s1 + $0x4b8] sm:$0xff]
  %v174 = vld [vmem:[%s1 + $0x4c0] sm:$0xff]
  %v175 = vld [vmem:[%s1 + $0x4c8] sm:$0xff]
  %v176 = vld [vmem:[%s1 + $0x4d0] sm:$0xff]
  %v177 = vld [vmem:[%s1 + $0x4d8] sm:$0xff]
  %v178 = vld [vmem:[%s1 + $0x4e0] sm:$0xff]
  %v179 = vld [vmem:[%s1 + $0x4e8] sm:$0xff]
  %v180 = vld [vmem:[%s1 + $0x4f0] sm:$0xff]
  %v181 = vld [vmem:[%s1 + $0x4f8] sm:$0xff]
  %v182 = vld [vmem:[%s1 + $0x500] sm:$0xff]
  %v183 = vld [vmem:[%s1 + $0x508] sm:$0xff]
  %v184 = vld [vmem:[%s1 + $0x510] sm:$0xff]
  %v185 = vld [vmem:[%s1 + $0x518] sm:$0xff]
  %v186 = vld [vmem:[%s1 + $0x520] sm:$0xff]
  %v187 = vld [vmem:[%s1 + $0x528] sm:$0xff]
  %v188 = vld [vmem:[%s1 + $0x530] sm:$0xff]
  %v189 = vld [vmem:[%s1 + $0x538] sm:$0xff]
  %v190 = vld [vmem:[%s1 + $0x540] sm:$0xff]
  %v191 = vld [vmem:[%s1 + $0x548] sm:$0xff]
  %v192 = vld [vmem:[%s1 + $0x550] sm:$0xff]
  %v193 = vld [vmem:[%s1 + $0x558] sm:$0xff]
  %v194 = vld [vmem:[%s1 + $0x560] sm:$0xff]
  %v195 = vld [vmem:[%s1 + $0x568] sm:$0xff]
  %v196 = vld [vmem:[%s1 + $0x570] sm:$0xff]
  %v197 = vld [vmem:[%s1 + $0x578] sm:$0xff]
  %v198 = vld [vmem:[%s1 + $0x580] sm:$0xff]
  %v199 = vld [vmem:[%s1 + $0x588] sm:$0xff]
  %v200 = vld [vmem:[%s1 + $0x590] sm:$0xff]
  %v201 = vld [vmem:[%s1 + $0x598] sm:$0xff]
  %v202 = vld [vmem:[%s1 + $0x5a0] sm:$0xff]
  %v203 = vld [vmem:[%s1 + $0x5a8] sm:$0xff]
  %v204 = vld [vmem:[%s1 + $0x5b0] sm:$0xff]
  %v205 = vld [vmem:[%s1 + $0x5b8] sm:$0xff]
  %v206 = vld [vmem:[%s1 + $0x5c0] sm:$0xff]
  %v207 = vld [vmem:[%s1 + $0x5c8] sm:$0xff]
  %v208 = vld [vmem:[%s1 + $0x5d0] sm:$0xff]
  %v209 = vld [vmem:[%s1 + $0x5d8] sm:$0xff]
  %v210 = vld [vmem:[%s1 + $0x5e0] sm:$0xff]
  %v211 = vld [vmem:[%s1 + $0x5e8] sm:$0xff]
  %v212 = vld [vmem:[%s1 + $0x5f0] sm:$0xff]
  %v213 = vld [vmem:[%s1 + $0x5f8] sm:$0xff]
  %v214 = vld [vmem:[%s1 + $0x600] sm:$0xff]
  %v215 = vld [vmem:[%s1 + $0x608] sm:$0xff]
  %v216 = vld [vmem:[%s1 + $0x610] sm:$0xff]
  %v217 = vld [vmem:[%s1 + $0x618] sm:$0xff]
  %v218 = vld [vmem:[%s1 + $0x620] sm:$0xff]
  %v219 = vld [vmem:[%s1 + $0x628] sm:$0xff]
  %v220 = vld [vmem:[%s1 + $0x630] sm:$0xff]
  %v221 = vld [vmem:[%s1 + $0x638] sm:$0xff]
  %v222 = vld [vmem:[%s1 + $0x640] sm:$0xff]
  %v223 = vld [vmem:[%s1 + $0x648] sm:$0xff]
  %v224 = vld [vmem:[%s1 + $0x650] sm:$0xff]
  %v225 = vld [vmem:[%s1 + $0x658] sm:$0xff]
  %v226 = vld [vmem:[%s1 + $0x660] sm:$0xff]
  %v227 = vld [vmem:[%s1 + $0x668] sm:$0xff]
  %v228 = vld [vmem:[%s1 + $0x670] sm:$0xff]
  %v229 = vld [vmem:[%s1 + $0x678] sm:$0xff]
  %v230 = vld [vmem:[%s1 + $0x680] sm:$0xff]
  %v231 = vld [vmem:[%s1 + $0x688] sm:$0xff]
  %v232 = vld [vmem:[%s1 + $0x690] sm:$0xff]
  %v233 = vld [vmem:[%s1 + $0x698] sm:$0xff]
  %v234 = vld [vmem:[%s1 + $0x6a0] sm:$0xff]
  %v235 = vld [vmem:[%s1 + $0x6a8] sm:$0xff]
  %v236 = vld [vmem:[%s1 + $0x6b0] sm:$0xff]
  %v237 = vld [vmem:[%s1 + $0x6b8] sm:$0xff]
  %v238 = vld [vmem:[%s1 + $0x6c0] sm:$0xff]
  %v239 = vld [vmem:[%s1 + $0x6c8] sm:$0xff]
  %v240 = vld [vmem:[%s1 + $0x6d0] sm:$0xff]
  %v241 = vld [vmem:[%s1 + $0x6d8] sm:$0xff]
  %v242 = vld [vmem:[%s1 + $0x6e0] sm:$0xff]
  %v243 = vld [vmem:[%s1 + $0x6e8] sm:$0xff]
  %v244 = vld [vmem:[%s1 + $0x6f0] sm:$0xff]
  %v245 = vld [vmem:[%s1 + $0x6f8] sm:$0xff]
  %v246 = vld [vmem:[%s1 + $0x700] sm:$0xff]
  %v247 = vld [vmem:[%s1 + $0x708] sm:$0xff]
  %v248 = vld [vmem:[%s1 + $0x710] sm:$0xff]
  %v249 = vld [vmem:[%s1 + $0x718] sm:$0xff]
  %v250 = vld [vmem:[%s1 + $0x720] sm:$0xff]
  %v251 = vld [vmem:[%s1 + $0x728] sm:$0xff]
  %v252 = vld [vmem:[%s1 + $0x730] sm:$0xff]
  %v253 = vld [vmem:[%s1 + $0x738] sm:$0xff]
  %v254 = vld [vmem:[%s1 + $0x740] sm:$0xff]
  %v255 = vld [vmem:[%s1 + $0x748] sm:$0xff]
  %v256 = vld [vmem:[%s1 + $0x750] sm:$0xff]
  %v257 = vld [vmem:[%s1 + $0x758] sm:$0xff]
  %v258 = vld [vmem:[%s1 + $0x760] sm:$0xff]
  %v259 = vld [vmem:[%s1 + $0x768] sm:$0xff]
  %v260 = vld [vmem:[%s1 + $0x770] sm:$0xff]
  %v261 = vld [vmem:[%s1 + $0x778] sm:$0xff]
  %v262 = vld [vmem:[%s1 + $0x780] sm:$0xff]
  %v263 = vld [vmem:[%s1 + $0x788] sm:$0xff]
  %v264 = vld [vmem:[%s1 + $0x790] sm:$0xff]
  %v265 = vld [vmem:[%s1 + $0x798] sm:$0xff]
  %v266 = vld [vmem:[%s1 + $0x7a0] sm:$0xff]
  %v267 = vld [vmem:[%s1 + $0x7a8] sm:$0xff]
  %v268 = vld [vmem:[%s1 + $0x7b0] sm:$0xff]
  %v269 = vld [vmem:[%s1 + $0x7b8] sm:$0xff]
  %v270 = vld [vmem:[%s1 + $0x7c0] sm:$0xff]
  %v271 = vld [vmem:[%s1 + $0x7c8] sm:$0xff]
  %v272 = vld [vmem:[%s1 + $0x7d0] sm:$0xff]
  %v273 = vld [vmem:[%s1 + $0x7d8] sm:$0xff]
  %v274 = vld [vmem:[%s1 + $0x7e0] sm:$0xff]
  %v275 = vld [vmem:[%s1 + $0x7e8] sm:$0xff]
  %v276 = vld [vmem:[%s1 + $0x7f0] sm:$0xff]
  %v277 = vld [vmem:[%s1 + $0x7f8] sm:$0xff]
  %v278 = vld [vmem:[%s2] sm:$0xff]
  %v280 = vperm.slane %v278, 0
  %v281 = vperm.slane %v278, 1
  %v282 = vperm.slane %v278, 2
  %v283 = vperm.slane %v278, 3
  %v284 = vperm.slane %v278, 4
  %v285 = vperm.slane %v278, 5
  %v286 = vperm.slane %v278, 6
  %v287 = vperm.slane %v278, 7
  %v298 = vunpack.c.l.b16 %v20
  %v299 = vunpack.c.h.b16 %v20
  %v300 = vunpack.c.l.b16 %v21
  %v301 = vunpack.c.h.b16 %v21
  %v302 = vpack.c.b16 %v298, %v298
  %v303 = vpack.c.b16 %v299, %v299
  %v304 = vpack.c.b16 %v300, %v300
  %v305 = vpack.c.b16 %v301, %v301
  %v566 = vunpack.c.l.b16 %v22
  %v567 = vunpack.c.h.b16 %v22
  %v568 = vunpack.c.l.b16 %v23
  %v569 = vunpack.c.h.b16 %v23
  %v570 = vunpack.c.l.b16 %v24
  %v571 = vunpack.c.h.b16 %v24
  %v572 = vunpack.c.l.b16 %v25
  %v573 = vunpack.c.h.b16 %v25
  %v574 = vunpack.c.l.b16 %v26
  %v575 = vunpack.c.h.b16 %v26
  %v576 = vunpack.c.l.b16 %v27
  %v577 = vunpack.c.h.b16 %v27
  %v578 = vunpack.c.l.b16 %v28
  %v579 = vunpack.c.h.b16 %v28
  %v580 = vunpack.c.l.b16 %v29
  %v581 = vunpack.c.h.b16 %v29
  %v582 = vunpack.c.l.b16 %v30
  %v583 = vunpack.c.h.b16 %v30
  %v584 = vunpack.c.l.b16 %v31
  %v585 = vunpack.c.h.b16 %v31
  %v586 = vunpack.c.l.b16 %v32
  %v587 = vunpack.c.h.b16 %v32
  %v588 = vunpack.c.l.b16 %v33
  %v589 = vunpack.c.h.b16 %v33
  %v590 = vunpack.c.l.b16 %v34
  %v591 = vunpack.c.h.b16 %v34
  %v592 = vunpack.c.l.b16 %v35
  %v593 = vunpack.c.h.b16 %v35
  %v594 = vunpack.c.l.b16 %v36
  %v595 = vunpack.c.h.b16 %v36
  %v596 = vunpack.c.l.b16 %v37
  %v597 = vunpack.c.h.b16 %v37
  %v598 = vunpack.c.l.b16 %v38
  %v599 = vunpack.c.h.b16 %v38
  %v600 = vunpack.c.l.b16 %v39
  %v601 = vunpack.c.h.b16 %v39
  %v602 = vunpack.c.l.b16 %v40
  %v603 = vunpack.c.h.b16 %v40
  %v604 = vunpack.c.l.b16 %v41
  %v605 = vunpack.c.h.b16 %v41
  %v606 = vunpack.c.l.b16 %v42
  %v607 = vunpack.c.h.b16 %v42
  %v608 = vunpack.c.l.b16 %v43
  %v609 = vunpack.c.h.b16 %v43
  %v610 = vunpack.c.l.b16 %v44
  %v611 = vunpack.c.h.b16 %v44
  %v612 = vunpack.c.l.b16 %v45
  %v613 = vunpack.c.h.b16 %v45
  %v614 = vunpack.c.l.b16 %v46
  %v615 = vunpack.c.h.b16 %v46
  %v616 = vunpack.c.l.b16 %v47
  %v617 = vunpack.c.h.b16 %v47
  %v618 = vunpack.c.l.b16 %v48
  %v619 = vunpack.c.h.b16 %v48
  %v620 = vunpack.c.l.b16 %v49
  %v621 = vunpack.c.h.b16 %v49
  %v622 = vunpack.c.l.b16 %v50
  %v623 = vunpack.c.h.b16 %v50
  %v624 = vunpack.c.l.b16 %v51
  %v625 = vunpack.c.h.b16 %v51
  %v626 = vunpack.c.l.b16 %v52
  %v627 = vunpack.c.h.b16 %v52
  %v628 = vunpack.c.l.b16 %v53
  %v629 = vunpack.c.h.b16 %v53
  %v630 = vunpack.c.l.b16 %v54
  %v631 = vunpack.c.h.b16 %v54
  %v632 = vunpack.c.l.b16 %v55
  %v633 = vunpack.c.h.b16 %v55
  %v634 = vunpack.c.l.b16 %v56
  %v635 = vunpack.c.h.b16 %v56
  %v636 = vunpack.c.l.b16 %v57
  %v637 = vunpack.c.h.b16 %v57
  %v638 = vunpack.c.l.b16 %v58
  %v639 = vunpack.c.h.b16 %v58
  %v640 = vunpack.c.l.b16 %v59
  %v641 = vunpack.c.h.b16 %v59
  %v642 = vunpack.c.l.b16 %v60
  %v643 = vunpack.c.h.b16 %v60
  %v644 = vunpack.c.l.b16 %v61
  %v645 = vunpack.c.h.b16 %v61
  %v646 = vunpack.c.l.b16 %v62
  %v647 = vunpack.c.h.b16 %v62
  %v648 = vunpack.c.l.b16 %v63
  %v649 = vunpack.c.h.b16 %v63
  %v650 = vunpack.c.l.b16 %v64
  %v651 = vunpack.c.h.b16 %v64
  %v652 = vunpack.c.l.b16 %v65
  %v653 = vunpack.c.h.b16 %v65
  %v654 = vunpack.c.l.b16 %v66
  %v655 = vunpack.c.h.b16 %v66
  %v656 = vunpack.c.l.b16 %v67
  %v657 = vunpack.c.h.b16 %v67
  %v658 = vunpack.c.l.b16 %v68
  %v659 = vunpack.c.h.b16 %v68
  %v660 = vunpack.c.l.b16 %v69
  %v661 = vunpack.c.h.b16 %v69
  %v662 = vunpack.c.l.b16 %v70
  %v663 = vunpack.c.h.b16 %v70
  %v664 = vunpack.c.l.b16 %v71
  %v665 = vunpack.c.h.b16 %v71
  %v666 = vunpack.c.l.b16 %v72
  %v667 = vunpack.c.h.b16 %v72
  %v668 = vunpack.c.l.b16 %v73
  %v669 = vunpack.c.h.b16 %v73
  %v670 = vunpack.c.l.b16 %v74
  %v671 = vunpack.c.h.b16 %v74
  %v672 = vunpack.c.l.b16 %v75
  %v673 = vunpack.c.h.b16 %v75
  %v674 = vunpack.c.l.b16 %v76
  %v675 = vunpack.c.h.b16 %v76
  %v676 = vunpack.c.l.b16 %v77
  %v677 = vunpack.c.h.b16 %v77
  %v678 = vunpack.c.l.b16 %v78
  %v679 = vunpack.c.h.b16 %v78
  %v680 = vunpack.c.l.b16 %v79
  %v681 = vunpack.c.h.b16 %v79
  %v682 = vunpack.c.l.b16 %v80
  %v683 = vunpack.c.h.b16 %v80
  %v684 = vunpack.c.l.b16 %v81
  %v685 = vunpack.c.h.b16 %v81
  %v686 = vunpack.c.l.b16 %v82
  %v687 = vunpack.c.h.b16 %v82
  %v688 = vunpack.c.l.b16 %v83
  %v689 = vunpack.c.h.b16 %v83
  %v690 = vunpack.c.l.b16 %v84
  %v691 = vunpack.c.h.b16 %v84
  %v692 = vunpack.c.l.b16 %v85
  %v693 = vunpack.c.h.b16 %v85
  %v694 = vunpack.c.l.b16 %v86
  %v695 = vunpack.c.h.b16 %v86
  %v696 = vunpack.c.l.b16 %v87
  %v697 = vunpack.c.h.b16 %v87
  %v698 = vunpack.c.l.b16 %v88
  %v699 = vunpack.c.h.b16 %v88
  %v700 = vunpack.c.l.b16 %v89
  %v701 = vunpack.c.h.b16 %v89
  %v702 = vunpack.c.l.b16 %v90
  %v703 = vunpack.c.h.b16 %v90
  %v704 = vunpack.c.l.b16 %v91
  %v705 = vunpack.c.h.b16 %v91
  %v706 = vunpack.c.l.b16 %v92
  %v707 = vunpack.c.h.b16 %v92
  %v708 = vunpack.c.l.b16 %v93
  %v709 = vunpack.c.h.b16 %v93
  %v710 = vunpack.c.l.b16 %v94
  %v711 = vunpack.c.h.b16 %v94
  %v712 = vunpack.c.l.b16 %v95
  %v713 = vunpack.c.h.b16 %v95
  %v714 = vunpack.c.l.b16 %v96
  %v715 = vunpack.c.h.b16 %v96
  %v716 = vunpack.c.l.b16 %v97
  %v717 = vunpack.c.h.b16 %v97
  %v718 = vunpack.c.l.b16 %v98
  %v719 = vunpack.c.h.b16 %v98
  %v720 = vunpack.c.l.b16 %v99
  %v721 = vunpack.c.h.b16 %v99
  %v722 = vunpack.c.l.b16 %v100
  %v723 = vunpack.c.h.b16 %v100
  %v724 = vunpack.c.l.b16 %v101
  %v725 = vunpack.c.h.b16 %v101
  %v726 = vunpack.c.l.b16 %v102
  %v727 = vunpack.c.h.b16 %v102
  %v728 = vunpack.c.l.b16 %v103
  %v729 = vunpack.c.h.b16 %v103
  %v730 = vunpack.c.l.b16 %v104
  %v731 = vunpack.c.h.b16 %v104
  %v732 = vunpack.c.l.b16 %v105
  %v733 = vunpack.c.h.b16 %v105
  %v734 = vunpack.c.l.b16 %v106
  %v735 = vunpack.c.h.b16 %v106
  %v736 = vunpack.c.l.b16 %v107
  %v737 = vunpack.c.h.b16 %v107
  %v738 = vunpack.c.l.b16 %v108
  %v739 = vunpack.c.h.b16 %v108
  %v740 = vunpack.c.l.b16 %v109
  %v741 = vunpack.c.h.b16 %v109
  %v742 = vunpack.c.l.b16 %v110
  %v743 = vunpack.c.h.b16 %v110
  %v744 = vunpack.c.l.b16 %v111
  %v745 = vunpack.c.h.b16 %v111
  %v746 = vunpack.c.l.b16 %v112
  %v747 = vunpack.c.h.b16 %v112
  %v748 = vunpack.c.l.b16 %v113
  %v749 = vunpack.c.h.b16 %v113
  %v750 = vunpack.c.l.b16 %v114
  %v751 = vunpack.c.h.b16 %v114
  %v752 = vunpack.c.l.b16 %v115
  %v753 = vunpack.c.h.b16 %v115
  %v754 = vunpack.c.l.b16 %v116
  %v755 = vunpack.c.h.b16 %v116
  %v756 = vunpack.c.l.b16 %v117
  %v757 = vunpack.c.h.b16 %v117
  %v758 = vunpack.c.l.b16 %v118
  %v759 = vunpack.c.h.b16 %v118
  %v760 = vunpack.c.l.b16 %v119
  %v761 = vunpack.c.h.b16 %v119
  %v762 = vunpack.c.l.b16 %v120
  %v763 = vunpack.c.h.b16 %v120
  %v764 = vunpack.c.l.b16 %v121
  %v765 = vunpack.c.h.b16 %v121
  %v766 = vunpack.c.l.b16 %v122
  %v767 = vunpack.c.h.b16 %v122
  %v768 = vunpack.c.l.b16 %v123
  %v769 = vunpack.c.h.b16 %v123
  %v770 = vunpack.c.l.b16 %v124
  %v771 = vunpack.c.h.b16 %v124
  %v772 = vunpack.c.l.b16 %v125
  %v773 = vunpack.c.h.b16 %v125
  %v774 = vunpack.c.l.b16 %v126
  %v775 = vunpack.c.h.b16 %v126
  %v776 = vunpack.c.l.b16 %v127
  %v777 = vunpack.c.h.b16 %v127
  %v778 = vunpack.c.l.b16 %v128
  %v779 = vunpack.c.h.b16 %v128
  %v780 = vunpack.c.l.b16 %v129
  %v781 = vunpack.c.h.b16 %v129
  %v782 = vunpack.c.l.b16 %v130
  %v783 = vunpack.c.h.b16 %v130
  %v784 = vunpack.c.l.b16 %v131
  %v785 = vunpack.c.h.b16 %v131
  %v786 = vunpack.c.l.b16 %v132
  %v787 = vunpack.c.h.b16 %v132
  %v788 = vunpack.c.l.b16 %v133
  %v789 = vunpack.c.h.b16 %v133
  %v790 = vunpack.c.l.b16 %v134
  %v791 = vunpack.c.h.b16 %v134
  %v792 = vunpack.c.l.b16 %v135
  %v793 = vunpack.c.h.b16 %v135
  %v794 = vunpack.c.l.b16 %v136
  %v795 = vunpack.c.h.b16 %v136
  %v796 = vunpack.c.l.b16 %v137
  %v797 = vunpack.c.h.b16 %v137
  %v798 = vunpack.c.l.b16 %v138
  %v799 = vunpack.c.h.b16 %v138
  %v800 = vunpack.c.l.b16 %v139
  %v801 = vunpack.c.h.b16 %v139
  %v802 = vunpack.c.l.b16 %v140
  %v803 = vunpack.c.h.b16 %v140
  %v804 = vunpack.c.l.b16 %v141
  %v805 = vunpack.c.h.b16 %v141
  %v806 = vunpack.c.l.b16 %v142
  %v807 = vunpack.c.h.b16 %v142
  %v808 = vunpack.c.l.b16 %v143
  %v809 = vunpack.c.h.b16 %v143
  %v810 = vunpack.c.l.b16 %v144
  %v811 = vunpack.c.h.b16 %v144
  %v812 = vunpack.c.l.b16 %v145
  %v813 = vunpack.c.h.b16 %v145
  %v814 = vunpack.c.l.b16 %v146
  %v815 = vunpack.c.h.b16 %v146
  %v816 = vunpack.c.l.b16 %v147
  %v817 = vunpack.c.h.b16 %v147
  %v818 = vunpack.c.l.b16 %v148
  %v819 = vunpack.c.h.b16 %v148
  %v820 = vunpack.c.l.b16 %v149
  %v821 = vunpack.c.h.b16 %v149
  %v822 = vunpack.c.l.b16 %v150
  %v823 = vunpack.c.h.b16 %v150
  %v824 = vunpack.c.l.b16 %v151
  %v825 = vunpack.c.h.b16 %v151
  %v826 = vunpack.c.l.b16 %v152
  %v827 = vunpack.c.h.b16 %v152
  %v828 = vunpack.c.l.b16 %v153
  %v829 = vunpack.c.h.b16 %v153
  %v830 = vunpack.c.l.b16 %v154
  %v831 = vunpack.c.h.b16 %v154
  %v832 = vunpack.c.l.b16 %v155
  %v833 = vunpack.c.h.b16 %v155
  %v834 = vunpack.c.l.b16 %v156
  %v835 = vunpack.c.h.b16 %v156
  %v836 = vunpack.c.l.b16 %v157
  %v837 = vunpack.c.h.b16 %v157
  %v838 = vunpack.c.l.b16 %v158
  %v839 = vunpack.c.h.b16 %v158
  %v840 = vunpack.c.l.b16 %v159
  %v841 = vunpack.c.h.b16 %v159
  %v842 = vunpack.c.l.b16 %v160
  %v843 = vunpack.c.h.b16 %v160
  %v844 = vunpack.c.l.b16 %v161
  %v845 = vunpack.c.h.b16 %v161
  %v846 = vunpack.c.l.b16 %v162
  %v847 = vunpack.c.h.b16 %v162
  %v848 = vunpack.c.l.b16 %v163
  %v849 = vunpack.c.h.b16 %v163
  %v850 = vunpack.c.l.b16 %v164
  %v851 = vunpack.c.h.b16 %v164
  %v852 = vunpack.c.l.b16 %v165
  %v853 = vunpack.c.h.b16 %v165
  %v854 = vunpack.c.l.b16 %v166
  %v855 = vunpack.c.h.b16 %v166
  %v856 = vunpack.c.l.b16 %v167
  %v857 = vunpack.c.h.b16 %v167
  %v858 = vunpack.c.l.b16 %v168
  %v859 = vunpack.c.h.b16 %v168
  %v860 = vunpack.c.l.b16 %v169
  %v861 = vunpack.c.h.b16 %v169
  %v862 = vunpack.c.l.b16 %v170
  %v863 = vunpack.c.h.b16 %v170
  %v864 = vunpack.c.l.b16 %v171
  %v865 = vunpack.c.h.b16 %v171
  %v866 = vunpack.c.l.b16 %v172
  %v867 = vunpack.c.h.b16 %v172
  %v868 = vunpack.c.l.b16 %v173
  %v869 = vunpack.c.h.b16 %v173
  %v870 = vunpack.c.l.b16 %v174
  %v871 = vunpack.c.h.b16 %v174
  %v872 = vunpack.c.l.b16 %v175
  %v873 = vunpack.c.h.b16 %v175
  %v874 = vunpack.c.l.b16 %v176
  %v875 = vunpack.c.h.b16 %v176
  %v876 = vunpack.c.l.b16 %v177
  %v877 = vunpack.c.h.b16 %v177
  %v878 = vunpack.c.l.b16 %v178
  %v879 = vunpack.c.h.b16 %v178
  %v880 = vunpack.c.l.b16 %v179
  %v881 = vunpack.c.h.b16 %v179
  %v882 = vunpack.c.l.b16 %v180
  %v883 = vunpack.c.h.b16 %v180
  %v884 = vunpack.c.l.b16 %v181
  %v885 = vunpack.c.h.b16 %v181
  %v886 = vunpack.c.l.b16 %v182
  %v887 = vunpack.c.h.b16 %v182
  %v888 = vunpack.c.l.b16 %v183
  %v889 = vunpack.c.h.b16 %v183
  %v890 = vunpack.c.l.b16 %v184
  %v891 = vunpack.c.h.b16 %v184
  %v892 = vunpack.c.l.b16 %v185
  %v893 = vunpack.c.h.b16 %v185
  %v894 = vunpack.c.l.b16 %v186
  %v895 = vunpack.c.h.b16 %v186
  %v896 = vunpack.c.l.b16 %v187
  %v897 = vunpack.c.h.b16 %v187
  %v898 = vunpack.c.l.b16 %v188
  %v899 = vunpack.c.h.b16 %v188
  %v900 = vunpack.c.l.b16 %v189
  %v901 = vunpack.c.h.b16 %v189
  %v902 = vunpack.c.l.b16 %v190
  %v903 = vunpack.c.h.b16 %v190
  %v904 = vunpack.c.l.b16 %v191
  %v905 = vunpack.c.h.b16 %v191
  %v906 = vunpack.c.l.b16 %v192
  %v907 = vunpack.c.h.b16 %v192
  %v908 = vunpack.c.l.b16 %v193
  %v909 = vunpack.c.h.b16 %v193
  %v910 = vunpack.c.l.b16 %v194
  %v911 = vunpack.c.h.b16 %v194
  %v912 = vunpack.c.l.b16 %v195
  %v913 = vunpack.c.h.b16 %v195
  %v914 = vunpack.c.l.b16 %v196
  %v915 = vunpack.c.h.b16 %v196
  %v916 = vunpack.c.l.b16 %v197
  %v917 = vunpack.c.h.b16 %v197
  %v918 = vunpack.c.l.b16 %v198
  %v919 = vunpack.c.h.b16 %v198
  %v920 = vunpack.c.l.b16 %v199
  %v921 = vunpack.c.h.b16 %v199
  %v922 = vunpack.c.l.b16 %v200
  %v923 = vunpack.c.h.b16 %v200
  %v924 = vunpack.c.l.b16 %v201
  %v925 = vunpack.c.h.b16 %v201
  %v926 = vunpack.c.l.b16 %v202
  %v927 = vunpack.c.h.b16 %v202
  %v928 = vunpack.c.l.b16 %v203
  %v929 = vunpack.c.h.b16 %v203
  %v930 = vunpack.c.l.b16 %v204
  %v931 = vunpack.c.h.b16 %v204
  %v932 = vunpack.c.l.b16 %v205
  %v933 = vunpack.c.h.b16 %v205
  %v934 = vunpack.c.l.b16 %v206
  %v935 = vunpack.c.h.b16 %v206
  %v936 = vunpack.c.l.b16 %v207
  %v937 = vunpack.c.h.b16 %v207
  %v938 = vunpack.c.l.b16 %v208
  %v939 = vunpack.c.h.b16 %v208
  %v940 = vunpack.c.l.b16 %v209
  %v941 = vunpack.c.h.b16 %v209
  %v942 = vunpack.c.l.b16 %v210
  %v943 = vunpack.c.h.b16 %v210
  %v944 = vunpack.c.l.b16 %v211
  %v945 = vunpack.c.h.b16 %v211
  %v946 = vunpack.c.l.b16 %v212
  %v947 = vunpack.c.h.b16 %v212
  %v948 = vunpack.c.l.b16 %v213
  %v949 = vunpack.c.h.b16 %v213
  %v950 = vunpack.c.l.b16 %v214
  %v951 = vunpack.c.h.b16 %v214
  %v952 = vunpack.c.l.b16 %v215
  %v953 = vunpack.c.h.b16 %v215
  %v954 = vunpack.c.l.b16 %v216
  %v955 = vunpack.c.h.b16 %v216
  %v956 = vunpack.c.l.b16 %v217
  %v957 = vunpack.c.h.b16 %v217
  %v958 = vunpack.c.l.b16 %v218
  %v959 = vunpack.c.h.b16 %v218
  %v960 = vunpack.c.l.b16 %v219
  %v961 = vunpack.c.h.b16 %v219
  %v962 = vunpack.c.l.b16 %v220
  %v963 = vunpack.c.h.b16 %v220
  %v964 = vunpack.c.l.b16 %v221
  %v965 = vunpack.c.h.b16 %v221
  %v966 = vunpack.c.l.b16 %v222
  %v967 = vunpack.c.h.b16 %v222
  %v968 = vunpack.c.l.b16 %v223
  %v969 = vunpack.c.h.b16 %v223
  %v970 = vunpack.c.l.b16 %v224
  %v971 = vunpack.c.h.b16 %v224
  %v972 = vunpack.c.l.b16 %v225
  %v973 = vunpack.c.h.b16 %v225
  %v974 = vunpack.c.l.b16 %v226
  %v975 = vunpack.c.h.b16 %v226
  %v976 = vunpack.c.l.b16 %v227
  %v977 = vunpack.c.h.b16 %v227
  %v978 = vunpack.c.l.b16 %v228
  %v979 = vunpack.c.h.b16 %v228
  %v980 = vunpack.c.l.b16 %v229
  %v981 = vunpack.c.h.b16 %v229
  %v982 = vunpack.c.l.b16 %v230
  %v983 = vunpack.c.h.b16 %v230
  %v984 = vunpack.c.l.b16 %v231
  %v985 = vunpack.c.h.b16 %v231
  %v986 = vunpack.c.l.b16 %v232
  %v987 = vunpack.c.h.b16 %v232
  %v988 = vunpack.c.l.b16 %v233
  %v989 = vunpack.c.h.b16 %v233
  %v990 = vunpack.c.l.b16 %v234
  %v991 = vunpack.c.h.b16 %v234
  %v992 = vunpack.c.l.b16 %v235
  %v993 = vunpack.c.h.b16 %v235
  %v994 = vunpack.c.l.b16 %v236
  %v995 = vunpack.c.h.b16 %v236
  %v996 = vunpack.c.l.b16 %v237
  %v997 = vunpack.c.h.b16 %v237
  %v998 = vunpack.c.l.b16 %v238
  %v999 = vunpack.c.h.b16 %v238
  %v1000 = vunpack.c.l.b16 %v239
  %v1001 = vunpack.c.h.b16 %v239
  %v1002 = vunpack.c.l.b16 %v240
  %v1003 = vunpack.c.h.b16 %v240
  %v1004 = vunpack.c.l.b16 %v241
  %v1005 = vunpack.c.h.b16 %v241
  %v1006 = vunpack.c.l.b16 %v242
  %v1007 = vunpack.c.h.b16 %v242
  %v1008 = vunpack.c.l.b16 %v243
  %v1009 = vunpack.c.h.b16 %v243
  %v1010 = vunpack.c.l.b16 %v244
  %v1011 = vunpack.c.h.b16 %v244
  %v1012 = vunpack.c.l.b16 %v245
  %v1013 = vunpack.c.h.b16 %v245
  %v1014 = vunpack.c.l.b16 %v246
  %v1015 = vunpack.c.h.b16 %v246
  %v1016 = vunpack.c.l.b16 %v247
  %v1017 = vunpack.c.h.b16 %v247
  %v1018 = vunpack.c.l.b16 %v248
  %v1019 = vunpack.c.h.b16 %v248
  %v1020 = vunpack.c.l.b16 %v249
  %v1021 = vunpack.c.h.b16 %v249
  %v1022 = vunpack.c.l.b16 %v250
  %v1023 = vunpack.c.h.b16 %v250
  %v1024 = vunpack.c.l.b16 %v251
  %v1025 = vunpack.c.h.b16 %v251
  %v1026 = vunpack.c.l.b16 %v252
  %v1027 = vunpack.c.h.b16 %v252
  %v1028 = vunpack.c.l.b16 %v253
  %v1029 = vunpack.c.h.b16 %v253
  %v1030 = vunpack.c.l.b16 %v254
  %v1031 = vunpack.c.h.b16 %v254
  %v1032 = vunpack.c.l.b16 %v255
  %v1033 = vunpack.c.h.b16 %v255
  %v1034 = vunpack.c.l.b16 %v256
  %v1035 = vunpack.c.h.b16 %v256
  %v1036 = vunpack.c.l.b16 %v257
  %v1037 = vunpack.c.h.b16 %v257
  %v1038 = vunpack.c.l.b16 %v258
  %v1039 = vunpack.c.h.b16 %v258
  %v1040 = vunpack.c.l.b16 %v259
  %v1041 = vunpack.c.h.b16 %v259
  %v1042 = vunpack.c.l.b16 %v260
  %v1043 = vunpack.c.h.b16 %v260
  %v1044 = vunpack.c.l.b16 %v261
  %v1045 = vunpack.c.h.b16 %v261
  %v1046 = vunpack.c.l.b16 %v262
  %v1047 = vunpack.c.h.b16 %v262
  %v1048 = vunpack.c.l.b16 %v263
  %v1049 = vunpack.c.h.b16 %v263
  %v1050 = vunpack.c.l.b16 %v264
  %v1051 = vunpack.c.h.b16 %v264
  %v1052 = vunpack.c.l.b16 %v265
  %v1053 = vunpack.c.h.b16 %v265
  %v1054 = vunpack.c.l.b16 %v266
  %v1055 = vunpack.c.h.b16 %v266
  %v1056 = vunpack.c.l.b16 %v267
  %v1057 = vunpack.c.h.b16 %v267
  %v1058 = vunpack.c.l.b16 %v268
  %v1059 = vunpack.c.h.b16 %v268
  %v1060 = vunpack.c.l.b16 %v269
  %v1061 = vunpack.c.h.b16 %v269
  %v1062 = vunpack.c.l.b16 %v270
  %v1063 = vunpack.c.h.b16 %v270
  %v1064 = vunpack.c.l.b16 %v271
  %v1065 = vunpack.c.h.b16 %v271
  %v1066 = vunpack.c.l.b16 %v272
  %v1067 = vunpack.c.h.b16 %v272
  %v1068 = vunpack.c.l.b16 %v273
  %v1069 = vunpack.c.h.b16 %v273
  %v1070 = vunpack.c.l.b16 %v274
  %v1071 = vunpack.c.h.b16 %v274
  %v1072 = vunpack.c.l.b16 %v275
  %v1073 = vunpack.c.h.b16 %v275
  %v1074 = vunpack.c.l.b16 %v276
  %v1075 = vunpack.c.h.b16 %v276
  %v1076 = vunpack.c.l.b16 %v277
  %v1077 = vunpack.c.h.b16 %v277
  %v1078 = vpack.c.b16 %v574, %v566
  %v1079 = vpack.c.b16 %v575, %v567
  %v1080 = vpack.c.b16 %v576, %v568
  %v1081 = vpack.c.b16 %v577, %v569
  %v1082 = vpack.c.b16 %v578, %v570
  %v1083 = vpack.c.b16 %v579, %v571
  %v1084 = vpack.c.b16 %v580, %v572
  %v1085 = vpack.c.b16 %v581, %v573
  %v1086 = vpack.c.b16 %v590, %v582
  %v1087 = vpack.c.b16 %v591, %v583
  %v1088 = vpack.c.b16 %v592, %v584
  %v1089 = vpack.c.b16 %v593, %v585
  %v1090 = vpack.c.b16 %v594, %v586
  %v1091 = vpack.c.b16 %v595, %v587
  %v1092 = vpack.c.b16 %v596, %v588
  %v1093 = vpack.c.b16 %v597, %v589
  %v1094 = vpack.c.b16 %v606, %v598
  %v1095 = vpack.c.b16 %v607, %v599
  %v1096 = vpack.c.b16 %v608, %v600
  %v1097 = vpack.c.b16 %v609, %v601
  %v1098 = vpack.c.b16 %v610, %v602
  %v1099 = vpack.c.b16 %v611, %v603
  %v1100 = vpack.c.b16 %v612, %v604
  %v1101 = vpack.c.b16 %v613, %v605
  %v1102 = vpack.c.b16 %v622, %v614
  %v1103 = vpack.c.b16 %v623, %v615
  %v1104 = vpack.c.b16 %v624, %v616
  %v1105 = vpack.c.b16 %v625, %v617
  %v1106 = vpack.c.b16 %v626, %v618
  %v1107 = vpack.c.b16 %v627, %v619
  %v1108 = vpack.c.b16 %v628, %v620
  %v1109 = vpack.c.b16 %v629, %v621
  %v1110 = vpack.c.b16 %v638, %v630
  %v1111 = vpack.c.b16 %v639, %v631
  %v1112 = vpack.c.b16 %v640, %v632
  %v1113 = vpack.c.b16 %v641, %v633
  %v1114 = vpack.c.b16 %v642, %v634
  %v1115 = vpack.c.b16 %v643, %v635
  %v1116 = vpack.c.b16 %v644, %v636
  %v1117 = vpack.c.b16 %v645, %v637
  %v1118 = vpack.c.b16 %v654, %v646
  %v1119 = vpack.c.b16 %v655, %v647
  %v1120 = vpack.c.b16 %v656, %v648
  %v1121 = vpack.c.b16 %v657, %v649
  %v1122 = vpack.c.b16 %v658, %v650
  %v1123 = vpack.c.b16 %v659, %v651
  %v1124 = vpack.c.b16 %v660, %v652
  %v1125 = vpack.c.b16 %v661, %v653
  %v1126 = vpack.c.b16 %v670, %v662
  %v1127 = vpack.c.b16 %v671, %v663
  %v1128 = vpack.c.b16 %v672, %v664
  %v1129 = vpack.c.b16 %v673, %v665
  %v1130 = vpack.c.b16 %v674, %v666
  %v1131 = vpack.c.b16 %v675, %v667
  %v1132 = vpack.c.b16 %v676, %v668
  %v1133 = vpack.c.b16 %v677, %v669
  %v1134 = vpack.c.b16 %v686, %v678
  %v1135 = vpack.c.b16 %v687, %v679
  %v1136 = vpack.c.b16 %v688, %v680
  %v1137 = vpack.c.b16 %v689, %v681
  %v1138 = vpack.c.b16 %v690, %v682
  %v1139 = vpack.c.b16 %v691, %v683
  %v1140 = vpack.c.b16 %v692, %v684
  %v1141 = vpack.c.b16 %v693, %v685
  %v1142 = vpack.c.b16 %v702, %v694
  %v1143 = vpack.c.b16 %v703, %v695
  %v1144 = vpack.c.b16 %v704, %v696
  %v1145 = vpack.c.b16 %v705, %v697
  %v1146 = vpack.c.b16 %v706, %v698
  %v1147 = vpack.c.b16 %v707, %v699
  %v1148 = vpack.c.b16 %v708, %v700
  %v1149 = vpack.c.b16 %v709, %v701
  %v1150 = vpack.c.b16 %v718, %v710
  %v1151 = vpack.c.b16 %v719, %v711
  %v1152 = vpack.c.b16 %v720, %v712
  %v1153 = vpack.c.b16 %v721, %v713
  %v1154 = vpack.c.b16 %v722, %v714
  %v1155 = vpack.c.b16 %v723, %v715
  %v1156 = vpack.c.b16 %v724, %v716
  %v1157 = vpack.c.b16 %v725, %v717
  %v1158 = vpack.c.b16 %v734, %v726
  %v1159 = vpack.c.b16 %v735, %v727
  %v1160 = vpack.c.b16 %v736, %v728
  %v1161 = vpack.c.b16 %v737, %v729
  %v1162 = vpack.c.b16 %v738, %v730
  %v1163 = vpack.c.b16 %v739, %v731
  %v1164 = vpack.c.b16 %v740, %v732
  %v1165 = vpack.c.b16 %v741, %v733
  %v1166 = vpack.c.b16 %v750, %v742
  %v1167 = vpack.c.b16 %v751, %v743
  %v1168 = vpack.c.b16 %v752, %v744
  %v1169 = vpack.c.b16 %v753, %v745
  %v1170 = vpack.c.b16 %v754, %v746
  %v1171 = vpack.c.b16 %v755, %v747
  %v1172 = vpack.c.b16 %v756, %v748
  %v1173 = vpack.c.b16 %v757, %v749
  %v1174 = vpack.c.b16 %v766, %v758
  %v1175 = vpack.c.b16 %v767, %v759
  %v1176 = vpack.c.b16 %v768, %v760
  %v1177 = vpack.c.b16 %v769, %v761
  %v1178 = vpack.c.b16 %v770, %v762
  %v1179 = vpack.c.b16 %v771, %v763
  %v1180 = vpack.c.b16 %v772, %v764
  %v1181 = vpack.c.b16 %v773, %v765
  %v1182 = vpack.c.b16 %v782, %v774
  %v1183 = vpack.c.b16 %v783, %v775
  %v1184 = vpack.c.b16 %v784, %v776
  %v1185 = vpack.c.b16 %v785, %v777
  %v1186 = vpack.c.b16 %v786, %v778
  %v1187 = vpack.c.b16 %v787, %v779
  %v1188 = vpack.c.b16 %v788, %v780
  %v1189 = vpack.c.b16 %v789, %v781
  %v1190 = vpack.c.b16 %v798, %v790
  %v1191 = vpack.c.b16 %v799, %v791
  %v1192 = vpack.c.b16 %v800, %v792
  %v1193 = vpack.c.b16 %v801, %v793
  %v1194 = vpack.c.b16 %v802, %v794
  %v1195 = vpack.c.b16 %v803, %v795
  %v1196 = vpack.c.b16 %v804, %v796
  %v1197 = vpack.c.b16 %v805, %v797
  %v1198 = vpack.c.b16 %v814, %v806
  %v1199 = vpack.c.b16 %v815, %v807
  %v1200 = vpack.c.b16 %v816, %v808
  %v1201 = vpack.c.b16 %v817, %v809
  %v1202 = vpack.c.b16 %v818, %v810
  %v1203 = vpack.c.b16 %v819, %v811
  %v1204 = vpack.c.b16 %v820, %v812
  %v1205 = vpack.c.b16 %v821, %v813
  %v1206 = vpack.c.b16 %v830, %v822
  %v1207 = vpack.c.b16 %v831, %v823
  %v1208 = vpack.c.b16 %v832, %v824
  %v1209 = vpack.c.b16 %v833, %v825
  %v1210 = vpack.c.b16 %v834, %v826
  %v1211 = vpack.c.b16 %v835, %v827
  %v1212 = vpack.c.b16 %v836, %v828
  %v1213 = vpack.c.b16 %v837, %v829
  %v1214 = vpack.c.b16 %v846, %v838
  %v1215 = vpack.c.b16 %v847, %v839
  %v1216 = vpack.c.b16 %v848, %v840
  %v1217 = vpack.c.b16 %v849, %v841
  %v1218 = vpack.c.b16 %v850, %v842
  %v1219 = vpack.c.b16 %v851, %v843
  %v1220 = vpack.c.b16 %v852, %v844
  %v1221 = vpack.c.b16 %v853, %v845
  %v1222 = vpack.c.b16 %v862, %v854
  %v1223 = vpack.c.b16 %v863, %v855
  %v1224 = vpack.c.b16 %v864, %v856
  %v1225 = vpack.c.b16 %v865, %v857
  %v1226 = vpack.c.b16 %v866, %v858
  %v1227 = vpack.c.b16 %v867, %v859
  %v1228 = vpack.c.b16 %v868, %v860
  %v1229 = vpack.c.b16 %v869, %v861
  %v1230 = vpack.c.b16 %v878, %v870
  %v1231 = vpack.c.b16 %v879, %v871
  %v1232 = vpack.c.b16 %v880, %v872
  %v1233 = vpack.c.b16 %v881, %v873
  %v1234 = vpack.c.b16 %v882, %v874
  %v1235 = vpack.c.b16 %v883, %v875
  %v1236 = vpack.c.b16 %v884, %v876
  %v1237 = vpack.c.b16 %v885, %v877
  %v1238 = vpack.c.b16 %v894, %v886
  %v1239 = vpack.c.b16 %v895, %v887
  %v1240 = vpack.c.b16 %v896, %v888
  %v1241 = vpack.c.b16 %v897, %v889
  %v1242 = vpack.c.b16 %v898, %v890
  %v1243 = vpack.c.b16 %v899, %v891
  %v1244 = vpack.c.b16 %v900, %v892
  %v1245 = vpack.c.b16 %v901, %v893
  %v1246 = vpack.c.b16 %v910, %v902
  %v1247 = vpack.c.b16 %v911, %v903
  %v1248 = vpack.c.b16 %v912, %v904
  %v1249 = vpack.c.b16 %v913, %v905
  %v1250 = vpack.c.b16 %v914, %v906
  %v1251 = vpack.c.b16 %v915, %v907
  %v1252 = vpack.c.b16 %v916, %v908
  %v1253 = vpack.c.b16 %v917, %v909
  %v1254 = vpack.c.b16 %v926, %v918
  %v1255 = vpack.c.b16 %v927, %v919
  %v1256 = vpack.c.b16 %v928, %v920
  %v1257 = vpack.c.b16 %v929, %v921
  %v1258 = vpack.c.b16 %v930, %v922
  %v1259 = vpack.c.b16 %v931, %v923
  %v1260 = vpack.c.b16 %v932, %v924
  %v1261 = vpack.c.b16 %v933, %v925
  %v1262 = vpack.c.b16 %v942, %v934
  %v1263 = vpack.c.b16 %v943, %v935
  %v1264 = vpack.c.b16 %v944, %v936
  %v1265 = vpack.c.b16 %v945, %v937
  %v1266 = vpack.c.b16 %v946, %v938
  %v1267 = vpack.c.b16 %v947, %v939
  %v1268 = vpack.c.b16 %v948, %v940
  %v1269 = vpack.c.b16 %v949, %v941
  %v1270 = vpack.c.b16 %v958, %v950
  %v1271 = vpack.c.b16 %v959, %v951
  %v1272 = vpack.c.b16 %v960, %v952
  %v1273 = vpack.c.b16 %v961, %v953
  %v1274 = vpack.c.b16 %v962, %v954
  %v1275 = vpack.c.b16 %v963, %v955
  %v1276 = vpack.c.b16 %v964, %v956
  %v1277 = vpack.c.b16 %v965, %v957
  %v1278 = vpack.c.b16 %v974, %v966
  %v1279 = vpack.c.b16 %v975, %v967
  %v1280 = vpack.c.b16 %v976, %v968
  %v1281 = vpack.c.b16 %v977, %v969
  %v1282 = vpack.c.b16 %v978, %v970
  %v1283 = vpack.c.b16 %v979, %v971
  %v1284 = vpack.c.b16 %v980, %v972
  %v1285 = vpack.c.b16 %v981, %v973
  %v1286 = vpack.c.b16 %v990, %v982
  %v1287 = vpack.c.b16 %v991, %v983
  %v1288 = vpack.c.b16 %v992, %v984
  %v1289 = vpack.c.b16 %v993, %v985
  %v1290 = vpack.c.b16 %v994, %v986
  %v1291 = vpack.c.b16 %v995, %v987
  %v1292 = vpack.c.b16 %v996, %v988
  %v1293 = vpack.c.b16 %v997, %v989
  %v1294 = vpack.c.b16 %v1006, %v998
  %v1295 = vpack.c.b16 %v1007, %v999
  %v1296 = vpack.c.b16 %v1008, %v1000
  %v1297 = vpack.c.b16 %v1009, %v1001
  %v1298 = vpack.c.b16 %v1010, %v1002
  %v1299 = vpack.c.b16 %v1011, %v1003
  %v1300 = vpack.c.b16 %v1012, %v1004
  %v1301 = vpack.c.b16 %v1013, %v1005
  %v1302 = vpack.c.b16 %v1022, %v1014
  %v1303 = vpack.c.b16 %v1023, %v1015
  %v1304 = vpack.c.b16 %v1024, %v1016
  %v1305 = vpack.c.b16 %v1025, %v1017
  %v1306 = vpack.c.b16 %v1026, %v1018
  %v1307 = vpack.c.b16 %v1027, %v1019
  %v1308 = vpack.c.b16 %v1028, %v1020
  %v1309 = vpack.c.b16 %v1029, %v1021
  %v1310 = vpack.c.b16 %v1038, %v1030
  %v1311 = vpack.c.b16 %v1039, %v1031
  %v1312 = vpack.c.b16 %v1040, %v1032
  %v1313 = vpack.c.b16 %v1041, %v1033
  %v1314 = vpack.c.b16 %v1042, %v1034
  %v1315 = vpack.c.b16 %v1043, %v1035
  %v1316 = vpack.c.b16 %v1044, %v1036
  %v1317 = vpack.c.b16 %v1045, %v1037
  %v1318 = vpack.c.b16 %v1054, %v1046
  %v1319 = vpack.c.b16 %v1055, %v1047
  %v1320 = vpack.c.b16 %v1056, %v1048
  %v1321 = vpack.c.b16 %v1057, %v1049
  %v1322 = vpack.c.b16 %v1058, %v1050
  %v1323 = vpack.c.b16 %v1059, %v1051
  %v1324 = vpack.c.b16 %v1060, %v1052
  %v1325 = vpack.c.b16 %v1061, %v1053
  %v1326 = vpack.c.b16 %v1070, %v1062
  %v1327 = vpack.c.b16 %v1071, %v1063
  %v1328 = vpack.c.b16 %v1072, %v1064
  %v1329 = vpack.c.b16 %v1073, %v1065
  %v1330 = vpack.c.b16 %v1074, %v1066
  %v1331 = vpack.c.b16 %v1075, %v1067
  %v1332 = vpack.c.b16 %v1076, %v1068
  %v1333 = vpack.c.b16 %v1077, %v1069
  %1590 = vmatpush.bf16.msra.mxu0 %v1134
  %1591 = vmatpush.bf16.msra.mxu0 %v1126
  %1592 = vmatpush.bf16.msra.mxu0 %v1118
  %1593 = vmatpush.bf16.msra.mxu0 %v1110
  %1594 = vmatpush.bf16.msra.mxu0 %v1102
  %1595 = vmatpush.bf16.msra.mxu0 %v1094
  %1596 = vmatpush.bf16.msra.mxu0 %v1086
  %1597 = vmatpush.bf16.msra.mxu0 %v1078
  %1598 = vmatmul.bf16.gmra.mxu0 %v302
  %v1599 = vpop.f32.mrf.mxu0
  %v1600 = vadd.f32 %v280, %v1599
  %v1601 = vpop.f32.mrf.mxu0
  %1602 = vdwg.mxu0
  %1603 = vmatpush.bf16.msra.mxu0 %v1198
  %1604 = vmatpush.bf16.msra.mxu0 %v1190
  %1605 = vmatpush.bf16.msra.mxu0 %v1182
  %1606 = vmatpush.bf16.msra.mxu0 %v1174
  %1607 = vmatpush.bf16.msra.mxu0 %v1166
  %1608 = vmatpush.bf16.msra.mxu0 %v1158
  %1609 = vmatpush.bf16.msra.mxu0 %v1150
  %1610 = vmatpush.bf16.msra.mxu0 %v1142
  %1611 = vmatmul.bf16.gmra.mxu0 %v303
  %v1612 = vpop.f32.mrf.mxu0
  %v1613 = vadd.f32 %v1600, %v1612
  %v1614 = vpop.f32.mrf.mxu0
  %1615 = vdwg.mxu0
  %1616 = vmatpush.bf16.msra.mxu0 %v1262
  %1617 = vmatpush.bf16.msra.mxu0 %v1254
  %1618 = vmatpush.bf16.msra.mxu0 %v1246
  %1619 = vmatpush.bf16.msra.mxu0 %v1238
  %1620 = vmatpush.bf16.msra.mxu0 %v1230
  %1621 = vmatpush.bf16.msra.mxu0 %v1222
  %1622 = vmatpush.bf16.msra.mxu0 %v1214
  %1623 = vmatpush.bf16.msra.mxu0 %v1206
  %1624 = vmatmul.bf16.gmra.mxu0 %v304
  %v1625 = vpop.f32.mrf.mxu0
  %v1626 = vadd.f32 %v1613, %v1625
  %v1627 = vpop.f32.mrf.mxu0
  %1628 = vdwg.mxu0
  %1629 = vmatpush.bf16.msra.mxu0 %v1326
  %1630 = vmatpush.bf16.msra.mxu0 %v1318
  %1631 = vmatpush.bf16.msra.mxu0 %v1310
  %1632 = vmatpush.bf16.msra.mxu0 %v1302
  %1633 = vmatpush.bf16.msra.mxu0 %v1294
  %1634 = vmatpush.bf16.msra.mxu0 %v1286
  %1635 = vmatpush.bf16.msra.mxu0 %v1278
  %1636 = vmatpush.bf16.msra.mxu0 %v1270
  %1637 = vmatmul.bf16.gmra.mxu0 %v305
  %v1638 = vpop.f32.mrf.mxu0
  %v1639 = vadd.f32 %v1626, %v1638
  %v1640 = vpop.f32.mrf.mxu0
  %1641 = vdwg.mxu0
  %1642 = vmatpush.bf16.msra.mxu0 %v1135
  %1643 = vmatpush.bf16.msra.mxu0 %v1127
  %1644 = vmatpush.bf16.msra.mxu0 %v1119
  %1645 = vmatpush.bf16.msra.mxu0 %v1111
  %1646 = vmatpush.bf16.msra.mxu0 %v1103
  %1647 = vmatpush.bf16.msra.mxu0 %v1095
  %1648 = vmatpush.bf16.msra.mxu0 %v1087
  %1649 = vmatpush.bf16.msra.mxu0 %v1079
  %1650 = vmatmul.bf16.gmra.mxu0 %v302
  %v1651 = vpop.f32.mrf.mxu0
  %v1652 = vadd.f32 %v281, %v1651
  %v1653 = vpop.f32.mrf.mxu0
  %1654 = vdwg.mxu0
  %1655 = vmatpush.bf16.msra.mxu0 %v1199
  %1656 = vmatpush.bf16.msra.mxu0 %v1191
  %1657 = vmatpush.bf16.msra.mxu0 %v1183
  %1658 = vmatpush.bf16.msra.mxu0 %v1175
  %1659 = vmatpush.bf16.msra.mxu0 %v1167
  %1660 = vmatpush.bf16.msra.mxu0 %v1159
  %1661 = vmatpush.bf16.msra.mxu0 %v1151
  %1662 = vmatpush.bf16.msra.mxu0 %v1143
  %1663 = vmatmul.bf16.gmra.mxu0 %v303
  %v1664 = vpop.f32.mrf.mxu0
  %v1665 = vadd.f32 %v1652, %v1664
  %v1666 = vpop.f32.mrf.mxu0
  %1667 = vdwg.mxu0
  %1668 = vmatpush.bf16.msra.mxu0 %v1263
  %1669 = vmatpush.bf16.msra.mxu0 %v1255
  %1670 = vmatpush.bf16.msra.mxu0 %v1247
  %1671 = vmatpush.bf16.msra.mxu0 %v1239
  %1672 = vmatpush.bf16.msra.mxu0 %v1231
  %1673 = vmatpush.bf16.msra.mxu0 %v1223
  %1674 = vmatpush.bf16.msra.mxu0 %v1215
  %1675 = vmatpush.bf16.msra.mxu0 %v1207
  %1676 = vmatmul.bf16.gmra.mxu0 %v304
  %v1677 = vpop.f32.mrf.mxu0
  %v1678 = vadd.f32 %v1665, %v1677
  %v1679 = vpop.f32.mrf.mxu0
  %1680 = vdwg.mxu0
  %1681 = vmatpush.bf16.msra.mxu0 %v1327
  %1682 = vmatpush.bf16.msra.mxu0 %v1319
  %1683 = vmatpush.bf16.msra.mxu0 %v1311
  %1684 = vmatpush.bf16.msra.mxu0 %v1303
  %1685 = vmatpush.bf16.msra.mxu0 %v1295
  %1686 = vmatpush.bf16.msra.mxu0 %v1287
  %1687 = vmatpush.bf16.msra.mxu0 %v1279
  %1688 = vmatpush.bf16.msra.mxu0 %v1271
  %1689 = vmatmul.bf16.gmra.mxu0 %v305
  %v1690 = vpop.f32.mrf.mxu0
  %v1691 = vadd.f32 %v1678, %v1690
  %v1692 = vpop.f32.mrf.mxu0
  %1693 = vdwg.mxu0
  %1694 = vmatpush.bf16.msra.mxu0 %v1136
  %1695 = vmatpush.bf16.msra.mxu0 %v1128
  %1696 = vmatpush.bf16.msra.mxu0 %v1120
  %1697 = vmatpush.bf16.msra.mxu0 %v1112
  %1698 = vmatpush.bf16.msra.mxu0 %v1104
  %1699 = vmatpush.bf16.msra.mxu0 %v1096
  %1700 = vmatpush.bf16.msra.mxu0 %v1088
  %1701 = vmatpush.bf16.msra.mxu0 %v1080
  %1702 = vmatmul.bf16.gmra.mxu0 %v302
  %v1703 = vpop.f32.mrf.mxu0
  %v1704 = vadd.f32 %v282, %v1703
  %v1705 = vpop.f32.mrf.mxu0
  %1706 = vdwg.mxu0
  %1707 = vmatpush.bf16.msra.mxu0 %v1200
  %1708 = vmatpush.bf16.msra.mxu0 %v1192
  %1709 = vmatpush.bf16.msra.mxu0 %v1184
  %1710 = vmatpush.bf16.msra.mxu0 %v1176
  %1711 = vmatpush.bf16.msra.mxu0 %v1168
  %1712 = vmatpush.bf16.msra.mxu0 %v1160
  %1713 = vmatpush.bf16.msra.mxu0 %v1152
  %1714 = vmatpush.bf16.msra.mxu0 %v1144
  %1715 = vmatmul.bf16.gmra.mxu0 %v303
  %v1716 = vpop.f32.mrf.mxu0
  %v1717 = vadd.f32 %v1704, %v1716
  %v1718 = vpop.f32.mrf.mxu0
  %1719 = vdwg.mxu0
  %1720 = vmatpush.bf16.msra.mxu0 %v1264
  %1721 = vmatpush.bf16.msra.mxu0 %v1256
  %1722 = vmatpush.bf16.msra.mxu0 %v1248
  %1723 = vmatpush.bf16.msra.mxu0 %v1240
  %1724 = vmatpush.bf16.msra.mxu0 %v1232
  %1725 = vmatpush.bf16.msra.mxu0 %v1224
  %1726 = vmatpush.bf16.msra.mxu0 %v1216
  %1727 = vmatpush.bf16.msra.mxu0 %v1208
  %1728 = vmatmul.bf16.gmra.mxu0 %v304
  %v1729 = vpop.f32.mrf.mxu0
  %v1730 = vadd.f32 %v1717, %v1729
  %v1731 = vpop.f32.mrf.mxu0
  %1732 = vdwg.mxu0
  %1733 = vmatpush.bf16.msra.mxu0 %v1328
  %1734 = vmatpush.bf16.msra.mxu0 %v1320
  %1735 = vmatpush.bf16.msra.mxu0 %v1312
  %1736 = vmatpush.bf16.msra.mxu0 %v1304
  %1737 = vmatpush.bf16.msra.mxu0 %v1296
  %1738 = vmatpush.bf16.msra.mxu0 %v1288
  %1739 = vmatpush.bf16.msra.mxu0 %v1280
  %1740 = vmatpush.bf16.msra.mxu0 %v1272
  %1741 = vmatmul.bf16.gmra.mxu0 %v305
  %v1742 = vpop.f32.mrf.mxu0
  %v1743 = vadd.f32 %v1730, %v1742
  %v1744 = vpop.f32.mrf.mxu0
  %1745 = vdwg.mxu0
  %1746 = vmatpush.bf16.msra.mxu0 %v1137
  %1747 = vmatpush.bf16.msra.mxu0 %v1129
  %1748 = vmatpush.bf16.msra.mxu0 %v1121
  %1749 = vmatpush.bf16.msra.mxu0 %v1113
  %1750 = vmatpush.bf16.msra.mxu0 %v1105
  %1751 = vmatpush.bf16.msra.mxu0 %v1097
  %1752 = vmatpush.bf16.msra.mxu0 %v1089
  %1753 = vmatpush.bf16.msra.mxu0 %v1081
  %1754 = vmatmul.bf16.gmra.mxu0 %v302
  %v1755 = vpop.f32.mrf.mxu0
  %v1756 = vadd.f32 %v283, %v1755
  %v1757 = vpop.f32.mrf.mxu0
  %1758 = vdwg.mxu0
  %1759 = vmatpush.bf16.msra.mxu0 %v1201
  %1760 = vmatpush.bf16.msra.mxu0 %v1193
  %1761 = vmatpush.bf16.msra.mxu0 %v1185
  %1762 = vmatpush.bf16.msra.mxu0 %v1177
  %1763 = vmatpush.bf16.msra.mxu0 %v1169
  %1764 = vmatpush.bf16.msra.mxu0 %v1161
  %1765 = vmatpush.bf16.msra.mxu0 %v1153
  %1766 = vmatpush.bf16.msra.mxu0 %v1145
  %1767 = vmatmul.bf16.gmra.mxu0 %v303
  %v1768 = vpop.f32.mrf.mxu0
  %v1769 = vadd.f32 %v1756, %v1768
  %v1770 = vpop.f32.mrf.mxu0
  %1771 = vdwg.mxu0
  %1772 = vmatpush.bf16.msra.mxu0 %v1265
  %1773 = vmatpush.bf16.msra.mxu0 %v1257
  %1774 = vmatpush.bf16.msra.mxu0 %v1249
  %1775 = vmatpush.bf16.msra.mxu0 %v1241
  %1776 = vmatpush.bf16.msra.mxu0 %v1233
  %1777 = vmatpush.bf16.msra.mxu0 %v1225
  %1778 = vmatpush.bf16.msra.mxu0 %v1217
  %1779 = vmatpush.bf16.msra.mxu0 %v1209
  %1780 = vmatmul.bf16.gmra.mxu0 %v304
  %v1781 = vpop.f32.mrf.mxu0
  %v1782 = vadd.f32 %v1769, %v1781
  %v1783 = vpop.f32.mrf.mxu0
  %1784 = vdwg.mxu0
  %1785 = vmatpush.bf16.msra.mxu0 %v1329
  %1786 = vmatpush.bf16.msra.mxu0 %v1321
  %1787 = vmatpush.bf16.msra.mxu0 %v1313
  %1788 = vmatpush.bf16.msra.mxu0 %v1305
  %1789 = vmatpush.bf16.msra.mxu0 %v1297
  %1790 = vmatpush.bf16.msra.mxu0 %v1289
  %1791 = vmatpush.bf16.msra.mxu0 %v1281
  %1792 = vmatpush.bf16.msra.mxu0 %v1273
  %1793 = vmatmul.bf16.gmra.mxu0 %v305
  %v1794 = vpop.f32.mrf.mxu0
  %v1795 = vadd.f32 %v1782, %v1794
  %v1796 = vpop.f32.mrf.mxu0
  %1797 = vdwg.mxu0
  %1798 = vmatpush.bf16.msra.mxu0 %v1138
  %1799 = vmatpush.bf16.msra.mxu0 %v1130
  %1800 = vmatpush.bf16.msra.mxu0 %v1122
  %1801 = vmatpush.bf16.msra.mxu0 %v1114
  %1802 = vmatpush.bf16.msra.mxu0 %v1106
  %1803 = vmatpush.bf16.msra.mxu0 %v1098
  %1804 = vmatpush.bf16.msra.mxu0 %v1090
  %1805 = vmatpush.bf16.msra.mxu0 %v1082
  %1806 = vmatmul.bf16.gmra.mxu0 %v302
  %v1807 = vpop.f32.mrf.mxu0
  %v1808 = vadd.f32 %v284, %v1807
  %v1809 = vpop.f32.mrf.mxu0
  %1810 = vdwg.mxu0
  %1811 = vmatpush.bf16.msra.mxu0 %v1202
  %1812 = vmatpush.bf16.msra.mxu0 %v1194
  %1813 = vmatpush.bf16.msra.mxu0 %v1186
  %1814 = vmatpush.bf16.msra.mxu0 %v1178
  %1815 = vmatpush.bf16.msra.mxu0 %v1170
  %1816 = vmatpush.bf16.msra.mxu0 %v1162
  %1817 = vmatpush.bf16.msra.mxu0 %v1154
  %1818 = vmatpush.bf16.msra.mxu0 %v1146
  %1819 = vmatmul.bf16.gmra.mxu0 %v303
  %v1820 = vpop.f32.mrf.mxu0
  %v1821 = vadd.f32 %v1808, %v1820
  %v1822 = vpop.f32.mrf.mxu0
  %1823 = vdwg.mxu0
  %1824 = vmatpush.bf16.msra.mxu0 %v1266
  %1825 = vmatpush.bf16.msra.mxu0 %v1258
  %1826 = vmatpush.bf16.msra.mxu0 %v1250
  %1827 = vmatpush.bf16.msra.mxu0 %v1242
  %1828 = vmatpush.bf16.msra.mxu0 %v1234
  %1829 = vmatpush.bf16.msra.mxu0 %v1226
  %1830 = vmatpush.bf16.msra.mxu0 %v1218
  %1831 = vmatpush.bf16.msra.mxu0 %v1210
  %1832 = vmatmul.bf16.gmra.mxu0 %v304
  %v1833 = vpop.f32.mrf.mxu0
  %v1834 = vadd.f32 %v1821, %v1833
  %v1835 = vpop.f32.mrf.mxu0
  %1836 = vdwg.mxu0
  %1837 = vmatpush.bf16.msra.mxu0 %v1330
  %1838 = vmatpush.bf16.msra.mxu0 %v1322
  %1839 = vmatpush.bf16.msra.mxu0 %v1314
  %1840 = vmatpush.bf16.msra.mxu0 %v1306
  %1841 = vmatpush.bf16.msra.mxu0 %v1298
  %1842 = vmatpush.bf16.msra.mxu0 %v1290
  %1843 = vmatpush.bf16.msra.mxu0 %v1282
  %1844 = vmatpush.bf16.msra.mxu0 %v1274
  %1845 = vmatmul.bf16.gmra.mxu0 %v305
  %v1846 = vpop.f32.mrf.mxu0
  %v1847 = vadd.f32 %v1834, %v1846
  %v1848 = vpop.f32.mrf.mxu0
  %1849 = vdwg.mxu0
  %1850 = vmatpush.bf16.msra.mxu0 %v1139
  %1851 = vmatpush.bf16.msra.mxu0 %v1131
  %1852 = vmatpush.bf16.msra.mxu0 %v1123
  %1853 = vmatpush.bf16.msra.mxu0 %v1115
  %1854 = vmatpush.bf16.msra.mxu0 %v1107
  %1855 = vmatpush.bf16.msra.mxu0 %v1099
  %1856 = vmatpush.bf16.msra.mxu0 %v1091
  %1857 = vmatpush.bf16.msra.mxu0 %v1083
  %1858 = vmatmul.bf16.gmra.mxu0 %v302
  %v1859 = vpop.f32.mrf.mxu0
  %v1860 = vadd.f32 %v285, %v1859
  %v1861 = vpop.f32.mrf.mxu0
  %1862 = vdwg.mxu0
  %1863 = vmatpush.bf16.msra.mxu0 %v1203
  %1864 = vmatpush.bf16.msra.mxu0 %v1195
  %1865 = vmatpush.bf16.msra.mxu0 %v1187
  %1866 = vmatpush.bf16.msra.mxu0 %v1179
  %1867 = vmatpush.bf16.msra.mxu0 %v1171
  %1868 = vmatpush.bf16.msra.mxu0 %v1163
  %1869 = vmatpush.bf16.msra.mxu0 %v1155
  %1870 = vmatpush.bf16.msra.mxu0 %v1147
  %1871 = vmatmul.bf16.gmra.mxu0 %v303
  %v1872 = vpop.f32.mrf.mxu0
  %v1873 = vadd.f32 %v1860, %v1872
  %v1874 = vpop.f32.mrf.mxu0
  %1875 = vdwg.mxu0
  %1876 = vmatpush.bf16.msra.mxu0 %v1267
  %1877 = vmatpush.bf16.msra.mxu0 %v1259
  %1878 = vmatpush.bf16.msra.mxu0 %v1251
  %1879 = vmatpush.bf16.msra.mxu0 %v1243
  %1880 = vmatpush.bf16.msra.mxu0 %v1235
  %1881 = vmatpush.bf16.msra.mxu0 %v1227
  %1882 = vmatpush.bf16.msra.mxu0 %v1219
  %1883 = vmatpush.bf16.msra.mxu0 %v1211
  %1884 = vmatmul.bf16.gmra.mxu0 %v304
  %v1885 = vpop.f32.mrf.mxu0
  %v1886 = vadd.f32 %v1873, %v1885
  %v1887 = vpop.f32.mrf.mxu0
  %1888 = vdwg.mxu0
  %1889 = vmatpush.bf16.msra.mxu0 %v1331
  %1890 = vmatpush.bf16.msra.mxu0 %v1323
  %1891 = vmatpush.bf16.msra.mxu0 %v1315
  %1892 = vmatpush.bf16.msra.mxu0 %v1307
  %1893 = vmatpush.bf16.msra.mxu0 %v1299
  %1894 = vmatpush.bf16.msra.mxu0 %v1291
  %1895 = vmatpush.bf16.msra.mxu0 %v1283
  %1896 = vmatpush.bf16.msra.mxu0 %v1275
  %1897 = vmatmul.bf16.gmra.mxu0 %v305
  %v1898 = vpop.f32.mrf.mxu0
  %v1899 = vadd.f32 %v1886, %v1898
  %v1900 = vpop.f32.mrf.mxu0
  %1901 = vdwg.mxu0
  %1902 = vmatpush.bf16.msra.mxu0 %v1140
  %1903 = vmatpush.bf16.msra.mxu0 %v1132
  %1904 = vmatpush.bf16.msra.mxu0 %v1124
  %1905 = vmatpush.bf16.msra.mxu0 %v1116
  %1906 = vmatpush.bf16.msra.mxu0 %v1108
  %1907 = vmatpush.bf16.msra.mxu0 %v1100
  %1908 = vmatpush.bf16.msra.mxu0 %v1092
  %1909 = vmatpush.bf16.msra.mxu0 %v1084
  %1910 = vmatmul.bf16.gmra.mxu0 %v302
  %v1911 = vpop.f32.mrf.mxu0
  %v1912 = vadd.f32 %v286, %v1911
  %v1913 = vpop.f32.mrf.mxu0
  %1914 = vdwg.mxu0
  %1915 = vmatpush.bf16.msra.mxu0 %v1204
  %1916 = vmatpush.bf16.msra.mxu0 %v1196
  %1917 = vmatpush.bf16.msra.mxu0 %v1188
  %1918 = vmatpush.bf16.msra.mxu0 %v1180
  %1919 = vmatpush.bf16.msra.mxu0 %v1172
  %1920 = vmatpush.bf16.msra.mxu0 %v1164
  %1921 = vmatpush.bf16.msra.mxu0 %v1156
  %1922 = vmatpush.bf16.msra.mxu0 %v1148
  %1923 = vmatmul.bf16.gmra.mxu0 %v303
  %v1924 = vpop.f32.mrf.mxu0
  %v1925 = vadd.f32 %v1912, %v1924
  %v1926 = vpop.f32.mrf.mxu0
  %1927 = vdwg.mxu0
  %1928 = vmatpush.bf16.msra.mxu0 %v1268
  %1929 = vmatpush.bf16.msra.mxu0 %v1260
  %1930 = vmatpush.bf16.msra.mxu0 %v1252
  %1931 = vmatpush.bf16.msra.mxu0 %v1244
  %1932 = vmatpush.bf16.msra.mxu0 %v1236
  %1933 = vmatpush.bf16.msra.mxu0 %v1228
  %1934 = vmatpush.bf16.msra.mxu0 %v1220
  %1935 = vmatpush.bf16.msra.mxu0 %v1212
  %1936 = vmatmul.bf16.gmra.mxu0 %v304
  %v1937 = vpop.f32.mrf.mxu0
  %v1938 = vadd.f32 %v1925, %v1937
  %v1939 = vpop.f32.mrf.mxu0
  %1940 = vdwg.mxu0
  %1941 = vmatpush.bf16.msra.mxu0 %v1332
  %1942 = vmatpush.bf16.msra.mxu0 %v1324
  %1943 = vmatpush.bf16.msra.mxu0 %v1316
  %1944 = vmatpush.bf16.msra.mxu0 %v1308
  %1945 = vmatpush.bf16.msra.mxu0 %v1300
  %1946 = vmatpush.bf16.msra.mxu0 %v1292
  %1947 = vmatpush.bf16.msra.mxu0 %v1284
  %1948 = vmatpush.bf16.msra.mxu0 %v1276
  %1949 = vmatmul.bf16.gmra.mxu0 %v305
  %v1950 = vpop.f32.mrf.mxu0
  %v1951 = vadd.f32 %v1938, %v1950
  %v1952 = vpop.f32.mrf.mxu0
  %1953 = vdwg.mxu0
  %1954 = vmatpush.bf16.msra.mxu0 %v1141
  %1955 = vmatpush.bf16.msra.mxu0 %v1133
  %1956 = vmatpush.bf16.msra.mxu0 %v1125
  %1957 = vmatpush.bf16.msra.mxu0 %v1117
  %1958 = vmatpush.bf16.msra.mxu0 %v1109
  %1959 = vmatpush.bf16.msra.mxu0 %v1101
  %1960 = vmatpush.bf16.msra.mxu0 %v1093
  %1961 = vmatpush.bf16.msra.mxu0 %v1085
  %1962 = vmatmul.bf16.gmra.mxu0 %v302
  %v1963 = vpop.f32.mrf.mxu0
  %v1964 = vadd.f32 %v287, %v1963
  %v1965 = vpop.f32.mrf.mxu0
  %1966 = vdwg.mxu0
  %1967 = vmatpush.bf16.msra.mxu0 %v1205
  %1968 = vmatpush.bf16.msra.mxu0 %v1197
  %1969 = vmatpush.bf16.msra.mxu0 %v1189
  %1970 = vmatpush.bf16.msra.mxu0 %v1181
  %1971 = vmatpush.bf16.msra.mxu0 %v1173
  %1972 = vmatpush.bf16.msra.mxu0 %v1165
  %1973 = vmatpush.bf16.msra.mxu0 %v1157
  %1974 = vmatpush.bf16.msra.mxu0 %v1149
  %1975 = vmatmul.bf16.gmra.mxu0 %v303
  %v1976 = vpop.f32.mrf.mxu0
  %v1977 = vadd.f32 %v1964, %v1976
  %v1978 = vpop.f32.mrf.mxu0
  %1979 = vdwg.mxu0
  %1980 = vmatpush.bf16.msra.mxu0 %v1269
  %1981 = vmatpush.bf16.msra.mxu0 %v1261
  %1982 = vmatpush.bf16.msra.mxu0 %v1253
  %1983 = vmatpush.bf16.msra.mxu0 %v1245
  %1984 = vmatpush.bf16.msra.mxu0 %v1237
  %1985 = vmatpush.bf16.msra.mxu0 %v1229
  %1986 = vmatpush.bf16.msra.mxu0 %v1221
  %1987 = vmatpush.bf16.msra.mxu0 %v1213
  %1988 = vmatmul.bf16.gmra.mxu0 %v304
  %v1989 = vpop.f32.mrf.mxu0
  %v1990 = vadd.f32 %v1977, %v1989
  %v1991 = vpop.f32.mrf.mxu0
  %1992 = vdwg.mxu0
  %1993 = vmatpush.bf16.msra.mxu0 %v1333
  %1994 = vmatpush.bf16.msra.mxu0 %v1325
  %1995 = vmatpush.bf16.msra.mxu0 %v1317
  %1996 = vmatpush.bf16.msra.mxu0 %v1309
  %1997 = vmatpush.bf16.msra.mxu0 %v1301
  %1998 = vmatpush.bf16.msra.mxu0 %v1293
  %1999 = vmatpush.bf16.msra.mxu0 %v1285
  %2000 = vmatpush.bf16.msra.mxu0 %v1277
  %2001 = vmatmul.bf16.gmra.mxu0 %v305
  %v2002 = vpop.f32.mrf.mxu0
  %v2003 = vadd.f32 %v1990, %v2002
  %v2004 = vpop.f32.mrf.mxu0
  %2005 = vdwg.mxu0
  %v2006 = vpack.c.bf16 %v1691, %v1639
  %v2007 = vpack.c.bf16 %v1795, %v1743
  %v2008 = vpack.c.bf16 %v1899, %v1847
  %v2009 = vpack.c.bf16 %v2003, %v1951
  %v2010 = vunpack.c.l.bf16 %v2006
  %v2011 = vunpack.c.h.bf16 %v2006
  %v2012 = vunpack.c.l.bf16 %v2007
  %v2013 = vunpack.c.h.bf16 %v2007
  %v2014 = vunpack.c.l.bf16 %v2008
  %v2015 = vunpack.c.h.bf16 %v2008
  %v2016 = vunpack.c.l.bf16 %v2009
  %v2017 = vunpack.c.h.bf16 %v2009
  %vm2018 = vcmp.gt.f32.partialorder %v2010, 0.0
  %vm2019 = vcmp.gt.f32.partialorder %v2011, 0.0
  %vm2020 = vcmp.gt.f32.partialorder %v2012, 0.0
  %vm2021 = vcmp.gt.f32.partialorder %v2013, 0.0
  %vm2022 = vcmp.gt.f32.partialorder %v2014, 0.0
  %vm2023 = vcmp.gt.f32.partialorder %v2015, 0.0
  %vm2024 = vcmp.gt.f32.partialorder %v2016, 0.0
  %vm2025 = vcmp.gt.f32.partialorder %v2017, 0.0
  %v2026 = vmul.f32 %v2010, 0.20019531
  %v2027 = vmul.f32 %v2011, 0.20019531
  %v2028 = vmul.f32 %v2012, 0.20019531
  %v2029 = vmul.f32 %v2013, 0.20019531
  %v2030 = vmul.f32 %v2014, 0.20019531
  %v2031 = vmul.f32 %v2015, 0.20019531
  %v2032 = vmul.f32 %v2016, 0.20019531
  %v2033 = vmul.f32 %v2017, 0.20019531
  %v2034 = vpack.c.bf16 %v2027, %v2026
  %v2035 = vpack.c.bf16 %v2029, %v2028
  %v2036 = vpack.c.bf16 %v2031, %v2030
  %v2037 = vpack.c.bf16 %v2033, %v2032
  %vm2038 = vmpackc.low %vm2019, %vm2018
  %vm2039 = vmpackc.low %vm2021, %vm2020
  %vm2040 = vmpackc.low %vm2023, %vm2022
  %vm2041 = vmpackc.low %vm2025, %vm2024
  %v2042 = vsel %vm2038, %v2006, %v2034
  %v2043 = vsel %vm2039, %v2007, %v2035
  %v2044 = vsel %vm2040, %v2008, %v2036
  %v2045 = vsel %vm2041, %v2009, %v2037
  %v2046 = vld [vmem:[%s3] sm:$0xf]
  %v2047 = vld [vmem:[%s3 + $0x4] sm:$0xf]
  %v2048 = vld [vmem:[%s3 + $0x8] sm:$0xf]
  %v2049 = vld [vmem:[%s3 + $0xc] sm:$0xf]
  %v2050 = vld [vmem:[%s3 + $0x10] sm:$0xf]
  %v2051 = vld [vmem:[%s3 + $0x14] sm:$0xf]
  %v2052 = vld [vmem:[%s3 + $0x18] sm:$0xf]
  %v2053 = vld [vmem:[%s3 + $0x1c] sm:$0xf]
  %v2054 = vld [vmem:[%s3 + $0x20] sm:$0xf]
  %v2055 = vld [vmem:[%s3 + $0x24] sm:$0xf]
  %v2056 = vld [vmem:[%s3 + $0x28] sm:$0xf]
  %v2057 = vld [vmem:[%s3 + $0x2c] sm:$0xf]
  %v2058 = vld [vmem:[%s3 + $0x30] sm:$0xf]
  %v2059 = vld [vmem:[%s3 + $0x34] sm:$0xf]
  %v2060 = vld [vmem:[%s3 + $0x38] sm:$0xf]
  %v2061 = vld [vmem:[%s3 + $0x3c] sm:$0xf]
  %v2062 = vld [vmem:[%s3 + $0x40] sm:$0xf]
  %v2063 = vld [vmem:[%s3 + $0x44] sm:$0xf]
  %v2064 = vld [vmem:[%s3 + $0x48] sm:$0xf]
  %v2065 = vld [vmem:[%s3 + $0x4c] sm:$0xf]
  %v2066 = vld [vmem:[%s3 + $0x50] sm:$0xf]
  %v2067 = vld [vmem:[%s3 + $0x54] sm:$0xf]
  %v2068 = vld [vmem:[%s3 + $0x58] sm:$0xf]
  %v2069 = vld [vmem:[%s3 + $0x5c] sm:$0xf]
  %v2070 = vld [vmem:[%s3 + $0x60] sm:$0xf]
  %v2071 = vld [vmem:[%s3 + $0x64] sm:$0xf]
  %v2072 = vld [vmem:[%s3 + $0x68] sm:$0xf]
  %v2073 = vld [vmem:[%s3 + $0x6c] sm:$0xf]
  %v2074 = vld [vmem:[%s3 + $0x70] sm:$0xf]
  %v2075 = vld [vmem:[%s3 + $0x74] sm:$0xf]
  %v2076 = vld [vmem:[%s3 + $0x78] sm:$0xf]
  %v2077 = vld [vmem:[%s3 + $0x7c] sm:$0xf]
  %v2078 = vld [vmem:[%s3 + $0x80] sm:$0xf]
  %v2079 = vld [vmem:[%s3 + $0x84] sm:$0xf]
  %v2080 = vld [vmem:[%s3 + $0x88] sm:$0xf]
  %v2081 = vld [vmem:[%s3 + $0x8c] sm:$0xf]
  %v2082 = vld [vmem:[%s3 + $0x90] sm:$0xf]
  %v2083 = vld [vmem:[%s3 + $0x94] sm:$0xf]
  %v2084 = vld [vmem:[%s3 + $0x98] sm:$0xf]
  %v2085 = vld [vmem:[%s3 + $0x9c] sm:$0xf]
  %v2086 = vld [vmem:[%s3 + $0xa0] sm:$0xf]
  %v2087 = vld [vmem:[%s3 + $0xa4] sm:$0xf]
  %v2088 = vld [vmem:[%s3 + $0xa8] sm:$0xf]
  %v2089 = vld [vmem:[%s3 + $0xac] sm:$0xf]
  %v2090 = vld [vmem:[%s3 + $0xb0] sm:$0xf]
  %v2091 = vld [vmem:[%s3 + $0xb4] sm:$0xf]
  %v2092 = vld [vmem:[%s3 + $0xb8] sm:$0xf]
  %v2093 = vld [vmem:[%s3 + $0xbc] sm:$0xf]
  %v2094 = vld [vmem:[%s3 + $0xc0] sm:$0xf]
  %v2095 = vld [vmem:[%s3 + $0xc4] sm:$0xf]
  %v2096 = vld [vmem:[%s3 + $0xc8] sm:$0xf]
  %v2097 = vld [vmem:[%s3 + $0xcc] sm:$0xf]
  %v2098 = vld [vmem:[%s3 + $0xd0] sm:$0xf]
  %v2099 = vld [vmem:[%s3 + $0xd4] sm:$0xf]
  %v2100 = vld [vmem:[%s3 + $0xd8] sm:$0xf]
  %v2101 = vld [vmem:[%s3 + $0xdc] sm:$0xf]
  %v2102 = vld [vmem:[%s3 + $0xe0] sm:$0xf]
  %v2103 = vld [vmem:[%s3 + $0xe4] sm:$0xf]
  %v2104 = vld [vmem:[%s3 + $0xe8] sm:$0xf]
  %v2105 = vld [vmem:[%s3 + $0xec] sm:$0xf]
  %v2106 = vld [vmem:[%s3 + $0xf0] sm:$0xf]
  %v2107 = vld [vmem:[%s3 + $0xf4] sm:$0xf]
  %v2108 = vld [vmem:[%s3 + $0xf8] sm:$0xf]
  %v2109 = vld [vmem:[%s3 + $0xfc] sm:$0xf]
  %v2110 = vld [vmem:[%s3 + $0x100] sm:$0xf]
  %v2111 = vld [vmem:[%s3 + $0x104] sm:$0xf]
  %v2112 = vld [vmem:[%s3 + $0x108] sm:$0xf]
  %v2113 = vld [vmem:[%s3 + $0x10c] sm:$0xf]
  %v2114 = vld [vmem:[%s3 + $0x110] sm:$0xf]
  %v2115 = vld [vmem:[%s3 + $0x114] sm:$0xf]
  %v2116 = vld [vmem:[%s3 + $0x118] sm:$0xf]
  %v2117 = vld [vmem:[%s3 + $0x11c] sm:$0xf]
  %v2118 = vld [vmem:[%s3 + $0x120] sm:$0xf]
  %v2119 = vld [vmem:[%s3 + $0x124] sm:$0xf]
  %v2120 = vld [vmem:[%s3 + $0x128] sm:$0xf]
  %v2121 = vld [vmem:[%s3 + $0x12c] sm:$0xf]
  %v2122 = vld [vmem:[%s3 + $0x130] sm:$0xf]
  %v2123 = vld [vmem:[%s3 + $0x134] sm:$0xf]
  %v2124 = vld [vmem:[%s3 + $0x138] sm:$0xf]
  %v2125 = vld [vmem:[%s3 + $0x13c] sm:$0xf]
  %v2126 = vld [vmem:[%s3 + $0x140] sm:$0xf]
  %v2127 = vld [vmem:[%s3 + $0x144] sm:$0xf]
  %v2128 = vld [vmem:[%s3 + $0x148] sm:$0xf]
  %v2129 = vld [vmem:[%s3 + $0x14c] sm:$0xf]
  %v2130 = vld [vmem:[%s3 + $0x150] sm:$0xf]
  %v2131 = vld [vmem:[%s3 + $0x154] sm:$0xf]
  %v2132 = vld [vmem:[%s3 + $0x158] sm:$0xf]
  %v2133 = vld [vmem:[%s3 + $0x15c] sm:$0xf]
  %v2134 = vld [vmem:[%s3 + $0x160] sm:$0xf]
  %v2135 = vld [vmem:[%s3 + $0x164] sm:$0xf]
  %v2136 = vld [vmem:[%s3 + $0x168] sm:$0xf]
  %v2137 = vld [vmem:[%s3 + $0x16c] sm:$0xf]
  %v2138 = vld [vmem:[%s3 + $0x170] sm:$0xf]
  %v2139 = vld [vmem:[%s3 + $0x174] sm:$0xf]
  %v2140 = vld [vmem:[%s3 + $0x178] sm:$0xf]
  %v2141 = vld [vmem:[%s3 + $0x17c] sm:$0xf]
  %v2142 = vld [vmem:[%s3 + $0x180] sm:$0xf]
  %v2143 = vld [vmem:[%s3 + $0x184] sm:$0xf]
  %v2144 = vld [vmem:[%s3 + $0x188] sm:$0xf]
  %v2145 = vld [vmem:[%s3 + $0x18c] sm:$0xf]
  %v2146 = vld [vmem:[%s3 + $0x190] sm:$0xf]
  %v2147 = vld [vmem:[%s3 + $0x194] sm:$0xf]
  %v2148 = vld [vmem:[%s3 + $0x198] sm:$0xf]
  %v2149 = vld [vmem:[%s3 + $0x19c] sm:$0xf]
  %v2150 = vld [vmem:[%s3 + $0x1a0] sm:$0xf]
  %v2151 = vld [vmem:[%s3 + $0x1a4] sm:$0xf]
  %v2152 = vld [vmem:[%s3 + $0x1a8] sm:$0xf]
  %v2153 = vld [vmem:[%s3 + $0x1ac] sm:$0xf]
  %v2154 = vld [vmem:[%s3 + $0x1b0] sm:$0xf]
  %v2155 = vld [vmem:[%s3 + $0x1b4] sm:$0xf]
  %v2156 = vld [vmem:[%s3 + $0x1b8] sm:$0xf]
  %v2157 = vld [vmem:[%s3 + $0x1bc] sm:$0xf]
  %v2158 = vld [vmem:[%s3 + $0x1c0] sm:$0xf]
  %v2159 = vld [vmem:[%s3 + $0x1c4] sm:$0xf]
  %v2160 = vld [vmem:[%s3 + $0x1c8] sm:$0xf]
  %v2161 = vld [vmem:[%s3 + $0x1cc] sm:$0xf]
  %v2162 = vld [vmem:[%s3 + $0x1d0] sm:$0xf]
  %v2163 = vld [vmem:[%s3 + $0x1d4] sm:$0xf]
  %v2164 = vld [vmem:[%s3 + $0x1d8] sm:$0xf]
  %v2165 = vld [vmem:[%s3 + $0x1dc] sm:$0xf]
  %v2166 = vld [vmem:[%s3 + $0x1e0] sm:$0xf]
  %v2167 = vld [vmem:[%s3 + $0x1e4] sm:$0xf]
  %v2168 = vld [vmem:[%s3 + $0x1e8] sm:$0xf]
  %v2169 = vld [vmem:[%s3 + $0x1ec] sm:$0xf]
  %v2170 = vld [vmem:[%s3 + $0x1f0] sm:$0xf]
  %v2171 = vld [vmem:[%s3 + $0x1f4] sm:$0xf]
  %v2172 = vld [vmem:[%s3 + $0x1f8] sm:$0xf]
  %v2173 = vld [vmem:[%s3 + $0x1fc] sm:$0xf]
  %v2174 = vld [vmem:[%s4] sm:$0x1]
  %v2176 = vperm.slane %v2174, 0
  %v2182 = vunpack.c.l.b16 %v2042
  %v2183 = vunpack.c.h.b16 %v2042
  %v2184 = vunpack.c.l.b16 %v2043
  %v2185 = vunpack.c.h.b16 %v2043
  %v2186 = vunpack.c.l.b16 %v2044
  %v2187 = vunpack.c.h.b16 %v2044
  %v2188 = vunpack.c.l.b16 %v2045
  %v2189 = vunpack.c.h.b16 %v2045
  %v2190 = vpack.c.b16 %v2182, %v2182
  %v2191 = vpack.c.b16 %v2183, %v2183
  %v2192 = vpack.c.b16 %v2184, %v2184
  %v2193 = vpack.c.b16 %v2185, %v2185
  %v2194 = vpack.c.b16 %v2186, %v2186
  %v2195 = vpack.c.b16 %v2187, %v2187
  %v2196 = vpack.c.b16 %v2188, %v2188
  %v2197 = vpack.c.b16 %v2189, %v2189
  %v2334 = vunpack.c.l.b16 %v2046
  %v2335 = vunpack.c.l.b16 %v2047
  %v2336 = vunpack.c.l.b16 %v2048
  %v2337 = vunpack.c.l.b16 %v2049
  %v2338 = vunpack.c.l.b16 %v2050
  %v2339 = vunpack.c.l.b16 %v2051
  %v2340 = vunpack.c.l.b16 %v2052
  %v2341 = vunpack.c.l.b16 %v2053
  %v2342 = vunpack.c.l.b16 %v2054
  %v2343 = vunpack.c.l.b16 %v2055
  %v2344 = vunpack.c.l.b16 %v2056
  %v2345 = vunpack.c.l.b16 %v2057
  %v2346 = vunpack.c.l.b16 %v2058
  %v2347 = vunpack.c.l.b16 %v2059
  %v2348 = vunpack.c.l.b16 %v2060
  %v2349 = vunpack.c.l.b16 %v2061
  %v2350 = vunpack.c.l.b16 %v2062
  %v2351 = vunpack.c.l.b16 %v2063
  %v2352 = vunpack.c.l.b16 %v2064
  %v2353 = vunpack.c.l.b16 %v2065
  %v2354 = vunpack.c.l.b16 %v2066
  %v2355 = vunpack.c.l.b16 %v2067
  %v2356 = vunpack.c.l.b16 %v2068
  %v2357 = vunpack.c.l.b16 %v2069
  %v2358 = vunpack.c.l.b16 %v2070
  %v2359 = vunpack.c.l.b16 %v2071
  %v2360 = vunpack.c.l.b16 %v2072
  %v2361 = vunpack.c.l.b16 %v2073
  %v2362 = vunpack.c.l.b16 %v2074
  %v2363 = vunpack.c.l.b16 %v2075
  %v2364 = vunpack.c.l.b16 %v2076
  %v2365 = vunpack.c.l.b16 %v2077
  %v2366 = vunpack.c.l.b16 %v2078
  %v2367 = vunpack.c.l.b16 %v2079
  %v2368 = vunpack.c.l.b16 %v2080
  %v2369 = vunpack.c.l.b16 %v2081
  %v2370 = vunpack.c.l.b16 %v2082
  %v2371 = vunpack.c.l.b16 %v2083
  %v2372 = vunpack.c.l.b16 %v2084
  %v2373 = vunpack.c.l.b16 %v2085
  %v2374 = vunpack.c.l.b16 %v2086
  %v2375 = vunpack.c.l.b16 %v2087
  %v2376 = vunpack.c.l.b16 %v2088
  %v2377 = vunpack.c.l.b16 %v2089
  %v2378 = vunpack.c.l.b16 %v2090
  %v2379 = vunpack.c.l.b16 %v2091
  %v2380 = vunpack.c.l.b16 %v2092
  %v2381 = vunpack.c.l.b16 %v2093
  %v2382 = vunpack.c.l.b16 %v2094
  %v2383 = vunpack.c.l.b16 %v2095
  %v2384 = vunpack.c.l.b16 %v2096
  %v2385 = vunpack.c.l.b16 %v2097
  %v2386 = vunpack.c.l.b16 %v2098
  %v2387 = vunpack.c.l.b16 %v2099
  %v2388 = vunpack.c.l.b16 %v2100
  %v2389 = vunpack.c.l.b16 %v2101
  %v2390 = vunpack.c.l.b16 %v2102
  %v2391 = vunpack.c.l.b16 %v2103
  %v2392 = vunpack.c.l.b16 %v2104
  %v2393 = vunpack.c.l.b16 %v2105
  %v2394 = vunpack.c.l.b16 %v2106
  %v2395 = vunpack.c.l.b16 %v2107
  %v2396 = vunpack.c.l.b16 %v2108
  %v2397 = vunpack.c.l.b16 %v2109
  %v2398 = vunpack.c.l.b16 %v2110
  %v2399 = vunpack.c.l.b16 %v2111
  %v2400 = vunpack.c.l.b16 %v2112
  %v2401 = vunpack.c.l.b16 %v2113
  %v2402 = vunpack.c.l.b16 %v2114
  %v2403 = vunpack.c.l.b16 %v2115
  %v2404 = vunpack.c.l.b16 %v2116
  %v2405 = vunpack.c.l.b16 %v2117
  %v2406 = vunpack.c.l.b16 %v2118
  %v2407 = vunpack.c.l.b16 %v2119
  %v2408 = vunpack.c.l.b16 %v2120
  %v2409 = vunpack.c.l.b16 %v2121
  %v2410 = vunpack.c.l.b16 %v2122
  %v2411 = vunpack.c.l.b16 %v2123
  %v2412 = vunpack.c.l.b16 %v2124
  %v2413 = vunpack.c.l.b16 %v2125
  %v2414 = vunpack.c.l.b16 %v2126
  %v2415 = vunpack.c.l.b16 %v2127
  %v2416 = vunpack.c.l.b16 %v2128
  %v2417 = vunpack.c.l.b16 %v2129
  %v2418 = vunpack.c.l.b16 %v2130
  %v2419 = vunpack.c.l.b16 %v2131
  %v2420 = vunpack.c.l.b16 %v2132
  %v2421 = vunpack.c.l.b16 %v2133
  %v2422 = vunpack.c.l.b16 %v2134
  %v2423 = vunpack.c.l.b16 %v2135
  %v2424 = vunpack.c.l.b16 %v2136
  %v2425 = vunpack.c.l.b16 %v2137
  %v2426 = vunpack.c.l.b16 %v2138
  %v2427 = vunpack.c.l.b16 %v2139
  %v2428 = vunpack.c.l.b16 %v2140
  %v2429 = vunpack.c.l.b16 %v2141
  %v2430 = vunpack.c.l.b16 %v2142
  %v2431 = vunpack.c.l.b16 %v2143
  %v2432 = vunpack.c.l.b16 %v2144
  %v2433 = vunpack.c.l.b16 %v2145
  %v2434 = vunpack.c.l.b16 %v2146
  %v2435 = vunpack.c.l.b16 %v2147
  %v2436 = vunpack.c.l.b16 %v2148
  %v2437 = vunpack.c.l.b16 %v2149
  %v2438 = vunpack.c.l.b16 %v2150
  %v2439 = vunpack.c.l.b16 %v2151
  %v2440 = vunpack.c.l.b16 %v2152
  %v2441 = vunpack.c.l.b16 %v2153
  %v2442 = vunpack.c.l.b16 %v2154
  %v2443 = vunpack.c.l.b16 %v2155
  %v2444 = vunpack.c.l.b16 %v2156
  %v2445 = vunpack.c.l.b16 %v2157
  %v2446 = vunpack.c.l.b16 %v2158
  %v2447 = vunpack.c.l.b16 %v2159
  %v2448 = vunpack.c.l.b16 %v2160
  %v2449 = vunpack.c.l.b16 %v2161
  %v2450 = vunpack.c.l.b16 %v2162
  %v2451 = vunpack.c.l.b16 %v2163
  %v2452 = vunpack.c.l.b16 %v2164
  %v2453 = vunpack.c.l.b16 %v2165
  %v2454 = vunpack.c.l.b16 %v2166
  %v2455 = vunpack.c.l.b16 %v2167
  %v2456 = vunpack.c.l.b16 %v2168
  %v2457 = vunpack.c.l.b16 %v2169
  %v2458 = vunpack.c.l.b16 %v2170
  %v2459 = vunpack.c.l.b16 %v2171
  %v2460 = vunpack.c.l.b16 %v2172
  %v2461 = vunpack.c.l.b16 %v2173
  %v2462 = vpack.c.b16 %v2335, %v2334
  %v2463 = vpack.c.b16 %v2337, %v2336
  %v2464 = vpack.c.b16 %v2339, %v2338
  %v2465 = vpack.c.b16 %v2341, %v2340
  %v2466 = vpack.c.b16 %v2343, %v2342
  %v2467 = vpack.c.b16 %v2345, %v2344
  %v2468 = vpack.c.b16 %v2347, %v2346
  %v2469 = vpack.c.b16 %v2349, %v2348
  %v2470 = vpack.c.b16 %v2351, %v2350
  %v2471 = vpack.c.b16 %v2353, %v2352
  %v2472 = vpack.c.b16 %v2355, %v2354
  %v2473 = vpack.c.b16 %v2357, %v2356
  %v2474 = vpack.c.b16 %v2359, %v2358
  %v2475 = vpack.c.b16 %v2361, %v2360
  %v2476 = vpack.c.b16 %v2363, %v2362
  %v2477 = vpack.c.b16 %v2365, %v2364
  %v2478 = vpack.c.b16 %v2367, %v2366
  %v2479 = vpack.c.b16 %v2369, %v2368
  %v2480 = vpack.c.b16 %v2371, %v2370
  %v2481 = vpack.c.b16 %v2373, %v2372
  %v2482 = vpack.c.b16 %v2375, %v2374
  %v2483 = vpack.c.b16 %v2377, %v2376
  %v2484 = vpack.c.b16 %v2379, %v2378
  %v2485 = vpack.c.b16 %v2381, %v2380
  %v2486 = vpack.c.b16 %v2383, %v2382
  %v2487 = vpack.c.b16 %v2385, %v2384
  %v2488 = vpack.c.b16 %v2387, %v2386
  %v2489 = vpack.c.b16 %v2389, %v2388
  %v2490 = vpack.c.b16 %v2391, %v2390
  %v2491 = vpack.c.b16 %v2393, %v2392
  %v2492 = vpack.c.b16 %v2395, %v2394
  %v2493 = vpack.c.b16 %v2397, %v2396
  %v2494 = vpack.c.b16 %v2399, %v2398
  %v2495 = vpack.c.b16 %v2401, %v2400
  %v2496 = vpack.c.b16 %v2403, %v2402
  %v2497 = vpack.c.b16 %v2405, %v2404
  %v2498 = vpack.c.b16 %v2407, %v2406
  %v2499 = vpack.c.b16 %v2409, %v2408
  %v2500 = vpack.c.b16 %v2411, %v2410
  %v2501 = vpack.c.b16 %v2413, %v2412
  %v2502 = vpack.c.b16 %v2415, %v2414
  %v2503 = vpack.c.b16 %v2417, %v2416
  %v2504 = vpack.c.b16 %v2419, %v2418
  %v2505 = vpack.c.b16 %v2421, %v2420
  %v2506 = vpack.c.b16 %v2423, %v2422
  %v2507 = vpack.c.b16 %v2425, %v2424
  %v2508 = vpack.c.b16 %v2427, %v2426
  %v2509 = vpack.c.b16 %v2429, %v2428
  %v2510 = vpack.c.b16 %v2431, %v2430
  %v2511 = vpack.c.b16 %v2433, %v2432
  %v2512 = vpack.c.b16 %v2435, %v2434
  %v2513 = vpack.c.b16 %v2437, %v2436
  %v2514 = vpack.c.b16 %v2439, %v2438
  %v2515 = vpack.c.b16 %v2441, %v2440
  %v2516 = vpack.c.b16 %v2443, %v2442
  %v2517 = vpack.c.b16 %v2445, %v2444
  %v2518 = vpack.c.b16 %v2447, %v2446
  %v2519 = vpack.c.b16 %v2449, %v2448
  %v2520 = vpack.c.b16 %v2451, %v2450
  %v2521 = vpack.c.b16 %v2453, %v2452
  %v2522 = vpack.c.b16 %v2455, %v2454
  %v2523 = vpack.c.b16 %v2457, %v2456
  %v2524 = vpack.c.b16 %v2459, %v2458
  %v2525 = vpack.c.b16 %v2461, %v2460
  %2590 = vmatpush.bf16.msra.mxu0 %v2469
  %2591 = vmatpush.bf16.msra.mxu0 %v2468
  %2592 = vmatpush.bf16.msra.mxu0 %v2467
  %2593 = vmatpush.bf16.msra.mxu0 %v2466
  %2594 = vmatpush.bf16.msra.mxu0 %v2465
  %2595 = vmatpush.bf16.msra.mxu0 %v2464
  %2596 = vmatpush.bf16.msra.mxu0 %v2463
  %2597 = vmatpush.bf16.msra.mxu0 %v2462
  %2598 = vmatmul.bf16.gmra.mxu0 %v2190
  %v2599 = vpop.f32.mrf.mxu0
  %v2600 = vadd.f32 %v2176, %v2599
  %v2601 = vpop.f32.mrf.mxu0
  %2602 = vdwg.mxu0
  %2603 = vmatpush.bf16.msra.mxu0 %v2477
  %2604 = vmatpush.bf16.msra.mxu0 %v2476
  %2605 = vmatpush.bf16.msra.mxu0 %v2475
  %2606 = vmatpush.bf16.msra.mxu0 %v2474
  %2607 = vmatpush.bf16.msra.mxu0 %v2473
  %2608 = vmatpush.bf16.msra.mxu0 %v2472
  %2609 = vmatpush.bf16.msra.mxu0 %v2471
  %2610 = vmatpush.bf16.msra.mxu0 %v2470
  %2611 = vmatmul.bf16.gmra.mxu0 %v2191
  %v2612 = vpop.f32.mrf.mxu0
  %v2613 = vadd.f32 %v2600, %v2612
  %v2614 = vpop.f32.mrf.mxu0
  %2615 = vdwg.mxu0
  %2616 = vmatpush.bf16.msra.mxu0 %v2485
  %2617 = vmatpush.bf16.msra.mxu0 %v2484
  %2618 = vmatpush.bf16.msra.mxu0 %v2483
  %2619 = vmatpush.bf16.msra.mxu0 %v2482
  %2620 = vmatpush.bf16.msra.mxu0 %v2481
  %2621 = vmatpush.bf16.msra.mxu0 %v2480
  %2622 = vmatpush.bf16.msra.mxu0 %v2479
  %2623 = vmatpush.bf16.msra.mxu0 %v2478
  %2624 = vmatmul.bf16.gmra.mxu0 %v2192
  %v2625 = vpop.f32.mrf.mxu0
  %v2626 = vadd.f32 %v2613, %v2625
  %v2627 = vpop.f32.mrf.mxu0
  %2628 = vdwg.mxu0
  %2629 = vmatpush.bf16.msra.mxu0 %v2493
  %2630 = vmatpush.bf16.msra.mxu0 %v2492
  %2631 = vmatpush.bf16.msra.mxu0 %v2491
  %2632 = vmatpush.bf16.msra.mxu0 %v2490
  %2633 = vmatpush.bf16.msra.mxu0 %v2489
  %2634 = vmatpush.bf16.msra.mxu0 %v2488
  %2635 = vmatpush.bf16.msra.mxu0 %v2487
  %2636 = vmatpush.bf16.msra.mxu0 %v2486
  %2637 = vmatmul.bf16.gmra.mxu0 %v2193
  %v2638 = vpop.f32.mrf.mxu0
  %v2639 = vadd.f32 %v2626, %v2638
  %v2640 = vpop.f32.mrf.mxu0
  %2641 = vdwg.mxu0
  %2642 = vmatpush.bf16.msra.mxu0 %v2501
  %2643 = vmatpush.bf16.msra.mxu0 %v2500
  %2644 = vmatpush.bf16.msra.mxu0 %v2499
  %2645 = vmatpush.bf16.msra.mxu0 %v2498
  %2646 = vmatpush.bf16.msra.mxu0 %v2497
  %2647 = vmatpush.bf16.msra.mxu0 %v2496
  %2648 = vmatpush.bf16.msra.mxu0 %v2495
  %2649 = vmatpush.bf16.msra.mxu0 %v2494
  %2650 = vmatmul.bf16.gmra.mxu0 %v2194
  %v2651 = vpop.f32.mrf.mxu0
  %v2652 = vadd.f32 %v2639, %v2651
  %v2653 = vpop.f32.mrf.mxu0
  %2654 = vdwg.mxu0
  %2655 = vmatpush.bf16.msra.mxu0 %v2509
  %2656 = vmatpush.bf16.msra.mxu0 %v2508
  %2657 = vmatpush.bf16.msra.mxu0 %v2507
  %2658 = vmatpush.bf16.msra.mxu0 %v2506
  %2659 = vmatpush.bf16.msra.mxu0 %v2505
  %2660 = vmatpush.bf16.msra.mxu0 %v2504
  %2661 = vmatpush.bf16.msra.mxu0 %v2503
  %2662 = vmatpush.bf16.msra.mxu0 %v2502
  %2663 = vmatmul.bf16.gmra.mxu0 %v2195
  %v2664 = vpop.f32.mrf.mxu0
  %v2665 = vadd.f32 %v2652, %v2664
  %v2666 = vpop.f32.mrf.mxu0
  %2667 = vdwg.mxu0
  %2668 = vmatpush.bf16.msra.mxu0 %v2517
  %2669 = vmatpush.bf16.msra.mxu0 %v2516
  %2670 = vmatpush.bf16.msra.mxu0 %v2515
  %2671 = vmatpush.bf16.msra.mxu0 %v2514
  %2672 = vmatpush.bf16.msra.mxu0 %v2513
  %2673 = vmatpush.bf16.msra.mxu0 %v2512
  %2674 = vmatpush.bf16.msra.mxu0 %v2511
  %2675 = vmatpush.bf16.msra.mxu0 %v2510
  %2676 = vmatmul.bf16.gmra.mxu0 %v2196
  %v2677 = vpop.f32.mrf.mxu0
  %v2678 = vadd.f32 %v2665, %v2677
  %v2679 = vpop.f32.mrf.mxu0
  %2680 = vdwg.mxu0
  %2681 = vmatpush.bf16.msra.mxu0 %v2525
  %2682 = vmatpush.bf16.msra.mxu0 %v2524
  %2683 = vmatpush.bf16.msra.mxu0 %v2523
  %2684 = vmatpush.bf16.msra.mxu0 %v2522
  %2685 = vmatpush.bf16.msra.mxu0 %v2521
  %2686 = vmatpush.bf16.msra.mxu0 %v2520
  %2687 = vmatpush.bf16.msra.mxu0 %v2519
  %2688 = vmatpush.bf16.msra.mxu0 %v2518
  %2689 = vmatmul.bf16.gmra.mxu0 %v2197
  %v2690 = vpop.f32.mrf.mxu0
  %v2691 = vadd.f32 %v2678, %v2690
  %v2692 = vpop.f32.mrf.mxu0
  %2693 = vdwg.mxu0
  %v2694 = vxor.u32 %v2691, 2147483648
  %v2695 = vmul.f32 %v2694, 1.442695
  %v2696 = vpow.pop %v2695
  %v2697 = vadd.f32 %v2696, 1.0
  %v2698 = vrcp.pop %v2697
  %v2699 = vmul.f32 %v2697, %v2698
  %v2700 = vsub.f32 1.0, %v2699
  %v2701 = vmul.f32 %v2698, %v2700
  %v2702 = vadd.f32 %v2698, %v2701
  %vm2703 = vweird.f32 %v2697
  %vm2704 = vweird.f32 %v2698
  %vm2705 = vmor %vm2703, %vm2704
  %v2706 = vsel %vm2705, %v2698, %v2702
  %v2707 = vand.u32 2147483647, %v2697
  %vm2708 = vcmp.eq.f32.partialorder %v2707, 8.507059e+37
  %v2709 = vand.u32 %v2697, 2147483648
  %v2710 = vor.u32 1.1754944e-38, %v2709
  %v2711 = vsel %vm2708, %v2710, %v2706
  %v2712 = vmul.f32 1.0, %v2711
  %2713 = vst [vmem:[%s5] sm:$0xff] %v2712
  // Predicated region
  $region22: #{discriminator_forward.17} parent=0 // pred_check
    _
  $region23: #{discriminator_forward.17} parent=0 // pred_check_branch
    %2715 = sbr.rel (0) target = $region25
  $region24: #{discriminator_forward.17} parent=0 // pred_region
    _
  $region25: #{discriminator_forward.17} parent=0 // pred_fallthru
    _
  // Predicated region
  $region26: #{discriminator_forward.17} parent=0 // pred_check
    _
  $region27: #{discriminator_forward.17} parent=0 // pred_check_branch
    %2717 = sbr.rel (0) target = $region29
  $region28: #{discriminator_forward.17} parent=0 // pred_region
    _
  $region29: #{discriminator_forward.17} parent=0 // pred_fallthru
    _

</llo_original>
